<compile_context>
chip_gen: v7x
topology: tpu7x:2x2x1
jax: 0.10.0
libtpu: 0.0.40
codegen_flags: <defaults>
</compile_context>

<pallas_src>
import functools

import jax
import jax.numpy as jnp
from jax.experimental import pallas as pl
from jax.experimental.pallas import tpu as pltpu

D_MODEL = 32
N_HEADS = 4
HEAD_DIM = D_MODEL // N_HEADS
D_FFN = 64
LN_EPS = 1e-5
INV_SIG_EPS = 1e-5
POSE_PAD = 8            # pose2 output lanes (first 3 are the real xyz deltas)
_LANES = 128

_MXU_DTYPE = jnp.bfloat16  # matmul operand dtype (accumulation stays f32)

# Fixed ordering of per-layer parameter tensors (kernel positional args).
PARAM_ORDER = (
    "sa_qk_w", "sa_qk_b", "sa_v_w", "sa_v_b", "sa_o_w", "sa_o_b",
    "n1_g", "n1_b",
    "ca_q_w", "ca_q_b", "ca_kv_w", "ca_kv_b", "ca_o_w", "ca_o_b",
    "n2_g", "n2_b",
    "ffn1_w", "ffn1_b", "ffn2_w", "ffn2_b",
    "n3_g", "n3_b",
    "pose1_w", "pose1_b", "pose2_w", "pose2_b",
)
_N_PARAMS = len(PARAM_ORDER)
_BF16_WEIGHTS = frozenset(n for n in PARAM_ORDER if n.endswith("_w"))


# ----------------------------- in-kernel helpers -----------------------------

def _linear(x, w, b, relu=False):
    """x: (rows, K) f32/bf16; w: (K, N) bf16 (pre-cast); b: (1, N) f32."""
    y = jnp.dot(x.astype(_MXU_DTYPE), w, preferred_element_type=jnp.float32) + b
    if relu:
        y = jnp.maximum(y, 0.0)
    return y


def _layer_norm(x, g, b):
    mu = jnp.mean(x, axis=-1, keepdims=True)
    var = jnp.mean(jnp.square(x - mu), axis=-1, keepdims=True)
    return (x - mu) * jax.lax.rsqrt(var + LN_EPS) * g + b


def _mha(q, k_b, v_b, wo, bo):
    """Multi-head attention on VMEM-resident tensors.

    q: (Lq, D) f32 (scaled + cast to bf16 once here); k_b/v_b: (Lk, D) bf16
    (cast once by the caller); wo: (D, D) bf16; bo: (1, D) f32.
    Head outputs are lane-concatenated and projected with ONE (Lq,D)@(D,D) matmul.
    """
    q_b = (q * (1.0 / (HEAD_DIM ** 0.5))).astype(_MXU_DTYPE)
    heads = []
    for h in range(N_HEADS):
        sl = slice(h * HEAD_DIM, (h + 1) * HEAD_DIM)
        # scores: contract on head_dim for both operands -> no explicit k.T
        s = jax.lax.dot_general(
            q_b[:, sl], k_b[:, sl],
            dimension_numbers=(((1,), (1,)), ((), ())),
            preferred_element_type=jnp.float32)
        m = jnp.max(s, axis=-1, keepdims=True)
        e = jnp.exp(s - m)
        prob = e * pl.reciprocal(jnp.sum(e, axis=-1, keepdims=True), approx=True)
        heads.append(jnp.dot(prob.astype(_MXU_DTYPE), v_b[:, sl],
                             preferred_element_type=jnp.float32))
    o = jnp.concatenate(heads, axis=-1).astype(_MXU_DTYPE)      # (Lq, D)
    return jnp.dot(o, wo, preferred_element_type=jnp.float32) + bo


def _pack_lane_dense(x):
    """(Q, D) -> (Q*D//128, 128) lane-dense slab via static sublane slices + lane
    concat (avoids a sublane->lane reshape inside the kernel).
    packed[i, k*D:(k+1)*D] == x[k*(Q//f) + i]  with f = 128//D."""
    q, d = x.shape
    f = _LANES // d
    r = q // f
    return jnp.concatenate([x[k * r:(k + 1) * r, :] for k in range(f)], axis=-1)


# ----------------------------- fused decoder kernel -----------------------------

def _decoder_kernel(*refs, num_layers, share_weights, return_intermediate, pack):
    tgt_ref, qp_ref, ref0_ref, src_ref = refs[:4]
    p = dict(zip(PARAM_ORDER, refs[4:4 + _N_PARAMS]))
    out_ref, ref_out_ref = refs[4 + _N_PARAMS:]

    x = tgt_ref[0].astype(jnp.float32)           # (Q, D) activation carry (values)
    qp = qp_ref[0].astype(jnp.float32)           # (Q, D)
    ref_pts = ref0_ref[0].astype(jnp.float32)    # (Q, 3)
    src_b = src_ref[0].astype(_MXU_DTYPE)        # (S, D), cast to bf16 once

    def W(name, li):
        return p[name][0 if share_weights else li]

    def store_x(idx, val):
        out_ref[idx, 0] = (_pack_lane_dense(val) if pack else val).astype(out_ref.dtype)

    # With shared layer weights the cross-attn K/V projection of src is identical
    # every layer -> hoist it out of the layer loop (largest matmul in the layer).
    if share_weights:
        ckv = _linear(src_b, W("ca_kv_w", 0), W("ca_kv_b", 0))   # (S, 2D) fused K/V
        ck_b = ckv[:, :D_MODEL].astype(_MXU_DTYPE)
        cv_b = ckv[:, D_MODEL:].astype(_MXU_DTYPE)

    for li in range(num_layers):
        g = lambda n: W(n, li)  # noqa: E731

        # ---- self-attention: q = k = x + query_pos, v = x (fused Q/K projection) ----
        qk = _linear(x + qp, g("sa_qk_w"), g("sa_qk_b"))          # (Q, 2D)
        v = _linear(x, g("sa_v_w"), g("sa_v_b"))                  # (Q, D)
        sa = _mha(qk[:, :D_MODEL], qk[:, D_MODEL:].astype(_MXU_DTYPE),
                  v.astype(_MXU_DTYPE), g("sa_o_w"), g("sa_o_b"))
        x = _layer_norm(sa + x, g("n1_g"), g("n1_b"))

        # ---- multi-view cross-attention ----
        # TODO(synk): the real MvP layer performs projective/deformable sampling driven
        # by reference_points, meta, src_spatial_shapes, src_valid_ratios; simplified
        # here to dense multi-head cross-attention over the flattened views.
        cq = _linear(x + qp, g("ca_q_w"), g("ca_q_b"))            # (Q, D)
        if not share_weights:
            ckv = _linear(src_b, g("ca_kv_w"), g("ca_kv_b"))      # (S, 2D) fused K/V
            ck_b = ckv[:, :D_MODEL].astype(_MXU_DTYPE)
            cv_b = ckv[:, D_MODEL:].astype(_MXU_DTYPE)
        ca = _mha(cq, ck_b, cv_b, g("ca_o_w"), g("ca_o_b"))
        x = _layer_norm(ca + x, g("n2_g"), g("n2_b"))

        # ---- FFN ----
        h = _linear(x, g("ffn1_w"), g("ffn1_b"), relu=True)
        h = _linear(h, g("ffn2_w"), g("ffn2_b"))
        x = _layer_norm(h + x, g("n3_g"), g("n3_b"))

        # ---- pose head + iterative reference refinement ----
        d = _linear(x, g("pose1_w"), g("pose1_b"), relu=True)
        delta = _linear(d, g("pose2_w"), g("pose2_b"))[:, :3]     # pose2 lane-padded to 8
        rc = jnp.clip(ref_pts, 0.0, 1.0)
        inv_sig = (jnp.log(jnp.maximum(rc, INV_SIG_EPS))
                   - jnp.log(jnp.maximum(1.0 - rc, INV_SIG_EPS)))
        ref_pts = 1.0 / (1.0 + jnp.exp(-(delta + inv_sig)))       # exact sigmoid

        if return_intermediate:
            store_x(li, x)
            ref_out_ref[li, 0] = ref_pts.astype(ref_out_ref.dtype)

    if not return_intermediate:
        # Only the final layer is consumed -> single HBM writeback.
        store_x(0, x)
        ref_out_ref[0, 0] = ref_pts.astype(ref_out_ref.dtype)


# ----------------------------- wrapper -----------------------------

@functools.partial(
    jax.jit,
    static_argnames=("num_layers", "share_weights", "return_intermediate"))
def _mvp_decoder_forward(params, tgt, query_pos, reference_points, src_flat, *,
                         num_layers, share_weights, return_intermediate):
    B, Q, D = tgt.shape
    S = src_flat.shape[1]
    n_out = num_layers if return_intermediate else 1

    # Lane-dense output packing: (Q, D) activation slab stored as (Q*D//128, 128).
    pack = (D < _LANES) and (_LANES % D == 0) and (Q % (_LANES // D) == 0)
    x_block = (Q * D // _LANES, _LANES) if pack else (Q, D)

    def whole(shape):
        nd = len(shape)
        return pl.BlockSpec(tuple(shape), lambda b, _nd=nd: (0,) * _nd)

    in_specs = [
        pl.BlockSpec((1, Q, D), lambda b: (b, 0, 0)),   # tgt
        pl.BlockSpec((1, Q, D), lambda b: (b, 0, 0)),   # query_pos
        pl.BlockSpec((1, Q, 3), lambda b: (b, 0, 0)),   # initial reference points
        pl.BlockSpec((1, S, D), lambda b: (b, 0, 0)),   # flattened multi-view feats
    ] + [whole(params[n].shape) for n in PARAM_ORDER]   # whole weight stacks, VMEM-resident

    out_shape = (
        jax.ShapeDtypeStruct((n_out, B) + x_block, jnp.float32),
        jax.ShapeDtypeStruct((n_out, B, Q, 3), jnp.float32),
    )
    out_specs = (
        pl.BlockSpec((n_out, 1) + x_block, lambda b: (0, b, 0, 0)),
        pl.BlockSpec((n_out, 1, Q, 3), lambda b: (0, b, 0, 0)),
    )

    kernel = functools.partial(
        _decoder_kernel, num_layers=num_layers, share_weights=share_weights,
        return_intermediate=return_intermediate, pack=pack)

    outs, refs = pl.pallas_call(
        kernel,
        out_shape=out_shape,
        grid=(B,),
        in_specs=in_specs,
        out_specs=out_specs,
        compiler_params=pltpu.CompilerParams(dimension_semantics=("parallel",)),
    )(tgt, query_pos, reference_points, src_flat,
      *[params[n] for n in PARAM_ORDER])

    if pack:
        f = _LANES // D
        r = Q // f
        # inverse of _pack_lane_dense: packed[i, k*D+c] == x[k*r + i, c]
        outs = outs.reshape(n_out, B, r, f, D).transpose(0, 1, 3, 2, 4)
        outs = outs.reshape(n_out, B, Q, D)

    if return_intermediate:
        return outs, refs
    return outs[0], refs[0]


# ----------------------------- parameters -----------------------------

def _init_layer_params(key):
    ks = jax.random.split(key, 10)

    def lin(k, fan_in, fan_out):
        w = jax.random.normal(k, (fan_in, fan_out), jnp.float32) * 0.02
        b = jnp.zeros((1, fan_out), jnp.float32)
        return w, b

    p = {}
    p["sa_qk_w"], p["sa_qk_b"] = lin(ks[0], D_MODEL, 2 * D_MODEL)
    p["sa_v_w"], p["sa_v_b"] = lin(ks[1], D_MODEL, D_MODEL)
    p["sa_o_w"], p["sa_o_b"] = lin(ks[2], D_MODEL, D_MODEL)
    p["ca_q_w"], p["ca_q_b"] = lin(ks[3], D_MODEL, D_MODEL)
    p["ca_kv_w"], p["ca_kv_b"] = lin(ks[4], D_MODEL, 2 * D_MODEL)
    p["ca_o_w"], p["ca_o_b"] = lin(ks[5], D_MODEL, D_MODEL)
    p["ffn1_w"], p["ffn1_b"] = lin(ks[6], D_MODEL, D_FFN)
    p["ffn2_w"], p["ffn2_b"] = lin(ks[7], D_FFN, D_MODEL)
    p["pose1_w"], p["pose1_b"] = lin(ks[8], D_MODEL, D_MODEL)
    w2, b2 = lin(ks[9], D_MODEL, 3)
    # pose2 lane-padded (32,3)->(32,POSE_PAD); only first 3 columns are real.
    p["pose2_w"] = jnp.pad(w2, ((0, 0), (0, POSE_PAD - 3)))
    p["pose2_b"] = jnp.pad(b2, ((0, 0), (0, POSE_PAD - 3)))
    for n in ("n1", "n2", "n3"):
        p[n + "_g"] = jnp.ones((1, D_MODEL), jnp.float32)
        p[n + "_b"] = jnp.zeros((1, D_MODEL), jnp.float32)
    return p


def _stack_layer_params(layer_list):
    out = {}
    for k in PARAM_ORDER:
        stacked = jnp.stack([lp[k] for lp in layer_list], axis=0)
        if k in _BF16_WEIGHTS:
            stacked = stacked.astype(_MXU_DTYPE)   # pre-cast matmul weights to bf16
        out[k] = stacked
    return out


# ----------------------------- MvPDecoder -----------------------------

class MvPDecoderPallas:
    def __init__(self, cfg, num_layers, return_intermediate=False, key=None):
        key = jax.random.PRNGKey(0) if key is None else key
        self.share_weights = bool(cfg["DECODER"]["share_layer_weights"])
        if self.share_weights:
            layer_list = [_init_layer_params(key)]          # stored once
        else:
            layer_list = [_init_layer_params(jax.random.fold_in(key, i))
                          for i in range(num_layers)]
        self.params = _stack_layer_params(layer_list)
        self.num_layers = num_layers
        self.return_intermediate = return_intermediate
        self.pose_embed = None
        self.class_embed = None
        self.grid_size = jnp.asarray(cfg["MULTI_PERSON"]["SPACE_SIZE"], jnp.float32)
        self.grid_center = jnp.asarray(cfg["MULTI_PERSON"]["SPACE_CENTER"], jnp.float32)

    def absolute2norm(self, absolute_coords):
        return (absolute_coords - self.grid_center + self.grid_size / 2.0) / self.grid_size

    def norm2absolute(self, norm_coords):
        return norm_coords * self.grid_size + self.grid_center - self.grid_size / 2.0

    def forward(self, tgt, reference_points, src_views, src_views_with_rayembed,
                meta, src_spatial_shapes, src_level_start_index, src_valid_ratios,
                query_pos=None, src_padding_mask=None, rgb_views=None):
        del src_views_with_rayembed, meta, src_spatial_shapes
        del src_level_start_index, src_valid_ratios, src_padding_mask, rgb_views
        B, Q, _ = tgt.shape
        # flatten multi-view features: list over levels of (B, V, HW, D) -> (B, S, D)
        src_flat = jnp.concatenate(
            [s.reshape(B, -1, D_MODEL) for s in src_views], axis=1)
        qp = jnp.zeros_like(tgt) if query_pos is None else query_pos
        return _mvp_decoder_forward(
            self.params, tgt, qp, reference_points, src_flat,
            num_layers=self.num_layers,
            share_weights=self.share_weights,
            return_intermediate=self.return_intermediate)


# ----------------------------- main -----------------------------

if __name__ == "__main__":
    key = jax.random.PRNGKey(0)
    B, Q, V, HW = 2, 16, 2, 32      # batch, queries, views, tokens per view

    cfg = {"DECODER": {"share_layer_weights": False},
           "MULTI_PERSON": {"SPACE_SIZE": [8000.0, 8000.0, 2000.0],
                            "SPACE_CENTER": [0.0, -500.0, 800.0]}}

    k_tgt, k_ref, k_src, k_qp, k_par = jax.random.split(key, 5)
    tgt = jax.random.normal(k_tgt, (B, Q, D_MODEL), jnp.float32)
    reference_points = jax.random.uniform(k_ref, (B, Q, 3), jnp.float32, 0.1, 0.9)
    src_views = [jax.random.normal(k_src, (B, V, HW, D_MODEL), jnp.float32)]
    src_views_with_rayembed = src_views
    query_pos = jax.random.normal(k_qp, (B, Q, D_MODEL), jnp.float32)
    src_spatial_shapes = jnp.array([[4, 8]], jnp.int32)
    src_level_start_index = jnp.array([0], jnp.int32)
    src_valid_ratios = jnp.ones((B, 1, 2), jnp.float32)
    meta = None

    decoder = MvPDecoderPallas(cfg, num_layers=2, return_intermediate=False, key=k_par)
    output, refs = decoder.forward(tgt, reference_points, src_views,
                                   src_views_with_rayembed, meta,
                                   src_spatial_shapes, src_level_start_index,
                                   src_valid_ratios, query_pos=query_pos)
    jax.block_until_ready((output, refs))
    assert output.shape == (B, Q, D_MODEL)
    assert refs.shape == (B, Q, 3)
    assert bool(jnp.all(jnp.isfinite(output)))
    assert bool(jnp.all((refs >= 0.0) & (refs <= 1.0)))
    print("KERNEL_OK")
</pallas_src>

<mosaic_0001>
module attributes {stable_mosaic.version = 11 : i64} {
  func.func @_decoder_kernel(%arg0: i32, %arg1: memref<1x16x32xf32, #tpu.memory_space<vmem>>, %arg2: memref<1x16x32xf32, #tpu.memory_space<vmem>>, %arg3: memref<1x16x3xf32, #tpu.memory_space<vmem>>, %arg4: memref<1x64x32xf32, #tpu.memory_space<vmem>>, %arg5: memref<2x32x64xbf16, #tpu.memory_space<vmem>>, %arg6: memref<2x1x64xf32, #tpu.memory_space<vmem>>, %arg7: memref<2x32x32xbf16, #tpu.memory_space<vmem>>, %arg8: memref<2x1x32xf32, #tpu.memory_space<vmem>>, %arg9: memref<2x32x32xbf16, #tpu.memory_space<vmem>>, %arg10: memref<2x1x32xf32, #tpu.memory_space<vmem>>, %arg11: memref<2x1x32xf32, #tpu.memory_space<vmem>>, %arg12: memref<2x1x32xf32, #tpu.memory_space<vmem>>, %arg13: memref<2x32x32xbf16, #tpu.memory_space<vmem>>, %arg14: memref<2x1x32xf32, #tpu.memory_space<vmem>>, %arg15: memref<2x32x64xbf16, #tpu.memory_space<vmem>>, %arg16: memref<2x1x64xf32, #tpu.memory_space<vmem>>, %arg17: memref<2x32x32xbf16, #tpu.memory_space<vmem>>, %arg18: memref<2x1x32xf32, #tpu.memory_space<vmem>>, %arg19: memref<2x1x32xf32, #tpu.memory_space<vmem>>, %arg20: memref<2x1x32xf32, #tpu.memory_space<vmem>>, %arg21: memref<2x32x64xbf16, #tpu.memory_space<vmem>>, %arg22: memref<2x1x64xf32, #tpu.memory_space<vmem>>, %arg23: memref<2x64x32xbf16, #tpu.memory_space<vmem>>, %arg24: memref<2x1x32xf32, #tpu.memory_space<vmem>>, %arg25: memref<2x1x32xf32, #tpu.memory_space<vmem>>, %arg26: memref<2x1x32xf32, #tpu.memory_space<vmem>>, %arg27: memref<2x32x32xbf16, #tpu.memory_space<vmem>>, %arg28: memref<2x1x32xf32, #tpu.memory_space<vmem>>, %arg29: memref<2x32x8xbf16, #tpu.memory_space<vmem>>, %arg30: memref<2x1x8xf32, #tpu.memory_space<vmem>>, %arg31: memref<1x1x4x128xf32, #tpu.memory_space<vmem>>, %arg32: memref<1x1x16x3xf32, #tpu.memory_space<vmem>>) attributes {dimension_semantics = [#tpu.dimension_semantics<parallel>], iteration_bounds = array<i64: 2>, scalar_prefetch = 0 : i64, scratch_operands = 0 : i64, tpu.core_type = #tpu.core_type<tc>, window_params = [{transform_indices = @transform_0, window_bounds = array<i64: 1, 16, 32>}, {transform_indices = @transform_1, window_bounds = array<i64: 1, 16, 32>}, {transform_indices = @transform_2, window_bounds = array<i64: 1, 16, 3>}, {transform_indices = @transform_3, window_bounds = array<i64: 1, 64, 32>}, {pipeline_mode = #tpu.pipeline_mode<synchronous>, transform_indices = @transform_4, window_bounds = array<i64: 2, 32, 64>}, {pipeline_mode = #tpu.pipeline_mode<synchronous>, transform_indices = @transform_5, window_bounds = array<i64: 2, 1, 64>}, {pipeline_mode = #tpu.pipeline_mode<synchronous>, transform_indices = @transform_6, window_bounds = array<i64: 2, 32, 32>}, {pipeline_mode = #tpu.pipeline_mode<synchronous>, transform_indices = @transform_7, window_bounds = array<i64: 2, 1, 32>}, {pipeline_mode = #tpu.pipeline_mode<synchronous>, transform_indices = @transform_8, window_bounds = array<i64: 2, 32, 32>}, {pipeline_mode = #tpu.pipeline_mode<synchronous>, transform_indices = @transform_9, window_bounds = array<i64: 2, 1, 32>}, {pipeline_mode = #tpu.pipeline_mode<synchronous>, transform_indices = @transform_10, window_bounds = array<i64: 2, 1, 32>}, {pipeline_mode = #tpu.pipeline_mode<synchronous>, transform_indices = @transform_11, window_bounds = array<i64: 2, 1, 32>}, {pipeline_mode = #tpu.pipeline_mode<synchronous>, transform_indices = @transform_12, window_bounds = array<i64: 2, 32, 32>}, {pipeline_mode = #tpu.pipeline_mode<synchronous>, transform_indices = @transform_13, window_bounds = array<i64: 2, 1, 32>}, {pipeline_mode = #tpu.pipeline_mode<synchronous>, transform_indices = @transform_14, window_bounds = array<i64: 2, 32, 64>}, {pipeline_mode = #tpu.pipeline_mode<synchronous>, transform_indices = @transform_15, window_bounds = array<i64: 2, 1, 64>}, {pipeline_mode = #tpu.pipeline_mode<synchronous>, transform_indices = @transform_16, window_bounds = array<i64: 2, 32, 32>}, {pipeline_mode = #tpu.pipeline_mode<synchronous>, transform_indices = @transform_17, window_bounds = array<i64: 2, 1, 32>}, {pipeline_mode = #tpu.pipeline_mode<synchronous>, transform_indices = @transform_18, window_bounds = array<i64: 2, 1, 32>}, {pipeline_mode = #tpu.pipeline_mode<synchronous>, transform_indices = @transform_19, window_bounds = array<i64: 2, 1, 32>}, {pipeline_mode = #tpu.pipeline_mode<synchronous>, transform_indices = @transform_20, window_bounds = array<i64: 2, 32, 64>}, {pipeline_mode = #tpu.pipeline_mode<synchronous>, transform_indices = @transform_21, window_bounds = array<i64: 2, 1, 64>}, {pipeline_mode = #tpu.pipeline_mode<synchronous>, transform_indices = @transform_22, window_bounds = array<i64: 2, 64, 32>}, {pipeline_mode = #tpu.pipeline_mode<synchronous>, transform_indices = @transform_23, window_bounds = array<i64: 2, 1, 32>}, {pipeline_mode = #tpu.pipeline_mode<synchronous>, transform_indices = @transform_24, window_bounds = array<i64: 2, 1, 32>}, {pipeline_mode = #tpu.pipeline_mode<synchronous>, transform_indices = @transform_25, window_bounds = array<i64: 2, 1, 32>}, {pipeline_mode = #tpu.pipeline_mode<synchronous>, transform_indices = @transform_26, window_bounds = array<i64: 2, 32, 32>}, {pipeline_mode = #tpu.pipeline_mode<synchronous>, transform_indices = @transform_27, window_bounds = array<i64: 2, 1, 32>}, {pipeline_mode = #tpu.pipeline_mode<synchronous>, transform_indices = @transform_28, window_bounds = array<i64: 2, 32, 8>}, {pipeline_mode = #tpu.pipeline_mode<synchronous>, transform_indices = @transform_29, window_bounds = array<i64: 2, 1, 8>}, {transform_indices = @transform_30, window_bounds = array<i64: 1, 1, 4, 128>}, {transform_indices = @transform_31, window_bounds = array<i64: 1, 1, 16, 3>}]} {
    %c0 = arith.constant 0 : index
    %c0_0 = arith.constant 0 : index
    %c0_1 = arith.constant 0 : index
    %0 = vector.load %arg1[%c0, %c0_0, %c0_1] : memref<1x16x32xf32, #tpu.memory_space<vmem>>, vector<1x16x32xf32>
    %1 = vector.shape_cast %0 : vector<1x16x32xf32> to vector<16x32xf32>
    %c0_2 = arith.constant 0 : index
    %c0_3 = arith.constant 0 : index
    %c0_4 = arith.constant 0 : index
    %2 = vector.load %arg2[%c0_2, %c0_3, %c0_4] : memref<1x16x32xf32, #tpu.memory_space<vmem>>, vector<1x16x32xf32>
    %3 = vector.shape_cast %2 : vector<1x16x32xf32> to vector<16x32xf32>
    %c0_5 = arith.constant 0 : index
    %c0_6 = arith.constant 0 : index
    %c0_7 = arith.constant 0 : index
    %4 = vector.load %arg3[%c0_5, %c0_6, %c0_7] : memref<1x16x3xf32, #tpu.memory_space<vmem>>, vector<1x16x3xf32>
    %5 = vector.shape_cast %4 : vector<1x16x3xf32> to vector<16x3xf32>
    %c0_8 = arith.constant 0 : index
    %c0_9 = arith.constant 0 : index
    %c0_10 = arith.constant 0 : index
    %6 = vector.load %arg4[%c0_8, %c0_9, %c0_10] : memref<1x64x32xf32, #tpu.memory_space<vmem>>, vector<1x64x32xf32>
    %7 = vector.shape_cast %6 : vector<1x64x32xf32> to vector<64x32xf32>
    %8 = arith.truncf %7 : vector<64x32xf32> to vector<64x32xbf16>
    %9 = arith.addf %1, %3 : vector<16x32xf32>
    %c0_11 = arith.constant 0 : index
    %c0_12 = arith.constant 0 : index
    %c0_13 = arith.constant 0 : index
    %10 = vector.load %arg5[%c0_11, %c0_12, %c0_13] : memref<2x32x64xbf16, #tpu.memory_space<vmem>>, vector<1x32x64xbf16>
    %11 = vector.shape_cast %10 : vector<1x32x64xbf16> to vector<32x64xbf16>
    %c0_14 = arith.constant 0 : index
    %c0_15 = arith.constant 0 : index
    %c0_16 = arith.constant 0 : index
    %12 = vector.load %arg6[%c0_14, %c0_15, %c0_16] : memref<2x1x64xf32, #tpu.memory_space<vmem>>, vector<1x1x64xf32>
    %13 = vector.shape_cast %12 : vector<1x1x64xf32> to vector<1x64xf32>
    %14 = arith.truncf %9 : vector<16x32xf32> to vector<16x32xbf16>
    %cst = arith.constant dense<0.000000e+00> : vector<16x64xf32>
    %15 = tpu.matmul %14, %11, %cst {dimension_numbers = #tpu.dot_dimension_numbers<[1], [0], [0], [1], [0, 0, 1, 1], [], []>} : vector<16x32xbf16>, vector<32x64xbf16>, vector<16x64xf32> -> vector<16x64xf32>
    %16 = vector.broadcast %13 : vector<1x64xf32> to vector<16x64xf32>
    %17 = arith.addf %15, %16 : vector<16x64xf32>
    %c0_17 = arith.constant 0 : index
    %c0_18 = arith.constant 0 : index
    %c0_19 = arith.constant 0 : index
    %18 = vector.load %arg7[%c0_17, %c0_18, %c0_19] : memref<2x32x32xbf16, #tpu.memory_space<vmem>>, vector<1x32x32xbf16>
    %19 = vector.shape_cast %18 : vector<1x32x32xbf16> to vector<32x32xbf16>
    %c0_20 = arith.constant 0 : index
    %c0_21 = arith.constant 0 : index
    %c0_22 = arith.constant 0 : index
    %20 = vector.load %arg8[%c0_20, %c0_21, %c0_22] : memref<2x1x32xf32, #tpu.memory_space<vmem>>, vector<1x1x32xf32>
    %21 = vector.shape_cast %20 : vector<1x1x32xf32> to vector<1x32xf32>
    %22 = arith.truncf %1 : vector<16x32xf32> to vector<16x32xbf16>
    %cst_23 = arith.constant dense<0.000000e+00> : vector<16x32xf32>
    %23 = tpu.matmul %22, %19, %cst_23 {dimension_numbers = #tpu.dot_dimension_numbers<[1], [0], [0], [1], [0, 0, 1, 1], [], []>} : vector<16x32xbf16>, vector<32x32xbf16>, vector<16x32xf32> -> vector<16x32xf32>
    %24 = vector.broadcast %21 : vector<1x32xf32> to vector<16x32xf32>
    %25 = arith.addf %23, %24 : vector<16x32xf32>
    %26 = vector.extract_strided_slice %17 {offsets = [0, 0], sizes = [16, 32], strides = [1, 1]} : vector<16x64xf32> to vector<16x32xf32>
    %27 = vector.extract_strided_slice %17 {offsets = [0, 32], sizes = [16, 32], strides = [1, 1]} : vector<16x64xf32> to vector<16x32xf32>
    %28 = arith.truncf %27 : vector<16x32xf32> to vector<16x32xbf16>
    %29 = arith.truncf %25 : vector<16x32xf32> to vector<16x32xbf16>
    %c0_24 = arith.constant 0 : index
    %c0_25 = arith.constant 0 : index
    %c0_26 = arith.constant 0 : index
    %30 = vector.load %arg9[%c0_24, %c0_25, %c0_26] : memref<2x32x32xbf16, #tpu.memory_space<vmem>>, vector<1x32x32xbf16>
    %31 = vector.shape_cast %30 : vector<1x32x32xbf16> to vector<32x32xbf16>
    %c0_27 = arith.constant 0 : index
    %c0_28 = arith.constant 0 : index
    %c0_29 = arith.constant 0 : index
    %32 = vector.load %arg10[%c0_27, %c0_28, %c0_29] : memref<2x1x32xf32, #tpu.memory_space<vmem>>, vector<1x1x32xf32>
    %33 = vector.shape_cast %32 : vector<1x1x32xf32> to vector<1x32xf32>
    %cst_30 = arith.constant 0.353553385 : f32
    %34 = vector.broadcast %cst_30 : f32 to vector<16x32xf32>
    %35 = arith.mulf %26, %34 : vector<16x32xf32>
    %36 = arith.truncf %35 : vector<16x32xf32> to vector<16x32xbf16>
    %37 = vector.extract_strided_slice %36 {offsets = [0, 0], sizes = [16, 8], strides = [1, 1]} : vector<16x32xbf16> to vector<16x8xbf16>
    %38 = vector.extract_strided_slice %28 {offsets = [0, 0], sizes = [16, 8], strides = [1, 1]} : vector<16x32xbf16> to vector<16x8xbf16>
    %cst_31 = arith.constant dense<0.000000e+00> : vector<16x16xf32>
    %39 = tpu.matmul %37, %38, %cst_31 {dimension_numbers = #tpu.dot_dimension_numbers<[1], [1], [0], [0], [0, 0, 1, 0], [], []>} : vector<16x8xbf16>, vector<16x8xbf16>, vector<16x16xf32> -> vector<16x16xf32>
    %cst_32 = arith.constant dense<0xFF800000> : vector<16xf32>
    %40 = vector.multi_reduction <maximumf>, %39, %cst_32 [1] : vector<16x16xf32> to vector<16xf32>
    %41 = vector.shape_cast %40 : vector<16xf32> to vector<16x1xf32>
    %42 = vector.broadcast %41 : vector<16x1xf32> to vector<16x16xf32>
    %43 = arith.subf %39, %42 : vector<16x16xf32>
    %44 = math.exp %43 : vector<16x16xf32>
    %cst_33 = arith.constant dense<0.000000e+00> : vector<16xf32>
    %45 = vector.multi_reduction <add>, %44, %cst_33 [1] : vector<16x16xf32> to vector<16xf32>
    %46 = vector.shape_cast %45 : vector<16xf32> to vector<16x1xf32>
    %47 = tpu.reciprocal %46 {approx = true} : vector<16x1xf32> -> vector<16x1xf32>
    %48 = vector.broadcast %47 : vector<16x1xf32> to vector<16x16xf32>
    %49 = arith.mulf %44, %48 : vector<16x16xf32>
    %50 = arith.truncf %49 : vector<16x16xf32> to vector<16x16xbf16>
    %51 = vector.extract_strided_slice %29 {offsets = [0, 0], sizes = [16, 8], strides = [1, 1]} : vector<16x32xbf16> to vector<16x8xbf16>
    %cst_34 = arith.constant dense<0.000000e+00> : vector<16x8xf32>
    %52 = tpu.matmul %50, %51, %cst_34 {dimension_numbers = #tpu.dot_dimension_numbers<[1], [0], [0], [1], [0, 0, 1, 1], [], []>} : vector<16x16xbf16>, vector<16x8xbf16>, vector<16x8xf32> -> vector<16x8xf32>
    %53 = vector.extract_strided_slice %36 {offsets = [0, 8], sizes = [16, 8], strides = [1, 1]} : vector<16x32xbf16> to vector<16x8xbf16>
    %54 = vector.extract_strided_slice %28 {offsets = [0, 8], sizes = [16, 8], strides = [1, 1]} : vector<16x32xbf16> to vector<16x8xbf16>
    %cst_35 = arith.constant dense<0.000000e+00> : vector<16x16xf32>
    %55 = tpu.matmul %53, %54, %cst_35 {dimension_numbers = #tpu.dot_dimension_numbers<[1], [1], [0], [0], [0, 0, 1, 0], [], []>} : vector<16x8xbf16>, vector<16x8xbf16>, vector<16x16xf32> -> vector<16x16xf32>
    %cst_36 = arith.constant dense<0xFF800000> : vector<16xf32>
    %56 = vector.multi_reduction <maximumf>, %55, %cst_36 [1] : vector<16x16xf32> to vector<16xf32>
    %57 = vector.shape_cast %56 : vector<16xf32> to vector<16x1xf32>
    %58 = vector.broadcast %57 : vector<16x1xf32> to vector<16x16xf32>
    %59 = arith.subf %55, %58 : vector<16x16xf32>
    %60 = math.exp %59 : vector<16x16xf32>
    %cst_37 = arith.constant dense<0.000000e+00> : vector<16xf32>
    %61 = vector.multi_reduction <add>, %60, %cst_37 [1] : vector<16x16xf32> to vector<16xf32>
    %62 = vector.shape_cast %61 : vector<16xf32> to vector<16x1xf32>
    %63 = tpu.reciprocal %62 {approx = true} : vector<16x1xf32> -> vector<16x1xf32>
    %64 = vector.broadcast %63 : vector<16x1xf32> to vector<16x16xf32>
    %65 = arith.mulf %60, %64 : vector<16x16xf32>
    %66 = arith.truncf %65 : vector<16x16xf32> to vector<16x16xbf16>
    %67 = vector.extract_strided_slice %29 {offsets = [0, 8], sizes = [16, 8], strides = [1, 1]} : vector<16x32xbf16> to vector<16x8xbf16>
    %cst_38 = arith.constant dense<0.000000e+00> : vector<16x8xf32>
    %68 = tpu.matmul %66, %67, %cst_38 {dimension_numbers = #tpu.dot_dimension_numbers<[1], [0], [0], [1], [0, 0, 1, 1], [], []>} : vector<16x16xbf16>, vector<16x8xbf16>, vector<16x8xf32> -> vector<16x8xf32>
    %69 = vector.extract_strided_slice %36 {offsets = [0, 16], sizes = [16, 8], strides = [1, 1]} : vector<16x32xbf16> to vector<16x8xbf16>
    %70 = vector.extract_strided_slice %28 {offsets = [0, 16], sizes = [16, 8], strides = [1, 1]} : vector<16x32xbf16> to vector<16x8xbf16>
    %cst_39 = arith.constant dense<0.000000e+00> : vector<16x16xf32>
    %71 = tpu.matmul %69, %70, %cst_39 {dimension_numbers = #tpu.dot_dimension_numbers<[1], [1], [0], [0], [0, 0, 1, 0], [], []>} : vector<16x8xbf16>, vector<16x8xbf16>, vector<16x16xf32> -> vector<16x16xf32>
    %cst_40 = arith.constant dense<0xFF800000> : vector<16xf32>
    %72 = vector.multi_reduction <maximumf>, %71, %cst_40 [1] : vector<16x16xf32> to vector<16xf32>
    %73 = vector.shape_cast %72 : vector<16xf32> to vector<16x1xf32>
    %74 = vector.broadcast %73 : vector<16x1xf32> to vector<16x16xf32>
    %75 = arith.subf %71, %74 : vector<16x16xf32>
    %76 = math.exp %75 : vector<16x16xf32>
    %cst_41 = arith.constant dense<0.000000e+00> : vector<16xf32>
    %77 = vector.multi_reduction <add>, %76, %cst_41 [1] : vector<16x16xf32> to vector<16xf32>
    %78 = vector.shape_cast %77 : vector<16xf32> to vector<16x1xf32>
    %79 = tpu.reciprocal %78 {approx = true} : vector<16x1xf32> -> vector<16x1xf32>
    %80 = vector.broadcast %79 : vector<16x1xf32> to vector<16x16xf32>
    %81 = arith.mulf %76, %80 : vector<16x16xf32>
    %82 = arith.truncf %81 : vector<16x16xf32> to vector<16x16xbf16>
    %83 = vector.extract_strided_slice %29 {offsets = [0, 16], sizes = [16, 8], strides = [1, 1]} : vector<16x32xbf16> to vector<16x8xbf16>
    %cst_42 = arith.constant dense<0.000000e+00> : vector<16x8xf32>
    %84 = tpu.matmul %82, %83, %cst_42 {dimension_numbers = #tpu.dot_dimension_numbers<[1], [0], [0], [1], [0, 0, 1, 1], [], []>} : vector<16x16xbf16>, vector<16x8xbf16>, vector<16x8xf32> -> vector<16x8xf32>
    %85 = vector.extract_strided_slice %36 {offsets = [0, 24], sizes = [16, 8], strides = [1, 1]} : vector<16x32xbf16> to vector<16x8xbf16>
    %86 = vector.extract_strided_slice %28 {offsets = [0, 24], sizes = [16, 8], strides = [1, 1]} : vector<16x32xbf16> to vector<16x8xbf16>
    %cst_43 = arith.constant dense<0.000000e+00> : vector<16x16xf32>
    %87 = tpu.matmul %85, %86, %cst_43 {dimension_numbers = #tpu.dot_dimension_numbers<[1], [1], [0], [0], [0, 0, 1, 0], [], []>} : vector<16x8xbf16>, vector<16x8xbf16>, vector<16x16xf32> -> vector<16x16xf32>
    %cst_44 = arith.constant dense<0xFF800000> : vector<16xf32>
    %88 = vector.multi_reduction <maximumf>, %87, %cst_44 [1] : vector<16x16xf32> to vector<16xf32>
    %89 = vector.shape_cast %88 : vector<16xf32> to vector<16x1xf32>
    %90 = vector.broadcast %89 : vector<16x1xf32> to vector<16x16xf32>
    %91 = arith.subf %87, %90 : vector<16x16xf32>
    %92 = math.exp %91 : vector<16x16xf32>
    %cst_45 = arith.constant dense<0.000000e+00> : vector<16xf32>
    %93 = vector.multi_reduction <add>, %92, %cst_45 [1] : vector<16x16xf32> to vector<16xf32>
    %94 = vector.shape_cast %93 : vector<16xf32> to vector<16x1xf32>
    %95 = tpu.reciprocal %94 {approx = true} : vector<16x1xf32> -> vector<16x1xf32>
    %96 = vector.broadcast %95 : vector<16x1xf32> to vector<16x16xf32>
    %97 = arith.mulf %92, %96 : vector<16x16xf32>
    %98 = arith.truncf %97 : vector<16x16xf32> to vector<16x16xbf16>
    %99 = vector.extract_strided_slice %29 {offsets = [0, 24], sizes = [16, 8], strides = [1, 1]} : vector<16x32xbf16> to vector<16x8xbf16>
    %cst_46 = arith.constant dense<0.000000e+00> : vector<16x8xf32>
    %100 = tpu.matmul %98, %99, %cst_46 {dimension_numbers = #tpu.dot_dimension_numbers<[1], [0], [0], [1], [0, 0, 1, 1], [], []>} : vector<16x16xbf16>, vector<16x8xbf16>, vector<16x8xf32> -> vector<16x8xf32>
    %101 = tpu.concatenate %52, %68, %84, %100 in 1 : vector<16x8xf32>, vector<16x8xf32>, vector<16x8xf32>, vector<16x8xf32> -> vector<16x32xf32>
    %102 = arith.truncf %101 : vector<16x32xf32> to vector<16x32xbf16>
    %cst_47 = arith.constant dense<0.000000e+00> : vector<16x32xf32>
    %103 = tpu.matmul %102, %31, %cst_47 {dimension_numbers = #tpu.dot_dimension_numbers<[1], [0], [0], [1], [0, 0, 1, 1], [], []>} : vector<16x32xbf16>, vector<32x32xbf16>, vector<16x32xf32> -> vector<16x32xf32>
    %104 = vector.broadcast %33 : vector<1x32xf32> to vector<16x32xf32>
    %105 = arith.addf %103, %104 : vector<16x32xf32>
    %106 = arith.addf %105, %1 : vector<16x32xf32>
    %c0_48 = arith.constant 0 : index
    %c0_49 = arith.constant 0 : index
    %c0_50 = arith.constant 0 : index
    %107 = vector.load %arg11[%c0_48, %c0_49, %c0_50] : memref<2x1x32xf32, #tpu.memory_space<vmem>>, vector<1x1x32xf32>
    %108 = vector.shape_cast %107 : vector<1x1x32xf32> to vector<1x32xf32>
    %c0_51 = arith.constant 0 : index
    %c0_52 = arith.constant 0 : index
    %c0_53 = arith.constant 0 : index
    %109 = vector.load %arg12[%c0_51, %c0_52, %c0_53] : memref<2x1x32xf32, #tpu.memory_space<vmem>>, vector<1x1x32xf32>
    %110 = vector.shape_cast %109 : vector<1x1x32xf32> to vector<1x32xf32>
    %cst_54 = arith.constant dense<0.000000e+00> : vector<16xf32>
    %111 = vector.multi_reduction <add>, %106, %cst_54 [1] : vector<16x32xf32> to vector<16xf32>
    %112 = vector.shape_cast %111 : vector<16xf32> to vector<16x1xf32>
    %cst_55 = arith.constant 3.200000e+01 : f32
    %113 = vector.broadcast %cst_55 : f32 to vector<16x1xf32>
    %114 = arith.divf %112, %113 : vector<16x1xf32>
    %115 = vector.broadcast %114 : vector<16x1xf32> to vector<16x32xf32>
    %116 = arith.subf %106, %115 : vector<16x32xf32>
    %117 = arith.mulf %116, %116 : vector<16x32xf32>
    %cst_56 = arith.constant dense<0.000000e+00> : vector<16xf32>
    %118 = vector.multi_reduction <add>, %117, %cst_56 [1] : vector<16x32xf32> to vector<16xf32>
    %119 = vector.shape_cast %118 : vector<16xf32> to vector<16x1xf32>
    %cst_57 = arith.constant 3.200000e+01 : f32
    %120 = vector.broadcast %cst_57 : f32 to vector<16x1xf32>
    %121 = arith.divf %119, %120 : vector<16x1xf32>
    %122 = vector.broadcast %114 : vector<16x1xf32> to vector<16x32xf32>
    %123 = arith.subf %106, %122 : vector<16x32xf32>
    %cst_58 = arith.constant 9.99999974E-6 : f32
    %124 = vector.broadcast %cst_58 : f32 to vector<16x1xf32>
    %125 = arith.addf %121, %124 : vector<16x1xf32>
    %126 = math.rsqrt %125 : vector<16x1xf32>
    %127 = vector.broadcast %126 : vector<16x1xf32> to vector<16x32xf32>
    %128 = arith.mulf %123, %127 : vector<16x32xf32>
    %129 = vector.broadcast %108 : vector<1x32xf32> to vector<16x32xf32>
    %130 = arith.mulf %128, %129 : vector<16x32xf32>
    %131 = vector.broadcast %110 : vector<1x32xf32> to vector<16x32xf32>
    %132 = arith.addf %130, %131 : vector<16x32xf32>
    %133 = arith.addf %132, %3 : vector<16x32xf32>
    %c0_59 = arith.constant 0 : index
    %c0_60 = arith.constant 0 : index
    %c0_61 = arith.constant 0 : index
    %134 = vector.load %arg13[%c0_59, %c0_60, %c0_61] : memref<2x32x32xbf16, #tpu.memory_space<vmem>>, vector<1x32x32xbf16>
    %135 = vector.shape_cast %134 : vector<1x32x32xbf16> to vector<32x32xbf16>
    %c0_62 = arith.constant 0 : index
    %c0_63 = arith.constant 0 : index
    %c0_64 = arith.constant 0 : index
    %136 = vector.load %arg14[%c0_62, %c0_63, %c0_64] : memref<2x1x32xf32, #tpu.memory_space<vmem>>, vector<1x1x32xf32>
    %137 = vector.shape_cast %136 : vector<1x1x32xf32> to vector<1x32xf32>
    %138 = arith.truncf %133 : vector<16x32xf32> to vector<16x32xbf16>
    %cst_65 = arith.constant dense<0.000000e+00> : vector<16x32xf32>
    %139 = tpu.matmul %138, %135, %cst_65 {dimension_numbers = #tpu.dot_dimension_numbers<[1], [0], [0], [1], [0, 0, 1, 1], [], []>} : vector<16x32xbf16>, vector<32x32xbf16>, vector<16x32xf32> -> vector<16x32xf32>
    %140 = vector.broadcast %137 : vector<1x32xf32> to vector<16x32xf32>
    %141 = arith.addf %139, %140 : vector<16x32xf32>
    %c0_66 = arith.constant 0 : index
    %c0_67 = arith.constant 0 : index
    %c0_68 = arith.constant 0 : index
    %142 = vector.load %arg15[%c0_66, %c0_67, %c0_68] : memref<2x32x64xbf16, #tpu.memory_space<vmem>>, vector<1x32x64xbf16>
    %143 = vector.shape_cast %142 : vector<1x32x64xbf16> to vector<32x64xbf16>
    %c0_69 = arith.constant 0 : index
    %c0_70 = arith.constant 0 : index
    %c0_71 = arith.constant 0 : index
    %144 = vector.load %arg16[%c0_69, %c0_70, %c0_71] : memref<2x1x64xf32, #tpu.memory_space<vmem>>, vector<1x1x64xf32>
    %145 = vector.shape_cast %144 : vector<1x1x64xf32> to vector<1x64xf32>
    %cst_72 = arith.constant dense<0.000000e+00> : vector<64x64xf32>
    %146 = tpu.matmul %8, %143, %cst_72 {dimension_numbers = #tpu.dot_dimension_numbers<[1], [0], [0], [1], [0, 0, 1, 1], [], []>} : vector<64x32xbf16>, vector<32x64xbf16>, vector<64x64xf32> -> vector<64x64xf32>
    %147 = vector.broadcast %145 : vector<1x64xf32> to vector<64x64xf32>
    %148 = arith.addf %146, %147 : vector<64x64xf32>
    %149 = vector.extract_strided_slice %148 {offsets = [0, 0], sizes = [64, 32], strides = [1, 1]} : vector<64x64xf32> to vector<64x32xf32>
    %150 = arith.truncf %149 : vector<64x32xf32> to vector<64x32xbf16>
    %151 = vector.extract_strided_slice %148 {offsets = [0, 32], sizes = [64, 32], strides = [1, 1]} : vector<64x64xf32> to vector<64x32xf32>
    %152 = arith.truncf %151 : vector<64x32xf32> to vector<64x32xbf16>
    %c0_73 = arith.constant 0 : index
    %c0_74 = arith.constant 0 : index
    %c0_75 = arith.constant 0 : index
    %153 = vector.load %arg17[%c0_73, %c0_74, %c0_75] : memref<2x32x32xbf16, #tpu.memory_space<vmem>>, vector<1x32x32xbf16>
    %154 = vector.shape_cast %153 : vector<1x32x32xbf16> to vector<32x32xbf16>
    %c0_76 = arith.constant 0 : index
    %c0_77 = arith.constant 0 : index
    %c0_78 = arith.constant 0 : index
    %155 = vector.load %arg18[%c0_76, %c0_77, %c0_78] : memref<2x1x32xf32, #tpu.memory_space<vmem>>, vector<1x1x32xf32>
    %156 = vector.shape_cast %155 : vector<1x1x32xf32> to vector<1x32xf32>
    %cst_79 = arith.constant 0.353553385 : f32
    %157 = vector.broadcast %cst_79 : f32 to vector<16x32xf32>
    %158 = arith.mulf %141, %157 : vector<16x32xf32>
    %159 = arith.truncf %158 : vector<16x32xf32> to vector<16x32xbf16>
    %160 = vector.extract_strided_slice %159 {offsets = [0, 0], sizes = [16, 8], strides = [1, 1]} : vector<16x32xbf16> to vector<16x8xbf16>
    %161 = vector.extract_strided_slice %150 {offsets = [0, 0], sizes = [64, 8], strides = [1, 1]} : vector<64x32xbf16> to vector<64x8xbf16>
    %cst_80 = arith.constant dense<0.000000e+00> : vector<16x64xf32>
    %162 = tpu.matmul %160, %161, %cst_80 {dimension_numbers = #tpu.dot_dimension_numbers<[1], [1], [0], [0], [0, 0, 1, 0], [], []>} : vector<16x8xbf16>, vector<64x8xbf16>, vector<16x64xf32> -> vector<16x64xf32>
    %cst_81 = arith.constant dense<0xFF800000> : vector<16xf32>
    %163 = vector.multi_reduction <maximumf>, %162, %cst_81 [1] : vector<16x64xf32> to vector<16xf32>
    %164 = vector.shape_cast %163 : vector<16xf32> to vector<16x1xf32>
    %165 = vector.broadcast %164 : vector<16x1xf32> to vector<16x64xf32>
    %166 = arith.subf %162, %165 : vector<16x64xf32>
    %167 = math.exp %166 : vector<16x64xf32>
    %cst_82 = arith.constant dense<0.000000e+00> : vector<16xf32>
    %168 = vector.multi_reduction <add>, %167, %cst_82 [1] : vector<16x64xf32> to vector<16xf32>
    %169 = vector.shape_cast %168 : vector<16xf32> to vector<16x1xf32>
    %170 = tpu.reciprocal %169 {approx = true} : vector<16x1xf32> -> vector<16x1xf32>
    %171 = vector.broadcast %170 : vector<16x1xf32> to vector<16x64xf32>
    %172 = arith.mulf %167, %171 : vector<16x64xf32>
    %173 = arith.truncf %172 : vector<16x64xf32> to vector<16x64xbf16>
    %174 = vector.extract_strided_slice %152 {offsets = [0, 0], sizes = [64, 8], strides = [1, 1]} : vector<64x32xbf16> to vector<64x8xbf16>
    %cst_83 = arith.constant dense<0.000000e+00> : vector<16x8xf32>
    %175 = tpu.matmul %173, %174, %cst_83 {dimension_numbers = #tpu.dot_dimension_numbers<[1], [0], [0], [1], [0, 0, 1, 1], [], []>} : vector<16x64xbf16>, vector<64x8xbf16>, vector<16x8xf32> -> vector<16x8xf32>
    %176 = vector.extract_strided_slice %159 {offsets = [0, 8], sizes = [16, 8], strides = [1, 1]} : vector<16x32xbf16> to vector<16x8xbf16>
    %177 = vector.extract_strided_slice %150 {offsets = [0, 8], sizes = [64, 8], strides = [1, 1]} : vector<64x32xbf16> to vector<64x8xbf16>
    %cst_84 = arith.constant dense<0.000000e+00> : vector<16x64xf32>
    %178 = tpu.matmul %176, %177, %cst_84 {dimension_numbers = #tpu.dot_dimension_numbers<[1], [1], [0], [0], [0, 0, 1, 0], [], []>} : vector<16x8xbf16>, vector<64x8xbf16>, vector<16x64xf32> -> vector<16x64xf32>
    %cst_85 = arith.constant dense<0xFF800000> : vector<16xf32>
    %179 = vector.multi_reduction <maximumf>, %178, %cst_85 [1] : vector<16x64xf32> to vector<16xf32>
    %180 = vector.shape_cast %179 : vector<16xf32> to vector<16x1xf32>
    %181 = vector.broadcast %180 : vector<16x1xf32> to vector<16x64xf32>
    %182 = arith.subf %178, %181 : vector<16x64xf32>
    %183 = math.exp %182 : vector<16x64xf32>
    %cst_86 = arith.constant dense<0.000000e+00> : vector<16xf32>
    %184 = vector.multi_reduction <add>, %183, %cst_86 [1] : vector<16x64xf32> to vector<16xf32>
    %185 = vector.shape_cast %184 : vector<16xf32> to vector<16x1xf32>
    %186 = tpu.reciprocal %185 {approx = true} : vector<16x1xf32> -> vector<16x1xf32>
    %187 = vector.broadcast %186 : vector<16x1xf32> to vector<16x64xf32>
    %188 = arith.mulf %183, %187 : vector<16x64xf32>
    %189 = arith.truncf %188 : vector<16x64xf32> to vector<16x64xbf16>
    %190 = vector.extract_strided_slice %152 {offsets = [0, 8], sizes = [64, 8], strides = [1, 1]} : vector<64x32xbf16> to vector<64x8xbf16>
    %cst_87 = arith.constant dense<0.000000e+00> : vector<16x8xf32>
    %191 = tpu.matmul %189, %190, %cst_87 {dimension_numbers = #tpu.dot_dimension_numbers<[1], [0], [0], [1], [0, 0, 1, 1], [], []>} : vector<16x64xbf16>, vector<64x8xbf16>, vector<16x8xf32> -> vector<16x8xf32>
    %192 = vector.extract_strided_slice %159 {offsets = [0, 16], sizes = [16, 8], strides = [1, 1]} : vector<16x32xbf16> to vector<16x8xbf16>
    %193 = vector.extract_strided_slice %150 {offsets = [0, 16], sizes = [64, 8], strides = [1, 1]} : vector<64x32xbf16> to vector<64x8xbf16>
    %cst_88 = arith.constant dense<0.000000e+00> : vector<16x64xf32>
    %194 = tpu.matmul %192, %193, %cst_88 {dimension_numbers = #tpu.dot_dimension_numbers<[1], [1], [0], [0], [0, 0, 1, 0], [], []>} : vector<16x8xbf16>, vector<64x8xbf16>, vector<16x64xf32> -> vector<16x64xf32>
    %cst_89 = arith.constant dense<0xFF800000> : vector<16xf32>
    %195 = vector.multi_reduction <maximumf>, %194, %cst_89 [1] : vector<16x64xf32> to vector<16xf32>
    %196 = vector.shape_cast %195 : vector<16xf32> to vector<16x1xf32>
    %197 = vector.broadcast %196 : vector<16x1xf32> to vector<16x64xf32>
    %198 = arith.subf %194, %197 : vector<16x64xf32>
    %199 = math.exp %198 : vector<16x64xf32>
    %cst_90 = arith.constant dense<0.000000e+00> : vector<16xf32>
    %200 = vector.multi_reduction <add>, %199, %cst_90 [1] : vector<16x64xf32> to vector<16xf32>
    %201 = vector.shape_cast %200 : vector<16xf32> to vector<16x1xf32>
    %202 = tpu.reciprocal %201 {approx = true} : vector<16x1xf32> -> vector<16x1xf32>
    %203 = vector.broadcast %202 : vector<16x1xf32> to vector<16x64xf32>
    %204 = arith.mulf %199, %203 : vector<16x64xf32>
    %205 = arith.truncf %204 : vector<16x64xf32> to vector<16x64xbf16>
    %206 = vector.extract_strided_slice %152 {offsets = [0, 16], sizes = [64, 8], strides = [1, 1]} : vector<64x32xbf16> to vector<64x8xbf16>
    %cst_91 = arith.constant dense<0.000000e+00> : vector<16x8xf32>
    %207 = tpu.matmul %205, %206, %cst_91 {dimension_numbers = #tpu.dot_dimension_numbers<[1], [0], [0], [1], [0, 0, 1, 1], [], []>} : vector<16x64xbf16>, vector<64x8xbf16>, vector<16x8xf32> -> vector<16x8xf32>
    %208 = vector.extract_strided_slice %159 {offsets = [0, 24], sizes = [16, 8], strides = [1, 1]} : vector<16x32xbf16> to vector<16x8xbf16>
    %209 = vector.extract_strided_slice %150 {offsets = [0, 24], sizes = [64, 8], strides = [1, 1]} : vector<64x32xbf16> to vector<64x8xbf16>
    %cst_92 = arith.constant dense<0.000000e+00> : vector<16x64xf32>
    %210 = tpu.matmul %208, %209, %cst_92 {dimension_numbers = #tpu.dot_dimension_numbers<[1], [1], [0], [0], [0, 0, 1, 0], [], []>} : vector<16x8xbf16>, vector<64x8xbf16>, vector<16x64xf32> -> vector<16x64xf32>
    %cst_93 = arith.constant dense<0xFF800000> : vector<16xf32>
    %211 = vector.multi_reduction <maximumf>, %210, %cst_93 [1] : vector<16x64xf32> to vector<16xf32>
    %212 = vector.shape_cast %211 : vector<16xf32> to vector<16x1xf32>
    %213 = vector.broadcast %212 : vector<16x1xf32> to vector<16x64xf32>
    %214 = arith.subf %210, %213 : vector<16x64xf32>
    %215 = math.exp %214 : vector<16x64xf32>
    %cst_94 = arith.constant dense<0.000000e+00> : vector<16xf32>
    %216 = vector.multi_reduction <add>, %215, %cst_94 [1] : vector<16x64xf32> to vector<16xf32>
    %217 = vector.shape_cast %216 : vector<16xf32> to vector<16x1xf32>
    %218 = tpu.reciprocal %217 {approx = true} : vector<16x1xf32> -> vector<16x1xf32>
    %219 = vector.broadcast %218 : vector<16x1xf32> to vector<16x64xf32>
    %220 = arith.mulf %215, %219 : vector<16x64xf32>
    %221 = arith.truncf %220 : vector<16x64xf32> to vector<16x64xbf16>
    %222 = vector.extract_strided_slice %152 {offsets = [0, 24], sizes = [64, 8], strides = [1, 1]} : vector<64x32xbf16> to vector<64x8xbf16>
    %cst_95 = arith.constant dense<0.000000e+00> : vector<16x8xf32>
    %223 = tpu.matmul %221, %222, %cst_95 {dimension_numbers = #tpu.dot_dimension_numbers<[1], [0], [0], [1], [0, 0, 1, 1], [], []>} : vector<16x64xbf16>, vector<64x8xbf16>, vector<16x8xf32> -> vector<16x8xf32>
    %224 = tpu.concatenate %175, %191, %207, %223 in 1 : vector<16x8xf32>, vector<16x8xf32>, vector<16x8xf32>, vector<16x8xf32> -> vector<16x32xf32>
    %225 = arith.truncf %224 : vector<16x32xf32> to vector<16x32xbf16>
    %cst_96 = arith.constant dense<0.000000e+00> : vector<16x32xf32>
    %226 = tpu.matmul %225, %154, %cst_96 {dimension_numbers = #tpu.dot_dimension_numbers<[1], [0], [0], [1], [0, 0, 1, 1], [], []>} : vector<16x32xbf16>, vector<32x32xbf16>, vector<16x32xf32> -> vector<16x32xf32>
    %227 = vector.broadcast %156 : vector<1x32xf32> to vector<16x32xf32>
    %228 = arith.addf %226, %227 : vector<16x32xf32>
    %229 = arith.addf %228, %132 : vector<16x32xf32>
    %c0_97 = arith.constant 0 : index
    %c0_98 = arith.constant 0 : index
    %c0_99 = arith.constant 0 : index
    %230 = vector.load %arg19[%c0_97, %c0_98, %c0_99] : memref<2x1x32xf32, #tpu.memory_space<vmem>>, vector<1x1x32xf32>
    %231 = vector.shape_cast %230 : vector<1x1x32xf32> to vector<1x32xf32>
    %c0_100 = arith.constant 0 : index
    %c0_101 = arith.constant 0 : index
    %c0_102 = arith.constant 0 : index
    %232 = vector.load %arg20[%c0_100, %c0_101, %c0_102] : memref<2x1x32xf32, #tpu.memory_space<vmem>>, vector<1x1x32xf32>
    %233 = vector.shape_cast %232 : vector<1x1x32xf32> to vector<1x32xf32>
    %cst_103 = arith.constant dense<0.000000e+00> : vector<16xf32>
    %234 = vector.multi_reduction <add>, %229, %cst_103 [1] : vector<16x32xf32> to vector<16xf32>
    %235 = vector.shape_cast %234 : vector<16xf32> to vector<16x1xf32>
    %cst_104 = arith.constant 3.200000e+01 : f32
    %236 = vector.broadcast %cst_104 : f32 to vector<16x1xf32>
    %237 = arith.divf %235, %236 : vector<16x1xf32>
    %238 = vector.broadcast %237 : vector<16x1xf32> to vector<16x32xf32>
    %239 = arith.subf %229, %238 : vector<16x32xf32>
    %240 = arith.mulf %239, %239 : vector<16x32xf32>
    %cst_105 = arith.constant dense<0.000000e+00> : vector<16xf32>
    %241 = vector.multi_reduction <add>, %240, %cst_105 [1] : vector<16x32xf32> to vector<16xf32>
    %242 = vector.shape_cast %241 : vector<16xf32> to vector<16x1xf32>
    %cst_106 = arith.constant 3.200000e+01 : f32
    %243 = vector.broadcast %cst_106 : f32 to vector<16x1xf32>
    %244 = arith.divf %242, %243 : vector<16x1xf32>
    %245 = vector.broadcast %237 : vector<16x1xf32> to vector<16x32xf32>
    %246 = arith.subf %229, %245 : vector<16x32xf32>
    %cst_107 = arith.constant 9.99999974E-6 : f32
    %247 = vector.broadcast %cst_107 : f32 to vector<16x1xf32>
    %248 = arith.addf %244, %247 : vector<16x1xf32>
    %249 = math.rsqrt %248 : vector<16x1xf32>
    %250 = vector.broadcast %249 : vector<16x1xf32> to vector<16x32xf32>
    %251 = arith.mulf %246, %250 : vector<16x32xf32>
    %252 = vector.broadcast %231 : vector<1x32xf32> to vector<16x32xf32>
    %253 = arith.mulf %251, %252 : vector<16x32xf32>
    %254 = vector.broadcast %233 : vector<1x32xf32> to vector<16x32xf32>
    %255 = arith.addf %253, %254 : vector<16x32xf32>
    %c0_108 = arith.constant 0 : index
    %c0_109 = arith.constant 0 : index
    %c0_110 = arith.constant 0 : index
    %256 = vector.load %arg21[%c0_108, %c0_109, %c0_110] : memref<2x32x64xbf16, #tpu.memory_space<vmem>>, vector<1x32x64xbf16>
    %257 = vector.shape_cast %256 : vector<1x32x64xbf16> to vector<32x64xbf16>
    %c0_111 = arith.constant 0 : index
    %c0_112 = arith.constant 0 : index
    %c0_113 = arith.constant 0 : index
    %258 = vector.load %arg22[%c0_111, %c0_112, %c0_113] : memref<2x1x64xf32, #tpu.memory_space<vmem>>, vector<1x1x64xf32>
    %259 = vector.shape_cast %258 : vector<1x1x64xf32> to vector<1x64xf32>
    %260 = arith.truncf %255 : vector<16x32xf32> to vector<16x32xbf16>
    %cst_114 = arith.constant dense<0.000000e+00> : vector<16x64xf32>
    %261 = tpu.matmul %260, %257, %cst_114 {dimension_numbers = #tpu.dot_dimension_numbers<[1], [0], [0], [1], [0, 0, 1, 1], [], []>} : vector<16x32xbf16>, vector<32x64xbf16>, vector<16x64xf32> -> vector<16x64xf32>
    %262 = vector.broadcast %259 : vector<1x64xf32> to vector<16x64xf32>
    %263 = arith.addf %261, %262 : vector<16x64xf32>
    %cst_115 = arith.constant 0.000000e+00 : f32
    %264 = vector.broadcast %cst_115 : f32 to vector<16x64xf32>
    %265 = arith.maximumf %263, %264 : vector<16x64xf32>
    %c0_116 = arith.constant 0 : index
    %c0_117 = arith.constant 0 : index
    %c0_118 = arith.constant 0 : index
    %266 = vector.load %arg23[%c0_116, %c0_117, %c0_118] : memref<2x64x32xbf16, #tpu.memory_space<vmem>>, vector<1x64x32xbf16>
    %267 = vector.shape_cast %266 : vector<1x64x32xbf16> to vector<64x32xbf16>
    %c0_119 = arith.constant 0 : index
    %c0_120 = arith.constant 0 : index
    %c0_121 = arith.constant 0 : index
    %268 = vector.load %arg24[%c0_119, %c0_120, %c0_121] : memref<2x1x32xf32, #tpu.memory_space<vmem>>, vector<1x1x32xf32>
    %269 = vector.shape_cast %268 : vector<1x1x32xf32> to vector<1x32xf32>
    %270 = arith.truncf %265 : vector<16x64xf32> to vector<16x64xbf16>
    %cst_122 = arith.constant dense<0.000000e+00> : vector<16x32xf32>
    %271 = tpu.matmul %270, %267, %cst_122 {dimension_numbers = #tpu.dot_dimension_numbers<[1], [0], [0], [1], [0, 0, 1, 1], [], []>} : vector<16x64xbf16>, vector<64x32xbf16>, vector<16x32xf32> -> vector<16x32xf32>
    %272 = vector.broadcast %269 : vector<1x32xf32> to vector<16x32xf32>
    %273 = arith.addf %271, %272 : vector<16x32xf32>
    %274 = arith.addf %273, %255 : vector<16x32xf32>
    %c0_123 = arith.constant 0 : index
    %c0_124 = arith.constant 0 : index
    %c0_125 = arith.constant 0 : index
    %275 = vector.load %arg25[%c0_123, %c0_124, %c0_125] : memref<2x1x32xf32, #tpu.memory_space<vmem>>, vector<1x1x32xf32>
    %276 = vector.shape_cast %275 : vector<1x1x32xf32> to vector<1x32xf32>
    %c0_126 = arith.constant 0 : index
    %c0_127 = arith.constant 0 : index
    %c0_128 = arith.constant 0 : index
    %277 = vector.load %arg26[%c0_126, %c0_127, %c0_128] : memref<2x1x32xf32, #tpu.memory_space<vmem>>, vector<1x1x32xf32>
    %278 = vector.shape_cast %277 : vector<1x1x32xf32> to vector<1x32xf32>
    %cst_129 = arith.constant dense<0.000000e+00> : vector<16xf32>
    %279 = vector.multi_reduction <add>, %274, %cst_129 [1] : vector<16x32xf32> to vector<16xf32>
    %280 = vector.shape_cast %279 : vector<16xf32> to vector<16x1xf32>
    %cst_130 = arith.constant 3.200000e+01 : f32
    %281 = vector.broadcast %cst_130 : f32 to vector<16x1xf32>
    %282 = arith.divf %280, %281 : vector<16x1xf32>
    %283 = vector.broadcast %282 : vector<16x1xf32> to vector<16x32xf32>
    %284 = arith.subf %274, %283 : vector<16x32xf32>
    %285 = arith.mulf %284, %284 : vector<16x32xf32>
    %cst_131 = arith.constant dense<0.000000e+00> : vector<16xf32>
    %286 = vector.multi_reduction <add>, %285, %cst_131 [1] : vector<16x32xf32> to vector<16xf32>
    %287 = vector.shape_cast %286 : vector<16xf32> to vector<16x1xf32>
    %cst_132 = arith.constant 3.200000e+01 : f32
    %288 = vector.broadcast %cst_132 : f32 to vector<16x1xf32>
    %289 = arith.divf %287, %288 : vector<16x1xf32>
    %290 = vector.broadcast %282 : vector<16x1xf32> to vector<16x32xf32>
    %291 = arith.subf %274, %290 : vector<16x32xf32>
    %cst_133 = arith.constant 9.99999974E-6 : f32
    %292 = vector.broadcast %cst_133 : f32 to vector<16x1xf32>
    %293 = arith.addf %289, %292 : vector<16x1xf32>
    %294 = math.rsqrt %293 : vector<16x1xf32>
    %295 = vector.broadcast %294 : vector<16x1xf32> to vector<16x32xf32>
    %296 = arith.mulf %291, %295 : vector<16x32xf32>
    %297 = vector.broadcast %276 : vector<1x32xf32> to vector<16x32xf32>
    %298 = arith.mulf %296, %297 : vector<16x32xf32>
    %299 = vector.broadcast %278 : vector<1x32xf32> to vector<16x32xf32>
    %300 = arith.addf %298, %299 : vector<16x32xf32>
    %c0_134 = arith.constant 0 : index
    %c0_135 = arith.constant 0 : index
    %c0_136 = arith.constant 0 : index
    %301 = vector.load %arg27[%c0_134, %c0_135, %c0_136] : memref<2x32x32xbf16, #tpu.memory_space<vmem>>, vector<1x32x32xbf16>
    %302 = vector.shape_cast %301 : vector<1x32x32xbf16> to vector<32x32xbf16>
    %c0_137 = arith.constant 0 : index
    %c0_138 = arith.constant 0 : index
    %c0_139 = arith.constant 0 : index
    %303 = vector.load %arg28[%c0_137, %c0_138, %c0_139] : memref<2x1x32xf32, #tpu.memory_space<vmem>>, vector<1x1x32xf32>
    %304 = vector.shape_cast %303 : vector<1x1x32xf32> to vector<1x32xf32>
    %305 = arith.truncf %300 : vector<16x32xf32> to vector<16x32xbf16>
    %cst_140 = arith.constant dense<0.000000e+00> : vector<16x32xf32>
    %306 = tpu.matmul %305, %302, %cst_140 {dimension_numbers = #tpu.dot_dimension_numbers<[1], [0], [0], [1], [0, 0, 1, 1], [], []>} : vector<16x32xbf16>, vector<32x32xbf16>, vector<16x32xf32> -> vector<16x32xf32>
    %307 = vector.broadcast %304 : vector<1x32xf32> to vector<16x32xf32>
    %308 = arith.addf %306, %307 : vector<16x32xf32>
    %cst_141 = arith.constant 0.000000e+00 : f32
    %309 = vector.broadcast %cst_141 : f32 to vector<16x32xf32>
    %310 = arith.maximumf %308, %309 : vector<16x32xf32>
    %c0_142 = arith.constant 0 : index
    %c0_143 = arith.constant 0 : index
    %c0_144 = arith.constant 0 : index
    %311 = vector.load %arg29[%c0_142, %c0_143, %c0_144] : memref<2x32x8xbf16, #tpu.memory_space<vmem>>, vector<1x32x8xbf16>
    %312 = vector.shape_cast %311 : vector<1x32x8xbf16> to vector<32x8xbf16>
    %c0_145 = arith.constant 0 : index
    %c0_146 = arith.constant 0 : index
    %c0_147 = arith.constant 0 : index
    %313 = vector.load %arg30[%c0_145, %c0_146, %c0_147] : memref<2x1x8xf32, #tpu.memory_space<vmem>>, vector<1x1x8xf32>
    %314 = vector.shape_cast %313 : vector<1x1x8xf32> to vector<1x8xf32>
    %315 = arith.truncf %310 : vector<16x32xf32> to vector<16x32xbf16>
    %cst_148 = arith.constant dense<0.000000e+00> : vector<16x8xf32>
    %316 = tpu.matmul %315, %312, %cst_148 {dimension_numbers = #tpu.dot_dimension_numbers<[1], [0], [0], [1], [0, 0, 1, 1], [], []>} : vector<16x32xbf16>, vector<32x8xbf16>, vector<16x8xf32> -> vector<16x8xf32>
    %317 = vector.broadcast %314 : vector<1x8xf32> to vector<16x8xf32>
    %318 = arith.addf %316, %317 : vector<16x8xf32>
    %319 = vector.extract_strided_slice %318 {offsets = [0, 0], sizes = [16, 3], strides = [1, 1]} : vector<16x8xf32> to vector<16x3xf32>
    %cst_149 = arith.constant 0.000000e+00 : f32
    %cst_150 = arith.constant 1.000000e+00 : f32
    %320 = vector.broadcast %cst_149 : f32 to vector<16x3xf32>
    %321 = arith.maximumf %320, %5 : vector<16x3xf32>
    %322 = vector.broadcast %cst_150 : f32 to vector<16x3xf32>
    %323 = arith.minimumf %322, %321 : vector<16x3xf32>
    %cst_151 = arith.constant 9.99999974E-6 : f32
    %324 = vector.broadcast %cst_151 : f32 to vector<16x3xf32>
    %325 = arith.maximumf %323, %324 : vector<16x3xf32>
    %326 = math.log %325 : vector<16x3xf32>
    %cst_152 = arith.constant 1.000000e+00 : f32
    %327 = vector.broadcast %cst_152 : f32 to vector<16x3xf32>
    %328 = arith.subf %327, %323 : vector<16x3xf32>
    %cst_153 = arith.constant 9.99999974E-6 : f32
    %329 = vector.broadcast %cst_153 : f32 to vector<16x3xf32>
    %330 = arith.maximumf %328, %329 : vector<16x3xf32>
    %331 = math.log %330 : vector<16x3xf32>
    %332 = arith.subf %326, %331 : vector<16x3xf32>
    %333 = arith.addf %319, %332 : vector<16x3xf32>
    %cst_154 = arith.constant 0.000000e+00 : f32
    %334 = vector.broadcast %cst_154 : f32 to vector<16x3xf32>
    %335 = arith.subf %334, %333 : vector<16x3xf32>
    %336 = math.exp %335 : vector<16x3xf32>
    %cst_155 = arith.constant 1.000000e+00 : f32
    %337 = vector.broadcast %cst_155 : f32 to vector<16x3xf32>
    %338 = arith.addf %337, %336 : vector<16x3xf32>
    %cst_156 = arith.constant 1.000000e+00 : f32
    %339 = vector.broadcast %cst_156 : f32 to vector<16x3xf32>
    %340 = arith.divf %339, %338 : vector<16x3xf32>
    %341 = arith.addf %300, %3 : vector<16x32xf32>
    %c1 = arith.constant 1 : index
    %c0_157 = arith.constant 0 : index
    %c0_158 = arith.constant 0 : index
    %342 = vector.load %arg5[%c1, %c0_157, %c0_158] : memref<2x32x64xbf16, #tpu.memory_space<vmem>>, vector<1x32x64xbf16>
    %343 = vector.shape_cast %342 : vector<1x32x64xbf16> to vector<32x64xbf16>
    %c1_159 = arith.constant 1 : index
    %c0_160 = arith.constant 0 : index
    %c0_161 = arith.constant 0 : index
    %344 = vector.load %arg6[%c1_159, %c0_160, %c0_161] : memref<2x1x64xf32, #tpu.memory_space<vmem>>, vector<1x1x64xf32>
    %345 = vector.shape_cast %344 : vector<1x1x64xf32> to vector<1x64xf32>
    %346 = arith.truncf %341 : vector<16x32xf32> to vector<16x32xbf16>
    %cst_162 = arith.constant dense<0.000000e+00> : vector<16x64xf32>
    %347 = tpu.matmul %346, %343, %cst_162 {dimension_numbers = #tpu.dot_dimension_numbers<[1], [0], [0], [1], [0, 0, 1, 1], [], []>} : vector<16x32xbf16>, vector<32x64xbf16>, vector<16x64xf32> -> vector<16x64xf32>
    %348 = vector.broadcast %345 : vector<1x64xf32> to vector<16x64xf32>
    %349 = arith.addf %347, %348 : vector<16x64xf32>
    %c1_163 = arith.constant 1 : index
    %c0_164 = arith.constant 0 : index
    %c0_165 = arith.constant 0 : index
    %350 = vector.load %arg7[%c1_163, %c0_164, %c0_165] : memref<2x32x32xbf16, #tpu.memory_space<vmem>>, vector<1x32x32xbf16>
    %351 = vector.shape_cast %350 : vector<1x32x32xbf16> to vector<32x32xbf16>
    %c1_166 = arith.constant 1 : index
    %c0_167 = arith.constant 0 : index
    %c0_168 = arith.constant 0 : index
    %352 = vector.load %arg8[%c1_166, %c0_167, %c0_168] : memref<2x1x32xf32, #tpu.memory_space<vmem>>, vector<1x1x32xf32>
    %353 = vector.shape_cast %352 : vector<1x1x32xf32> to vector<1x32xf32>
    %354 = arith.truncf %300 : vector<16x32xf32> to vector<16x32xbf16>
    %cst_169 = arith.constant dense<0.000000e+00> : vector<16x32xf32>
    %355 = tpu.matmul %354, %351, %cst_169 {dimension_numbers = #tpu.dot_dimension_numbers<[1], [0], [0], [1], [0, 0, 1, 1], [], []>} : vector<16x32xbf16>, vector<32x32xbf16>, vector<16x32xf32> -> vector<16x32xf32>
    %356 = vector.broadcast %353 : vector<1x32xf32> to vector<16x32xf32>
    %357 = arith.addf %355, %356 : vector<16x32xf32>
    %358 = vector.extract_strided_slice %349 {offsets = [0, 0], sizes = [16, 32], strides = [1, 1]} : vector<16x64xf32> to vector<16x32xf32>
    %359 = vector.extract_strided_slice %349 {offsets = [0, 32], sizes = [16, 32], strides = [1, 1]} : vector<16x64xf32> to vector<16x32xf32>
    %360 = arith.truncf %359 : vector<16x32xf32> to vector<16x32xbf16>
    %361 = arith.truncf %357 : vector<16x32xf32> to vector<16x32xbf16>
    %c1_170 = arith.constant 1 : index
    %c0_171 = arith.constant 0 : index
    %c0_172 = arith.constant 0 : index
    %362 = vector.load %arg9[%c1_170, %c0_171, %c0_172] : memref<2x32x32xbf16, #tpu.memory_space<vmem>>, vector<1x32x32xbf16>
    %363 = vector.shape_cast %362 : vector<1x32x32xbf16> to vector<32x32xbf16>
    %c1_173 = arith.constant 1 : index
    %c0_174 = arith.constant 0 : index
    %c0_175 = arith.constant 0 : index
    %364 = vector.load %arg10[%c1_173, %c0_174, %c0_175] : memref<2x1x32xf32, #tpu.memory_space<vmem>>, vector<1x1x32xf32>
    %365 = vector.shape_cast %364 : vector<1x1x32xf32> to vector<1x32xf32>
    %cst_176 = arith.constant 0.353553385 : f32
    %366 = vector.broadcast %cst_176 : f32 to vector<16x32xf32>
    %367 = arith.mulf %358, %366 : vector<16x32xf32>
    %368 = arith.truncf %367 : vector<16x32xf32> to vector<16x32xbf16>
    %369 = vector.extract_strided_slice %368 {offsets = [0, 0], sizes = [16, 8], strides = [1, 1]} : vector<16x32xbf16> to vector<16x8xbf16>
    %370 = vector.extract_strided_slice %360 {offsets = [0, 0], sizes = [16, 8], strides = [1, 1]} : vector<16x32xbf16> to vector<16x8xbf16>
    %cst_177 = arith.constant dense<0.000000e+00> : vector<16x16xf32>
    %371 = tpu.matmul %369, %370, %cst_177 {dimension_numbers = #tpu.dot_dimension_numbers<[1], [1], [0], [0], [0, 0, 1, 0], [], []>} : vector<16x8xbf16>, vector<16x8xbf16>, vector<16x16xf32> -> vector<16x16xf32>
    %cst_178 = arith.constant dense<0xFF800000> : vector<16xf32>
    %372 = vector.multi_reduction <maximumf>, %371, %cst_178 [1] : vector<16x16xf32> to vector<16xf32>
    %373 = vector.shape_cast %372 : vector<16xf32> to vector<16x1xf32>
    %374 = vector.broadcast %373 : vector<16x1xf32> to vector<16x16xf32>
    %375 = arith.subf %371, %374 : vector<16x16xf32>
    %376 = math.exp %375 : vector<16x16xf32>
    %cst_179 = arith.constant dense<0.000000e+00> : vector<16xf32>
    %377 = vector.multi_reduction <add>, %376, %cst_179 [1] : vector<16x16xf32> to vector<16xf32>
    %378 = vector.shape_cast %377 : vector<16xf32> to vector<16x1xf32>
    %379 = tpu.reciprocal %378 {approx = true} : vector<16x1xf32> -> vector<16x1xf32>
    %380 = vector.broadcast %379 : vector<16x1xf32> to vector<16x16xf32>
    %381 = arith.mulf %376, %380 : vector<16x16xf32>
    %382 = arith.truncf %381 : vector<16x16xf32> to vector<16x16xbf16>
    %383 = vector.extract_strided_slice %361 {offsets = [0, 0], sizes = [16, 8], strides = [1, 1]} : vector<16x32xbf16> to vector<16x8xbf16>
    %cst_180 = arith.constant dense<0.000000e+00> : vector<16x8xf32>
    %384 = tpu.matmul %382, %383, %cst_180 {dimension_numbers = #tpu.dot_dimension_numbers<[1], [0], [0], [1], [0, 0, 1, 1], [], []>} : vector<16x16xbf16>, vector<16x8xbf16>, vector<16x8xf32> -> vector<16x8xf32>
    %385 = vector.extract_strided_slice %368 {offsets = [0, 8], sizes = [16, 8], strides = [1, 1]} : vector<16x32xbf16> to vector<16x8xbf16>
    %386 = vector.extract_strided_slice %360 {offsets = [0, 8], sizes = [16, 8], strides = [1, 1]} : vector<16x32xbf16> to vector<16x8xbf16>
    %cst_181 = arith.constant dense<0.000000e+00> : vector<16x16xf32>
    %387 = tpu.matmul %385, %386, %cst_181 {dimension_numbers = #tpu.dot_dimension_numbers<[1], [1], [0], [0], [0, 0, 1, 0], [], []>} : vector<16x8xbf16>, vector<16x8xbf16>, vector<16x16xf32> -> vector<16x16xf32>
    %cst_182 = arith.constant dense<0xFF800000> : vector<16xf32>
    %388 = vector.multi_reduction <maximumf>, %387, %cst_182 [1] : vector<16x16xf32> to vector<16xf32>
    %389 = vector.shape_cast %388 : vector<16xf32> to vector<16x1xf32>
    %390 = vector.broadcast %389 : vector<16x1xf32> to vector<16x16xf32>
    %391 = arith.subf %387, %390 : vector<16x16xf32>
    %392 = math.exp %391 : vector<16x16xf32>
    %cst_183 = arith.constant dense<0.000000e+00> : vector<16xf32>
    %393 = vector.multi_reduction <add>, %392, %cst_183 [1] : vector<16x16xf32> to vector<16xf32>
    %394 = vector.shape_cast %393 : vector<16xf32> to vector<16x1xf32>
    %395 = tpu.reciprocal %394 {approx = true} : vector<16x1xf32> -> vector<16x1xf32>
    %396 = vector.broadcast %395 : vector<16x1xf32> to vector<16x16xf32>
    %397 = arith.mulf %392, %396 : vector<16x16xf32>
    %398 = arith.truncf %397 : vector<16x16xf32> to vector<16x16xbf16>
    %399 = vector.extract_strided_slice %361 {offsets = [0, 8], sizes = [16, 8], strides = [1, 1]} : vector<16x32xbf16> to vector<16x8xbf16>
    %cst_184 = arith.constant dense<0.000000e+00> : vector<16x8xf32>
    %400 = tpu.matmul %398, %399, %cst_184 {dimension_numbers = #tpu.dot_dimension_numbers<[1], [0], [0], [1], [0, 0, 1, 1], [], []>} : vector<16x16xbf16>, vector<16x8xbf16>, vector<16x8xf32> -> vector<16x8xf32>
    %401 = vector.extract_strided_slice %368 {offsets = [0, 16], sizes = [16, 8], strides = [1, 1]} : vector<16x32xbf16> to vector<16x8xbf16>
    %402 = vector.extract_strided_slice %360 {offsets = [0, 16], sizes = [16, 8], strides = [1, 1]} : vector<16x32xbf16> to vector<16x8xbf16>
    %cst_185 = arith.constant dense<0.000000e+00> : vector<16x16xf32>
    %403 = tpu.matmul %401, %402, %cst_185 {dimension_numbers = #tpu.dot_dimension_numbers<[1], [1], [0], [0], [0, 0, 1, 0], [], []>} : vector<16x8xbf16>, vector<16x8xbf16>, vector<16x16xf32> -> vector<16x16xf32>
    %cst_186 = arith.constant dense<0xFF800000> : vector<16xf32>
    %404 = vector.multi_reduction <maximumf>, %403, %cst_186 [1] : vector<16x16xf32> to vector<16xf32>
    %405 = vector.shape_cast %404 : vector<16xf32> to vector<16x1xf32>
    %406 = vector.broadcast %405 : vector<16x1xf32> to vector<16x16xf32>
    %407 = arith.subf %403, %406 : vector<16x16xf32>
    %408 = math.exp %407 : vector<16x16xf32>
    %cst_187 = arith.constant dense<0.000000e+00> : vector<16xf32>
    %409 = vector.multi_reduction <add>, %408, %cst_187 [1] : vector<16x16xf32> to vector<16xf32>
    %410 = vector.shape_cast %409 : vector<16xf32> to vector<16x1xf32>
    %411 = tpu.reciprocal %410 {approx = true} : vector<16x1xf32> -> vector<16x1xf32>
    %412 = vector.broadcast %411 : vector<16x1xf32> to vector<16x16xf32>
    %413 = arith.mulf %408, %412 : vector<16x16xf32>
    %414 = arith.truncf %413 : vector<16x16xf32> to vector<16x16xbf16>
    %415 = vector.extract_strided_slice %361 {offsets = [0, 16], sizes = [16, 8], strides = [1, 1]} : vector<16x32xbf16> to vector<16x8xbf16>
    %cst_188 = arith.constant dense<0.000000e+00> : vector<16x8xf32>
    %416 = tpu.matmul %414, %415, %cst_188 {dimension_numbers = #tpu.dot_dimension_numbers<[1], [0], [0], [1], [0, 0, 1, 1], [], []>} : vector<16x16xbf16>, vector<16x8xbf16>, vector<16x8xf32> -> vector<16x8xf32>
    %417 = vector.extract_strided_slice %368 {offsets = [0, 24], sizes = [16, 8], strides = [1, 1]} : vector<16x32xbf16> to vector<16x8xbf16>
    %418 = vector.extract_strided_slice %360 {offsets = [0, 24], sizes = [16, 8], strides = [1, 1]} : vector<16x32xbf16> to vector<16x8xbf16>
    %cst_189 = arith.constant dense<0.000000e+00> : vector<16x16xf32>
    %419 = tpu.matmul %417, %418, %cst_189 {dimension_numbers = #tpu.dot_dimension_numbers<[1], [1], [0], [0], [0, 0, 1, 0], [], []>} : vector<16x8xbf16>, vector<16x8xbf16>, vector<16x16xf32> -> vector<16x16xf32>
    %cst_190 = arith.constant dense<0xFF800000> : vector<16xf32>
    %420 = vector.multi_reduction <maximumf>, %419, %cst_190 [1] : vector<16x16xf32> to vector<16xf32>
    %421 = vector.shape_cast %420 : vector<16xf32> to vector<16x1xf32>
    %422 = vector.broadcast %421 : vector<16x1xf32> to vector<16x16xf32>
    %423 = arith.subf %419, %422 : vector<16x16xf32>
    %424 = math.exp %423 : vector<16x16xf32>
    %cst_191 = arith.constant dense<0.000000e+00> : vector<16xf32>
    %425 = vector.multi_reduction <add>, %424, %cst_191 [1] : vector<16x16xf32> to vector<16xf32>
    %426 = vector.shape_cast %425 : vector<16xf32> to vector<16x1xf32>
    %427 = tpu.reciprocal %426 {approx = true} : vector<16x1xf32> -> vector<16x1xf32>
    %428 = vector.broadcast %427 : vector<16x1xf32> to vector<16x16xf32>
    %429 = arith.mulf %424, %428 : vector<16x16xf32>
    %430 = arith.truncf %429 : vector<16x16xf32> to vector<16x16xbf16>
    %431 = vector.extract_strided_slice %361 {offsets = [0, 24], sizes = [16, 8], strides = [1, 1]} : vector<16x32xbf16> to vector<16x8xbf16>
    %cst_192 = arith.constant dense<0.000000e+00> : vector<16x8xf32>
    %432 = tpu.matmul %430, %431, %cst_192 {dimension_numbers = #tpu.dot_dimension_numbers<[1], [0], [0], [1], [0, 0, 1, 1], [], []>} : vector<16x16xbf16>, vector<16x8xbf16>, vector<16x8xf32> -> vector<16x8xf32>
    %433 = tpu.concatenate %384, %400, %416, %432 in 1 : vector<16x8xf32>, vector<16x8xf32>, vector<16x8xf32>, vector<16x8xf32> -> vector<16x32xf32>
    %434 = arith.truncf %433 : vector<16x32xf32> to vector<16x32xbf16>
    %cst_193 = arith.constant dense<0.000000e+00> : vector<16x32xf32>
    %435 = tpu.matmul %434, %363, %cst_193 {dimension_numbers = #tpu.dot_dimension_numbers<[1], [0], [0], [1], [0, 0, 1, 1], [], []>} : vector<16x32xbf16>, vector<32x32xbf16>, vector<16x32xf32> -> vector<16x32xf32>
    %436 = vector.broadcast %365 : vector<1x32xf32> to vector<16x32xf32>
    %437 = arith.addf %435, %436 : vector<16x32xf32>
    %438 = arith.addf %437, %300 : vector<16x32xf32>
    %c1_194 = arith.constant 1 : index
    %c0_195 = arith.constant 0 : index
    %c0_196 = arith.constant 0 : index
    %439 = vector.load %arg11[%c1_194, %c0_195, %c0_196] : memref<2x1x32xf32, #tpu.memory_space<vmem>>, vector<1x1x32xf32>
    %440 = vector.shape_cast %439 : vector<1x1x32xf32> to vector<1x32xf32>
    %c1_197 = arith.constant 1 : index
    %c0_198 = arith.constant 0 : index
    %c0_199 = arith.constant 0 : index
    %441 = vector.load %arg12[%c1_197, %c0_198, %c0_199] : memref<2x1x32xf32, #tpu.memory_space<vmem>>, vector<1x1x32xf32>
    %442 = vector.shape_cast %441 : vector<1x1x32xf32> to vector<1x32xf32>
    %cst_200 = arith.constant dense<0.000000e+00> : vector<16xf32>
    %443 = vector.multi_reduction <add>, %438, %cst_200 [1] : vector<16x32xf32> to vector<16xf32>
    %444 = vector.shape_cast %443 : vector<16xf32> to vector<16x1xf32>
    %cst_201 = arith.constant 3.200000e+01 : f32
    %445 = vector.broadcast %cst_201 : f32 to vector<16x1xf32>
    %446 = arith.divf %444, %445 : vector<16x1xf32>
    %447 = vector.broadcast %446 : vector<16x1xf32> to vector<16x32xf32>
    %448 = arith.subf %438, %447 : vector<16x32xf32>
    %449 = arith.mulf %448, %448 : vector<16x32xf32>
    %cst_202 = arith.constant dense<0.000000e+00> : vector<16xf32>
    %450 = vector.multi_reduction <add>, %449, %cst_202 [1] : vector<16x32xf32> to vector<16xf32>
    %451 = vector.shape_cast %450 : vector<16xf32> to vector<16x1xf32>
    %cst_203 = arith.constant 3.200000e+01 : f32
    %452 = vector.broadcast %cst_203 : f32 to vector<16x1xf32>
    %453 = arith.divf %451, %452 : vector<16x1xf32>
    %454 = vector.broadcast %446 : vector<16x1xf32> to vector<16x32xf32>
    %455 = arith.subf %438, %454 : vector<16x32xf32>
    %cst_204 = arith.constant 9.99999974E-6 : f32
    %456 = vector.broadcast %cst_204 : f32 to vector<16x1xf32>
    %457 = arith.addf %453, %456 : vector<16x1xf32>
    %458 = math.rsqrt %457 : vector<16x1xf32>
    %459 = vector.broadcast %458 : vector<16x1xf32> to vector<16x32xf32>
    %460 = arith.mulf %455, %459 : vector<16x32xf32>
    %461 = vector.broadcast %440 : vector<1x32xf32> to vector<16x32xf32>
    %462 = arith.mulf %460, %461 : vector<16x32xf32>
    %463 = vector.broadcast %442 : vector<1x32xf32> to vector<16x32xf32>
    %464 = arith.addf %462, %463 : vector<16x32xf32>
    %465 = arith.addf %464, %3 : vector<16x32xf32>
    %c1_205 = arith.constant 1 : index
    %c0_206 = arith.constant 0 : index
    %c0_207 = arith.constant 0 : index
    %466 = vector.load %arg13[%c1_205, %c0_206, %c0_207] : memref<2x32x32xbf16, #tpu.memory_space<vmem>>, vector<1x32x32xbf16>
    %467 = vector.shape_cast %466 : vector<1x32x32xbf16> to vector<32x32xbf16>
    %c1_208 = arith.constant 1 : index
    %c0_209 = arith.constant 0 : index
    %c0_210 = arith.constant 0 : index
    %468 = vector.load %arg14[%c1_208, %c0_209, %c0_210] : memref<2x1x32xf32, #tpu.memory_space<vmem>>, vector<1x1x32xf32>
    %469 = vector.shape_cast %468 : vector<1x1x32xf32> to vector<1x32xf32>
    %470 = arith.truncf %465 : vector<16x32xf32> to vector<16x32xbf16>
    %cst_211 = arith.constant dense<0.000000e+00> : vector<16x32xf32>
    %471 = tpu.matmul %470, %467, %cst_211 {dimension_numbers = #tpu.dot_dimension_numbers<[1], [0], [0], [1], [0, 0, 1, 1], [], []>} : vector<16x32xbf16>, vector<32x32xbf16>, vector<16x32xf32> -> vector<16x32xf32>
    %472 = vector.broadcast %469 : vector<1x32xf32> to vector<16x32xf32>
    %473 = arith.addf %471, %472 : vector<16x32xf32>
    %c1_212 = arith.constant 1 : index
    %c0_213 = arith.constant 0 : index
    %c0_214 = arith.constant 0 : index
    %474 = vector.load %arg15[%c1_212, %c0_213, %c0_214] : memref<2x32x64xbf16, #tpu.memory_space<vmem>>, vector<1x32x64xbf16>
    %475 = vector.shape_cast %474 : vector<1x32x64xbf16> to vector<32x64xbf16>
    %c1_215 = arith.constant 1 : index
    %c0_216 = arith.constant 0 : index
    %c0_217 = arith.constant 0 : index
    %476 = vector.load %arg16[%c1_215, %c0_216, %c0_217] : memref<2x1x64xf32, #tpu.memory_space<vmem>>, vector<1x1x64xf32>
    %477 = vector.shape_cast %476 : vector<1x1x64xf32> to vector<1x64xf32>
    %cst_218 = arith.constant dense<0.000000e+00> : vector<64x64xf32>
    %478 = tpu.matmul %8, %475, %cst_218 {dimension_numbers = #tpu.dot_dimension_numbers<[1], [0], [0], [1], [0, 0, 1, 1], [], []>} : vector<64x32xbf16>, vector<32x64xbf16>, vector<64x64xf32> -> vector<64x64xf32>
    %479 = vector.broadcast %477 : vector<1x64xf32> to vector<64x64xf32>
    %480 = arith.addf %478, %479 : vector<64x64xf32>
    %481 = vector.extract_strided_slice %480 {offsets = [0, 0], sizes = [64, 32], strides = [1, 1]} : vector<64x64xf32> to vector<64x32xf32>
    %482 = arith.truncf %481 : vector<64x32xf32> to vector<64x32xbf16>
    %483 = vector.extract_strided_slice %480 {offsets = [0, 32], sizes = [64, 32], strides = [1, 1]} : vector<64x64xf32> to vector<64x32xf32>
    %484 = arith.truncf %483 : vector<64x32xf32> to vector<64x32xbf16>
    %c1_219 = arith.constant 1 : index
    %c0_220 = arith.constant 0 : index
    %c0_221 = arith.constant 0 : index
    %485 = vector.load %arg17[%c1_219, %c0_220, %c0_221] : memref<2x32x32xbf16, #tpu.memory_space<vmem>>, vector<1x32x32xbf16>
    %486 = vector.shape_cast %485 : vector<1x32x32xbf16> to vector<32x32xbf16>
    %c1_222 = arith.constant 1 : index
    %c0_223 = arith.constant 0 : index
    %c0_224 = arith.constant 0 : index
    %487 = vector.load %arg18[%c1_222, %c0_223, %c0_224] : memref<2x1x32xf32, #tpu.memory_space<vmem>>, vector<1x1x32xf32>
    %488 = vector.shape_cast %487 : vector<1x1x32xf32> to vector<1x32xf32>
    %cst_225 = arith.constant 0.353553385 : f32
    %489 = vector.broadcast %cst_225 : f32 to vector<16x32xf32>
    %490 = arith.mulf %473, %489 : vector<16x32xf32>
    %491 = arith.truncf %490 : vector<16x32xf32> to vector<16x32xbf16>
    %492 = vector.extract_strided_slice %491 {offsets = [0, 0], sizes = [16, 8], strides = [1, 1]} : vector<16x32xbf16> to vector<16x8xbf16>
    %493 = vector.extract_strided_slice %482 {offsets = [0, 0], sizes = [64, 8], strides = [1, 1]} : vector<64x32xbf16> to vector<64x8xbf16>
    %cst_226 = arith.constant dense<0.000000e+00> : vector<16x64xf32>
    %494 = tpu.matmul %492, %493, %cst_226 {dimension_numbers = #tpu.dot_dimension_numbers<[1], [1], [0], [0], [0, 0, 1, 0], [], []>} : vector<16x8xbf16>, vector<64x8xbf16>, vector<16x64xf32> -> vector<16x64xf32>
    %cst_227 = arith.constant dense<0xFF800000> : vector<16xf32>
    %495 = vector.multi_reduction <maximumf>, %494, %cst_227 [1] : vector<16x64xf32> to vector<16xf32>
    %496 = vector.shape_cast %495 : vector<16xf32> to vector<16x1xf32>
    %497 = vector.broadcast %496 : vector<16x1xf32> to vector<16x64xf32>
    %498 = arith.subf %494, %497 : vector<16x64xf32>
    %499 = math.exp %498 : vector<16x64xf32>
    %cst_228 = arith.constant dense<0.000000e+00> : vector<16xf32>
    %500 = vector.multi_reduction <add>, %499, %cst_228 [1] : vector<16x64xf32> to vector<16xf32>
    %501 = vector.shape_cast %500 : vector<16xf32> to vector<16x1xf32>
    %502 = tpu.reciprocal %501 {approx = true} : vector<16x1xf32> -> vector<16x1xf32>
    %503 = vector.broadcast %502 : vector<16x1xf32> to vector<16x64xf32>
    %504 = arith.mulf %499, %503 : vector<16x64xf32>
    %505 = arith.truncf %504 : vector<16x64xf32> to vector<16x64xbf16>
    %506 = vector.extract_strided_slice %484 {offsets = [0, 0], sizes = [64, 8], strides = [1, 1]} : vector<64x32xbf16> to vector<64x8xbf16>
    %cst_229 = arith.constant dense<0.000000e+00> : vector<16x8xf32>
    %507 = tpu.matmul %505, %506, %cst_229 {dimension_numbers = #tpu.dot_dimension_numbers<[1], [0], [0], [1], [0, 0, 1, 1], [], []>} : vector<16x64xbf16>, vector<64x8xbf16>, vector<16x8xf32> -> vector<16x8xf32>
    %508 = vector.extract_strided_slice %491 {offsets = [0, 8], sizes = [16, 8], strides = [1, 1]} : vector<16x32xbf16> to vector<16x8xbf16>
    %509 = vector.extract_strided_slice %482 {offsets = [0, 8], sizes = [64, 8], strides = [1, 1]} : vector<64x32xbf16> to vector<64x8xbf16>
    %cst_230 = arith.constant dense<0.000000e+00> : vector<16x64xf32>
    %510 = tpu.matmul %508, %509, %cst_230 {dimension_numbers = #tpu.dot_dimension_numbers<[1], [1], [0], [0], [0, 0, 1, 0], [], []>} : vector<16x8xbf16>, vector<64x8xbf16>, vector<16x64xf32> -> vector<16x64xf32>
    %cst_231 = arith.constant dense<0xFF800000> : vector<16xf32>
    %511 = vector.multi_reduction <maximumf>, %510, %cst_231 [1] : vector<16x64xf32> to vector<16xf32>
    %512 = vector.shape_cast %511 : vector<16xf32> to vector<16x1xf32>
    %513 = vector.broadcast %512 : vector<16x1xf32> to vector<16x64xf32>
    %514 = arith.subf %510, %513 : vector<16x64xf32>
    %515 = math.exp %514 : vector<16x64xf32>
    %cst_232 = arith.constant dense<0.000000e+00> : vector<16xf32>
    %516 = vector.multi_reduction <add>, %515, %cst_232 [1] : vector<16x64xf32> to vector<16xf32>
    %517 = vector.shape_cast %516 : vector<16xf32> to vector<16x1xf32>
    %518 = tpu.reciprocal %517 {approx = true} : vector<16x1xf32> -> vector<16x1xf32>
    %519 = vector.broadcast %518 : vector<16x1xf32> to vector<16x64xf32>
    %520 = arith.mulf %515, %519 : vector<16x64xf32>
    %521 = arith.truncf %520 : vector<16x64xf32> to vector<16x64xbf16>
    %522 = vector.extract_strided_slice %484 {offsets = [0, 8], sizes = [64, 8], strides = [1, 1]} : vector<64x32xbf16> to vector<64x8xbf16>
    %cst_233 = arith.constant dense<0.000000e+00> : vector<16x8xf32>
    %523 = tpu.matmul %521, %522, %cst_233 {dimension_numbers = #tpu.dot_dimension_numbers<[1], [0], [0], [1], [0, 0, 1, 1], [], []>} : vector<16x64xbf16>, vector<64x8xbf16>, vector<16x8xf32> -> vector<16x8xf32>
    %524 = vector.extract_strided_slice %491 {offsets = [0, 16], sizes = [16, 8], strides = [1, 1]} : vector<16x32xbf16> to vector<16x8xbf16>
    %525 = vector.extract_strided_slice %482 {offsets = [0, 16], sizes = [64, 8], strides = [1, 1]} : vector<64x32xbf16> to vector<64x8xbf16>
    %cst_234 = arith.constant dense<0.000000e+00> : vector<16x64xf32>
    %526 = tpu.matmul %524, %525, %cst_234 {dimension_numbers = #tpu.dot_dimension_numbers<[1], [1], [0], [0], [0, 0, 1, 0], [], []>} : vector<16x8xbf16>, vector<64x8xbf16>, vector<16x64xf32> -> vector<16x64xf32>
    %cst_235 = arith.constant dense<0xFF800000> : vector<16xf32>
    %527 = vector.multi_reduction <maximumf>, %526, %cst_235 [1] : vector<16x64xf32> to vector<16xf32>
    %528 = vector.shape_cast %527 : vector<16xf32> to vector<16x1xf32>
    %529 = vector.broadcast %528 : vector<16x1xf32> to vector<16x64xf32>
    %530 = arith.subf %526, %529 : vector<16x64xf32>
    %531 = math.exp %530 : vector<16x64xf32>
    %cst_236 = arith.constant dense<0.000000e+00> : vector<16xf32>
    %532 = vector.multi_reduction <add>, %531, %cst_236 [1] : vector<16x64xf32> to vector<16xf32>
    %533 = vector.shape_cast %532 : vector<16xf32> to vector<16x1xf32>
    %534 = tpu.reciprocal %533 {approx = true} : vector<16x1xf32> -> vector<16x1xf32>
    %535 = vector.broadcast %534 : vector<16x1xf32> to vector<16x64xf32>
    %536 = arith.mulf %531, %535 : vector<16x64xf32>
    %537 = arith.truncf %536 : vector<16x64xf32> to vector<16x64xbf16>
    %538 = vector.extract_strided_slice %484 {offsets = [0, 16], sizes = [64, 8], strides = [1, 1]} : vector<64x32xbf16> to vector<64x8xbf16>
    %cst_237 = arith.constant dense<0.000000e+00> : vector<16x8xf32>
    %539 = tpu.matmul %537, %538, %cst_237 {dimension_numbers = #tpu.dot_dimension_numbers<[1], [0], [0], [1], [0, 0, 1, 1], [], []>} : vector<16x64xbf16>, vector<64x8xbf16>, vector<16x8xf32> -> vector<16x8xf32>
    %540 = vector.extract_strided_slice %491 {offsets = [0, 24], sizes = [16, 8], strides = [1, 1]} : vector<16x32xbf16> to vector<16x8xbf16>
    %541 = vector.extract_strided_slice %482 {offsets = [0, 24], sizes = [64, 8], strides = [1, 1]} : vector<64x32xbf16> to vector<64x8xbf16>
    %cst_238 = arith.constant dense<0.000000e+00> : vector<16x64xf32>
    %542 = tpu.matmul %540, %541, %cst_238 {dimension_numbers = #tpu.dot_dimension_numbers<[1], [1], [0], [0], [0, 0, 1, 0], [], []>} : vector<16x8xbf16>, vector<64x8xbf16>, vector<16x64xf32> -> vector<16x64xf32>
    %cst_239 = arith.constant dense<0xFF800000> : vector<16xf32>
    %543 = vector.multi_reduction <maximumf>, %542, %cst_239 [1] : vector<16x64xf32> to vector<16xf32>
    %544 = vector.shape_cast %543 : vector<16xf32> to vector<16x1xf32>
    %545 = vector.broadcast %544 : vector<16x1xf32> to vector<16x64xf32>
    %546 = arith.subf %542, %545 : vector<16x64xf32>
    %547 = math.exp %546 : vector<16x64xf32>
    %cst_240 = arith.constant dense<0.000000e+00> : vector<16xf32>
    %548 = vector.multi_reduction <add>, %547, %cst_240 [1] : vector<16x64xf32> to vector<16xf32>
    %549 = vector.shape_cast %548 : vector<16xf32> to vector<16x1xf32>
    %550 = tpu.reciprocal %549 {approx = true} : vector<16x1xf32> -> vector<16x1xf32>
    %551 = vector.broadcast %550 : vector<16x1xf32> to vector<16x64xf32>
    %552 = arith.mulf %547, %551 : vector<16x64xf32>
    %553 = arith.truncf %552 : vector<16x64xf32> to vector<16x64xbf16>
    %554 = vector.extract_strided_slice %484 {offsets = [0, 24], sizes = [64, 8], strides = [1, 1]} : vector<64x32xbf16> to vector<64x8xbf16>
    %cst_241 = arith.constant dense<0.000000e+00> : vector<16x8xf32>
    %555 = tpu.matmul %553, %554, %cst_241 {dimension_numbers = #tpu.dot_dimension_numbers<[1], [0], [0], [1], [0, 0, 1, 1], [], []>} : vector<16x64xbf16>, vector<64x8xbf16>, vector<16x8xf32> -> vector<16x8xf32>
    %556 = tpu.concatenate %507, %523, %539, %555 in 1 : vector<16x8xf32>, vector<16x8xf32>, vector<16x8xf32>, vector<16x8xf32> -> vector<16x32xf32>
    %557 = arith.truncf %556 : vector<16x32xf32> to vector<16x32xbf16>
    %cst_242 = arith.constant dense<0.000000e+00> : vector<16x32xf32>
    %558 = tpu.matmul %557, %486, %cst_242 {dimension_numbers = #tpu.dot_dimension_numbers<[1], [0], [0], [1], [0, 0, 1, 1], [], []>} : vector<16x32xbf16>, vector<32x32xbf16>, vector<16x32xf32> -> vector<16x32xf32>
    %559 = vector.broadcast %488 : vector<1x32xf32> to vector<16x32xf32>
    %560 = arith.addf %558, %559 : vector<16x32xf32>
    %561 = arith.addf %560, %464 : vector<16x32xf32>
    %c1_243 = arith.constant 1 : index
    %c0_244 = arith.constant 0 : index
    %c0_245 = arith.constant 0 : index
    %562 = vector.load %arg19[%c1_243, %c0_244, %c0_245] : memref<2x1x32xf32, #tpu.memory_space<vmem>>, vector<1x1x32xf32>
    %563 = vector.shape_cast %562 : vector<1x1x32xf32> to vector<1x32xf32>
    %c1_246 = arith.constant 1 : index
    %c0_247 = arith.constant 0 : index
    %c0_248 = arith.constant 0 : index
    %564 = vector.load %arg20[%c1_246, %c0_247, %c0_248] : memref<2x1x32xf32, #tpu.memory_space<vmem>>, vector<1x1x32xf32>
    %565 = vector.shape_cast %564 : vector<1x1x32xf32> to vector<1x32xf32>
    %cst_249 = arith.constant dense<0.000000e+00> : vector<16xf32>
    %566 = vector.multi_reduction <add>, %561, %cst_249 [1] : vector<16x32xf32> to vector<16xf32>
    %567 = vector.shape_cast %566 : vector<16xf32> to vector<16x1xf32>
    %cst_250 = arith.constant 3.200000e+01 : f32
    %568 = vector.broadcast %cst_250 : f32 to vector<16x1xf32>
    %569 = arith.divf %567, %568 : vector<16x1xf32>
    %570 = vector.broadcast %569 : vector<16x1xf32> to vector<16x32xf32>
    %571 = arith.subf %561, %570 : vector<16x32xf32>
    %572 = arith.mulf %571, %571 : vector<16x32xf32>
    %cst_251 = arith.constant dense<0.000000e+00> : vector<16xf32>
    %573 = vector.multi_reduction <add>, %572, %cst_251 [1] : vector<16x32xf32> to vector<16xf32>
    %574 = vector.shape_cast %573 : vector<16xf32> to vector<16x1xf32>
    %cst_252 = arith.constant 3.200000e+01 : f32
    %575 = vector.broadcast %cst_252 : f32 to vector<16x1xf32>
    %576 = arith.divf %574, %575 : vector<16x1xf32>
    %577 = vector.broadcast %569 : vector<16x1xf32> to vector<16x32xf32>
    %578 = arith.subf %561, %577 : vector<16x32xf32>
    %cst_253 = arith.constant 9.99999974E-6 : f32
    %579 = vector.broadcast %cst_253 : f32 to vector<16x1xf32>
    %580 = arith.addf %576, %579 : vector<16x1xf32>
    %581 = math.rsqrt %580 : vector<16x1xf32>
    %582 = vector.broadcast %581 : vector<16x1xf32> to vector<16x32xf32>
    %583 = arith.mulf %578, %582 : vector<16x32xf32>
    %584 = vector.broadcast %563 : vector<1x32xf32> to vector<16x32xf32>
    %585 = arith.mulf %583, %584 : vector<16x32xf32>
    %586 = vector.broadcast %565 : vector<1x32xf32> to vector<16x32xf32>
    %587 = arith.addf %585, %586 : vector<16x32xf32>
    %c1_254 = arith.constant 1 : index
    %c0_255 = arith.constant 0 : index
    %c0_256 = arith.constant 0 : index
    %588 = vector.load %arg21[%c1_254, %c0_255, %c0_256] : memref<2x32x64xbf16, #tpu.memory_space<vmem>>, vector<1x32x64xbf16>
    %589 = vector.shape_cast %588 : vector<1x32x64xbf16> to vector<32x64xbf16>
    %c1_257 = arith.constant 1 : index
    %c0_258 = arith.constant 0 : index
    %c0_259 = arith.constant 0 : index
    %590 = vector.load %arg22[%c1_257, %c0_258, %c0_259] : memref<2x1x64xf32, #tpu.memory_space<vmem>>, vector<1x1x64xf32>
    %591 = vector.shape_cast %590 : vector<1x1x64xf32> to vector<1x64xf32>
    %592 = arith.truncf %587 : vector<16x32xf32> to vector<16x32xbf16>
    %cst_260 = arith.constant dense<0.000000e+00> : vector<16x64xf32>
    %593 = tpu.matmul %592, %589, %cst_260 {dimension_numbers = #tpu.dot_dimension_numbers<[1], [0], [0], [1], [0, 0, 1, 1], [], []>} : vector<16x32xbf16>, vector<32x64xbf16>, vector<16x64xf32> -> vector<16x64xf32>
    %594 = vector.broadcast %591 : vector<1x64xf32> to vector<16x64xf32>
    %595 = arith.addf %593, %594 : vector<16x64xf32>
    %cst_261 = arith.constant 0.000000e+00 : f32
    %596 = vector.broadcast %cst_261 : f32 to vector<16x64xf32>
    %597 = arith.maximumf %595, %596 : vector<16x64xf32>
    %c1_262 = arith.constant 1 : index
    %c0_263 = arith.constant 0 : index
    %c0_264 = arith.constant 0 : index
    %598 = vector.load %arg23[%c1_262, %c0_263, %c0_264] : memref<2x64x32xbf16, #tpu.memory_space<vmem>>, vector<1x64x32xbf16>
    %599 = vector.shape_cast %598 : vector<1x64x32xbf16> to vector<64x32xbf16>
    %c1_265 = arith.constant 1 : index
    %c0_266 = arith.constant 0 : index
    %c0_267 = arith.constant 0 : index
    %600 = vector.load %arg24[%c1_265, %c0_266, %c0_267] : memref<2x1x32xf32, #tpu.memory_space<vmem>>, vector<1x1x32xf32>
    %601 = vector.shape_cast %600 : vector<1x1x32xf32> to vector<1x32xf32>
    %602 = arith.truncf %597 : vector<16x64xf32> to vector<16x64xbf16>
    %cst_268 = arith.constant dense<0.000000e+00> : vector<16x32xf32>
    %603 = tpu.matmul %602, %599, %cst_268 {dimension_numbers = #tpu.dot_dimension_numbers<[1], [0], [0], [1], [0, 0, 1, 1], [], []>} : vector<16x64xbf16>, vector<64x32xbf16>, vector<16x32xf32> -> vector<16x32xf32>
    %604 = vector.broadcast %601 : vector<1x32xf32> to vector<16x32xf32>
    %605 = arith.addf %603, %604 : vector<16x32xf32>
    %606 = arith.addf %605, %587 : vector<16x32xf32>
    %c1_269 = arith.constant 1 : index
    %c0_270 = arith.constant 0 : index
    %c0_271 = arith.constant 0 : index
    %607 = vector.load %arg25[%c1_269, %c0_270, %c0_271] : memref<2x1x32xf32, #tpu.memory_space<vmem>>, vector<1x1x32xf32>
    %608 = vector.shape_cast %607 : vector<1x1x32xf32> to vector<1x32xf32>
    %c1_272 = arith.constant 1 : index
    %c0_273 = arith.constant 0 : index
    %c0_274 = arith.constant 0 : index
    %609 = vector.load %arg26[%c1_272, %c0_273, %c0_274] : memref<2x1x32xf32, #tpu.memory_space<vmem>>, vector<1x1x32xf32>
    %610 = vector.shape_cast %609 : vector<1x1x32xf32> to vector<1x32xf32>
    %cst_275 = arith.constant dense<0.000000e+00> : vector<16xf32>
    %611 = vector.multi_reduction <add>, %606, %cst_275 [1] : vector<16x32xf32> to vector<16xf32>
    %612 = vector.shape_cast %611 : vector<16xf32> to vector<16x1xf32>
    %cst_276 = arith.constant 3.200000e+01 : f32
    %613 = vector.broadcast %cst_276 : f32 to vector<16x1xf32>
    %614 = arith.divf %612, %613 : vector<16x1xf32>
    %615 = vector.broadcast %614 : vector<16x1xf32> to vector<16x32xf32>
    %616 = arith.subf %606, %615 : vector<16x32xf32>
    %617 = arith.mulf %616, %616 : vector<16x32xf32>
    %cst_277 = arith.constant dense<0.000000e+00> : vector<16xf32>
    %618 = vector.multi_reduction <add>, %617, %cst_277 [1] : vector<16x32xf32> to vector<16xf32>
    %619 = vector.shape_cast %618 : vector<16xf32> to vector<16x1xf32>
    %cst_278 = arith.constant 3.200000e+01 : f32
    %620 = vector.broadcast %cst_278 : f32 to vector<16x1xf32>
    %621 = arith.divf %619, %620 : vector<16x1xf32>
    %622 = vector.broadcast %614 : vector<16x1xf32> to vector<16x32xf32>
    %623 = arith.subf %606, %622 : vector<16x32xf32>
    %cst_279 = arith.constant 9.99999974E-6 : f32
    %624 = vector.broadcast %cst_279 : f32 to vector<16x1xf32>
    %625 = arith.addf %621, %624 : vector<16x1xf32>
    %626 = math.rsqrt %625 : vector<16x1xf32>
    %627 = vector.broadcast %626 : vector<16x1xf32> to vector<16x32xf32>
    %628 = arith.mulf %623, %627 : vector<16x32xf32>
    %629 = vector.broadcast %608 : vector<1x32xf32> to vector<16x32xf32>
    %630 = arith.mulf %628, %629 : vector<16x32xf32>
    %631 = vector.broadcast %610 : vector<1x32xf32> to vector<16x32xf32>
    %632 = arith.addf %630, %631 : vector<16x32xf32>
    %c1_280 = arith.constant 1 : index
    %c0_281 = arith.constant 0 : index
    %c0_282 = arith.constant 0 : index
    %633 = vector.load %arg27[%c1_280, %c0_281, %c0_282] : memref<2x32x32xbf16, #tpu.memory_space<vmem>>, vector<1x32x32xbf16>
    %634 = vector.shape_cast %633 : vector<1x32x32xbf16> to vector<32x32xbf16>
    %c1_283 = arith.constant 1 : index
    %c0_284 = arith.constant 0 : index
    %c0_285 = arith.constant 0 : index
    %635 = vector.load %arg28[%c1_283, %c0_284, %c0_285] : memref<2x1x32xf32, #tpu.memory_space<vmem>>, vector<1x1x32xf32>
    %636 = vector.shape_cast %635 : vector<1x1x32xf32> to vector<1x32xf32>
    %637 = arith.truncf %632 : vector<16x32xf32> to vector<16x32xbf16>
    %cst_286 = arith.constant dense<0.000000e+00> : vector<16x32xf32>
    %638 = tpu.matmul %637, %634, %cst_286 {dimension_numbers = #tpu.dot_dimension_numbers<[1], [0], [0], [1], [0, 0, 1, 1], [], []>} : vector<16x32xbf16>, vector<32x32xbf16>, vector<16x32xf32> -> vector<16x32xf32>
    %639 = vector.broadcast %636 : vector<1x32xf32> to vector<16x32xf32>
    %640 = arith.addf %638, %639 : vector<16x32xf32>
    %cst_287 = arith.constant 0.000000e+00 : f32
    %641 = vector.broadcast %cst_287 : f32 to vector<16x32xf32>
    %642 = arith.maximumf %640, %641 : vector<16x32xf32>
    %c1_288 = arith.constant 1 : index
    %c0_289 = arith.constant 0 : index
    %c0_290 = arith.constant 0 : index
    %643 = vector.load %arg29[%c1_288, %c0_289, %c0_290] : memref<2x32x8xbf16, #tpu.memory_space<vmem>>, vector<1x32x8xbf16>
    %644 = vector.shape_cast %643 : vector<1x32x8xbf16> to vector<32x8xbf16>
    %c1_291 = arith.constant 1 : index
    %c0_292 = arith.constant 0 : index
    %c0_293 = arith.constant 0 : index
    %645 = vector.load %arg30[%c1_291, %c0_292, %c0_293] : memref<2x1x8xf32, #tpu.memory_space<vmem>>, vector<1x1x8xf32>
    %646 = vector.shape_cast %645 : vector<1x1x8xf32> to vector<1x8xf32>
    %647 = arith.truncf %642 : vector<16x32xf32> to vector<16x32xbf16>
    %cst_294 = arith.constant dense<0.000000e+00> : vector<16x8xf32>
    %648 = tpu.matmul %647, %644, %cst_294 {dimension_numbers = #tpu.dot_dimension_numbers<[1], [0], [0], [1], [0, 0, 1, 1], [], []>} : vector<16x32xbf16>, vector<32x8xbf16>, vector<16x8xf32> -> vector<16x8xf32>
    %649 = vector.broadcast %646 : vector<1x8xf32> to vector<16x8xf32>
    %650 = arith.addf %648, %649 : vector<16x8xf32>
    %651 = vector.extract_strided_slice %650 {offsets = [0, 0], sizes = [16, 3], strides = [1, 1]} : vector<16x8xf32> to vector<16x3xf32>
    %cst_295 = arith.constant 0.000000e+00 : f32
    %cst_296 = arith.constant 1.000000e+00 : f32
    %652 = vector.broadcast %cst_295 : f32 to vector<16x3xf32>
    %653 = arith.maximumf %652, %340 : vector<16x3xf32>
    %654 = vector.broadcast %cst_296 : f32 to vector<16x3xf32>
    %655 = arith.minimumf %654, %653 : vector<16x3xf32>
    %cst_297 = arith.constant 9.99999974E-6 : f32
    %656 = vector.broadcast %cst_297 : f32 to vector<16x3xf32>
    %657 = arith.maximumf %655, %656 : vector<16x3xf32>
    %658 = math.log %657 : vector<16x3xf32>
    %cst_298 = arith.constant 1.000000e+00 : f32
    %659 = vector.broadcast %cst_298 : f32 to vector<16x3xf32>
    %660 = arith.subf %659, %655 : vector<16x3xf32>
    %cst_299 = arith.constant 9.99999974E-6 : f32
    %661 = vector.broadcast %cst_299 : f32 to vector<16x3xf32>
    %662 = arith.maximumf %660, %661 : vector<16x3xf32>
    %663 = math.log %662 : vector<16x3xf32>
    %664 = arith.subf %658, %663 : vector<16x3xf32>
    %665 = arith.addf %651, %664 : vector<16x3xf32>
    %cst_300 = arith.constant 0.000000e+00 : f32
    %666 = vector.broadcast %cst_300 : f32 to vector<16x3xf32>
    %667 = arith.subf %666, %665 : vector<16x3xf32>
    %668 = math.exp %667 : vector<16x3xf32>
    %cst_301 = arith.constant 1.000000e+00 : f32
    %669 = vector.broadcast %cst_301 : f32 to vector<16x3xf32>
    %670 = arith.addf %669, %668 : vector<16x3xf32>
    %cst_302 = arith.constant 1.000000e+00 : f32
    %671 = vector.broadcast %cst_302 : f32 to vector<16x3xf32>
    %672 = arith.divf %671, %670 : vector<16x3xf32>
    %673 = vector.extract_strided_slice %632 {offsets = [0, 0], sizes = [4, 32], strides = [1, 1]} : vector<16x32xf32> to vector<4x32xf32>
    %674 = vector.extract_strided_slice %632 {offsets = [4, 0], sizes = [4, 32], strides = [1, 1]} : vector<16x32xf32> to vector<4x32xf32>
    %675 = vector.extract_strided_slice %632 {offsets = [8, 0], sizes = [4, 32], strides = [1, 1]} : vector<16x32xf32> to vector<4x32xf32>
    %676 = vector.extract_strided_slice %632 {offsets = [12, 0], sizes = [4, 32], strides = [1, 1]} : vector<16x32xf32> to vector<4x32xf32>
    %677 = tpu.concatenate %673, %674, %675, %676 in 1 : vector<4x32xf32>, vector<4x32xf32>, vector<4x32xf32>, vector<4x32xf32> -> vector<4x128xf32>
    %c0_303 = arith.constant 0 : index
    %c0_304 = arith.constant 0 : index
    %c0_305 = arith.constant 0 : index
    %c0_306 = arith.constant 0 : index
    %678 = vector.load %arg31[%c0_303, %c0_304, %c0_305, %c0_306] : memref<1x1x4x128xf32, #tpu.memory_space<vmem>>, vector<1x1x4x128xf32>
    %679 = vector.shape_cast %678 : vector<1x1x4x128xf32> to vector<4x128xf32>
    %680 = vector.shape_cast %677 : vector<4x128xf32> to vector<1x1x4x128xf32>
    tpu.vector_store %arg31[%c0_303, %c0_304, %c0_305, %c0_306], %680 {strides = array<i32>} : memref<1x1x4x128xf32, #tpu.memory_space<vmem>>, vector<1x1x4x128xf32>,
    %c0_307 = arith.constant 0 : index
    %c0_308 = arith.constant 0 : index
    %c0_309 = arith.constant 0 : index
    %c0_310 = arith.constant 0 : index
    %681 = vector.load %arg32[%c0_307, %c0_308, %c0_309, %c0_310] : memref<1x1x16x3xf32, #tpu.memory_space<vmem>>, vector<1x1x16x3xf32>
    %682 = vector.shape_cast %681 : vector<1x1x16x3xf32> to vector<16x3xf32>
    %683 = vector.shape_cast %672 : vector<16x3xf32> to vector<1x1x16x3xf32>
    tpu.vector_store %arg32[%c0_307, %c0_308, %c0_309, %c0_310], %683 {strides = array<i32>} : memref<1x1x16x3xf32, #tpu.memory_space<vmem>>, vector<1x1x16x3xf32>,
    return
  }
  func.func @transform_0(%arg0: i32) -> (i32, i32, i32) {
    %c0_i32 = arith.constant 0 : i32
    %c0_i32_0 = arith.constant 0 : i32
    %c0_i32_1 = arith.constant 0 : i32
    return %arg0, %c0_i32, %c0_i32_0 : i32, i32, i32
  }
  func.func @transform_1(%arg0: i32) -> (i32, i32, i32) {
    %c0_i32 = arith.constant 0 : i32
    %c0_i32_0 = arith.constant 0 : i32
    %c0_i32_1 = arith.constant 0 : i32
    return %arg0, %c0_i32, %c0_i32_0 : i32, i32, i32
  }
  func.func @transform_2(%arg0: i32) -> (i32, i32, i32) {
    %c0_i32 = arith.constant 0 : i32
    %c0_i32_0 = arith.constant 0 : i32
    %c0_i32_1 = arith.constant 0 : i32
    return %arg0, %c0_i32, %c0_i32_0 : i32, i32, i32
  }
  func.func @transform_3(%arg0: i32) -> (i32, i32, i32) {
    %c0_i32 = arith.constant 0 : i32
    %c0_i32_0 = arith.constant 0 : i32
    %c0_i32_1 = arith.constant 0 : i32
    return %arg0, %c0_i32, %c0_i32_0 : i32, i32, i32
  }
  func.func @transform_4(%arg0: i32) -> (i32, i32, i32) {
    %c0_i32 = arith.constant 0 : i32
    %c0_i32_0 = arith.constant 0 : i32
    %c0_i32_1 = arith.constant 0 : i32
    %c0_i32_2 = arith.constant 0 : i32
    return %c0_i32, %c0_i32_0, %c0_i32_1 : i32, i32, i32
  }
  func.func @transform_5(%arg0: i32) -> (i32, i32, i32) {
    %c0_i32 = arith.constant 0 : i32
    %c0_i32_0 = arith.constant 0 : i32
    %c0_i32_1 = arith.constant 0 : i32
    %c0_i32_2 = arith.constant 0 : i32
    return %c0_i32, %c0_i32_0, %c0_i32_1 : i32, i32, i32
  }
  func.func @transform_6(%arg0: i32) -> (i32, i32, i32) {
    %c0_i32 = arith.constant 0 : i32
    %c0_i32_0 = arith.constant 0 : i32
    %c0_i32_1 = arith.constant 0 : i32
    %c0_i32_2 = arith.constant 0 : i32
    return %c0_i32, %c0_i32_0, %c0_i32_1 : i32, i32, i32
  }
  func.func @transform_7(%arg0: i32) -> (i32, i32, i32) {
    %c0_i32 = arith.constant 0 : i32
    %c0_i32_0 = arith.constant 0 : i32
    %c0_i32_1 = arith.constant 0 : i32
    %c0_i32_2 = arith.constant 0 : i32
    return %c0_i32, %c0_i32_0, %c0_i32_1 : i32, i32, i32
  }
  func.func @transform_8(%arg0: i32) -> (i32, i32, i32) {
    %c0_i32 = arith.constant 0 : i32
    %c0_i32_0 = arith.constant 0 : i32
    %c0_i32_1 = arith.constant 0 : i32
    %c0_i32_2 = arith.constant 0 : i32
    return %c0_i32, %c0_i32_0, %c0_i32_1 : i32, i32, i32
  }
  func.func @transform_9(%arg0: i32) -> (i32, i32, i32) {
    %c0_i32 = arith.constant 0 : i32
    %c0_i32_0 = arith.constant 0 : i32
    %c0_i32_1 = arith.constant 0 : i32
    %c0_i32_2 = arith.constant 0 : i32
    return %c0_i32, %c0_i32_0, %c0_i32_1 : i32, i32, i32
  }
  func.func @transform_10(%arg0: i32) -> (i32, i32, i32) {
    %c0_i32 = arith.constant 0 : i32
    %c0_i32_0 = arith.constant 0 : i32
    %c0_i32_1 = arith.constant 0 : i32
    %c0_i32_2 = arith.constant 0 : i32
    return %c0_i32, %c0_i32_0, %c0_i32_1 : i32, i32, i32
  }
  func.func @transform_11(%arg0: i32) -> (i32, i32, i32) {
    %c0_i32 = arith.constant 0 : i32
    %c0_i32_0 = arith.constant 0 : i32
    %c0_i32_1 = arith.constant 0 : i32
    %c0_i32_2 = arith.constant 0 : i32
    return %c0_i32, %c0_i32_0, %c0_i32_1 : i32, i32, i32
  }
  func.func @transform_12(%arg0: i32) -> (i32, i32, i32) {
    %c0_i32 = arith.constant 0 : i32
    %c0_i32_0 = arith.constant 0 : i32
    %c0_i32_1 = arith.constant 0 : i32
    %c0_i32_2 = arith.constant 0 : i32
    return %c0_i32, %c0_i32_0, %c0_i32_1 : i32, i32, i32
  }
  func.func @transform_13(%arg0: i32) -> (i32, i32, i32) {
    %c0_i32 = arith.constant 0 : i32
    %c0_i32_0 = arith.constant 0 : i32
    %c0_i32_1 = arith.constant 0 : i32
    %c0_i32_2 = arith.constant 0 : i32
    return %c0_i32, %c0_i32_0, %c0_i32_1 : i32, i32, i32
  }
  func.func @transform_14(%arg0: i32) -> (i32, i32, i32) {
    %c0_i32 = arith.constant 0 : i32
    %c0_i32_0 = arith.constant 0 : i32
    %c0_i32_1 = arith.constant 0 : i32
    %c0_i32_2 = arith.constant 0 : i32
    return %c0_i32, %c0_i32_0, %c0_i32_1 : i32, i32, i32
  }
  func.func @transform_15(%arg0: i32) -> (i32, i32, i32) {
    %c0_i32 = arith.constant 0 : i32
    %c0_i32_0 = arith.constant 0 : i32
    %c0_i32_1 = arith.constant 0 : i32
    %c0_i32_2 = arith.constant 0 : i32
    return %c0_i32, %c0_i32_0, %c0_i32_1 : i32, i32, i32
  }
  func.func @transform_16(%arg0: i32) -> (i32, i32, i32) {
    %c0_i32 = arith.constant 0 : i32
    %c0_i32_0 = arith.constant 0 : i32
    %c0_i32_1 = arith.constant 0 : i32
    %c0_i32_2 = arith.constant 0 : i32
    return %c0_i32, %c0_i32_0, %c0_i32_1 : i32, i32, i32
  }
  func.func @transform_17(%arg0: i32) -> (i32, i32, i32) {
    %c0_i32 = arith.constant 0 : i32
    %c0_i32_0 = arith.constant 0 : i32
    %c0_i32_1 = arith.constant 0 : i32
    %c0_i32_2 = arith.constant 0 : i32
    return %c0_i32, %c0_i32_0, %c0_i32_1 : i32, i32, i32
  }
  func.func @transform_18(%arg0: i32) -> (i32, i32, i32) {
    %c0_i32 = arith.constant 0 : i32
    %c0_i32_0 = arith.constant 0 : i32
    %c0_i32_1 = arith.constant 0 : i32
    %c0_i32_2 = arith.constant 0 : i32
    return %c0_i32, %c0_i32_0, %c0_i32_1 : i32, i32, i32
  }
  func.func @transform_19(%arg0: i32) -> (i32, i32, i32) {
    %c0_i32 = arith.constant 0 : i32
    %c0_i32_0 = arith.constant 0 : i32
    %c0_i32_1 = arith.constant 0 : i32
    %c0_i32_2 = arith.constant 0 : i32
    return %c0_i32, %c0_i32_0, %c0_i32_1 : i32, i32, i32
  }
  func.func @transform_20(%arg0: i32) -> (i32, i32, i32) {
    %c0_i32 = arith.constant 0 : i32
    %c0_i32_0 = arith.constant 0 : i32
    %c0_i32_1 = arith.constant 0 : i32
    %c0_i32_2 = arith.constant 0 : i32
    return %c0_i32, %c0_i32_0, %c0_i32_1 : i32, i32, i32
  }
  func.func @transform_21(%arg0: i32) -> (i32, i32, i32) {
    %c0_i32 = arith.constant 0 : i32
    %c0_i32_0 = arith.constant 0 : i32
    %c0_i32_1 = arith.constant 0 : i32
    %c0_i32_2 = arith.constant 0 : i32
    return %c0_i32, %c0_i32_0, %c0_i32_1 : i32, i32, i32
  }
  func.func @transform_22(%arg0: i32) -> (i32, i32, i32) {
    %c0_i32 = arith.constant 0 : i32
    %c0_i32_0 = arith.constant 0 : i32
    %c0_i32_1 = arith.constant 0 : i32
    %c0_i32_2 = arith.constant 0 : i32
    return %c0_i32, %c0_i32_0, %c0_i32_1 : i32, i32, i32
  }
  func.func @transform_23(%arg0: i32) -> (i32, i32, i32) {
    %c0_i32 = arith.constant 0 : i32
    %c0_i32_0 = arith.constant 0 : i32
    %c0_i32_1 = arith.constant 0 : i32
    %c0_i32_2 = arith.constant 0 : i32
    return %c0_i32, %c0_i32_0, %c0_i32_1 : i32, i32, i32
  }
  func.func @transform_24(%arg0: i32) -> (i32, i32, i32) {
    %c0_i32 = arith.constant 0 : i32
    %c0_i32_0 = arith.constant 0 : i32
    %c0_i32_1 = arith.constant 0 : i32
    %c0_i32_2 = arith.constant 0 : i32
    return %c0_i32, %c0_i32_0, %c0_i32_1 : i32, i32, i32
  }
  func.func @transform_25(%arg0: i32) -> (i32, i32, i32) {
    %c0_i32 = arith.constant 0 : i32
    %c0_i32_0 = arith.constant 0 : i32
    %c0_i32_1 = arith.constant 0 : i32
    %c0_i32_2 = arith.constant 0 : i32
    return %c0_i32, %c0_i32_0, %c0_i32_1 : i32, i32, i32
  }
  func.func @transform_26(%arg0: i32) -> (i32, i32, i32) {
    %c0_i32 = arith.constant 0 : i32
    %c0_i32_0 = arith.constant 0 : i32
    %c0_i32_1 = arith.constant 0 : i32
    %c0_i32_2 = arith.constant 0 : i32
    return %c0_i32, %c0_i32_0, %c0_i32_1 : i32, i32, i32
  }
  func.func @transform_27(%arg0: i32) -> (i32, i32, i32) {
    %c0_i32 = arith.constant 0 : i32
    %c0_i32_0 = arith.constant 0 : i32
    %c0_i32_1 = arith.constant 0 : i32
    %c0_i32_2 = arith.constant 0 : i32
    return %c0_i32, %c0_i32_0, %c0_i32_1 : i32, i32, i32
  }
  func.func @transform_28(%arg0: i32) -> (i32, i32, i32) {
    %c0_i32 = arith.constant 0 : i32
    %c0_i32_0 = arith.constant 0 : i32
    %c0_i32_1 = arith.constant 0 : i32
    %c0_i32_2 = arith.constant 0 : i32
    return %c0_i32, %c0_i32_0, %c0_i32_1 : i32, i32, i32
  }
  func.func @transform_29(%arg0: i32) -> (i32, i32, i32) {
    %c0_i32 = arith.constant 0 : i32
    %c0_i32_0 = arith.constant 0 : i32
    %c0_i32_1 = arith.constant 0 : i32
    %c0_i32_2 = arith.constant 0 : i32
    return %c0_i32, %c0_i32_0, %c0_i32_1 : i32, i32, i32
  }
  func.func @transform_30(%arg0: i32) -> (i32, i32, i32, i32) {
    %c0_i32 = arith.constant 0 : i32
    %c0_i32_0 = arith.constant 0 : i32
    %c0_i32_1 = arith.constant 0 : i32
    %c0_i32_2 = arith.constant 0 : i32
    return %c0_i32, %arg0, %c0_i32_0, %c0_i32_1 : i32, i32, i32, i32
  }
  func.func @transform_31(%arg0: i32) -> (i32, i32, i32, i32) {
    %c0_i32 = arith.constant 0 : i32
    %c0_i32_0 = arith.constant 0 : i32
    %c0_i32_1 = arith.constant 0 : i32
    %c0_i32_2 = arith.constant 0 : i32
    return %c0_i32, %arg0, %c0_i32_0, %c0_i32_1 : i32, i32, i32, i32
  }
}

</mosaic_0001>

<llo_original>
// kernel: _mvp_decoder_forward.1
$region0: #{_mvp_decoder_forward.1}
  #allocation0 [shape = 'u32[]', space=smem, size = 0x4, offset = 0x4, fixed_abs, tag = 'smem constant byte address 0x4 - core index']
  #allocation1 [shape = 'u32[144,128]{1,0:T(1,128)}', space=vmem, size = 0x12000, scoped, tag = 'internal scratch']
  %s0 = inlined_call_operand.smem [shape: u32[32], index: -1, kind: input, shape index: {}]
  %s1 = sld [smem:[%s0]]
  %s2 = scalar_lea.smem %s0, 1
  %s3 = sld [smem:[%s2]]
  %s4 = scalar_lea.smem %s0, 2
  %s5 = sld [smem:[%s4]]
  %s6 = scalar_lea.smem %s0, 3
  %s7 = sld [smem:[%s6]]
  %s8 = scalar_lea.smem %s0, 4
  %s9 = sld [smem:[%s8]]
  %s10 = scalar_lea.smem %s0, 5
  %s11 = sld [smem:[%s10]]
  %s12 = scalar_lea.smem %s0, 6
  %s13 = sld [smem:[%s12]]
  %s14 = scalar_lea.smem %s0, 7
  %s15 = sld [smem:[%s14]]
  %s16 = scalar_lea.smem %s0, 8
  %s17 = sld [smem:[%s16]]
  %s18 = scalar_lea.smem %s0, 9
  %s19 = sld [smem:[%s18]]
  %s20 = scalar_lea.smem %s0, 10
  %s21 = sld [smem:[%s20]]
  %s22 = scalar_lea.smem %s0, 11
  %s23 = sld [smem:[%s22]]
  %s24 = scalar_lea.smem %s0, 12
  %s25 = sld [smem:[%s24]]
  %s26 = scalar_lea.smem %s0, 13
  %s27 = sld [smem:[%s26]]
  %s28 = scalar_lea.smem %s0, 14
  %s29 = sld [smem:[%s28]]
  %s30 = scalar_lea.smem %s0, 15
  %s31 = sld [smem:[%s30]]
  %s32 = scalar_lea.smem %s0, 16
  %s33 = sld [smem:[%s32]]
  %s34 = scalar_lea.smem %s0, 17
  %s35 = sld [smem:[%s34]]
  %s36 = scalar_lea.smem %s0, 18
  %s37 = sld [smem:[%s36]]
  %s38 = scalar_lea.smem %s0, 19
  %s39 = sld [smem:[%s38]]
  %s40 = scalar_lea.smem %s0, 20
  %s41 = sld [smem:[%s40]]
  %s42 = scalar_lea.smem %s0, 21
  %s43 = sld [smem:[%s42]]
  %s44 = scalar_lea.smem %s0, 22
  %s45 = sld [smem:[%s44]]
  %s46 = scalar_lea.smem %s0, 23
  %s47 = sld [smem:[%s46]]
  %s48 = scalar_lea.smem %s0, 24
  %s49 = sld [smem:[%s48]]
  %s50 = scalar_lea.smem %s0, 25
  %s51 = sld [smem:[%s50]]
  %s52 = scalar_lea.smem %s0, 26
  %s53 = sld [smem:[%s52]]
  %s54 = scalar_lea.smem %s0, 27
  %s55 = sld [smem:[%s54]]
  %s56 = scalar_lea.smem %s0, 28
  %s57 = sld [smem:[%s56]]
  %s58 = scalar_lea.smem %s0, 29
  %s59 = sld [smem:[%s58]]
  %s60 = scalar_lea.smem %s0, 30
  %s61 = sld [smem:[%s60]]
  %s62 = scalar_lea.smem %s0, 31
  %s63 = sld [smem:[%s62]]
  %64 = xla_tuple %s61, %s63
  %s65 = sld [smem:[#allocation0]]
  $region213: #{_mvp_decoder_forward.1} parent=0
    _
  %s67 = ssub.s32 1, %s65
  %s68 = scalar_select 0, %s67, %s65
  $region1: #{_mvp_decoder_forward.1} parent=0
    #allocation2 [shape = 'u8[1024]{0}', space=vmem, size = 0x400, scoped, tag = 'input window, operand 10, single buffered']
    #allocation3 [shape = 's32[2]{0}', space=sflag, size = 0x8, scoped, tag = 'scoped memory for _mvp_decoder_forward.1']
    #allocation4 [shape = 'u8[1024]{0}', space=vmem, size = 0x400, scoped, tag = 'input window, operand 11, single buffered']
    #allocation5 [shape = 's32[1]{0}', space=sflag, size = 0x4, scoped, tag = 'scoped memory for _mvp_decoder_forward.1']
    #allocation6 [shape = 'u8[1024]{0}', space=vmem, size = 0x400, scoped, tag = 'input window, operand 13, single buffered']
    #allocation7 [shape = 'u8[1024]{0}', space=vmem, size = 0x400, scoped, tag = 'input window, operand 15, single buffered']
    #allocation8 [shape = 's32[1]{0}', space=sflag, size = 0x4, scoped, tag = 'scoped memory for _mvp_decoder_forward.1']
    #allocation9 [shape = 'u8[1024]{0}', space=vmem, size = 0x400, scoped, tag = 'input window, operand 17, single buffered']
    #allocation10 [shape = 'u8[1024]{0}', space=vmem, size = 0x400, scoped, tag = 'input window, operand 18, single buffered']
    #allocation11 [shape = 's32[1]{0}', space=sflag, size = 0x4, scoped, tag = 'scoped memory for _mvp_decoder_forward.1']
    #allocation12 [shape = 'u8[1024]{0}', space=vmem, size = 0x400, scoped, tag = 'input window, operand 19, single buffered']
    #allocation13 [shape = 'u8[1024]{0}', space=vmem, size = 0x400, scoped, tag = 'input window, operand 21, single buffered']
    #allocation14 [shape = 's32[1]{0}', space=sflag, size = 0x4, scoped, tag = 'scoped memory for _mvp_decoder_forward.1']
    #allocation15 [shape = 'u8[1024]{0}', space=vmem, size = 0x400, scoped, tag = 'input window, operand 23, single buffered']
    #allocation16 [shape = 'u8[1024]{0}', space=vmem, size = 0x400, scoped, tag = 'input window, operand 24, single buffered']
    #allocation17 [shape = 's32[1]{0}', space=sflag, size = 0x4, scoped, tag = 'scoped memory for _mvp_decoder_forward.1']
    #allocation18 [shape = 'u8[1024]{0}', space=vmem, size = 0x400, scoped, tag = 'input window, operand 25, single buffered']
    #allocation19 [shape = 'u8[1024]{0}', space=vmem, size = 0x400, scoped, tag = 'input window, operand 27, single buffered']
    #allocation20 [shape = 's32[1]{0}', space=sflag, size = 0x4, scoped, tag = 'scoped memory for _mvp_decoder_forward.1']
    #allocation21 [shape = 'u8[1024]{0}', space=vmem, size = 0x400, scoped, tag = 'input window, operand 29, single buffered']
    %69 = vsyncpa [#allocation3], 0
    %70 = vsyncpa [#allocation5], 0
    %71 = vsyncpa [#allocation8], 0
    %72 = vsyncpa [#allocation11], 0
    %73 = vsyncpa [#allocation14], 0
    %74 = vsyncpa [#allocation17], 0
    %75 = vsyncpa [#allocation20], 0
    loop: start=0, step=1, limit=4
    $region2: #{_mvp_decoder_forward.1} parent=1 // loop_pre_header
      _
    $region3: #{_mvp_decoder_forward.1} parent=1 // loop_header
      %s77 = sphi 0, %s81
      %p78 = scmp.ge.s32.totalorder %s77, 4
      %s87 = sphi 0, %s89
      %s90 = sphi 0, %s87
      %s91 = sphi 0, %s90
      %s107 = sphi 0, %s91
      %s113 = sphi 0, %s115
      %s116 = sphi 0, %s113
      %s117 = sphi 0, %s116
      %s133 = sphi 0, %s117
      %s139 = sphi 0, %s141
      %s142 = sphi 0, %s139
      %s143 = sphi 0, %s142
      %s159 = sphi 0, %s143
      %s165 = sphi 0, %s167
      %s168 = sphi 0, %s165
      %s169 = sphi 0, %s168
      %s185 = sphi 0, %s169
      %s189 = sphi 0, %s189
      %s191 = sphi 0, %s189
      %s192 = sphi 0, %s191
      %s206 = sphi 0, %s192
      %s210 = sphi 0, %s210
      %s212 = sphi 0, %s210
      %s213 = sphi 0, %s212
      %s227 = sphi 0, %s213
      %s231 = sphi 0, %s231
      %s233 = sphi 0, %s231
      %s234 = sphi 0, %s233
      %s248 = sphi 0, %s234
      %s252 = sphi 0, %s252
      %s254 = sphi 0, %s252
      %s255 = sphi 0, %s254
      %s269 = sphi 0, %s255
      %s273 = sphi 0, %s273
      %s275 = sphi 0, %s273
      %s276 = sphi 0, %s275
      %s290 = sphi 0, %s276
      %s294 = sphi 0, %s294
      %s296 = sphi 0, %s294
      %s297 = sphi 0, %s296
      %s311 = sphi 0, %s297
      %s315 = sphi 0, %s315
      %s317 = sphi 0, %s315
      %s318 = sphi 0, %s317
      %s332 = sphi 0, %s318
      %s336 = sphi 0, %s336
      %s338 = sphi 0, %s336
      %s339 = sphi 0, %s338
      %s353 = sphi 0, %s339
      %s357 = sphi 0, %s357
      %s359 = sphi 0, %s357
      %s360 = sphi 0, %s359
      %s374 = sphi 0, %s360
      %s378 = sphi 0, %s378
      %s380 = sphi 0, %s378
      %s381 = sphi 0, %s380
      %s395 = sphi 0, %s381
      %s399 = sphi 0, %s399
      %s401 = sphi 0, %s399
      %s402 = sphi 0, %s401
      %s416 = sphi 0, %s402
      %s420 = sphi 0, %s420
      %s422 = sphi 0, %s420
      %s423 = sphi 0, %s422
      %s437 = sphi 0, %s423
      %s441 = sphi 0, %s441
      %s443 = sphi 0, %s441
      %s444 = sphi 0, %s443
      %s458 = sphi 0, %s444
      %s462 = sphi 0, %s462
      %s464 = sphi 0, %s462
      %s465 = sphi 0, %s464
      %s479 = sphi 0, %s465
      %s483 = sphi 0, %s483
      %s485 = sphi 0, %s483
      %s486 = sphi 0, %s485
      %s500 = sphi 0, %s486
      %s504 = sphi 0, %s504
      %s506 = sphi 0, %s504
      %s507 = sphi 0, %s506
      %s521 = sphi 0, %s507
      %s525 = sphi 0, %s525
      %s527 = sphi 0, %s525
      %s528 = sphi 0, %s527
      %s542 = sphi 0, %s528
      %s546 = sphi 0, %s546
      %s548 = sphi 0, %s546
      %s549 = sphi 0, %s548
      %s563 = sphi 0, %s549
      %s567 = sphi 0, %s567
      %s569 = sphi 0, %s567
      %s570 = sphi 0, %s569
      %s584 = sphi 0, %s570
      %s588 = sphi 0, %s588
      %s590 = sphi 0, %s588
      %s591 = sphi 0, %s590
      %s605 = sphi 0, %s591
      %s609 = sphi 0, %s609
      %s611 = sphi 0, %s609
      %s612 = sphi 0, %s611
      %s626 = sphi 0, %s612
      %s630 = sphi 0, %s630
      %s632 = sphi 0, %s630
      %s633 = sphi 0, %s632
      %s647 = sphi 0, %s633
      %s651 = sphi 0, %s651
      %s653 = sphi 0, %s651
      %s654 = sphi 0, %s653
      %s668 = sphi 0, %s654
      %s672 = sphi 0, %s672
      %s674 = sphi 0, %s672
      %s675 = sphi 0, %s674
      %s689 = sphi 0, %s675
      %s693 = sphi 0, %s693
      %s695 = sphi 0, %s693
      %s696 = sphi 0, %s695
      %s710 = sphi 0, %s696
      %s714 = sphi 0, %s714
      %s716 = sphi 0, %s714
      %s717 = sphi 0, %s716
      %s731 = sphi 0, %s717
      %s737 = sphi 0, %s739
      %s740 = sphi 0, %s737
      %s741 = sphi 0, %s740
      %s757 = sphi 0, %s741
      %s763 = sphi 0, %s765
      %s766 = sphi 0, %s763
      %s767 = sphi 0, %s766
      %s783 = sphi 0, %s767
    $region4: #{_mvp_decoder_forward.1} parent=1 // loop_header_branch
      %80 = sbr.rel (%p78) target = $region8
    $region5: #{_mvp_decoder_forward.1} parent=1 // loop_body
      %s82 = ssub.s32 %s77, 1
      %s83 = ssub.s32 %s77, 2
      %s84 = sadd.s32 %s77, 1
      %s85 = ssub.s32 %s77, %s84
      %p86 = scmp.eq.s32.totalorder %s85, 0
      %s88 = sadd.s32 %s87, 1
      %s89 = scalar_select %p86, %s87, %s88
      %p92 = pneg %p86
      %p93 = scmp.eq.s32.totalorder %s77, 1
      %p94 = por %p92, %p93
      %p95 = scmp.ne.s32.totalorder %s87, %s90
      %p96 = scmp.eq.s32.totalorder %s77, 0
      %p97 = por %p95, %p96
      %p98 = scmp.ne.s32.totalorder %s87, %s90
      %p99 = scmp.eq.s32.totalorder %s82, 1
      %p100 = por %p98, %p99
      %p101 = scmp.ne.s32.totalorder %s90, %s91
      %p102 = scmp.eq.s32.totalorder %s82, 0
      %p103 = por %p101, %p102
      %p104 = scmp.ne.s32.totalorder %s90, %s91
      %p105 = scmp.eq.s32.totalorder %s83, 1
      %p106 = por %p104, %p105
      %p108 = scmp.ne.s32.totalorder %s91, %s107
      %p109 = scmp.eq.s32.totalorder %s83, 0
      %p110 = por %p108, %p109
      %s111 = ssub.s32 %s77, %s84
      %p112 = scmp.eq.s32.totalorder %s111, 0
      %s114 = sadd.s32 %s113, 1
      %s115 = scalar_select %p112, %s113, %s114
      %p118 = pneg %p112
      %p119 = scmp.eq.s32.totalorder %s77, 1
      %p120 = por %p118, %p119
      %p121 = scmp.ne.s32.totalorder %s113, %s116
      %p122 = scmp.eq.s32.totalorder %s77, 0
      %p123 = por %p121, %p122
      %p124 = scmp.ne.s32.totalorder %s113, %s116
      %p125 = scmp.eq.s32.totalorder %s82, 1
      %p126 = por %p124, %p125
      %p127 = scmp.ne.s32.totalorder %s116, %s117
      %p128 = scmp.eq.s32.totalorder %s82, 0
      %p129 = por %p127, %p128
      %p130 = scmp.ne.s32.totalorder %s116, %s117
      %p131 = scmp.eq.s32.totalorder %s83, 1
      %p132 = por %p130, %p131
      %p134 = scmp.ne.s32.totalorder %s117, %s133
      %p135 = scmp.eq.s32.totalorder %s83, 0
      %p136 = por %p134, %p135
      %s137 = ssub.s32 %s77, %s84
      %p138 = scmp.eq.s32.totalorder %s137, 0
      %s140 = sadd.s32 %s139, 1
      %s141 = scalar_select %p138, %s139, %s140
      %p144 = pneg %p138
      %p145 = scmp.eq.s32.totalorder %s77, 1
      %p146 = por %p144, %p145
      %p147 = scmp.ne.s32.totalorder %s139, %s142
      %p148 = scmp.eq.s32.totalorder %s77, 0
      %p149 = por %p147, %p148
      %p150 = scmp.ne.s32.totalorder %s139, %s142
      %p151 = scmp.eq.s32.totalorder %s82, 1
      %p152 = por %p150, %p151
      %p153 = scmp.ne.s32.totalorder %s142, %s143
      %p154 = scmp.eq.s32.totalorder %s82, 0
      %p155 = por %p153, %p154
      %p156 = scmp.ne.s32.totalorder %s142, %s143
      %p157 = scmp.eq.s32.totalorder %s83, 1
      %p158 = por %p156, %p157
      %p160 = scmp.ne.s32.totalorder %s143, %s159
      %p161 = scmp.eq.s32.totalorder %s83, 0
      %p162 = por %p160, %p161
      %s163 = ssub.s32 %s77, %s84
      %p164 = scmp.eq.s32.totalorder %s163, 0
      %s166 = sadd.s32 %s165, 1
      %s167 = scalar_select %p164, %s165, %s166
      %p170 = pneg %p164
      %p171 = scmp.eq.s32.totalorder %s77, 1
      %p172 = por %p170, %p171
      %p173 = scmp.ne.s32.totalorder %s165, %s168
      %p174 = scmp.eq.s32.totalorder %s77, 0
      %p175 = por %p173, %p174
      %p176 = scmp.ne.s32.totalorder %s165, %s168
      %p177 = scmp.eq.s32.totalorder %s82, 1
      %p178 = por %p176, %p177
      %p179 = scmp.ne.s32.totalorder %s168, %s169
      %p180 = scmp.eq.s32.totalorder %s82, 0
      %p181 = por %p179, %p180
      %p182 = scmp.ne.s32.totalorder %s168, %s169
      %p183 = scmp.eq.s32.totalorder %s83, 1
      %p184 = por %p182, %p183
      %p186 = scmp.ne.s32.totalorder %s169, %s185
      %p187 = scmp.eq.s32.totalorder %s83, 0
      %p188 = por %p186, %p187
      %s190 = sadd.s32 %s189, 1
      %p193 = scmp.eq.s32.totalorder %s77, 1
      %p194 = scmp.ne.s32.totalorder %s189, %s191
      %p195 = scmp.eq.s32.totalorder %s77, 0
      %p196 = por %p194, %p195
      %p197 = scmp.ne.s32.totalorder %s189, %s191
      %p198 = scmp.eq.s32.totalorder %s82, 1
      %p199 = por %p197, %p198
      %p200 = scmp.ne.s32.totalorder %s191, %s192
      %p201 = scmp.eq.s32.totalorder %s82, 0
      %p202 = por %p200, %p201
      %p203 = scmp.ne.s32.totalorder %s191, %s192
      %p204 = scmp.eq.s32.totalorder %s83, 1
      %p205 = por %p203, %p204
      %p207 = scmp.ne.s32.totalorder %s192, %s206
      %p208 = scmp.eq.s32.totalorder %s83, 0
      %p209 = por %p207, %p208
      %s211 = sadd.s32 %s210, 1
      %p214 = scmp.eq.s32.totalorder %s77, 1
      %p215 = scmp.ne.s32.totalorder %s210, %s212
      %p216 = scmp.eq.s32.totalorder %s77, 0
      %p217 = por %p215, %p216
      %p218 = scmp.ne.s32.totalorder %s210, %s212
      %p219 = scmp.eq.s32.totalorder %s82, 1
      %p220 = por %p218, %p219
      %p221 = scmp.ne.s32.totalorder %s212, %s213
      %p222 = scmp.eq.s32.totalorder %s82, 0
      %p223 = por %p221, %p222
      %p224 = scmp.ne.s32.totalorder %s212, %s213
      %p225 = scmp.eq.s32.totalorder %s83, 1
      %p226 = por %p224, %p225
      %p228 = scmp.ne.s32.totalorder %s213, %s227
      %p229 = scmp.eq.s32.totalorder %s83, 0
      %p230 = por %p228, %p229
      %s232 = sadd.s32 %s231, 1
      %p235 = scmp.eq.s32.totalorder %s77, 1
      %p236 = scmp.ne.s32.totalorder %s231, %s233
      %p237 = scmp.eq.s32.totalorder %s77, 0
      %p238 = por %p236, %p237
      %p239 = scmp.ne.s32.totalorder %s231, %s233
      %p240 = scmp.eq.s32.totalorder %s82, 1
      %p241 = por %p239, %p240
      %p242 = scmp.ne.s32.totalorder %s233, %s234
      %p243 = scmp.eq.s32.totalorder %s82, 0
      %p244 = por %p242, %p243
      %p245 = scmp.ne.s32.totalorder %s233, %s234
      %p246 = scmp.eq.s32.totalorder %s83, 1
      %p247 = por %p245, %p246
      %p249 = scmp.ne.s32.totalorder %s234, %s248
      %p250 = scmp.eq.s32.totalorder %s83, 0
      %p251 = por %p249, %p250
      %s253 = sadd.s32 %s252, 1
      %p256 = scmp.eq.s32.totalorder %s77, 1
      %p257 = scmp.ne.s32.totalorder %s252, %s254
      %p258 = scmp.eq.s32.totalorder %s77, 0
      %p259 = por %p257, %p258
      %p260 = scmp.ne.s32.totalorder %s252, %s254
      %p261 = scmp.eq.s32.totalorder %s82, 1
      %p262 = por %p260, %p261
      %p263 = scmp.ne.s32.totalorder %s254, %s255
      %p264 = scmp.eq.s32.totalorder %s82, 0
      %p265 = por %p263, %p264
      %p266 = scmp.ne.s32.totalorder %s254, %s255
      %p267 = scmp.eq.s32.totalorder %s83, 1
      %p268 = por %p266, %p267
      %p270 = scmp.ne.s32.totalorder %s255, %s269
      %p271 = scmp.eq.s32.totalorder %s83, 0
      %p272 = por %p270, %p271
      %s274 = sadd.s32 %s273, 1
      %p277 = scmp.eq.s32.totalorder %s77, 1
      %p278 = scmp.ne.s32.totalorder %s273, %s275
      %p279 = scmp.eq.s32.totalorder %s77, 0
      %p280 = por %p278, %p279
      %p281 = scmp.ne.s32.totalorder %s273, %s275
      %p282 = scmp.eq.s32.totalorder %s82, 1
      %p283 = por %p281, %p282
      %p284 = scmp.ne.s32.totalorder %s275, %s276
      %p285 = scmp.eq.s32.totalorder %s82, 0
      %p286 = por %p284, %p285
      %p287 = scmp.ne.s32.totalorder %s275, %s276
      %p288 = scmp.eq.s32.totalorder %s83, 1
      %p289 = por %p287, %p288
      %p291 = scmp.ne.s32.totalorder %s276, %s290
      %p292 = scmp.eq.s32.totalorder %s83, 0
      %p293 = por %p291, %p292
      %s295 = sadd.s32 %s294, 1
      %p298 = scmp.eq.s32.totalorder %s77, 1
      %p299 = scmp.ne.s32.totalorder %s294, %s296
      %p300 = scmp.eq.s32.totalorder %s77, 0
      %p301 = por %p299, %p300
      %p302 = scmp.ne.s32.totalorder %s294, %s296
      %p303 = scmp.eq.s32.totalorder %s82, 1
      %p304 = por %p302, %p303
      %p305 = scmp.ne.s32.totalorder %s296, %s297
      %p306 = scmp.eq.s32.totalorder %s82, 0
      %p307 = por %p305, %p306
      %p308 = scmp.ne.s32.totalorder %s296, %s297
      %p309 = scmp.eq.s32.totalorder %s83, 1
      %p310 = por %p308, %p309
      %p312 = scmp.ne.s32.totalorder %s297, %s311
      %p313 = scmp.eq.s32.totalorder %s83, 0
      %p314 = por %p312, %p313
      %s316 = sadd.s32 %s315, 1
      %p319 = scmp.eq.s32.totalorder %s77, 1
      %p320 = scmp.ne.s32.totalorder %s315, %s317
      %p321 = scmp.eq.s32.totalorder %s77, 0
      %p322 = por %p320, %p321
      %p323 = scmp.ne.s32.totalorder %s315, %s317
      %p324 = scmp.eq.s32.totalorder %s82, 1
      %p325 = por %p323, %p324
      %p326 = scmp.ne.s32.totalorder %s317, %s318
      %p327 = scmp.eq.s32.totalorder %s82, 0
      %p328 = por %p326, %p327
      %p329 = scmp.ne.s32.totalorder %s317, %s318
      %p330 = scmp.eq.s32.totalorder %s83, 1
      %p331 = por %p329, %p330
      %p333 = scmp.ne.s32.totalorder %s318, %s332
      %p334 = scmp.eq.s32.totalorder %s83, 0
      %p335 = por %p333, %p334
      %s337 = sadd.s32 %s336, 1
      %p340 = scmp.eq.s32.totalorder %s77, 1
      %p341 = scmp.ne.s32.totalorder %s336, %s338
      %p342 = scmp.eq.s32.totalorder %s77, 0
      %p343 = por %p341, %p342
      %p344 = scmp.ne.s32.totalorder %s336, %s338
      %p345 = scmp.eq.s32.totalorder %s82, 1
      %p346 = por %p344, %p345
      %p347 = scmp.ne.s32.totalorder %s338, %s339
      %p348 = scmp.eq.s32.totalorder %s82, 0
      %p349 = por %p347, %p348
      %p350 = scmp.ne.s32.totalorder %s338, %s339
      %p351 = scmp.eq.s32.totalorder %s83, 1
      %p352 = por %p350, %p351
      %p354 = scmp.ne.s32.totalorder %s339, %s353
      %p355 = scmp.eq.s32.totalorder %s83, 0
      %p356 = por %p354, %p355
      %s358 = sadd.s32 %s357, 1
      %p361 = scmp.eq.s32.totalorder %s77, 1
      %p362 = scmp.ne.s32.totalorder %s357, %s359
      %p363 = scmp.eq.s32.totalorder %s77, 0
      %p364 = por %p362, %p363
      %p365 = scmp.ne.s32.totalorder %s357, %s359
      %p366 = scmp.eq.s32.totalorder %s82, 1
      %p367 = por %p365, %p366
      %p368 = scmp.ne.s32.totalorder %s359, %s360
      %p369 = scmp.eq.s32.totalorder %s82, 0
      %p370 = por %p368, %p369
      %p371 = scmp.ne.s32.totalorder %s359, %s360
      %p372 = scmp.eq.s32.totalorder %s83, 1
      %p373 = por %p371, %p372
      %p375 = scmp.ne.s32.totalorder %s360, %s374
      %p376 = scmp.eq.s32.totalorder %s83, 0
      %p377 = por %p375, %p376
      %s379 = sadd.s32 %s378, 1
      %p382 = scmp.eq.s32.totalorder %s77, 1
      %p383 = scmp.ne.s32.totalorder %s378, %s380
      %p384 = scmp.eq.s32.totalorder %s77, 0
      %p385 = por %p383, %p384
      %p386 = scmp.ne.s32.totalorder %s378, %s380
      %p387 = scmp.eq.s32.totalorder %s82, 1
      %p388 = por %p386, %p387
      %p389 = scmp.ne.s32.totalorder %s380, %s381
      %p390 = scmp.eq.s32.totalorder %s82, 0
      %p391 = por %p389, %p390
      %p392 = scmp.ne.s32.totalorder %s380, %s381
      %p393 = scmp.eq.s32.totalorder %s83, 1
      %p394 = por %p392, %p393
      %p396 = scmp.ne.s32.totalorder %s381, %s395
      %p397 = scmp.eq.s32.totalorder %s83, 0
      %p398 = por %p396, %p397
      %s400 = sadd.s32 %s399, 1
      %p403 = scmp.eq.s32.totalorder %s77, 1
      %p404 = scmp.ne.s32.totalorder %s399, %s401
      %p405 = scmp.eq.s32.totalorder %s77, 0
      %p406 = por %p404, %p405
      %p407 = scmp.ne.s32.totalorder %s399, %s401
      %p408 = scmp.eq.s32.totalorder %s82, 1
      %p409 = por %p407, %p408
      %p410 = scmp.ne.s32.totalorder %s401, %s402
      %p411 = scmp.eq.s32.totalorder %s82, 0
      %p412 = por %p410, %p411
      %p413 = scmp.ne.s32.totalorder %s401, %s402
      %p414 = scmp.eq.s32.totalorder %s83, 1
      %p415 = por %p413, %p414
      %p417 = scmp.ne.s32.totalorder %s402, %s416
      %p418 = scmp.eq.s32.totalorder %s83, 0
      %p419 = por %p417, %p418
      %s421 = sadd.s32 %s420, 1
      %p424 = scmp.eq.s32.totalorder %s77, 1
      %p425 = scmp.ne.s32.totalorder %s420, %s422
      %p426 = scmp.eq.s32.totalorder %s77, 0
      %p427 = por %p425, %p426
      %p428 = scmp.ne.s32.totalorder %s420, %s422
      %p429 = scmp.eq.s32.totalorder %s82, 1
      %p430 = por %p428, %p429
      %p431 = scmp.ne.s32.totalorder %s422, %s423
      %p432 = scmp.eq.s32.totalorder %s82, 0
      %p433 = por %p431, %p432
      %p434 = scmp.ne.s32.totalorder %s422, %s423
      %p435 = scmp.eq.s32.totalorder %s83, 1
      %p436 = por %p434, %p435
      %p438 = scmp.ne.s32.totalorder %s423, %s437
      %p439 = scmp.eq.s32.totalorder %s83, 0
      %p440 = por %p438, %p439
      %s442 = sadd.s32 %s441, 1
      %p445 = scmp.eq.s32.totalorder %s77, 1
      %p446 = scmp.ne.s32.totalorder %s441, %s443
      %p447 = scmp.eq.s32.totalorder %s77, 0
      %p448 = por %p446, %p447
      %p449 = scmp.ne.s32.totalorder %s441, %s443
      %p450 = scmp.eq.s32.totalorder %s82, 1
      %p451 = por %p449, %p450
      %p452 = scmp.ne.s32.totalorder %s443, %s444
      %p453 = scmp.eq.s32.totalorder %s82, 0
      %p454 = por %p452, %p453
      %p455 = scmp.ne.s32.totalorder %s443, %s444
      %p456 = scmp.eq.s32.totalorder %s83, 1
      %p457 = por %p455, %p456
      %p459 = scmp.ne.s32.totalorder %s444, %s458
      %p460 = scmp.eq.s32.totalorder %s83, 0
      %p461 = por %p459, %p460
      %s463 = sadd.s32 %s462, 1
      %p466 = scmp.eq.s32.totalorder %s77, 1
      %p467 = scmp.ne.s32.totalorder %s462, %s464
      %p468 = scmp.eq.s32.totalorder %s77, 0
      %p469 = por %p467, %p468
      %p470 = scmp.ne.s32.totalorder %s462, %s464
      %p471 = scmp.eq.s32.totalorder %s82, 1
      %p472 = por %p470, %p471
      %p473 = scmp.ne.s32.totalorder %s464, %s465
      %p474 = scmp.eq.s32.totalorder %s82, 0
      %p475 = por %p473, %p474
      %p476 = scmp.ne.s32.totalorder %s464, %s465
      %p477 = scmp.eq.s32.totalorder %s83, 1
      %p478 = por %p476, %p477
      %p480 = scmp.ne.s32.totalorder %s465, %s479
      %p481 = scmp.eq.s32.totalorder %s83, 0
      %p482 = por %p480, %p481
      %s484 = sadd.s32 %s483, 1
      %p487 = scmp.eq.s32.totalorder %s77, 1
      %p488 = scmp.ne.s32.totalorder %s483, %s485
      %p489 = scmp.eq.s32.totalorder %s77, 0
      %p490 = por %p488, %p489
      %p491 = scmp.ne.s32.totalorder %s483, %s485
      %p492 = scmp.eq.s32.totalorder %s82, 1
      %p493 = por %p491, %p492
      %p494 = scmp.ne.s32.totalorder %s485, %s486
      %p495 = scmp.eq.s32.totalorder %s82, 0
      %p496 = por %p494, %p495
      %p497 = scmp.ne.s32.totalorder %s485, %s486
      %p498 = scmp.eq.s32.totalorder %s83, 1
      %p499 = por %p497, %p498
      %p501 = scmp.ne.s32.totalorder %s486, %s500
      %p502 = scmp.eq.s32.totalorder %s83, 0
      %p503 = por %p501, %p502
      %s505 = sadd.s32 %s504, 1
      %p508 = scmp.eq.s32.totalorder %s77, 1
      %p509 = scmp.ne.s32.totalorder %s504, %s506
      %p510 = scmp.eq.s32.totalorder %s77, 0
      %p511 = por %p509, %p510
      %p512 = scmp.ne.s32.totalorder %s504, %s506
      %p513 = scmp.eq.s32.totalorder %s82, 1
      %p514 = por %p512, %p513
      %p515 = scmp.ne.s32.totalorder %s506, %s507
      %p516 = scmp.eq.s32.totalorder %s82, 0
      %p517 = por %p515, %p516
      %p518 = scmp.ne.s32.totalorder %s506, %s507
      %p519 = scmp.eq.s32.totalorder %s83, 1
      %p520 = por %p518, %p519
      %p522 = scmp.ne.s32.totalorder %s507, %s521
      %p523 = scmp.eq.s32.totalorder %s83, 0
      %p524 = por %p522, %p523
      %s526 = sadd.s32 %s525, 1
      %p529 = scmp.eq.s32.totalorder %s77, 1
      %p530 = scmp.ne.s32.totalorder %s525, %s527
      %p531 = scmp.eq.s32.totalorder %s77, 0
      %p532 = por %p530, %p531
      %p533 = scmp.ne.s32.totalorder %s525, %s527
      %p534 = scmp.eq.s32.totalorder %s82, 1
      %p535 = por %p533, %p534
      %p536 = scmp.ne.s32.totalorder %s527, %s528
      %p537 = scmp.eq.s32.totalorder %s82, 0
      %p538 = por %p536, %p537
      %p539 = scmp.ne.s32.totalorder %s527, %s528
      %p540 = scmp.eq.s32.totalorder %s83, 1
      %p541 = por %p539, %p540
      %p543 = scmp.ne.s32.totalorder %s528, %s542
      %p544 = scmp.eq.s32.totalorder %s83, 0
      %p545 = por %p543, %p544
      %s547 = sadd.s32 %s546, 1
      %p550 = scmp.eq.s32.totalorder %s77, 1
      %p551 = scmp.ne.s32.totalorder %s546, %s548
      %p552 = scmp.eq.s32.totalorder %s77, 0
      %p553 = por %p551, %p552
      %p554 = scmp.ne.s32.totalorder %s546, %s548
      %p555 = scmp.eq.s32.totalorder %s82, 1
      %p556 = por %p554, %p555
      %p557 = scmp.ne.s32.totalorder %s548, %s549
      %p558 = scmp.eq.s32.totalorder %s82, 0
      %p559 = por %p557, %p558
      %p560 = scmp.ne.s32.totalorder %s548, %s549
      %p561 = scmp.eq.s32.totalorder %s83, 1
      %p562 = por %p560, %p561
      %p564 = scmp.ne.s32.totalorder %s549, %s563
      %p565 = scmp.eq.s32.totalorder %s83, 0
      %p566 = por %p564, %p565
      %s568 = sadd.s32 %s567, 1
      %p571 = scmp.eq.s32.totalorder %s77, 1
      %p572 = scmp.ne.s32.totalorder %s567, %s569
      %p573 = scmp.eq.s32.totalorder %s77, 0
      %p574 = por %p572, %p573
      %p575 = scmp.ne.s32.totalorder %s567, %s569
      %p576 = scmp.eq.s32.totalorder %s82, 1
      %p577 = por %p575, %p576
      %p578 = scmp.ne.s32.totalorder %s569, %s570
      %p579 = scmp.eq.s32.totalorder %s82, 0
      %p580 = por %p578, %p579
      %p581 = scmp.ne.s32.totalorder %s569, %s570
      %p582 = scmp.eq.s32.totalorder %s83, 1
      %p583 = por %p581, %p582
      %p585 = scmp.ne.s32.totalorder %s570, %s584
      %p586 = scmp.eq.s32.totalorder %s83, 0
      %p587 = por %p585, %p586
      %s589 = sadd.s32 %s588, 1
      %p592 = scmp.eq.s32.totalorder %s77, 1
      %p593 = scmp.ne.s32.totalorder %s588, %s590
      %p594 = scmp.eq.s32.totalorder %s77, 0
      %p595 = por %p593, %p594
      %p596 = scmp.ne.s32.totalorder %s588, %s590
      %p597 = scmp.eq.s32.totalorder %s82, 1
      %p598 = por %p596, %p597
      %p599 = scmp.ne.s32.totalorder %s590, %s591
      %p600 = scmp.eq.s32.totalorder %s82, 0
      %p601 = por %p599, %p600
      %p602 = scmp.ne.s32.totalorder %s590, %s591
      %p603 = scmp.eq.s32.totalorder %s83, 1
      %p604 = por %p602, %p603
      %p606 = scmp.ne.s32.totalorder %s591, %s605
      %p607 = scmp.eq.s32.totalorder %s83, 0
      %p608 = por %p606, %p607
      %s610 = sadd.s32 %s609, 1
      %p613 = scmp.eq.s32.totalorder %s77, 1
      %p614 = scmp.ne.s32.totalorder %s609, %s611
      %p615 = scmp.eq.s32.totalorder %s77, 0
      %p616 = por %p614, %p615
      %p617 = scmp.ne.s32.totalorder %s609, %s611
      %p618 = scmp.eq.s32.totalorder %s82, 1
      %p619 = por %p617, %p618
      %p620 = scmp.ne.s32.totalorder %s611, %s612
      %p621 = scmp.eq.s32.totalorder %s82, 0
      %p622 = por %p620, %p621
      %p623 = scmp.ne.s32.totalorder %s611, %s612
      %p624 = scmp.eq.s32.totalorder %s83, 1
      %p625 = por %p623, %p624
      %p627 = scmp.ne.s32.totalorder %s612, %s626
      %p628 = scmp.eq.s32.totalorder %s83, 0
      %p629 = por %p627, %p628
      %s631 = sadd.s32 %s630, 1
      %p634 = scmp.eq.s32.totalorder %s77, 1
      %p635 = scmp.ne.s32.totalorder %s630, %s632
      %p636 = scmp.eq.s32.totalorder %s77, 0
      %p637 = por %p635, %p636
      %p638 = scmp.ne.s32.totalorder %s630, %s632
      %p639 = scmp.eq.s32.totalorder %s82, 1
      %p640 = por %p638, %p639
      %p641 = scmp.ne.s32.totalorder %s632, %s633
      %p642 = scmp.eq.s32.totalorder %s82, 0
      %p643 = por %p641, %p642
      %p644 = scmp.ne.s32.totalorder %s632, %s633
      %p645 = scmp.eq.s32.totalorder %s83, 1
      %p646 = por %p644, %p645
      %p648 = scmp.ne.s32.totalorder %s633, %s647
      %p649 = scmp.eq.s32.totalorder %s83, 0
      %p650 = por %p648, %p649
      %s652 = sadd.s32 %s651, 1
      %p655 = scmp.eq.s32.totalorder %s77, 1
      %p656 = scmp.ne.s32.totalorder %s651, %s653
      %p657 = scmp.eq.s32.totalorder %s77, 0
      %p658 = por %p656, %p657
      %p659 = scmp.ne.s32.totalorder %s651, %s653
      %p660 = scmp.eq.s32.totalorder %s82, 1
      %p661 = por %p659, %p660
      %p662 = scmp.ne.s32.totalorder %s653, %s654
      %p663 = scmp.eq.s32.totalorder %s82, 0
      %p664 = por %p662, %p663
      %p665 = scmp.ne.s32.totalorder %s653, %s654
      %p666 = scmp.eq.s32.totalorder %s83, 1
      %p667 = por %p665, %p666
      %p669 = scmp.ne.s32.totalorder %s654, %s668
      %p670 = scmp.eq.s32.totalorder %s83, 0
      %p671 = por %p669, %p670
      %s673 = sadd.s32 %s672, 1
      %p676 = scmp.eq.s32.totalorder %s77, 1
      %p677 = scmp.ne.s32.totalorder %s672, %s674
      %p678 = scmp.eq.s32.totalorder %s77, 0
      %p679 = por %p677, %p678
      %p680 = scmp.ne.s32.totalorder %s672, %s674
      %p681 = scmp.eq.s32.totalorder %s82, 1
      %p682 = por %p680, %p681
      %p683 = scmp.ne.s32.totalorder %s674, %s675
      %p684 = scmp.eq.s32.totalorder %s82, 0
      %p685 = por %p683, %p684
      %p686 = scmp.ne.s32.totalorder %s674, %s675
      %p687 = scmp.eq.s32.totalorder %s83, 1
      %p688 = por %p686, %p687
      %p690 = scmp.ne.s32.totalorder %s675, %s689
      %p691 = scmp.eq.s32.totalorder %s83, 0
      %p692 = por %p690, %p691
      %s694 = sadd.s32 %s693, 1
      %p697 = scmp.eq.s32.totalorder %s77, 1
      %p698 = scmp.ne.s32.totalorder %s693, %s695
      %p699 = scmp.eq.s32.totalorder %s77, 0
      %p700 = por %p698, %p699
      %p701 = scmp.ne.s32.totalorder %s693, %s695
      %p702 = scmp.eq.s32.totalorder %s82, 1
      %p703 = por %p701, %p702
      %p704 = scmp.ne.s32.totalorder %s695, %s696
      %p705 = scmp.eq.s32.totalorder %s82, 0
      %p706 = por %p704, %p705
      %p707 = scmp.ne.s32.totalorder %s695, %s696
      %p708 = scmp.eq.s32.totalorder %s83, 1
      %p709 = por %p707, %p708
      %p711 = scmp.ne.s32.totalorder %s696, %s710
      %p712 = scmp.eq.s32.totalorder %s83, 0
      %p713 = por %p711, %p712
      %s715 = sadd.s32 %s714, 1
      %p718 = scmp.eq.s32.totalorder %s77, 1
      %p719 = scmp.ne.s32.totalorder %s714, %s716
      %p720 = scmp.eq.s32.totalorder %s77, 0
      %p721 = por %p719, %p720
      %p722 = scmp.ne.s32.totalorder %s714, %s716
      %p723 = scmp.eq.s32.totalorder %s82, 1
      %p724 = por %p722, %p723
      %p725 = scmp.ne.s32.totalorder %s716, %s717
      %p726 = scmp.eq.s32.totalorder %s82, 0
      %p727 = por %p725, %p726
      %p728 = scmp.ne.s32.totalorder %s716, %s717
      %p729 = scmp.eq.s32.totalorder %s83, 1
      %p730 = por %p728, %p729
      %p732 = scmp.ne.s32.totalorder %s717, %s731
      %p733 = scmp.eq.s32.totalorder %s83, 0
      %p734 = por %p732, %p733
      %s735 = ssub.s32 %s77, %s84
      %p736 = scmp.eq.s32.totalorder %s735, 0
      %s738 = sadd.s32 %s737, 1
      %s739 = scalar_select %p736, %s737, %s738
      %p742 = pneg %p736
      %p743 = scmp.eq.s32.totalorder %s77, 1
      %p744 = por %p742, %p743
      %p745 = scmp.ne.s32.totalorder %s737, %s740
      %p746 = scmp.eq.s32.totalorder %s77, 0
      %p747 = por %p745, %p746
      %p748 = scmp.ne.s32.totalorder %s737, %s740
      %p749 = scmp.eq.s32.totalorder %s82, 1
      %p750 = por %p748, %p749
      %p751 = scmp.ne.s32.totalorder %s740, %s741
      %p752 = scmp.eq.s32.totalorder %s82, 0
      %p753 = por %p751, %p752
      %p754 = scmp.ne.s32.totalorder %s740, %s741
      %p755 = scmp.eq.s32.totalorder %s83, 1
      %p756 = por %p754, %p755
      %p758 = scmp.ne.s32.totalorder %s741, %s757
      %p759 = scmp.eq.s32.totalorder %s83, 0
      %p760 = por %p758, %p759
      %s761 = ssub.s32 %s77, %s84
      %p762 = scmp.eq.s32.totalorder %s761, 0
      %s764 = sadd.s32 %s763, 1
      %s765 = scalar_select %p762, %s763, %s764
      %p768 = pneg %p762
      %p769 = scmp.eq.s32.totalorder %s77, 1
      %p770 = por %p768, %p769
      %p771 = scmp.ne.s32.totalorder %s763, %s766
      %p772 = scmp.eq.s32.totalorder %s77, 0
      %p773 = por %p771, %p772
      %p774 = scmp.ne.s32.totalorder %s763, %s766
      %p775 = scmp.eq.s32.totalorder %s82, 1
      %p776 = por %p774, %p775
      %p777 = scmp.ne.s32.totalorder %s766, %s767
      %p778 = scmp.eq.s32.totalorder %s82, 0
      %p779 = por %p777, %p778
      %p780 = scmp.ne.s32.totalorder %s766, %s767
      %p781 = scmp.eq.s32.totalorder %s83, 1
      %p782 = por %p780, %p781
      %p784 = scmp.ne.s32.totalorder %s767, %s783
      %p785 = scmp.eq.s32.totalorder %s83, 0
      %p786 = por %p784, %p785
      %p787 = scmp.le.s32.totalorder 1, %s77
      %p788 = scmp.lt.s32.totalorder %s77, 3
      %p789 = pnand %p787, %p788
      %p790 = pneg %p789
      // Predicated region
      $region9: #{_mvp_decoder_forward.1} parent=5 // pred_check
        _
      $region10: #{_mvp_decoder_forward.1} parent=5 // pred_check_branch
        %792 = sbr.rel (%p789) target = $region12
      $region11: #{_mvp_decoder_forward.1} parent=5 // pred_region
        %s793 = ssub.s32 %s77, 1
        // Predicated region
        $region13: #{_mvp_decoder_forward.1} parent=11 // pred_check
          %p794 = pneg %p202
        $region14: #{_mvp_decoder_forward.1} parent=11 // pred_check_branch
          %796 = sbr.rel (%p794) target = $region16
        $region15: #{_mvp_decoder_forward.1} parent=11 // pred_region
          _
        $region16: #{_mvp_decoder_forward.1} parent=11 // pred_fallthru
          _
        // Predicated region
        $region17: #{_mvp_decoder_forward.1} parent=11 // pred_check
          %p797 = pneg %p223
        $region18: #{_mvp_decoder_forward.1} parent=11 // pred_check_branch
          %799 = sbr.rel (%p797) target = $region20
        $region19: #{_mvp_decoder_forward.1} parent=11 // pred_region
          _
        $region20: #{_mvp_decoder_forward.1} parent=11 // pred_fallthru
          _
        // Predicated region
        $region21: #{_mvp_decoder_forward.1} parent=11 // pred_check
          %p800 = pneg %p244
        $region22: #{_mvp_decoder_forward.1} parent=11 // pred_check_branch
          %802 = sbr.rel (%p800) target = $region24
        $region23: #{_mvp_decoder_forward.1} parent=11 // pred_region
          _
        $region24: #{_mvp_decoder_forward.1} parent=11 // pred_fallthru
          _
        // Predicated region
        $region25: #{_mvp_decoder_forward.1} parent=11 // pred_check
          %p803 = pneg %p265
        $region26: #{_mvp_decoder_forward.1} parent=11 // pred_check_branch
          %805 = sbr.rel (%p803) target = $region28
        $region27: #{_mvp_decoder_forward.1} parent=11 // pred_region
          _
        $region28: #{_mvp_decoder_forward.1} parent=11 // pred_fallthru
          _
        // Predicated region
        $region29: #{_mvp_decoder_forward.1} parent=11 // pred_check
          %p806 = pneg %p286
        $region30: #{_mvp_decoder_forward.1} parent=11 // pred_check_branch
          %808 = sbr.rel (%p806) target = $region32
        $region31: #{_mvp_decoder_forward.1} parent=11 // pred_region
          _
        $region32: #{_mvp_decoder_forward.1} parent=11 // pred_fallthru
          _
        // Predicated region
        $region33: #{_mvp_decoder_forward.1} parent=11 // pred_check
          %p809 = pneg %p307
        $region34: #{_mvp_decoder_forward.1} parent=11 // pred_check_branch
          %811 = sbr.rel (%p809) target = $region36
        $region35: #{_mvp_decoder_forward.1} parent=11 // pred_region
          _
        $region36: #{_mvp_decoder_forward.1} parent=11 // pred_fallthru
          _
        // Predicated region
        $region37: #{_mvp_decoder_forward.1} parent=11 // pred_check
          %p812 = pneg %p328
        $region38: #{_mvp_decoder_forward.1} parent=11 // pred_check_branch
          %814 = sbr.rel (%p812) target = $region40
        $region39: #{_mvp_decoder_forward.1} parent=11 // pred_region
          %s816 = ssub.s32 32, 32
          %817 = vsyncadd [#allocation3], %s816
          %s818 = sshll.u32 [#allocation2], 4
          %s819 = int_to_ptr.vmem [resolvable:$true] %s818
          %824 = dma.hbm_to_vmem [thread:$0]  %s21, 32, %s819, [#allocation3], 16, 16, 1
        $region40: #{_mvp_decoder_forward.1} parent=11 // pred_fallthru
          _
        // Predicated region
        $region41: #{_mvp_decoder_forward.1} parent=11 // pred_check
          %p825 = pneg %p349
        $region42: #{_mvp_decoder_forward.1} parent=11 // pred_check_branch
          %827 = sbr.rel (%p825) target = $region44
        $region43: #{_mvp_decoder_forward.1} parent=11 // pred_region
          %s829 = ssub.s32 32, 32
          %830 = vsyncadd [#allocation5], %s829
          %s831 = sshll.u32 [#allocation4], 4
          %s832 = int_to_ptr.vmem [resolvable:$true] %s831
          %837 = dma.hbm_to_vmem [thread:$0]  %s23, 32, %s832, [#allocation5], 16, 16, 1
        $region44: #{_mvp_decoder_forward.1} parent=11 // pred_fallthru
          _
        // Predicated region
        $region45: #{_mvp_decoder_forward.1} parent=11 // pred_check
          %p838 = pneg %p370
        $region46: #{_mvp_decoder_forward.1} parent=11 // pred_check_branch
          %840 = sbr.rel (%p838) target = $region48
        $region47: #{_mvp_decoder_forward.1} parent=11 // pred_region
          _
        $region48: #{_mvp_decoder_forward.1} parent=11 // pred_fallthru
          _
        // Predicated region
        $region49: #{_mvp_decoder_forward.1} parent=11 // pred_check
          %p841 = pneg %p391
        $region50: #{_mvp_decoder_forward.1} parent=11 // pred_check_branch
          %843 = sbr.rel (%p841) target = $region52
        $region51: #{_mvp_decoder_forward.1} parent=11 // pred_region
          %s845 = ssub.s32 32, 32
          %846 = vsyncadd [#allocation5], %s845
          %s847 = sshll.u32 [#allocation6], 4
          %s848 = int_to_ptr.vmem [resolvable:$true] %s847
          %853 = dma.hbm_to_vmem [thread:$0]  %s27, 32, %s848, [#allocation5], 16, 16, 1
        $region52: #{_mvp_decoder_forward.1} parent=11 // pred_fallthru
          _
        // Predicated region
        $region53: #{_mvp_decoder_forward.1} parent=11 // pred_check
          %p854 = pneg %p412
        $region54: #{_mvp_decoder_forward.1} parent=11 // pred_check_branch
          %856 = sbr.rel (%p854) target = $region56
        $region55: #{_mvp_decoder_forward.1} parent=11 // pred_region
          _
        $region56: #{_mvp_decoder_forward.1} parent=11 // pred_fallthru
          _
        // Predicated region
        $region57: #{_mvp_decoder_forward.1} parent=11 // pred_check
          %p857 = pneg %p433
        $region58: #{_mvp_decoder_forward.1} parent=11 // pred_check_branch
          %859 = sbr.rel (%p857) target = $region60
        $region59: #{_mvp_decoder_forward.1} parent=11 // pred_region
          %s861 = ssub.s32 32, 32
          %862 = vsyncadd [#allocation8], %s861
          %s863 = sshll.u32 [#allocation7], 4
          %s864 = int_to_ptr.vmem [resolvable:$true] %s863
          %869 = dma.hbm_to_vmem [thread:$0]  %s31, 32, %s864, [#allocation8], 16, 16, 1
        $region60: #{_mvp_decoder_forward.1} parent=11 // pred_fallthru
          _
        // Predicated region
        $region61: #{_mvp_decoder_forward.1} parent=11 // pred_check
          %p870 = pneg %p454
        $region62: #{_mvp_decoder_forward.1} parent=11 // pred_check_branch
          %872 = sbr.rel (%p870) target = $region64
        $region63: #{_mvp_decoder_forward.1} parent=11 // pred_region
          _
        $region64: #{_mvp_decoder_forward.1} parent=11 // pred_fallthru
          _
        // Predicated region
        $region65: #{_mvp_decoder_forward.1} parent=11 // pred_check
          %p873 = pneg %p475
        $region66: #{_mvp_decoder_forward.1} parent=11 // pred_check_branch
          %875 = sbr.rel (%p873) target = $region68
        $region67: #{_mvp_decoder_forward.1} parent=11 // pred_region
          %s877 = ssub.s32 32, 32
          %878 = vsyncadd [#allocation8], %s877
          %s879 = sshll.u32 [#allocation9], 4
          %s880 = int_to_ptr.vmem [resolvable:$true] %s879
          %885 = dma.hbm_to_vmem [thread:$0]  %s35, 32, %s880, [#allocation8], 16, 16, 1
        $region68: #{_mvp_decoder_forward.1} parent=11 // pred_fallthru
          _
        // Predicated region
        $region69: #{_mvp_decoder_forward.1} parent=11 // pred_check
          %p886 = pneg %p496
        $region70: #{_mvp_decoder_forward.1} parent=11 // pred_check_branch
          %888 = sbr.rel (%p886) target = $region72
        $region71: #{_mvp_decoder_forward.1} parent=11 // pred_region
          %s890 = ssub.s32 32, 32
          %891 = vsyncadd [#allocation11], %s890
          %s892 = sshll.u32 [#allocation10], 4
          %s893 = int_to_ptr.vmem [resolvable:$true] %s892
          %898 = dma.hbm_to_vmem [thread:$0]  %s37, 32, %s893, [#allocation11], 16, 16, 1
        $region72: #{_mvp_decoder_forward.1} parent=11 // pred_fallthru
          _
        // Predicated region
        $region73: #{_mvp_decoder_forward.1} parent=11 // pred_check
          %p899 = pneg %p517
        $region74: #{_mvp_decoder_forward.1} parent=11 // pred_check_branch
          %901 = sbr.rel (%p899) target = $region76
        $region75: #{_mvp_decoder_forward.1} parent=11 // pred_region
          %s903 = ssub.s32 32, 32
          %904 = vsyncadd [#allocation11], %s903
          %s905 = sshll.u32 [#allocation12], 4
          %s906 = int_to_ptr.vmem [resolvable:$true] %s905
          %911 = dma.hbm_to_vmem [thread:$0]  %s39, 32, %s906, [#allocation11], 16, 16, 1
        $region76: #{_mvp_decoder_forward.1} parent=11 // pred_fallthru
          _
        // Predicated region
        $region77: #{_mvp_decoder_forward.1} parent=11 // pred_check
          %p912 = pneg %p538
        $region78: #{_mvp_decoder_forward.1} parent=11 // pred_check_branch
          %914 = sbr.rel (%p912) target = $region80
        $region79: #{_mvp_decoder_forward.1} parent=11 // pred_region
          _
        $region80: #{_mvp_decoder_forward.1} parent=11 // pred_fallthru
          _
        // Predicated region
        $region81: #{_mvp_decoder_forward.1} parent=11 // pred_check
          %p915 = pneg %p559
        $region82: #{_mvp_decoder_forward.1} parent=11 // pred_check_branch
          %917 = sbr.rel (%p915) target = $region84
        $region83: #{_mvp_decoder_forward.1} parent=11 // pred_region
          %s919 = ssub.s32 32, 32
          %920 = vsyncadd [#allocation14], %s919
          %s921 = sshll.u32 [#allocation13], 4
          %s922 = int_to_ptr.vmem [resolvable:$true] %s921
          %927 = dma.hbm_to_vmem [thread:$0]  %s43, 32, %s922, [#allocation14], 16, 16, 1
        $region84: #{_mvp_decoder_forward.1} parent=11 // pred_fallthru
          _
        // Predicated region
        $region85: #{_mvp_decoder_forward.1} parent=11 // pred_check
          %p928 = pneg %p580
        $region86: #{_mvp_decoder_forward.1} parent=11 // pred_check_branch
          %930 = sbr.rel (%p928) target = $region88
        $region87: #{_mvp_decoder_forward.1} parent=11 // pred_region
          _
        $region88: #{_mvp_decoder_forward.1} parent=11 // pred_fallthru
          _
        // Predicated region
        $region89: #{_mvp_decoder_forward.1} parent=11 // pred_check
          %p931 = pneg %p601
        $region90: #{_mvp_decoder_forward.1} parent=11 // pred_check_branch
          %933 = sbr.rel (%p931) target = $region92
        $region91: #{_mvp_decoder_forward.1} parent=11 // pred_region
          %s935 = ssub.s32 32, 32
          %936 = vsyncadd [#allocation14], %s935
          %s937 = sshll.u32 [#allocation15], 4
          %s938 = int_to_ptr.vmem [resolvable:$true] %s937
          %943 = dma.hbm_to_vmem [thread:$0]  %s47, 32, %s938, [#allocation14], 16, 16, 1
        $region92: #{_mvp_decoder_forward.1} parent=11 // pred_fallthru
          _
        // Predicated region
        $region93: #{_mvp_decoder_forward.1} parent=11 // pred_check
          %p944 = pneg %p622
        $region94: #{_mvp_decoder_forward.1} parent=11 // pred_check_branch
          %946 = sbr.rel (%p944) target = $region96
        $region95: #{_mvp_decoder_forward.1} parent=11 // pred_region
          %s948 = ssub.s32 32, 32
          %949 = vsyncadd [#allocation17], %s948
          %s950 = sshll.u32 [#allocation16], 4
          %s951 = int_to_ptr.vmem [resolvable:$true] %s950
          %956 = dma.hbm_to_vmem [thread:$0]  %s49, 32, %s951, [#allocation17], 16, 16, 1
        $region96: #{_mvp_decoder_forward.1} parent=11 // pred_fallthru
          _
        // Predicated region
        $region97: #{_mvp_decoder_forward.1} parent=11 // pred_check
          %p957 = pneg %p643
        $region98: #{_mvp_decoder_forward.1} parent=11 // pred_check_branch
          %959 = sbr.rel (%p957) target = $region100
        $region99: #{_mvp_decoder_forward.1} parent=11 // pred_region
          %s961 = ssub.s32 32, 32
          %962 = vsyncadd [#allocation17], %s961
          %s963 = sshll.u32 [#allocation18], 4
          %s964 = int_to_ptr.vmem [resolvable:$true] %s963
          %969 = dma.hbm_to_vmem [thread:$0]  %s51, 32, %s964, [#allocation17], 16, 16, 1
        $region100: #{_mvp_decoder_forward.1} parent=11 // pred_fallthru
          _
        // Predicated region
        $region101: #{_mvp_decoder_forward.1} parent=11 // pred_check
          %p970 = pneg %p664
        $region102: #{_mvp_decoder_forward.1} parent=11 // pred_check_branch
          %972 = sbr.rel (%p970) target = $region104
        $region103: #{_mvp_decoder_forward.1} parent=11 // pred_region
          _
        $region104: #{_mvp_decoder_forward.1} parent=11 // pred_fallthru
          _
        // Predicated region
        $region105: #{_mvp_decoder_forward.1} parent=11 // pred_check
          %p973 = pneg %p685
        $region106: #{_mvp_decoder_forward.1} parent=11 // pred_check_branch
          %975 = sbr.rel (%p973) target = $region108
        $region107: #{_mvp_decoder_forward.1} parent=11 // pred_region
          %s977 = ssub.s32 32, 32
          %978 = vsyncadd [#allocation20], %s977
          %s979 = sshll.u32 [#allocation19], 4
          %s980 = int_to_ptr.vmem [resolvable:$true] %s979
          %985 = dma.hbm_to_vmem [thread:$0]  %s55, 32, %s980, [#allocation20], 16, 16, 1
        $region108: #{_mvp_decoder_forward.1} parent=11 // pred_fallthru
          _
        // Predicated region
        $region109: #{_mvp_decoder_forward.1} parent=11 // pred_check
          %p986 = pneg %p706
        $region110: #{_mvp_decoder_forward.1} parent=11 // pred_check_branch
          %988 = sbr.rel (%p986) target = $region112
        $region111: #{_mvp_decoder_forward.1} parent=11 // pred_region
          _
        $region112: #{_mvp_decoder_forward.1} parent=11 // pred_fallthru
          _
        // Predicated region
        $region113: #{_mvp_decoder_forward.1} parent=11 // pred_check
          %p989 = pneg %p727
        $region114: #{_mvp_decoder_forward.1} parent=11 // pred_check_branch
          %991 = sbr.rel (%p989) target = $region116
        $region115: #{_mvp_decoder_forward.1} parent=11 // pred_region
          %s993 = ssub.s32 32, 32
          %994 = vsyncadd [#allocation20], %s993
          %s995 = sshll.u32 [#allocation21], 4
          %s996 = int_to_ptr.vmem [resolvable:$true] %s995
          %1001 = dma.hbm_to_vmem [thread:$0]  %s59, 32, %s996, [#allocation20], 16, 16, 1
        $region116: #{_mvp_decoder_forward.1} parent=11 // pred_fallthru
          _
      $region12: #{_mvp_decoder_forward.1} parent=5 // pred_fallthru
        _
      %p1002 = scmp.lt.s32.totalorder %s77, 2
      // Predicated region
      $region117: #{_mvp_decoder_forward.1} parent=5 // pred_check
        %p1003 = pneg %p1002
      $region118: #{_mvp_decoder_forward.1} parent=5 // pred_check_branch
        %1005 = sbr.rel (%p1003) target = $region120
      $region119: #{_mvp_decoder_forward.1} parent=5 // pred_region
        // Predicated region
        $region121: #{_mvp_decoder_forward.1} parent=119 // pred_check
          %p1006 = pneg %p97
        $region122: #{_mvp_decoder_forward.1} parent=119 // pred_check_branch
          %1008 = sbr.rel (%p1006) target = $region124
        $region123: #{_mvp_decoder_forward.1} parent=119 // pred_region
          %p1009 = scmp.lt.s32.totalorder %s77, 1
          %s1010 = scalar_select %p1009, %s77, 1
          %s1011 = smul.addr %s1010, 2
          %s1012 = smul.addr %s1011, 8
          %s1013 = scalar_lea.vmem %s1, %s1012
        $region124: #{_mvp_decoder_forward.1} parent=119 // pred_fallthru
          _
        // Predicated region
        $region125: #{_mvp_decoder_forward.1} parent=119 // pred_check
          %p1014 = pneg %p123
        $region126: #{_mvp_decoder_forward.1} parent=119 // pred_check_branch
          %1016 = sbr.rel (%p1014) target = $region128
        $region127: #{_mvp_decoder_forward.1} parent=119 // pred_region
          %p1017 = scmp.lt.s32.totalorder %s77, 1
          %s1018 = scalar_select %p1017, %s77, 1
          %s1019 = smul.addr %s1018, 2
          %s1020 = smul.addr %s1019, 8
          %s1021 = scalar_lea.vmem %s3, %s1020
        $region128: #{_mvp_decoder_forward.1} parent=119 // pred_fallthru
          _
        // Predicated region
        $region129: #{_mvp_decoder_forward.1} parent=119 // pred_check
          %p1022 = pneg %p149
        $region130: #{_mvp_decoder_forward.1} parent=119 // pred_check_branch
          %1024 = sbr.rel (%p1022) target = $region132
        $region131: #{_mvp_decoder_forward.1} parent=119 // pred_region
          %p1025 = scmp.lt.s32.totalorder %s77, 1
          %s1026 = scalar_select %p1025, %s77, 1
          %s1027 = smul.addr %s1026, 2
          %s1028 = smul.addr %s1027, 8
          %s1029 = scalar_lea.vmem %s5, %s1028
        $region132: #{_mvp_decoder_forward.1} parent=119 // pred_fallthru
          _
        // Predicated region
        $region133: #{_mvp_decoder_forward.1} parent=119 // pred_check
          %p1030 = pneg %p175
        $region134: #{_mvp_decoder_forward.1} parent=119 // pred_check_branch
          %1032 = sbr.rel (%p1030) target = $region136
        $region135: #{_mvp_decoder_forward.1} parent=119 // pred_region
          %p1033 = scmp.lt.s32.totalorder %s77, 1
          %s1034 = scalar_select %p1033, %s77, 1
          %s1035 = smul.addr %s1034, 8
          %s1036 = smul.addr %s1035, 8
          %s1037 = scalar_lea.vmem %s7, %s1036
        $region136: #{_mvp_decoder_forward.1} parent=119 // pred_fallthru
          _
      $region120: #{_mvp_decoder_forward.1} parent=5 // pred_fallthru
        _
      %p1038 = scmp.le.s32.totalorder 1, %s77
      %p1039 = scmp.lt.s32.totalorder %s77, 3
      %p1040 = pnand %p1038, %p1039
      %p1041 = pneg %p1040
      // Predicated region
      $region137: #{_mvp_decoder_forward.1} parent=5 // pred_check
        _
      $region138: #{_mvp_decoder_forward.1} parent=5 // pred_check_branch
        %1043 = sbr.rel (%p1040) target = $region140
      $region139: #{_mvp_decoder_forward.1} parent=5 // pred_region
        %s1044 = ssub.s32 %s77, 1
        // Predicated region
        $region141: #{_mvp_decoder_forward.1} parent=139 // pred_check
          %p1045 = pneg %p328
        $region142: #{_mvp_decoder_forward.1} parent=139 // pred_check_branch
          %1047 = sbr.rel (%p1045) target = $region144
        $region143: #{_mvp_decoder_forward.1} parent=139 // pred_region
          %1048 = dma.done [#allocation3], 32
        $region144: #{_mvp_decoder_forward.1} parent=139 // pred_fallthru
          _
        // Predicated region
        $region145: #{_mvp_decoder_forward.1} parent=139 // pred_check
          %p1049 = pneg %p349
        $region146: #{_mvp_decoder_forward.1} parent=139 // pred_check_branch
          %1051 = sbr.rel (%p1049) target = $region148
        $region147: #{_mvp_decoder_forward.1} parent=139 // pred_region
          %1052 = dma.done [#allocation5], 32
        $region148: #{_mvp_decoder_forward.1} parent=139 // pred_fallthru
          _
        // Predicated region
        $region149: #{_mvp_decoder_forward.1} parent=139 // pred_check
          %p1053 = pneg %p391
        $region150: #{_mvp_decoder_forward.1} parent=139 // pred_check_branch
          %1055 = sbr.rel (%p1053) target = $region152
        $region151: #{_mvp_decoder_forward.1} parent=139 // pred_region
          %1056 = dma.done [#allocation5], 32
        $region152: #{_mvp_decoder_forward.1} parent=139 // pred_fallthru
          _
        // Predicated region
        $region153: #{_mvp_decoder_forward.1} parent=139 // pred_check
          %p1057 = pneg %p433
        $region154: #{_mvp_decoder_forward.1} parent=139 // pred_check_branch
          %1059 = sbr.rel (%p1057) target = $region156
        $region155: #{_mvp_decoder_forward.1} parent=139 // pred_region
          %1060 = dma.done [#allocation8], 32
        $region156: #{_mvp_decoder_forward.1} parent=139 // pred_fallthru
          _
        // Predicated region
        $region157: #{_mvp_decoder_forward.1} parent=139 // pred_check
          %p1061 = pneg %p475
        $region158: #{_mvp_decoder_forward.1} parent=139 // pred_check_branch
          %1063 = sbr.rel (%p1061) target = $region160
        $region159: #{_mvp_decoder_forward.1} parent=139 // pred_region
          %1064 = dma.done [#allocation8], 32
        $region160: #{_mvp_decoder_forward.1} parent=139 // pred_fallthru
          _
        // Predicated region
        $region161: #{_mvp_decoder_forward.1} parent=139 // pred_check
          %p1065 = pneg %p496
        $region162: #{_mvp_decoder_forward.1} parent=139 // pred_check_branch
          %1067 = sbr.rel (%p1065) target = $region164
        $region163: #{_mvp_decoder_forward.1} parent=139 // pred_region
          %1068 = dma.done [#allocation11], 32
        $region164: #{_mvp_decoder_forward.1} parent=139 // pred_fallthru
          _
        // Predicated region
        $region165: #{_mvp_decoder_forward.1} parent=139 // pred_check
          %p1069 = pneg %p517
        $region166: #{_mvp_decoder_forward.1} parent=139 // pred_check_branch
          %1071 = sbr.rel (%p1069) target = $region168
        $region167: #{_mvp_decoder_forward.1} parent=139 // pred_region
          %1072 = dma.done [#allocation11], 32
        $region168: #{_mvp_decoder_forward.1} parent=139 // pred_fallthru
          _
        // Predicated region
        $region169: #{_mvp_decoder_forward.1} parent=139 // pred_check
          %p1073 = pneg %p559
        $region170: #{_mvp_decoder_forward.1} parent=139 // pred_check_branch
          %1075 = sbr.rel (%p1073) target = $region172
        $region171: #{_mvp_decoder_forward.1} parent=139 // pred_region
          %1076 = dma.done [#allocation14], 32
        $region172: #{_mvp_decoder_forward.1} parent=139 // pred_fallthru
          _
        // Predicated region
        $region173: #{_mvp_decoder_forward.1} parent=139 // pred_check
          %p1077 = pneg %p601
        $region174: #{_mvp_decoder_forward.1} parent=139 // pred_check_branch
          %1079 = sbr.rel (%p1077) target = $region176
        $region175: #{_mvp_decoder_forward.1} parent=139 // pred_region
          %1080 = dma.done [#allocation14], 32
        $region176: #{_mvp_decoder_forward.1} parent=139 // pred_fallthru
          _
        // Predicated region
        $region177: #{_mvp_decoder_forward.1} parent=139 // pred_check
          %p1081 = pneg %p622
        $region178: #{_mvp_decoder_forward.1} parent=139 // pred_check_branch
          %1083 = sbr.rel (%p1081) target = $region180
        $region179: #{_mvp_decoder_forward.1} parent=139 // pred_region
          %1084 = dma.done [#allocation17], 32
        $region180: #{_mvp_decoder_forward.1} parent=139 // pred_fallthru
          _
        // Predicated region
        $region181: #{_mvp_decoder_forward.1} parent=139 // pred_check
          %p1085 = pneg %p643
        $region182: #{_mvp_decoder_forward.1} parent=139 // pred_check_branch
          %1087 = sbr.rel (%p1085) target = $region184
        $region183: #{_mvp_decoder_forward.1} parent=139 // pred_region
          %1088 = dma.done [#allocation17], 32
        $region184: #{_mvp_decoder_forward.1} parent=139 // pred_fallthru
          _
        // Predicated region
        $region185: #{_mvp_decoder_forward.1} parent=139 // pred_check
          %p1089 = pneg %p685
        $region186: #{_mvp_decoder_forward.1} parent=139 // pred_check_branch
          %1091 = sbr.rel (%p1089) target = $region188
        $region187: #{_mvp_decoder_forward.1} parent=139 // pred_region
          %1092 = dma.done [#allocation20], 32
        $region188: #{_mvp_decoder_forward.1} parent=139 // pred_fallthru
          _
        // Predicated region
        $region189: #{_mvp_decoder_forward.1} parent=139 // pred_check
          %p1093 = pneg %p727
        $region190: #{_mvp_decoder_forward.1} parent=139 // pred_check_branch
          %1095 = sbr.rel (%p1093) target = $region192
        $region191: #{_mvp_decoder_forward.1} parent=139 // pred_region
          %1096 = dma.done [#allocation20], 32
        $region192: #{_mvp_decoder_forward.1} parent=139 // pred_fallthru
          _
        %p1097 = scmp.lt.s32.totalorder %s82, 1
        %s1098 = scalar_select %p1097, %s82, 1
        %s1099 = smul.addr %s1098, 2
        %s1100 = smul.addr %s1099, 8
        %s1101 = scalar_lea.vmem %s1, %s1100
        %p1102 = pneg %p103
        %p1103 = pneg %p100
        %p1104 = scmp.lt.s32.totalorder %s82, 1
        %s1105 = scalar_select %p1104, %s82, 1
        %s1106 = smul.addr %s1105, 2
        %s1107 = smul.addr %s1106, 8
        %s1108 = scalar_lea.vmem %s3, %s1107
        %p1109 = pneg %p129
        %p1110 = pneg %p126
        %p1111 = scmp.lt.s32.totalorder %s82, 1
        %s1112 = scalar_select %p1111, %s82, 1
        %s1113 = smul.addr %s1112, 2
        %s1114 = smul.addr %s1113, 8
        %s1115 = scalar_lea.vmem %s5, %s1114
        %p1116 = pneg %p155
        %p1117 = pneg %p152
        %p1118 = scmp.lt.s32.totalorder %s82, 1
        %s1119 = scalar_select %p1118, %s82, 1
        %s1120 = smul.addr %s1119, 8
        %s1121 = smul.addr %s1120, 8
        %s1122 = scalar_lea.vmem %s7, %s1121
        %p1123 = pneg %p181
        %p1124 = pneg %p178
        %p1125 = pneg %p202
        %p1126 = pneg %p199
        %p1127 = pneg %p223
        %p1128 = pneg %p220
        %p1129 = pneg %p244
        %p1130 = pneg %p241
        %p1131 = pneg %p265
        %p1132 = pneg %p262
        %p1133 = pneg %p286
        %p1134 = pneg %p283
        %p1135 = pneg %p307
        %p1136 = pneg %p304
        %p1137 = pneg %p328
        %p1138 = pneg %p325
        %p1139 = pneg %p349
        %p1140 = pneg %p346
        %p1141 = pneg %p370
        %p1142 = pneg %p367
        %p1143 = pneg %p391
        %p1144 = pneg %p388
        %p1145 = pneg %p412
        %p1146 = pneg %p409
        %p1147 = pneg %p433
        %p1148 = pneg %p430
        %p1149 = pneg %p454
        %p1150 = pneg %p451
        %p1151 = pneg %p475
        %p1152 = pneg %p472
        %p1153 = pneg %p496
        %p1154 = pneg %p493
        %p1155 = pneg %p517
        %p1156 = pneg %p514
        %p1157 = pneg %p538
        %p1158 = pneg %p535
        %p1159 = pneg %p559
        %p1160 = pneg %p556
        %p1161 = pneg %p580
        %p1162 = pneg %p577
        %p1163 = pneg %p601
        %p1164 = pneg %p598
        %p1165 = pneg %p622
        %p1166 = pneg %p619
        %p1167 = pneg %p643
        %p1168 = pneg %p640
        %p1169 = pneg %p664
        %p1170 = pneg %p661
        %p1171 = pneg %p685
        %p1172 = pneg %p682
        %p1173 = pneg %p706
        %p1174 = pneg %p703
        %p1175 = pneg %p727
        %p1176 = pneg %p724
        %p1177 = pneg %p753
        %p1178 = pneg %p750
        %p1179 = scmp.lt.s32.totalorder %s82, 1
        %s1180 = scalar_select %p1179, %s82, 1
        %s1181 = smul.addr %s1180, 4
        %s1182 = scalar_lea.vmem %s61, %s1181
        %p1183 = pneg %p779
        %p1184 = pneg %p776
        %p1185 = scmp.lt.s32.totalorder %s82, 1
        %s1186 = scalar_select %p1185, %s82, 1
        %s1187 = smul.addr %s1186, 2
        %s1188 = smul.addr %s1187, 8
        %s1189 = scalar_lea.vmem %s63, %s1188
        %p1190 = scmp.lt.s32.totalorder %s82, 1
        %s1191 = scalar_select %p1190, %s82, 1
        %s1192 = smul.addr %s1191, 2
        %s1193 = smul.addr %s1192, 8
        %s1194 = scalar_lea.vmem %s1, %s1193
        %p1195 = scmp.lt.s32.totalorder %s82, 1
        %s1196 = scalar_select %p1195, %s82, 1
        %s1197 = smul.addr %s1196, 2
        %s1198 = smul.addr %s1197, 8
        %s1199 = scalar_lea.vmem %s3, %s1198
        %p1200 = scmp.lt.s32.totalorder %s82, 1
        %s1201 = scalar_select %p1200, %s82, 1
        %s1202 = smul.addr %s1201, 2
        %s1203 = smul.addr %s1202, 8
        %s1204 = scalar_lea.vmem %s5, %s1203
        %p1205 = scmp.lt.s32.totalorder %s82, 1
        %s1206 = scalar_select %p1205, %s82, 1
        %s1207 = smul.addr %s1206, 8
        %s1208 = smul.addr %s1207, 8
        %s1209 = scalar_lea.vmem %s7, %s1208
        %p1210 = scmp.lt.s32.totalorder %s82, 1
        %s1211 = scalar_select %p1210, %s82, 1
        %s1212 = smul.addr %s1211, 4
        %s1213 = scalar_lea.vmem %s61, %s1212
        %p1214 = scmp.lt.s32.totalorder %s82, 1
        %s1215 = scalar_select %p1214, %s82, 1
        %s1216 = smul.addr %s1215, 2
        %s1217 = smul.addr %s1216, 8
        %s1218 = scalar_lea.vmem %s63, %s1217
        %v1220 = vld [vmem:[%s1194] sm:$0xff]
        %v1221 = vld [vmem:[%s1194 + $0x8] sm:$0xff]
        %v1222 = vld [vmem:[%s1199] sm:$0xff]
        %v1223 = vld [vmem:[%s1199 + $0x8] sm:$0xff]
        %v1224 = vld [vmem:[%s1204] sm:$0xff]
        %v1225 = vld [vmem:[%s1204 + $0x8] sm:$0xff]
        %v1226 = vld [vmem:[%s1209] sm:$0xff]
        %v1227 = vld [vmem:[%s1209 + $0x8] sm:$0xff]
        %v1228 = vld [vmem:[%s1209 + $0x10] sm:$0xff]
        %v1229 = vld [vmem:[%s1209 + $0x18] sm:$0xff]
        %v1230 = vld [vmem:[%s1209 + $0x20] sm:$0xff]
        %v1231 = vld [vmem:[%s1209 + $0x28] sm:$0xff]
        %v1232 = vld [vmem:[%s1209 + $0x30] sm:$0xff]
        %v1233 = vld [vmem:[%s1209 + $0x38] sm:$0xff]
        %v1234 = vpack.c.bf16 %v1227, %v1226
        %v1235 = vpack.c.bf16 %v1229, %v1228
        %v1236 = vpack.c.bf16 %v1231, %v1230
        %v1237 = vpack.c.bf16 %v1233, %v1232
        %v1238 = vadd.f32 %v1220, %v1222
        %v1239 = vadd.f32 %v1221, %v1223
        %v1240 = vld [vmem:[%s9] sm:$0xf]
        %v1241 = vld [vmem:[%s9 + $0x4] sm:$0xf]
        %v1242 = vld [vmem:[%s9 + $0x8] sm:$0xf]
        %v1243 = vld [vmem:[%s9 + $0xc] sm:$0xf]
        %v1244 = vld [vmem:[%s11] sm:$0x1]
        %v1245 = vpack.c.bf16 %v1239, %v1238
        %v1247 = vlaneseq
        %v1248 = vshrl.u32 %v1247, 7
        %v1249 = vsub.s32 0, %v1248
        %v1250 = vrot.slane %v1244, %v1249
        %v1256 = vunpack.c.l.b16 %v1240
        %v1257 = vunpack.c.l.b16 %v1241
        %v1258 = vunpack.c.l.b16 %v1242
        %v1259 = vunpack.c.l.b16 %v1243
        %v1260 = vpack.c.b16 %v1257, %v1256
        %v1261 = vpack.c.b16 %v1259, %v1258
        %vm1264 = vcmask 261120
        %v1266 = vsel %vm1264, %v1245, 0
        %1268 = vmatprep.subr.bf16.mxu0 0
        %1269 = vmatpush1.bf16.msra.mxu0 %v1260
        %1270 = vmatprep.subr.bf16.mxu0 0
        %1271 = vmatpush1.bf16.msra.mxu0 %v1261
        %1272 = vmatprep.subr.bf16.mxu0 0
        %1273 = vmatpush1.bf16.msra.mxu0 0
        %1274 = vmatprep.subr.bf16.mxu0 0
        %1275 = vmatpush1.bf16.msra.mxu0 0
        %1276 = vmatprep.subr.bf16.mxu0 0
        %1277 = vmatpush1.bf16.msra.mxu0 0
        %1278 = vmatprep.subr.bf16.mxu0 0
        %1279 = vmatpush1.bf16.msra.mxu0 0
        %1280 = vmatprep.subr.bf16.mxu0 0
        %1281 = vmatpush1.bf16.msra.mxu0 0
        %1282 = vmatprep.subr.bf16.mxu0 0
        %1283 = vmatpush1.bf16.msra.mxu0 0
        %1284 = vmatprep.subr.bf16.mxu0 0
        %1285 = vmatpush1.bf16.msra.mxu0 0
        %1286 = vmatprep.subr.bf16.mxu0 0
        %1287 = vmatpush1.bf16.msra.mxu0 0
        %1288 = vmatprep.subr.bf16.mxu0 0
        %1289 = vmatpush1.bf16.msra.mxu0 0
        %1290 = vmatprep.subr.bf16.mxu0 0
        %1291 = vmatpush1.bf16.msra.mxu0 0
        %1292 = vmatprep.subr.bf16.mxu0 0
        %1293 = vmatpush1.bf16.msra.mxu0 0
        %1294 = vmatprep.subr.bf16.mxu0 0
        %1295 = vmatpush1.bf16.msra.mxu0 0
        %1296 = vmatprep.subr.bf16.mxu0 0
        %1297 = vmatpush1.bf16.msra.mxu0 0
        %1298 = vmatprep.subr.bf16.mxu0 0
        %1299 = vmatpush1.bf16.msra.mxu0 0
        %1300 = vmatprep.mubr.bf16.mxu0 0
        %1301 = vmatmul.mubr.bf16.gmra.mrb[0].mxu0 %v1266
        %v1302 = vpop.f32.mrb[0].mxu0
        %v1303 = vadd.f32 %v1250, %v1302
        %v1304 = vpop.f32.mrb[0].mxu0
        %v1305 = vpop.f32.mrb[0].mxu0
        %v1306 = vadd.f32 %v1250, %v1305
        %v1307 = vpop.f32.mrb[0].mxu0
        %1308 = vdwg.mxu0
        %v1309 = vld [vmem:[%s13] sm:$0xf]
        %v1310 = vld [vmem:[%s13 + $0x4] sm:$0xf]
        %v1311 = vld [vmem:[%s13 + $0x8] sm:$0xf]
        %v1312 = vld [vmem:[%s13 + $0xc] sm:$0xf]
        %v1313 = vld [vmem:[%s15] sm:$0x1]
        %v1314 = vpack.c.bf16 %v1221, %v1220
        %v1316 = vlaneseq
        %v1317 = vshrl.u32 %v1316, 7
        %v1318 = vsub.s32 0, %v1317
        %v1319 = vrot.slane %v1313, %v1318
        %v1325 = vunpack.c.l.b16 %v1309
        %v1326 = vunpack.c.l.b16 %v1310
        %v1327 = vunpack.c.l.b16 %v1311
        %v1328 = vunpack.c.l.b16 %v1312
        %v1329 = vpack.c.b16 %v1326, %v1325
        %v1330 = vpack.c.b16 %v1328, %v1327
        %v1334 = vsel %vm1264, %v1314, 0
        %1336 = vmatprep.subr.bf16.mxu0 0
        %1337 = vmatpush1.bf16.msra.mxu0 %v1329
        %1338 = vmatprep.subr.bf16.mxu0 0
        %1339 = vmatpush1.bf16.msra.mxu0 %v1330
        %1340 = vmatprep.subr.bf16.mxu0 0
        %1341 = vmatpush1.bf16.msra.mxu0 0
        %1342 = vmatprep.subr.bf16.mxu0 0
        %1343 = vmatpush1.bf16.msra.mxu0 0
        %1344 = vmatprep.subr.bf16.mxu0 0
        %1345 = vmatpush1.bf16.msra.mxu0 0
        %1346 = vmatprep.subr.bf16.mxu0 0
        %1347 = vmatpush1.bf16.msra.mxu0 0
        %1348 = vmatprep.subr.bf16.mxu0 0
        %1349 = vmatpush1.bf16.msra.mxu0 0
        %1350 = vmatprep.subr.bf16.mxu0 0
        %1351 = vmatpush1.bf16.msra.mxu0 0
        %1352 = vmatprep.subr.bf16.mxu0 0
        %1353 = vmatpush1.bf16.msra.mxu0 0
        %1354 = vmatprep.subr.bf16.mxu0 0
        %1355 = vmatpush1.bf16.msra.mxu0 0
        %1356 = vmatprep.subr.bf16.mxu0 0
        %1357 = vmatpush1.bf16.msra.mxu0 0
        %1358 = vmatprep.subr.bf16.mxu0 0
        %1359 = vmatpush1.bf16.msra.mxu0 0
        %1360 = vmatprep.subr.bf16.mxu0 0
        %1361 = vmatpush1.bf16.msra.mxu0 0
        %1362 = vmatprep.subr.bf16.mxu0 0
        %1363 = vmatpush1.bf16.msra.mxu0 0
        %1364 = vmatprep.subr.bf16.mxu0 0
        %1365 = vmatpush1.bf16.msra.mxu0 0
        %1366 = vmatprep.subr.bf16.mxu0 0
        %1367 = vmatpush1.bf16.msra.mxu0 0
        %1368 = vmatprep.mubr.bf16.mxu0 0
        %1369 = vmatmul.mubr.bf16.gmra.mrb[0].mxu0 %v1334
        %v1370 = vpop.f32.mrb[0].mxu0
        %v1371 = vadd.f32 %v1319, %v1370
        %v1372 = vpop.f32.mrb[0].mxu0
        %v1373 = vpop.f32.mrb[0].mxu0
        %v1374 = vadd.f32 %v1319, %v1373
        %v1375 = vpop.f32.mrb[0].mxu0
        %1376 = vdwg.mxu0
        %v1377 = vpack.c.bf16 %v1306, %v1303
        %v1378 = vpack.c.bf16 %v1374, %v1371
        %v1379 = vld [vmem:[%s17] sm:$0xf]
        %v1380 = vld [vmem:[%s17 + $0x4] sm:$0xf]
        %v1381 = vld [vmem:[%s17 + $0x8] sm:$0xf]
        %v1382 = vld [vmem:[%s17 + $0xc] sm:$0xf]
        %v1383 = vld [vmem:[%s19] sm:$0x1]
        %v1384 = vmul.f32 %v1303, 0.35355338
        %v1385 = vmul.f32 %v1306, 0.35355338
        %v1386 = vpack.c.bf16 %v1385, %v1384
        %1388 = vrot.lane.b32.xlu0 %v1377, 96
        %v1389 = vpop.permute.xlu0 %1388
        %vm1390 = vcmask 64512
        %v1392 = vsel %vm1390, %v1386, 0
        %v1395 = vsel %vm1390, %v1389, 0
        %1397 = vmatprep.subr.bf16.mxu0 0
        %1398 = vmatpush1.bf16.xpose.msra.mxu0 %v1395
        %1399 = vmatprep.subr.bf16.mxu0 0
        %1400 = vmatpush1.bf16.xpose.msra.mxu0 0
        %1401 = vmatprep.subr.bf16.mxu0 0
        %1402 = vmatpush1.bf16.xpose.msra.mxu0 0
        %1403 = vmatprep.subr.bf16.mxu0 0
        %1404 = vmatpush1.bf16.xpose.msra.mxu0 0
        %1405 = vmatprep.subr.bf16.mxu0 0
        %1406 = vmatpush1.bf16.xpose.msra.mxu0 0
        %1407 = vmatprep.subr.bf16.mxu0 0
        %1408 = vmatpush1.bf16.xpose.msra.mxu0 0
        %1409 = vmatprep.subr.bf16.mxu0 0
        %1410 = vmatpush1.bf16.xpose.msra.mxu0 0
        %1411 = vmatprep.subr.bf16.mxu0 0
        %1412 = vmatpush1.bf16.xpose.msra.mxu0 0
        %1413 = vmatprep.subr.bf16.mxu0 0
        %1414 = vmatpush1.bf16.xpose.msra.mxu0 0
        %1415 = vmatprep.subr.bf16.mxu0 0
        %1416 = vmatpush1.bf16.xpose.msra.mxu0 0
        %1417 = vmatprep.subr.bf16.mxu0 0
        %1418 = vmatpush1.bf16.xpose.msra.mxu0 0
        %1419 = vmatprep.subr.bf16.mxu0 0
        %1420 = vmatpush1.bf16.xpose.msra.mxu0 0
        %1421 = vmatprep.subr.bf16.mxu0 0
        %1422 = vmatpush1.bf16.xpose.msra.mxu0 0
        %1423 = vmatprep.subr.bf16.mxu0 0
        %1424 = vmatpush1.bf16.xpose.msra.mxu0 0
        %1425 = vmatprep.subr.bf16.mxu0 0
        %1426 = vmatpush1.bf16.xpose.msra.mxu0 0
        %1427 = vmatprep.subr.bf16.mxu0 0
        %1428 = vmatpush1.bf16.xpose.msra.mxu0 0
        %1429 = vmatprep.mubr.bf16.mxu0 0
        %1430 = vmatmul.mubr.bf16.gmra.mrb[0].mxu0 %v1392
        %v1431 = vpop.f32.mrb[0].mxu0
        %v1432 = vadd.f32 0.0, %v1431
        %v1433 = vpop.f32.mrb[0].mxu0
        %v1434 = vpop.f32.mrb[0].mxu0
        %v1435 = vadd.f32 0.0, %v1434
        %v1436 = vpop.f32.mrb[0].mxu0
        %1437 = vdwg.mxu0
        %vm1438 = vcmask 130048
        %v1439 = vsel %vm1438, %v1432, -inf
        %1440 = vmax.xlane.f32.xlu0 %v1439
        %v1441 = vpop.xlane.xlu0 %1440
        %v1442 = vsel %vm1438, %v1435, -inf
        %1443 = vmax.xlane.f32.xlu0 %v1442
        %v1444 = vpop.xlane.xlu0 %1443
        %v1445 = vsub.f32 %v1432, %v1441
        %v1446 = vsub.f32 %v1435, %v1444
        %v1447 = vmul.f32 %v1445, 1.442695
        %v1448 = vpow.pop %v1447
        %v1449 = vmul.f32 %v1446, 1.442695
        %v1450 = vpow.pop %v1449
        %v1451 = vsel %vm1438, %v1448, 0.0
        %1452 = vadd.xlane.f32.xlu0 %v1451
        %v1453 = vpop.xlane.xlu0 %1452
        %v1454 = vsel %vm1438, %v1450, 0.0
        %1455 = vadd.xlane.f32.xlu0 %v1454
        %v1456 = vpop.xlane.xlu0 %1455
        %v1457 = vrcp.pop %v1453
        %v1458 = vrcp.pop %v1456
        %v1459 = vmul.f32 %v1448, %v1457
        %v1460 = vmul.f32 %v1450, %v1458
        %v1461 = vpack.c.bf16 %v1460, %v1459
        %v1463 = vsel %vm1438, %v1461, 0
        %1465 = vmatprep.subr.bf16.mxu0 0
        %1466 = vmatpush1.bf16.msra.mxu0 %v1378
        %1467 = vmatprep.subr.bf16.mxu0 0
        %1468 = vmatpush1.bf16.msra.mxu0 0
        %1469 = vmatprep.subr.bf16.mxu0 0
        %1470 = vmatpush1.bf16.msra.mxu0 0
        %1471 = vmatprep.subr.bf16.mxu0 0
        %1472 = vmatpush1.bf16.msra.mxu0 0
        %1473 = vmatprep.subr.bf16.mxu0 0
        %1474 = vmatpush1.bf16.msra.mxu0 0
        %1475 = vmatprep.subr.bf16.mxu0 0
        %1476 = vmatpush1.bf16.msra.mxu0 0
        %1477 = vmatprep.subr.bf16.mxu0 0
        %1478 = vmatpush1.bf16.msra.mxu0 0
        %1479 = vmatprep.subr.bf16.mxu0 0
        %1480 = vmatpush1.bf16.msra.mxu0 0
        %1481 = vmatprep.subr.bf16.mxu0 0
        %1482 = vmatpush1.bf16.msra.mxu0 0
        %1483 = vmatprep.subr.bf16.mxu0 0
        %1484 = vmatpush1.bf16.msra.mxu0 0
        %1485 = vmatprep.subr.bf16.mxu0 0
        %1486 = vmatpush1.bf16.msra.mxu0 0
        %1487 = vmatprep.subr.bf16.mxu0 0
        %1488 = vmatpush1.bf16.msra.mxu0 0
        %1489 = vmatprep.subr.bf16.mxu0 0
        %1490 = vmatpush1.bf16.msra.mxu0 0
        %1491 = vmatprep.subr.bf16.mxu0 0
        %1492 = vmatpush1.bf16.msra.mxu0 0
        %1493 = vmatprep.subr.bf16.mxu0 0
        %1494 = vmatpush1.bf16.msra.mxu0 0
        %1495 = vmatprep.subr.bf16.mxu0 0
        %1496 = vmatpush1.bf16.msra.mxu0 0
        %1497 = vmatprep.mubr.bf16.mxu0 0
        %1498 = vmatmul.mubr.bf16.gmra.mrb[0].mxu0 %v1463
        %v1499 = vpop.f32.mrb[0].mxu0
        %v1500 = vadd.f32 0.0, %v1499
        %v1501 = vpop.f32.mrb[0].mxu0
        %v1502 = vpop.f32.mrb[0].mxu0
        %v1503 = vadd.f32 0.0, %v1502
        %v1504 = vpop.f32.mrb[0].mxu0
        %1505 = vdwg.mxu0
        %1507 = vrot.lane.b32.xlu0 %v1386, 120
        %v1508 = vpop.permute.xlu0 %1507
        %1509 = vrot.lane.b32.xlu0 %v1377, 88
        %v1510 = vpop.permute.xlu0 %1509
        %v1512 = vsel %vm1390, %v1508, 0
        %v1515 = vsel %vm1390, %v1510, 0
        %1517 = vmatprep.subr.bf16.mxu0 0
        %1518 = vmatpush1.bf16.xpose.msra.mxu0 %v1515
        %1519 = vmatprep.subr.bf16.mxu0 0
        %1520 = vmatpush1.bf16.xpose.msra.mxu0 0
        %1521 = vmatprep.subr.bf16.mxu0 0
        %1522 = vmatpush1.bf16.xpose.msra.mxu0 0
        %1523 = vmatprep.subr.bf16.mxu0 0
        %1524 = vmatpush1.bf16.xpose.msra.mxu0 0
        %1525 = vmatprep.subr.bf16.mxu0 0
        %1526 = vmatpush1.bf16.xpose.msra.mxu0 0
        %1527 = vmatprep.subr.bf16.mxu0 0
        %1528 = vmatpush1.bf16.xpose.msra.mxu0 0
        %1529 = vmatprep.subr.bf16.mxu0 0
        %1530 = vmatpush1.bf16.xpose.msra.mxu0 0
        %1531 = vmatprep.subr.bf16.mxu0 0
        %1532 = vmatpush1.bf16.xpose.msra.mxu0 0
        %1533 = vmatprep.subr.bf16.mxu0 0
        %1534 = vmatpush1.bf16.xpose.msra.mxu0 0
        %1535 = vmatprep.subr.bf16.mxu0 0
        %1536 = vmatpush1.bf16.xpose.msra.mxu0 0
        %1537 = vmatprep.subr.bf16.mxu0 0
        %1538 = vmatpush1.bf16.xpose.msra.mxu0 0
        %1539 = vmatprep.subr.bf16.mxu0 0
        %1540 = vmatpush1.bf16.xpose.msra.mxu0 0
        %1541 = vmatprep.subr.bf16.mxu0 0
        %1542 = vmatpush1.bf16.xpose.msra.mxu0 0
        %1543 = vmatprep.subr.bf16.mxu0 0
        %1544 = vmatpush1.bf16.xpose.msra.mxu0 0
        %1545 = vmatprep.subr.bf16.mxu0 0
        %1546 = vmatpush1.bf16.xpose.msra.mxu0 0
        %1547 = vmatprep.subr.bf16.mxu0 0
        %1548 = vmatpush1.bf16.xpose.msra.mxu0 0
        %1549 = vmatprep.mubr.bf16.mxu0 0
        %1550 = vmatmul.mubr.bf16.gmra.mrb[0].mxu0 %v1512
        %v1551 = vpop.f32.mrb[0].mxu0
        %v1552 = vadd.f32 0.0, %v1551
        %v1553 = vpop.f32.mrb[0].mxu0
        %v1554 = vpop.f32.mrb[0].mxu0
        %v1555 = vadd.f32 0.0, %v1554
        %v1556 = vpop.f32.mrb[0].mxu0
        %1557 = vdwg.mxu0
        %v1558 = vsel %vm1438, %v1552, -inf
        %1559 = vmax.xlane.f32.xlu0 %v1558
        %v1560 = vpop.xlane.xlu0 %1559
        %v1561 = vsel %vm1438, %v1555, -inf
        %1562 = vmax.xlane.f32.xlu0 %v1561
        %v1563 = vpop.xlane.xlu0 %1562
        %v1564 = vsub.f32 %v1552, %v1560
        %v1565 = vsub.f32 %v1555, %v1563
        %v1566 = vmul.f32 %v1564, 1.442695
        %v1567 = vpow.pop %v1566
        %v1568 = vmul.f32 %v1565, 1.442695
        %v1569 = vpow.pop %v1568
        %v1570 = vsel %vm1438, %v1567, 0.0
        %1571 = vadd.xlane.f32.xlu0 %v1570
        %v1572 = vpop.xlane.xlu0 %1571
        %v1573 = vsel %vm1438, %v1569, 0.0
        %1574 = vadd.xlane.f32.xlu0 %v1573
        %v1575 = vpop.xlane.xlu0 %1574
        %v1576 = vrcp.pop %v1572
        %v1577 = vrcp.pop %v1575
        %v1578 = vmul.f32 %v1567, %v1576
        %v1579 = vmul.f32 %v1569, %v1577
        %v1580 = vpack.c.bf16 %v1579, %v1578
        %1582 = vrot.lane.b32.xlu0 %v1378, 120
        %v1583 = vpop.permute.xlu0 %1582
        %v1586 = vsel %vm1438, %v1580, 0
        %1588 = vmatprep.subr.bf16.mxu0 0
        %1589 = vmatpush1.bf16.msra.mxu0 %v1583
        %1590 = vmatprep.subr.bf16.mxu0 0
        %1591 = vmatpush1.bf16.msra.mxu0 0
        %1592 = vmatprep.subr.bf16.mxu0 0
        %1593 = vmatpush1.bf16.msra.mxu0 0
        %1594 = vmatprep.subr.bf16.mxu0 0
        %1595 = vmatpush1.bf16.msra.mxu0 0
        %1596 = vmatprep.subr.bf16.mxu0 0
        %1597 = vmatpush1.bf16.msra.mxu0 0
        %1598 = vmatprep.subr.bf16.mxu0 0
        %1599 = vmatpush1.bf16.msra.mxu0 0
        %1600 = vmatprep.subr.bf16.mxu0 0
        %1601 = vmatpush1.bf16.msra.mxu0 0
        %1602 = vmatprep.subr.bf16.mxu0 0
        %1603 = vmatpush1.bf16.msra.mxu0 0
        %1604 = vmatprep.subr.bf16.mxu0 0
        %1605 = vmatpush1.bf16.msra.mxu0 0
        %1606 = vmatprep.subr.bf16.mxu0 0
        %1607 = vmatpush1.bf16.msra.mxu0 0
        %1608 = vmatprep.subr.bf16.mxu0 0
        %1609 = vmatpush1.bf16.msra.mxu0 0
        %1610 = vmatprep.subr.bf16.mxu0 0
        %1611 = vmatpush1.bf16.msra.mxu0 0
        %1612 = vmatprep.subr.bf16.mxu0 0
        %1613 = vmatpush1.bf16.msra.mxu0 0
        %1614 = vmatprep.subr.bf16.mxu0 0
        %1615 = vmatpush1.bf16.msra.mxu0 0
        %1616 = vmatprep.subr.bf16.mxu0 0
        %1617 = vmatpush1.bf16.msra.mxu0 0
        %1618 = vmatprep.subr.bf16.mxu0 0
        %1619 = vmatpush1.bf16.msra.mxu0 0
        %1620 = vmatprep.mubr.bf16.mxu0 0
        %1621 = vmatmul.mubr.bf16.gmra.mrb[0].mxu0 %v1586
        %v1622 = vpop.f32.mrb[0].mxu0
        %v1623 = vadd.f32 0.0, %v1622
        %v1624 = vpop.f32.mrb[0].mxu0
        %v1625 = vpop.f32.mrb[0].mxu0
        %v1626 = vadd.f32 0.0, %v1625
        %v1627 = vpop.f32.mrb[0].mxu0
        %1628 = vdwg.mxu0
        %1629 = vrot.lane.b32.xlu0 %v1386, 112
        %v1630 = vpop.permute.xlu0 %1629
        %1631 = vrot.lane.b32.xlu0 %v1377, 80
        %v1632 = vpop.permute.xlu0 %1631
        %v1634 = vsel %vm1390, %v1630, 0
        %v1637 = vsel %vm1390, %v1632, 0
        %1639 = vmatprep.subr.bf16.mxu0 0
        %1640 = vmatpush1.bf16.xpose.msra.mxu0 %v1637
        %1641 = vmatprep.subr.bf16.mxu0 0
        %1642 = vmatpush1.bf16.xpose.msra.mxu0 0
        %1643 = vmatprep.subr.bf16.mxu0 0
        %1644 = vmatpush1.bf16.xpose.msra.mxu0 0
        %1645 = vmatprep.subr.bf16.mxu0 0
        %1646 = vmatpush1.bf16.xpose.msra.mxu0 0
        %1647 = vmatprep.subr.bf16.mxu0 0
        %1648 = vmatpush1.bf16.xpose.msra.mxu0 0
        %1649 = vmatprep.subr.bf16.mxu0 0
        %1650 = vmatpush1.bf16.xpose.msra.mxu0 0
        %1651 = vmatprep.subr.bf16.mxu0 0
        %1652 = vmatpush1.bf16.xpose.msra.mxu0 0
        %1653 = vmatprep.subr.bf16.mxu0 0
        %1654 = vmatpush1.bf16.xpose.msra.mxu0 0
        %1655 = vmatprep.subr.bf16.mxu0 0
        %1656 = vmatpush1.bf16.xpose.msra.mxu0 0
        %1657 = vmatprep.subr.bf16.mxu0 0
        %1658 = vmatpush1.bf16.xpose.msra.mxu0 0
        %1659 = vmatprep.subr.bf16.mxu0 0
        %1660 = vmatpush1.bf16.xpose.msra.mxu0 0
        %1661 = vmatprep.subr.bf16.mxu0 0
        %1662 = vmatpush1.bf16.xpose.msra.mxu0 0
        %1663 = vmatprep.subr.bf16.mxu0 0
        %1664 = vmatpush1.bf16.xpose.msra.mxu0 0
        %1665 = vmatprep.subr.bf16.mxu0 0
        %1666 = vmatpush1.bf16.xpose.msra.mxu0 0
        %1667 = vmatprep.subr.bf16.mxu0 0
        %1668 = vmatpush1.bf16.xpose.msra.mxu0 0
        %1669 = vmatprep.subr.bf16.mxu0 0
        %1670 = vmatpush1.bf16.xpose.msra.mxu0 0
        %1671 = vmatprep.mubr.bf16.mxu0 0
        %1672 = vmatmul.mubr.bf16.gmra.mrb[0].mxu0 %v1634
        %v1673 = vpop.f32.mrb[0].mxu0
        %v1674 = vadd.f32 0.0, %v1673
        %v1675 = vpop.f32.mrb[0].mxu0
        %v1676 = vpop.f32.mrb[0].mxu0
        %v1677 = vadd.f32 0.0, %v1676
        %v1678 = vpop.f32.mrb[0].mxu0
        %1679 = vdwg.mxu0
        %v1680 = vsel %vm1438, %v1674, -inf
        %1681 = vmax.xlane.f32.xlu0 %v1680
        %v1682 = vpop.xlane.xlu0 %1681
        %v1683 = vsel %vm1438, %v1677, -inf
        %1684 = vmax.xlane.f32.xlu0 %v1683
        %v1685 = vpop.xlane.xlu0 %1684
        %v1686 = vsub.f32 %v1674, %v1682
        %v1687 = vsub.f32 %v1677, %v1685
        %v1688 = vmul.f32 %v1686, 1.442695
        %v1689 = vpow.pop %v1688
        %v1690 = vmul.f32 %v1687, 1.442695
        %v1691 = vpow.pop %v1690
        %v1692 = vsel %vm1438, %v1689, 0.0
        %1693 = vadd.xlane.f32.xlu0 %v1692
        %v1694 = vpop.xlane.xlu0 %1693
        %v1695 = vsel %vm1438, %v1691, 0.0
        %1696 = vadd.xlane.f32.xlu0 %v1695
        %v1697 = vpop.xlane.xlu0 %1696
        %v1698 = vrcp.pop %v1694
        %v1699 = vrcp.pop %v1697
        %v1700 = vmul.f32 %v1689, %v1698
        %v1701 = vmul.f32 %v1691, %v1699
        %v1702 = vpack.c.bf16 %v1701, %v1700
        %1703 = vrot.lane.b32.xlu0 %v1378, 112
        %v1704 = vpop.permute.xlu0 %1703
        %v1707 = vsel %vm1438, %v1702, 0
        %1709 = vmatprep.subr.bf16.mxu0 0
        %1710 = vmatpush1.bf16.msra.mxu0 %v1704
        %1711 = vmatprep.subr.bf16.mxu0 0
        %1712 = vmatpush1.bf16.msra.mxu0 0
        %1713 = vmatprep.subr.bf16.mxu0 0
        %1714 = vmatpush1.bf16.msra.mxu0 0
        %1715 = vmatprep.subr.bf16.mxu0 0
        %1716 = vmatpush1.bf16.msra.mxu0 0
        %1717 = vmatprep.subr.bf16.mxu0 0
        %1718 = vmatpush1.bf16.msra.mxu0 0
        %1719 = vmatprep.subr.bf16.mxu0 0
        %1720 = vmatpush1.bf16.msra.mxu0 0
        %1721 = vmatprep.subr.bf16.mxu0 0
        %1722 = vmatpush1.bf16.msra.mxu0 0
        %1723 = vmatprep.subr.bf16.mxu0 0
        %1724 = vmatpush1.bf16.msra.mxu0 0
        %1725 = vmatprep.subr.bf16.mxu0 0
        %1726 = vmatpush1.bf16.msra.mxu0 0
        %1727 = vmatprep.subr.bf16.mxu0 0
        %1728 = vmatpush1.bf16.msra.mxu0 0
        %1729 = vmatprep.subr.bf16.mxu0 0
        %1730 = vmatpush1.bf16.msra.mxu0 0
        %1731 = vmatprep.subr.bf16.mxu0 0
        %1732 = vmatpush1.bf16.msra.mxu0 0
        %1733 = vmatprep.subr.bf16.mxu0 0
        %1734 = vmatpush1.bf16.msra.mxu0 0
        %1735 = vmatprep.subr.bf16.mxu0 0
        %1736 = vmatpush1.bf16.msra.mxu0 0
        %1737 = vmatprep.subr.bf16.mxu0 0
        %1738 = vmatpush1.bf16.msra.mxu0 0
        %1739 = vmatprep.subr.bf16.mxu0 0
        %1740 = vmatpush1.bf16.msra.mxu0 0
        %1741 = vmatprep.mubr.bf16.mxu0 0
        %1742 = vmatmul.mubr.bf16.gmra.mrb[0].mxu0 %v1707
        %v1743 = vpop.f32.mrb[0].mxu0
        %v1744 = vadd.f32 0.0, %v1743
        %v1745 = vpop.f32.mrb[0].mxu0
        %v1746 = vpop.f32.mrb[0].mxu0
        %v1747 = vadd.f32 0.0, %v1746
        %v1748 = vpop.f32.mrb[0].mxu0
        %1749 = vdwg.mxu0
        %1750 = vrot.lane.b32.xlu0 %v1386, 104
        %v1751 = vpop.permute.xlu0 %1750
        %1752 = vrot.lane.b32.xlu0 %v1377, 72
        %v1753 = vpop.permute.xlu0 %1752
        %v1755 = vsel %vm1390, %v1751, 0
        %v1758 = vsel %vm1390, %v1753, 0
        %1760 = vmatprep.subr.bf16.mxu0 0
        %1761 = vmatpush1.bf16.xpose.msra.mxu0 %v1758
        %1762 = vmatprep.subr.bf16.mxu0 0
        %1763 = vmatpush1.bf16.xpose.msra.mxu0 0
        %1764 = vmatprep.subr.bf16.mxu0 0
        %1765 = vmatpush1.bf16.xpose.msra.mxu0 0
        %1766 = vmatprep.subr.bf16.mxu0 0
        %1767 = vmatpush1.bf16.xpose.msra.mxu0 0
        %1768 = vmatprep.subr.bf16.mxu0 0
        %1769 = vmatpush1.bf16.xpose.msra.mxu0 0
        %1770 = vmatprep.subr.bf16.mxu0 0
        %1771 = vmatpush1.bf16.xpose.msra.mxu0 0
        %1772 = vmatprep.subr.bf16.mxu0 0
        %1773 = vmatpush1.bf16.xpose.msra.mxu0 0
        %1774 = vmatprep.subr.bf16.mxu0 0
        %1775 = vmatpush1.bf16.xpose.msra.mxu0 0
        %1776 = vmatprep.subr.bf16.mxu0 0
        %1777 = vmatpush1.bf16.xpose.msra.mxu0 0
        %1778 = vmatprep.subr.bf16.mxu0 0
        %1779 = vmatpush1.bf16.xpose.msra.mxu0 0
        %1780 = vmatprep.subr.bf16.mxu0 0
        %1781 = vmatpush1.bf16.xpose.msra.mxu0 0
        %1782 = vmatprep.subr.bf16.mxu0 0
        %1783 = vmatpush1.bf16.xpose.msra.mxu0 0
        %1784 = vmatprep.subr.bf16.mxu0 0
        %1785 = vmatpush1.bf16.xpose.msra.mxu0 0
        %1786 = vmatprep.subr.bf16.mxu0 0
        %1787 = vmatpush1.bf16.xpose.msra.mxu0 0
        %1788 = vmatprep.subr.bf16.mxu0 0
        %1789 = vmatpush1.bf16.xpose.msra.mxu0 0
        %1790 = vmatprep.subr.bf16.mxu0 0
        %1791 = vmatpush1.bf16.xpose.msra.mxu0 0
        %1792 = vmatprep.mubr.bf16.mxu0 0
        %1793 = vmatmul.mubr.bf16.gmra.mrb[0].mxu0 %v1755
        %v1794 = vpop.f32.mrb[0].mxu0
        %v1795 = vadd.f32 0.0, %v1794
        %v1796 = vpop.f32.mrb[0].mxu0
        %v1797 = vpop.f32.mrb[0].mxu0
        %v1798 = vadd.f32 0.0, %v1797
        %v1799 = vpop.f32.mrb[0].mxu0
        %1800 = vdwg.mxu0
        %v1801 = vsel %vm1438, %v1795, -inf
        %1802 = vmax.xlane.f32.xlu0 %v1801
        %v1803 = vpop.xlane.xlu0 %1802
        %v1804 = vsel %vm1438, %v1798, -inf
        %1805 = vmax.xlane.f32.xlu0 %v1804
        %v1806 = vpop.xlane.xlu0 %1805
        %v1807 = vsub.f32 %v1795, %v1803
        %v1808 = vsub.f32 %v1798, %v1806
        %v1809 = vmul.f32 %v1807, 1.442695
        %v1810 = vpow.pop %v1809
        %v1811 = vmul.f32 %v1808, 1.442695
        %v1812 = vpow.pop %v1811
        %v1813 = vsel %vm1438, %v1810, 0.0
        %1814 = vadd.xlane.f32.xlu0 %v1813
        %v1815 = vpop.xlane.xlu0 %1814
        %v1816 = vsel %vm1438, %v1812, 0.0
        %1817 = vadd.xlane.f32.xlu0 %v1816
        %v1818 = vpop.xlane.xlu0 %1817
        %v1819 = vrcp.pop %v1815
        %v1820 = vrcp.pop %v1818
        %v1821 = vmul.f32 %v1810, %v1819
        %v1822 = vmul.f32 %v1812, %v1820
        %v1823 = vpack.c.bf16 %v1822, %v1821
        %1824 = vrot.lane.b32.xlu0 %v1378, 104
        %v1825 = vpop.permute.xlu0 %1824
        %v1828 = vsel %vm1438, %v1823, 0
        %1830 = vmatprep.subr.bf16.mxu0 0
        %1831 = vmatpush1.bf16.msra.mxu0 %v1825
        %1832 = vmatprep.subr.bf16.mxu0 0
        %1833 = vmatpush1.bf16.msra.mxu0 0
        %1834 = vmatprep.subr.bf16.mxu0 0
        %1835 = vmatpush1.bf16.msra.mxu0 0
        %1836 = vmatprep.subr.bf16.mxu0 0
        %1837 = vmatpush1.bf16.msra.mxu0 0
        %1838 = vmatprep.subr.bf16.mxu0 0
        %1839 = vmatpush1.bf16.msra.mxu0 0
        %1840 = vmatprep.subr.bf16.mxu0 0
        %1841 = vmatpush1.bf16.msra.mxu0 0
        %1842 = vmatprep.subr.bf16.mxu0 0
        %1843 = vmatpush1.bf16.msra.mxu0 0
        %1844 = vmatprep.subr.bf16.mxu0 0
        %1845 = vmatpush1.bf16.msra.mxu0 0
        %1846 = vmatprep.subr.bf16.mxu0 0
        %1847 = vmatpush1.bf16.msra.mxu0 0
        %1848 = vmatprep.subr.bf16.mxu0 0
        %1849 = vmatpush1.bf16.msra.mxu0 0
        %1850 = vmatprep.subr.bf16.mxu0 0
        %1851 = vmatpush1.bf16.msra.mxu0 0
        %1852 = vmatprep.subr.bf16.mxu0 0
        %1853 = vmatpush1.bf16.msra.mxu0 0
        %1854 = vmatprep.subr.bf16.mxu0 0
        %1855 = vmatpush1.bf16.msra.mxu0 0
        %1856 = vmatprep.subr.bf16.mxu0 0
        %1857 = vmatpush1.bf16.msra.mxu0 0
        %1858 = vmatprep.subr.bf16.mxu0 0
        %1859 = vmatpush1.bf16.msra.mxu0 0
        %1860 = vmatprep.subr.bf16.mxu0 0
        %1861 = vmatpush1.bf16.msra.mxu0 0
        %1862 = vmatprep.mubr.bf16.mxu0 0
        %1863 = vmatmul.mubr.bf16.gmra.mrb[0].mxu0 %v1828
        %v1864 = vpop.f32.mrb[0].mxu0
        %v1865 = vadd.f32 0.0, %v1864
        %v1866 = vpop.f32.mrb[0].mxu0
        %v1867 = vpop.f32.mrb[0].mxu0
        %v1868 = vadd.f32 0.0, %v1867
        %v1869 = vpop.f32.mrb[0].mxu0
        %1870 = vdwg.mxu0
        %1873 = vrot.lane.b32.xlu0 %v1623, 8
        %v1874 = vpop.permute.xlu0 %1873
        %1875 = vrot.lane.b32.xlu0 %v1626, 8
        %v1876 = vpop.permute.xlu0 %1875
        %1881 = vrot.lane.b32.xlu0 %v1744, 16
        %v1882 = vpop.permute.xlu0 %1881
        %1883 = vrot.lane.b32.xlu0 %v1747, 16
        %v1884 = vpop.permute.xlu0 %1883
        %1889 = vrot.lane.b32.xlu0 %v1865, 24
        %v1890 = vpop.permute.xlu0 %1889
        %1891 = vrot.lane.b32.xlu0 %v1868, 24
        %v1892 = vpop.permute.xlu0 %1891
        %v1895 = vsel %vm1390, %v1500, %v1874
        %v1896 = vsel %vm1390, %v1503, %v1876
        %v1897 = vsel %vm1438, %v1895, %v1882
        %v1898 = vsel %vm1438, %v1896, %v1884
        %vm1899 = vcmask 195584
        %v1900 = vsel %vm1899, %v1897, %v1890
        %v1901 = vsel %vm1899, %v1898, %v1892
        %v1902 = vpack.c.bf16 %v1901, %v1900
        %v1904 = vlaneseq
        %v1905 = vshrl.u32 %v1904, 7
        %v1906 = vsub.s32 0, %v1905
        %v1907 = vrot.slane %v1383, %v1906
        %v1913 = vunpack.c.l.b16 %v1379
        %v1914 = vunpack.c.l.b16 %v1380
        %v1915 = vunpack.c.l.b16 %v1381
        %v1916 = vunpack.c.l.b16 %v1382
        %v1917 = vpack.c.b16 %v1914, %v1913
        %v1918 = vpack.c.b16 %v1916, %v1915
        %v1922 = vsel %vm1264, %v1902, 0
        %1924 = vmatprep.subr.bf16.mxu0 0
        %1925 = vmatpush1.bf16.msra.mxu0 %v1917
        %1926 = vmatprep.subr.bf16.mxu0 0
        %1927 = vmatpush1.bf16.msra.mxu0 %v1918
        %1928 = vmatprep.subr.bf16.mxu0 0
        %1929 = vmatpush1.bf16.msra.mxu0 0
        %1930 = vmatprep.subr.bf16.mxu0 0
        %1931 = vmatpush1.bf16.msra.mxu0 0
        %1932 = vmatprep.subr.bf16.mxu0 0
        %1933 = vmatpush1.bf16.msra.mxu0 0
        %1934 = vmatprep.subr.bf16.mxu0 0
        %1935 = vmatpush1.bf16.msra.mxu0 0
        %1936 = vmatprep.subr.bf16.mxu0 0
        %1937 = vmatpush1.bf16.msra.mxu0 0
        %1938 = vmatprep.subr.bf16.mxu0 0
        %1939 = vmatpush1.bf16.msra.mxu0 0
        %1940 = vmatprep.subr.bf16.mxu0 0
        %1941 = vmatpush1.bf16.msra.mxu0 0
        %1942 = vmatprep.subr.bf16.mxu0 0
        %1943 = vmatpush1.bf16.msra.mxu0 0
        %1944 = vmatprep.subr.bf16.mxu0 0
        %1945 = vmatpush1.bf16.msra.mxu0 0
        %1946 = vmatprep.subr.bf16.mxu0 0
        %1947 = vmatpush1.bf16.msra.mxu0 0
        %1948 = vmatprep.subr.bf16.mxu0 0
        %1949 = vmatpush1.bf16.msra.mxu0 0
        %1950 = vmatprep.subr.bf16.mxu0 0
        %1951 = vmatpush1.bf16.msra.mxu0 0
        %1952 = vmatprep.subr.bf16.mxu0 0
        %1953 = vmatpush1.bf16.msra.mxu0 0
        %1954 = vmatprep.subr.bf16.mxu0 0
        %1955 = vmatpush1.bf16.msra.mxu0 0
        %1956 = vmatprep.mubr.bf16.mxu0 0
        %1957 = vmatmul.mubr.bf16.gmra.mrb[0].mxu0 %v1922
        %v1958 = vpop.f32.mrb[0].mxu0
        %v1959 = vadd.f32 %v1907, %v1958
        %v1960 = vpop.f32.mrb[0].mxu0
        %v1961 = vpop.f32.mrb[0].mxu0
        %v1962 = vadd.f32 %v1907, %v1961
        %v1963 = vpop.f32.mrb[0].mxu0
        %1964 = vdwg.mxu0
        %v1965 = vadd.f32 %v1959, %v1220
        %v1966 = vadd.f32 %v1962, %v1221
        %v1967 = vld [vmem:[#allocation2] sm:$0x1]
        %v1968 = vld [vmem:[#allocation4] sm:$0x1]
        %v1969 = vsel %vm1264, %v1965, 0.0
        %1970 = vadd.xlane.f32.xlu0 %v1969
        %v1971 = vpop.xlane.xlu0 %1970
        %v1972 = vsel %vm1264, %v1966, 0.0
        %1973 = vadd.xlane.f32.xlu0 %v1972
        %v1974 = vpop.xlane.xlu0 %1973
        %v1975 = vrcp.pop 32.0
        %v1976 = vmul.f32 %v1971, %v1975
        %v1977 = vmul.f32 %v1974, %v1975
        %v1978 = vsub.f32 %v1965, %v1976
        %v1979 = vsub.f32 %v1966, %v1977
        %v1980 = vmul.f32 %v1978, %v1978
        %v1981 = vmul.f32 %v1979, %v1979
        %v1982 = vsel %vm1264, %v1980, 0.0
        %1983 = vadd.xlane.f32.xlu0 %v1982
        %v1984 = vpop.xlane.xlu0 %1983
        %v1985 = vsel %vm1264, %v1981, 0.0
        %1986 = vadd.xlane.f32.xlu0 %v1985
        %v1987 = vpop.xlane.xlu0 %1986
        %v1988 = vmul.f32 %v1984, %v1975
        %v1989 = vmul.f32 %v1987, %v1975
        %v1990 = vadd.f32 %v1988, 1e-05
        %v1991 = vadd.f32 %v1989, 1e-05
        %v1992 = vrsqrt.pop %v1990
        %v1993 = vrsqrt.pop %v1991
        %v1994 = vmul.f32 %v1978, %v1992
        %v1995 = vmul.f32 %v1979, %v1993
        %v1997 = vlaneseq
        %v1998 = vshrl.u32 %v1997, 7
        %v1999 = vsub.s32 0, %v1998
        %v2000 = vrot.slane %v1967, %v1999
        %v2002 = vmul.f32 %v1994, %v2000
        %v2003 = vmul.f32 %v1995, %v2000
        %v2005 = vlaneseq
        %v2006 = vshrl.u32 %v2005, 7
        %v2007 = vsub.s32 0, %v2006
        %v2008 = vrot.slane %v1968, %v2007
        %v2010 = vadd.f32 %v2002, %v2008
        %v2011 = vadd.f32 %v2003, %v2008
        %v2012 = vadd.f32 %v2010, %v1222
        %v2013 = vadd.f32 %v2011, %v1223
        %v2014 = vld [vmem:[%s25] sm:$0xf]
        %v2015 = vld [vmem:[%s25 + $0x4] sm:$0xf]
        %v2016 = vld [vmem:[%s25 + $0x8] sm:$0xf]
        %v2017 = vld [vmem:[%s25 + $0xc] sm:$0xf]
        %v2018 = vld [vmem:[#allocation6] sm:$0x1]
        %v2019 = vpack.c.bf16 %v2013, %v2012
        %v2021 = vlaneseq
        %v2022 = vshrl.u32 %v2021, 7
        %v2023 = vsub.s32 0, %v2022
        %v2024 = vrot.slane %v2018, %v2023
        %v2030 = vunpack.c.l.b16 %v2014
        %v2031 = vunpack.c.l.b16 %v2015
        %v2032 = vunpack.c.l.b16 %v2016
        %v2033 = vunpack.c.l.b16 %v2017
        %v2034 = vpack.c.b16 %v2031, %v2030
        %v2035 = vpack.c.b16 %v2033, %v2032
        %v2039 = vsel %vm1264, %v2019, 0
        %2041 = vmatprep.subr.bf16.mxu0 0
        %2042 = vmatpush1.bf16.msra.mxu0 %v2034
        %2043 = vmatprep.subr.bf16.mxu0 0
        %2044 = vmatpush1.bf16.msra.mxu0 %v2035
        %2045 = vmatprep.subr.bf16.mxu0 0
        %2046 = vmatpush1.bf16.msra.mxu0 0
        %2047 = vmatprep.subr.bf16.mxu0 0
        %2048 = vmatpush1.bf16.msra.mxu0 0
        %2049 = vmatprep.subr.bf16.mxu0 0
        %2050 = vmatpush1.bf16.msra.mxu0 0
        %2051 = vmatprep.subr.bf16.mxu0 0
        %2052 = vmatpush1.bf16.msra.mxu0 0
        %2053 = vmatprep.subr.bf16.mxu0 0
        %2054 = vmatpush1.bf16.msra.mxu0 0
        %2055 = vmatprep.subr.bf16.mxu0 0
        %2056 = vmatpush1.bf16.msra.mxu0 0
        %2057 = vmatprep.subr.bf16.mxu0 0
        %2058 = vmatpush1.bf16.msra.mxu0 0
        %2059 = vmatprep.subr.bf16.mxu0 0
        %2060 = vmatpush1.bf16.msra.mxu0 0
        %2061 = vmatprep.subr.bf16.mxu0 0
        %2062 = vmatpush1.bf16.msra.mxu0 0
        %2063 = vmatprep.subr.bf16.mxu0 0
        %2064 = vmatpush1.bf16.msra.mxu0 0
        %2065 = vmatprep.subr.bf16.mxu0 0
        %2066 = vmatpush1.bf16.msra.mxu0 0
        %2067 = vmatprep.subr.bf16.mxu0 0
        %2068 = vmatpush1.bf16.msra.mxu0 0
        %2069 = vmatprep.subr.bf16.mxu0 0
        %2070 = vmatpush1.bf16.msra.mxu0 0
        %2071 = vmatprep.subr.bf16.mxu0 0
        %2072 = vmatpush1.bf16.msra.mxu0 0
        %2073 = vmatprep.mubr.bf16.mxu0 0
        %2074 = vmatmul.mubr.bf16.gmra.mrb[0].mxu0 %v2039
        %v2075 = vpop.f32.mrb[0].mxu0
        %v2076 = vadd.f32 %v2024, %v2075
        %v2077 = vpop.f32.mrb[0].mxu0
        %v2078 = vpop.f32.mrb[0].mxu0
        %v2079 = vadd.f32 %v2024, %v2078
        %v2080 = vpop.f32.mrb[0].mxu0
        %2081 = vdwg.mxu0
        %v2082 = vld [vmem:[%s29] sm:$0xf]
        %v2083 = vld [vmem:[%s29 + $0x4] sm:$0xf]
        %v2084 = vld [vmem:[%s29 + $0x8] sm:$0xf]
        %v2085 = vld [vmem:[%s29 + $0xc] sm:$0xf]
        %v2086 = vld [vmem:[#allocation7] sm:$0x1]
        %v2088 = vlaneseq
        %v2089 = vshrl.u32 %v2088, 7
        %v2090 = vsub.s32 0, %v2089
        %v2091 = vrot.slane %v2086, %v2090
        %v2097 = vunpack.c.l.b16 %v2082
        %v2098 = vunpack.c.l.b16 %v2083
        %v2099 = vunpack.c.l.b16 %v2084
        %v2100 = vunpack.c.l.b16 %v2085
        %v2101 = vpack.c.b16 %v2098, %v2097
        %v2102 = vpack.c.b16 %v2100, %v2099
        %v2106 = vsel %vm1264, %v1234, 0
        %v2109 = vsel %vm1264, %v1235, 0
        %v2112 = vsel %vm1264, %v1236, 0
        %v2115 = vsel %vm1264, %v1237, 0
        %2117 = vmatprep.subr.bf16.mxu0 0
        %2118 = vmatpush1.bf16.msra.mxu0 %v2101
        %2119 = vmatprep.subr.bf16.mxu0 0
        %2120 = vmatpush1.bf16.msra.mxu0 %v2102
        %2121 = vmatprep.subr.bf16.mxu0 0
        %2122 = vmatpush1.bf16.msra.mxu0 0
        %2123 = vmatprep.subr.bf16.mxu0 0
        %2124 = vmatpush1.bf16.msra.mxu0 0
        %2125 = vmatprep.subr.bf16.mxu0 0
        %2126 = vmatpush1.bf16.msra.mxu0 0
        %2127 = vmatprep.subr.bf16.mxu0 0
        %2128 = vmatpush1.bf16.msra.mxu0 0
        %2129 = vmatprep.subr.bf16.mxu0 0
        %2130 = vmatpush1.bf16.msra.mxu0 0
        %2131 = vmatprep.subr.bf16.mxu0 0
        %2132 = vmatpush1.bf16.msra.mxu0 0
        %2133 = vmatprep.subr.bf16.mxu0 0
        %2134 = vmatpush1.bf16.msra.mxu0 0
        %2135 = vmatprep.subr.bf16.mxu0 0
        %2136 = vmatpush1.bf16.msra.mxu0 0
        %2137 = vmatprep.subr.bf16.mxu0 0
        %2138 = vmatpush1.bf16.msra.mxu0 0
        %2139 = vmatprep.subr.bf16.mxu0 0
        %2140 = vmatpush1.bf16.msra.mxu0 0
        %2141 = vmatprep.subr.bf16.mxu0 0
        %2142 = vmatpush1.bf16.msra.mxu0 0
        %2143 = vmatprep.subr.bf16.mxu0 0
        %2144 = vmatpush1.bf16.msra.mxu0 0
        %2145 = vmatprep.subr.bf16.mxu0 0
        %2146 = vmatpush1.bf16.msra.mxu0 0
        %2147 = vmatprep.subr.bf16.mxu0 0
        %2148 = vmatpush1.bf16.msra.mxu0 0
        %2149 = vmatprep.mubr.bf16.mxu0 0
        %2150 = vmatmul.mubr.bf16.gmra.mrb[0].mxu0 %v2106
        %v2151 = vpop.f32.mrb[0].mxu0
        %v2152 = vadd.f32 %v2091, %v2151
        %v2153 = vpop.f32.mrb[0].mxu0
        %v2154 = vpop.f32.mrb[0].mxu0
        %v2155 = vadd.f32 %v2091, %v2154
        %v2156 = vpop.f32.mrb[0].mxu0
        %2157 = vmatprep.mubr.bf16.mxu0 0
        %2158 = vmatmul.mubr.bf16.gmra.mrb[0].mxu0 %v2109
        %v2159 = vpop.f32.mrb[0].mxu0
        %v2160 = vadd.f32 %v2091, %v2159
        %v2161 = vpop.f32.mrb[0].mxu0
        %v2162 = vpop.f32.mrb[0].mxu0
        %v2163 = vadd.f32 %v2091, %v2162
        %v2164 = vpop.f32.mrb[0].mxu0
        %2165 = vmatprep.mubr.bf16.mxu0 0
        %2166 = vmatmul.mubr.bf16.gmra.mrb[0].mxu0 %v2112
        %v2167 = vpop.f32.mrb[0].mxu0
        %v2168 = vadd.f32 %v2091, %v2167
        %v2169 = vpop.f32.mrb[0].mxu0
        %v2170 = vpop.f32.mrb[0].mxu0
        %v2171 = vadd.f32 %v2091, %v2170
        %v2172 = vpop.f32.mrb[0].mxu0
        %2173 = vmatprep.mubr.bf16.mxu0 0
        %2174 = vmatmul.mubr.bf16.gmra.mrb[0].mxu0 %v2115
        %v2175 = vpop.f32.mrb[0].mxu0
        %v2176 = vadd.f32 %v2091, %v2175
        %v2177 = vpop.f32.mrb[0].mxu0
        %v2178 = vpop.f32.mrb[0].mxu0
        %v2179 = vadd.f32 %v2091, %v2178
        %v2180 = vpop.f32.mrb[0].mxu0
        %2181 = vdwg.mxu0
        %v2182 = vpack.c.bf16 %v2155, %v2152
        %v2183 = vpack.c.bf16 %v2163, %v2160
        %v2184 = vpack.c.bf16 %v2171, %v2168
        %v2185 = vpack.c.bf16 %v2179, %v2176
        %v2186 = vld [vmem:[%s33] sm:$0xf]
        %v2187 = vld [vmem:[%s33 + $0x4] sm:$0xf]
        %v2188 = vld [vmem:[%s33 + $0x8] sm:$0xf]
        %v2189 = vld [vmem:[%s33 + $0xc] sm:$0xf]
        %v2190 = vld [vmem:[#allocation9] sm:$0x1]
        %v2191 = vmul.f32 %v2076, 0.35355338
        %v2192 = vmul.f32 %v2079, 0.35355338
        %v2193 = vpack.c.bf16 %v2192, %v2191
        %v2195 = vsel %vm1390, %v2193, 0
        %v2198 = vsel %vm1390, %v2182, 0
        %v2201 = vsel %vm1390, %v2183, 0
        %v2204 = vsel %vm1390, %v2184, 0
        %v2207 = vsel %vm1390, %v2185, 0
        %2209 = vmatprep.subr.bf16.mxu0 0
        %2210 = vmatpush1.bf16.xpose.msra.mxu0 %v2198
        %2211 = vmatprep.subr.bf16.mxu0 0
        %2212 = vmatpush1.bf16.xpose.msra.mxu0 %v2201
        %2213 = vmatprep.subr.bf16.mxu0 0
        %2214 = vmatpush1.bf16.xpose.msra.mxu0 %v2204
        %2215 = vmatprep.subr.bf16.mxu0 0
        %2216 = vmatpush1.bf16.xpose.msra.mxu0 %v2207
        %2217 = vmatprep.subr.bf16.mxu0 0
        %2218 = vmatpush1.bf16.xpose.msra.mxu0 0
        %2219 = vmatprep.subr.bf16.mxu0 0
        %2220 = vmatpush1.bf16.xpose.msra.mxu0 0
        %2221 = vmatprep.subr.bf16.mxu0 0
        %2222 = vmatpush1.bf16.xpose.msra.mxu0 0
        %2223 = vmatprep.subr.bf16.mxu0 0
        %2224 = vmatpush1.bf16.xpose.msra.mxu0 0
        %2225 = vmatprep.subr.bf16.mxu0 0
        %2226 = vmatpush1.bf16.xpose.msra.mxu0 0
        %2227 = vmatprep.subr.bf16.mxu0 0
        %2228 = vmatpush1.bf16.xpose.msra.mxu0 0
        %2229 = vmatprep.subr.bf16.mxu0 0
        %2230 = vmatpush1.bf16.xpose.msra.mxu0 0
        %2231 = vmatprep.subr.bf16.mxu0 0
        %2232 = vmatpush1.bf16.xpose.msra.mxu0 0
        %2233 = vmatprep.subr.bf16.mxu0 0
        %2234 = vmatpush1.bf16.xpose.msra.mxu0 0
        %2235 = vmatprep.subr.bf16.mxu0 0
        %2236 = vmatpush1.bf16.xpose.msra.mxu0 0
        %2237 = vmatprep.subr.bf16.mxu0 0
        %2238 = vmatpush1.bf16.xpose.msra.mxu0 0
        %2239 = vmatprep.subr.bf16.mxu0 0
        %2240 = vmatpush1.bf16.xpose.msra.mxu0 0
        %2241 = vmatprep.mubr.bf16.mxu0 0
        %2242 = vmatmul.mubr.bf16.gmra.mrb[0].mxu0 %v2195
        %v2243 = vpop.f32.mrb[0].mxu0
        %v2244 = vadd.f32 0.0, %v2243
        %v2245 = vpop.f32.mrb[0].mxu0
        %v2246 = vpop.f32.mrb[0].mxu0
        %v2247 = vadd.f32 0.0, %v2246
        %v2248 = vpop.f32.mrb[0].mxu0
        %2249 = vdwg.mxu0
        %vm2250 = vcmask 523264
        %v2251 = vsel %vm2250, %v2244, -inf
        %2252 = vmax.xlane.f32.xlu0 %v2251
        %v2253 = vpop.xlane.xlu0 %2252
        %v2254 = vsel %vm2250, %v2247, -inf
        %2255 = vmax.xlane.f32.xlu0 %v2254
        %v2256 = vpop.xlane.xlu0 %2255
        %v2257 = vsub.f32 %v2244, %v2253
        %v2258 = vsub.f32 %v2247, %v2256
        %v2259 = vmul.f32 %v2257, 1.442695
        %v2260 = vpow.pop %v2259
        %v2261 = vmul.f32 %v2258, 1.442695
        %v2262 = vpow.pop %v2261
        %v2263 = vsel %vm2250, %v2260, 0.0
        %2264 = vadd.xlane.f32.xlu0 %v2263
        %v2265 = vpop.xlane.xlu0 %2264
        %v2266 = vsel %vm2250, %v2262, 0.0
        %2267 = vadd.xlane.f32.xlu0 %v2266
        %v2268 = vpop.xlane.xlu0 %2267
        %v2269 = vrcp.pop %v2265
        %v2270 = vrcp.pop %v2268
        %v2271 = vmul.f32 %v2260, %v2269
        %v2272 = vmul.f32 %v2262, %v2270
        %v2273 = vpack.c.bf16 %v2272, %v2271
        %2278 = vrot.lane.b32.xlu0 %v2182, 96
        %v2279 = vpop.permute.xlu0 %2278
        %2280 = vrot.lane.b32.xlu0 %v2183, 96
        %v2281 = vpop.permute.xlu0 %2280
        %2282 = vrot.lane.b32.xlu0 %v2184, 96
        %v2283 = vpop.permute.xlu0 %2282
        %2284 = vrot.lane.b32.xlu0 %v2185, 96
        %v2285 = vpop.permute.xlu0 %2284
        %v2291 = vsel %vm2250, %v2273, 0
        %2293 = vmatprep.subr.bf16.mxu0 0
        %2294 = vmatpush1.bf16.msra.mxu0 %v2279
        %2295 = vmatprep.subr.bf16.mxu0 0
        %2296 = vmatpush1.bf16.msra.mxu0 %v2281
        %2297 = vmatprep.subr.bf16.mxu0 0
        %2298 = vmatpush1.bf16.msra.mxu0 %v2283
        %2299 = vmatprep.subr.bf16.mxu0 0
        %2300 = vmatpush1.bf16.msra.mxu0 %v2285
        %2301 = vmatprep.subr.bf16.mxu0 0
        %2302 = vmatpush1.bf16.msra.mxu0 0
        %2303 = vmatprep.subr.bf16.mxu0 0
        %2304 = vmatpush1.bf16.msra.mxu0 0
        %2305 = vmatprep.subr.bf16.mxu0 0
        %2306 = vmatpush1.bf16.msra.mxu0 0
        %2307 = vmatprep.subr.bf16.mxu0 0
        %2308 = vmatpush1.bf16.msra.mxu0 0
        %2309 = vmatprep.subr.bf16.mxu0 0
        %2310 = vmatpush1.bf16.msra.mxu0 0
        %2311 = vmatprep.subr.bf16.mxu0 0
        %2312 = vmatpush1.bf16.msra.mxu0 0
        %2313 = vmatprep.subr.bf16.mxu0 0
        %2314 = vmatpush1.bf16.msra.mxu0 0
        %2315 = vmatprep.subr.bf16.mxu0 0
        %2316 = vmatpush1.bf16.msra.mxu0 0
        %2317 = vmatprep.subr.bf16.mxu0 0
        %2318 = vmatpush1.bf16.msra.mxu0 0
        %2319 = vmatprep.subr.bf16.mxu0 0
        %2320 = vmatpush1.bf16.msra.mxu0 0
        %2321 = vmatprep.subr.bf16.mxu0 0
        %2322 = vmatpush1.bf16.msra.mxu0 0
        %2323 = vmatprep.subr.bf16.mxu0 0
        %2324 = vmatpush1.bf16.msra.mxu0 0
        %2325 = vmatprep.mubr.bf16.mxu0 0
        %2326 = vmatmul.mubr.bf16.gmra.mrb[0].mxu0 %v2291
        %v2327 = vpop.f32.mrb[0].mxu0
        %v2328 = vadd.f32 0.0, %v2327
        %v2329 = vpop.f32.mrb[0].mxu0
        %v2330 = vpop.f32.mrb[0].mxu0
        %v2331 = vadd.f32 0.0, %v2330
        %v2332 = vpop.f32.mrb[0].mxu0
        %2333 = vdwg.mxu0
        %2335 = vrot.lane.b32.xlu0 %v2193, 120
        %v2336 = vpop.permute.xlu0 %2335
        %2337 = vrot.lane.b32.xlu0 %v2182, 120
        %v2338 = vpop.permute.xlu0 %2337
        %2339 = vrot.lane.b32.xlu0 %v2183, 120
        %v2340 = vpop.permute.xlu0 %2339
        %2341 = vrot.lane.b32.xlu0 %v2184, 120
        %v2342 = vpop.permute.xlu0 %2341
        %2343 = vrot.lane.b32.xlu0 %v2185, 120
        %v2344 = vpop.permute.xlu0 %2343
        %v2346 = vsel %vm1390, %v2336, 0
        %v2349 = vsel %vm1390, %v2338, 0
        %v2352 = vsel %vm1390, %v2340, 0
        %v2355 = vsel %vm1390, %v2342, 0
        %v2358 = vsel %vm1390, %v2344, 0
        %2360 = vmatprep.subr.bf16.mxu0 0
        %2361 = vmatpush1.bf16.xpose.msra.mxu0 %v2349
        %2362 = vmatprep.subr.bf16.mxu0 0
        %2363 = vmatpush1.bf16.xpose.msra.mxu0 %v2352
        %2364 = vmatprep.subr.bf16.mxu0 0
        %2365 = vmatpush1.bf16.xpose.msra.mxu0 %v2355
        %2366 = vmatprep.subr.bf16.mxu0 0
        %2367 = vmatpush1.bf16.xpose.msra.mxu0 %v2358
        %2368 = vmatprep.subr.bf16.mxu0 0
        %2369 = vmatpush1.bf16.xpose.msra.mxu0 0
        %2370 = vmatprep.subr.bf16.mxu0 0
        %2371 = vmatpush1.bf16.xpose.msra.mxu0 0
        %2372 = vmatprep.subr.bf16.mxu0 0
        %2373 = vmatpush1.bf16.xpose.msra.mxu0 0
        %2374 = vmatprep.subr.bf16.mxu0 0
        %2375 = vmatpush1.bf16.xpose.msra.mxu0 0
        %2376 = vmatprep.subr.bf16.mxu0 0
        %2377 = vmatpush1.bf16.xpose.msra.mxu0 0
        %2378 = vmatprep.subr.bf16.mxu0 0
        %2379 = vmatpush1.bf16.xpose.msra.mxu0 0
        %2380 = vmatprep.subr.bf16.mxu0 0
        %2381 = vmatpush1.bf16.xpose.msra.mxu0 0
        %2382 = vmatprep.subr.bf16.mxu0 0
        %2383 = vmatpush1.bf16.xpose.msra.mxu0 0
        %2384 = vmatprep.subr.bf16.mxu0 0
        %2385 = vmatpush1.bf16.xpose.msra.mxu0 0
        %2386 = vmatprep.subr.bf16.mxu0 0
        %2387 = vmatpush1.bf16.xpose.msra.mxu0 0
        %2388 = vmatprep.subr.bf16.mxu0 0
        %2389 = vmatpush1.bf16.xpose.msra.mxu0 0
        %2390 = vmatprep.subr.bf16.mxu0 0
        %2391 = vmatpush1.bf16.xpose.msra.mxu0 0
        %2392 = vmatprep.mubr.bf16.mxu0 0
        %2393 = vmatmul.mubr.bf16.gmra.mrb[0].mxu0 %v2346
        %v2394 = vpop.f32.mrb[0].mxu0
        %v2395 = vadd.f32 0.0, %v2394
        %v2396 = vpop.f32.mrb[0].mxu0
        %v2397 = vpop.f32.mrb[0].mxu0
        %v2398 = vadd.f32 0.0, %v2397
        %v2399 = vpop.f32.mrb[0].mxu0
        %2400 = vdwg.mxu0
        %v2401 = vsel %vm2250, %v2395, -inf
        %2402 = vmax.xlane.f32.xlu0 %v2401
        %v2403 = vpop.xlane.xlu0 %2402
        %v2404 = vsel %vm2250, %v2398, -inf
        %2405 = vmax.xlane.f32.xlu0 %v2404
        %v2406 = vpop.xlane.xlu0 %2405
        %v2407 = vsub.f32 %v2395, %v2403
        %v2408 = vsub.f32 %v2398, %v2406
        %v2409 = vmul.f32 %v2407, 1.442695
        %v2410 = vpow.pop %v2409
        %v2411 = vmul.f32 %v2408, 1.442695
        %v2412 = vpow.pop %v2411
        %v2413 = vsel %vm2250, %v2410, 0.0
        %2414 = vadd.xlane.f32.xlu0 %v2413
        %v2415 = vpop.xlane.xlu0 %2414
        %v2416 = vsel %vm2250, %v2412, 0.0
        %2417 = vadd.xlane.f32.xlu0 %v2416
        %v2418 = vpop.xlane.xlu0 %2417
        %v2419 = vrcp.pop %v2415
        %v2420 = vrcp.pop %v2418
        %v2421 = vmul.f32 %v2410, %v2419
        %v2422 = vmul.f32 %v2412, %v2420
        %v2423 = vpack.c.bf16 %v2422, %v2421
        %2424 = vrot.lane.b32.xlu0 %v2182, 88
        %v2425 = vpop.permute.xlu0 %2424
        %2426 = vrot.lane.b32.xlu0 %v2183, 88
        %v2427 = vpop.permute.xlu0 %2426
        %2428 = vrot.lane.b32.xlu0 %v2184, 88
        %v2429 = vpop.permute.xlu0 %2428
        %2430 = vrot.lane.b32.xlu0 %v2185, 88
        %v2431 = vpop.permute.xlu0 %2430
        %v2437 = vsel %vm2250, %v2423, 0
        %2439 = vmatprep.subr.bf16.mxu0 0
        %2440 = vmatpush1.bf16.msra.mxu0 %v2425
        %2441 = vmatprep.subr.bf16.mxu0 0
        %2442 = vmatpush1.bf16.msra.mxu0 %v2427
        %2443 = vmatprep.subr.bf16.mxu0 0
        %2444 = vmatpush1.bf16.msra.mxu0 %v2429
        %2445 = vmatprep.subr.bf16.mxu0 0
        %2446 = vmatpush1.bf16.msra.mxu0 %v2431
        %2447 = vmatprep.subr.bf16.mxu0 0
        %2448 = vmatpush1.bf16.msra.mxu0 0
        %2449 = vmatprep.subr.bf16.mxu0 0
        %2450 = vmatpush1.bf16.msra.mxu0 0
        %2451 = vmatprep.subr.bf16.mxu0 0
        %2452 = vmatpush1.bf16.msra.mxu0 0
        %2453 = vmatprep.subr.bf16.mxu0 0
        %2454 = vmatpush1.bf16.msra.mxu0 0
        %2455 = vmatprep.subr.bf16.mxu0 0
        %2456 = vmatpush1.bf16.msra.mxu0 0
        %2457 = vmatprep.subr.bf16.mxu0 0
        %2458 = vmatpush1.bf16.msra.mxu0 0
        %2459 = vmatprep.subr.bf16.mxu0 0
        %2460 = vmatpush1.bf16.msra.mxu0 0
        %2461 = vmatprep.subr.bf16.mxu0 0
        %2462 = vmatpush1.bf16.msra.mxu0 0
        %2463 = vmatprep.subr.bf16.mxu0 0
        %2464 = vmatpush1.bf16.msra.mxu0 0
        %2465 = vmatprep.subr.bf16.mxu0 0
        %2466 = vmatpush1.bf16.msra.mxu0 0
        %2467 = vmatprep.subr.bf16.mxu0 0
        %2468 = vmatpush1.bf16.msra.mxu0 0
        %2469 = vmatprep.subr.bf16.mxu0 0
        %2470 = vmatpush1.bf16.msra.mxu0 0
        %2471 = vmatprep.mubr.bf16.mxu0 0
        %2472 = vmatmul.mubr.bf16.gmra.mrb[0].mxu0 %v2437
        %v2473 = vpop.f32.mrb[0].mxu0
        %v2474 = vadd.f32 0.0, %v2473
        %v2475 = vpop.f32.mrb[0].mxu0
        %v2476 = vpop.f32.mrb[0].mxu0
        %v2477 = vadd.f32 0.0, %v2476
        %v2478 = vpop.f32.mrb[0].mxu0
        %2479 = vdwg.mxu0
        %2480 = vrot.lane.b32.xlu0 %v2193, 112
        %v2481 = vpop.permute.xlu0 %2480
        %2482 = vrot.lane.b32.xlu0 %v2182, 112
        %v2483 = vpop.permute.xlu0 %2482
        %2484 = vrot.lane.b32.xlu0 %v2183, 112
        %v2485 = vpop.permute.xlu0 %2484
        %2486 = vrot.lane.b32.xlu0 %v2184, 112
        %v2487 = vpop.permute.xlu0 %2486
        %2488 = vrot.lane.b32.xlu0 %v2185, 112
        %v2489 = vpop.permute.xlu0 %2488
        %v2491 = vsel %vm1390, %v2481, 0
        %v2494 = vsel %vm1390, %v2483, 0
        %v2497 = vsel %vm1390, %v2485, 0
        %v2500 = vsel %vm1390, %v2487, 0
        %v2503 = vsel %vm1390, %v2489, 0
        %2505 = vmatprep.subr.bf16.mxu0 0
        %2506 = vmatpush1.bf16.xpose.msra.mxu0 %v2494
        %2507 = vmatprep.subr.bf16.mxu0 0
        %2508 = vmatpush1.bf16.xpose.msra.mxu0 %v2497
        %2509 = vmatprep.subr.bf16.mxu0 0
        %2510 = vmatpush1.bf16.xpose.msra.mxu0 %v2500
        %2511 = vmatprep.subr.bf16.mxu0 0
        %2512 = vmatpush1.bf16.xpose.msra.mxu0 %v2503
        %2513 = vmatprep.subr.bf16.mxu0 0
        %2514 = vmatpush1.bf16.xpose.msra.mxu0 0
        %2515 = vmatprep.subr.bf16.mxu0 0
        %2516 = vmatpush1.bf16.xpose.msra.mxu0 0
        %2517 = vmatprep.subr.bf16.mxu0 0
        %2518 = vmatpush1.bf16.xpose.msra.mxu0 0
        %2519 = vmatprep.subr.bf16.mxu0 0
        %2520 = vmatpush1.bf16.xpose.msra.mxu0 0
        %2521 = vmatprep.subr.bf16.mxu0 0
        %2522 = vmatpush1.bf16.xpose.msra.mxu0 0
        %2523 = vmatprep.subr.bf16.mxu0 0
        %2524 = vmatpush1.bf16.xpose.msra.mxu0 0
        %2525 = vmatprep.subr.bf16.mxu0 0
        %2526 = vmatpush1.bf16.xpose.msra.mxu0 0
        %2527 = vmatprep.subr.bf16.mxu0 0
        %2528 = vmatpush1.bf16.xpose.msra.mxu0 0
        %2529 = vmatprep.subr.bf16.mxu0 0
        %2530 = vmatpush1.bf16.xpose.msra.mxu0 0
        %2531 = vmatprep.subr.bf16.mxu0 0
        %2532 = vmatpush1.bf16.xpose.msra.mxu0 0
        %2533 = vmatprep.subr.bf16.mxu0 0
        %2534 = vmatpush1.bf16.xpose.msra.mxu0 0
        %2535 = vmatprep.subr.bf16.mxu0 0
        %2536 = vmatpush1.bf16.xpose.msra.mxu0 0
        %2537 = vmatprep.mubr.bf16.mxu0 0
        %2538 = vmatmul.mubr.bf16.gmra.mrb[0].mxu0 %v2491
        %v2539 = vpop.f32.mrb[0].mxu0
        %v2540 = vadd.f32 0.0, %v2539
        %v2541 = vpop.f32.mrb[0].mxu0
        %v2542 = vpop.f32.mrb[0].mxu0
        %v2543 = vadd.f32 0.0, %v2542
        %v2544 = vpop.f32.mrb[0].mxu0
        %2545 = vdwg.mxu0
        %v2546 = vsel %vm2250, %v2540, -inf
        %2547 = vmax.xlane.f32.xlu0 %v2546
        %v2548 = vpop.xlane.xlu0 %2547
        %v2549 = vsel %vm2250, %v2543, -inf
        %2550 = vmax.xlane.f32.xlu0 %v2549
        %v2551 = vpop.xlane.xlu0 %2550
        %v2552 = vsub.f32 %v2540, %v2548
        %v2553 = vsub.f32 %v2543, %v2551
        %v2554 = vmul.f32 %v2552, 1.442695
        %v2555 = vpow.pop %v2554
        %v2556 = vmul.f32 %v2553, 1.442695
        %v2557 = vpow.pop %v2556
        %v2558 = vsel %vm2250, %v2555, 0.0
        %2559 = vadd.xlane.f32.xlu0 %v2558
        %v2560 = vpop.xlane.xlu0 %2559
        %v2561 = vsel %vm2250, %v2557, 0.0
        %2562 = vadd.xlane.f32.xlu0 %v2561
        %v2563 = vpop.xlane.xlu0 %2562
        %v2564 = vrcp.pop %v2560
        %v2565 = vrcp.pop %v2563
        %v2566 = vmul.f32 %v2555, %v2564
        %v2567 = vmul.f32 %v2557, %v2565
        %v2568 = vpack.c.bf16 %v2567, %v2566
        %2569 = vrot.lane.b32.xlu0 %v2182, 80
        %v2570 = vpop.permute.xlu0 %2569
        %2571 = vrot.lane.b32.xlu0 %v2183, 80
        %v2572 = vpop.permute.xlu0 %2571
        %2573 = vrot.lane.b32.xlu0 %v2184, 80
        %v2574 = vpop.permute.xlu0 %2573
        %2575 = vrot.lane.b32.xlu0 %v2185, 80
        %v2576 = vpop.permute.xlu0 %2575
        %v2582 = vsel %vm2250, %v2568, 0
        %2584 = vmatprep.subr.bf16.mxu0 0
        %2585 = vmatpush1.bf16.msra.mxu0 %v2570
        %2586 = vmatprep.subr.bf16.mxu0 0
        %2587 = vmatpush1.bf16.msra.mxu0 %v2572
        %2588 = vmatprep.subr.bf16.mxu0 0
        %2589 = vmatpush1.bf16.msra.mxu0 %v2574
        %2590 = vmatprep.subr.bf16.mxu0 0
        %2591 = vmatpush1.bf16.msra.mxu0 %v2576
        %2592 = vmatprep.subr.bf16.mxu0 0
        %2593 = vmatpush1.bf16.msra.mxu0 0
        %2594 = vmatprep.subr.bf16.mxu0 0
        %2595 = vmatpush1.bf16.msra.mxu0 0
        %2596 = vmatprep.subr.bf16.mxu0 0
        %2597 = vmatpush1.bf16.msra.mxu0 0
        %2598 = vmatprep.subr.bf16.mxu0 0
        %2599 = vmatpush1.bf16.msra.mxu0 0
        %2600 = vmatprep.subr.bf16.mxu0 0
        %2601 = vmatpush1.bf16.msra.mxu0 0
        %2602 = vmatprep.subr.bf16.mxu0 0
        %2603 = vmatpush1.bf16.msra.mxu0 0
        %2604 = vmatprep.subr.bf16.mxu0 0
        %2605 = vmatpush1.bf16.msra.mxu0 0
        %2606 = vmatprep.subr.bf16.mxu0 0
        %2607 = vmatpush1.bf16.msra.mxu0 0
        %2608 = vmatprep.subr.bf16.mxu0 0
        %2609 = vmatpush1.bf16.msra.mxu0 0
        %2610 = vmatprep.subr.bf16.mxu0 0
        %2611 = vmatpush1.bf16.msra.mxu0 0
        %2612 = vmatprep.subr.bf16.mxu0 0
        %2613 = vmatpush1.bf16.msra.mxu0 0
        %2614 = vmatprep.subr.bf16.mxu0 0
        %2615 = vmatpush1.bf16.msra.mxu0 0
        %2616 = vmatprep.mubr.bf16.mxu0 0
        %2617 = vmatmul.mubr.bf16.gmra.mrb[0].mxu0 %v2582
        %v2618 = vpop.f32.mrb[0].mxu0
        %v2619 = vadd.f32 0.0, %v2618
        %v2620 = vpop.f32.mrb[0].mxu0
        %v2621 = vpop.f32.mrb[0].mxu0
        %v2622 = vadd.f32 0.0, %v2621
        %v2623 = vpop.f32.mrb[0].mxu0
        %2624 = vdwg.mxu0
        %2625 = vrot.lane.b32.xlu0 %v2193, 104
        %v2626 = vpop.permute.xlu0 %2625
        %2627 = vrot.lane.b32.xlu0 %v2182, 104
        %v2628 = vpop.permute.xlu0 %2627
        %2629 = vrot.lane.b32.xlu0 %v2183, 104
        %v2630 = vpop.permute.xlu0 %2629
        %2631 = vrot.lane.b32.xlu0 %v2184, 104
        %v2632 = vpop.permute.xlu0 %2631
        %2633 = vrot.lane.b32.xlu0 %v2185, 104
        %v2634 = vpop.permute.xlu0 %2633
        %v2636 = vsel %vm1390, %v2626, 0
        %v2639 = vsel %vm1390, %v2628, 0
        %v2642 = vsel %vm1390, %v2630, 0
        %v2645 = vsel %vm1390, %v2632, 0
        %v2648 = vsel %vm1390, %v2634, 0
        %2650 = vmatprep.subr.bf16.mxu0 0
        %2651 = vmatpush1.bf16.xpose.msra.mxu0 %v2639
        %2652 = vmatprep.subr.bf16.mxu0 0
        %2653 = vmatpush1.bf16.xpose.msra.mxu0 %v2642
        %2654 = vmatprep.subr.bf16.mxu0 0
        %2655 = vmatpush1.bf16.xpose.msra.mxu0 %v2645
        %2656 = vmatprep.subr.bf16.mxu0 0
        %2657 = vmatpush1.bf16.xpose.msra.mxu0 %v2648
        %2658 = vmatprep.subr.bf16.mxu0 0
        %2659 = vmatpush1.bf16.xpose.msra.mxu0 0
        %2660 = vmatprep.subr.bf16.mxu0 0
        %2661 = vmatpush1.bf16.xpose.msra.mxu0 0
        %2662 = vmatprep.subr.bf16.mxu0 0
        %2663 = vmatpush1.bf16.xpose.msra.mxu0 0
        %2664 = vmatprep.subr.bf16.mxu0 0
        %2665 = vmatpush1.bf16.xpose.msra.mxu0 0
        %2666 = vmatprep.subr.bf16.mxu0 0
        %2667 = vmatpush1.bf16.xpose.msra.mxu0 0
        %2668 = vmatprep.subr.bf16.mxu0 0
        %2669 = vmatpush1.bf16.xpose.msra.mxu0 0
        %2670 = vmatprep.subr.bf16.mxu0 0
        %2671 = vmatpush1.bf16.xpose.msra.mxu0 0
        %2672 = vmatprep.subr.bf16.mxu0 0
        %2673 = vmatpush1.bf16.xpose.msra.mxu0 0
        %2674 = vmatprep.subr.bf16.mxu0 0
        %2675 = vmatpush1.bf16.xpose.msra.mxu0 0
        %2676 = vmatprep.subr.bf16.mxu0 0
        %2677 = vmatpush1.bf16.xpose.msra.mxu0 0
        %2678 = vmatprep.subr.bf16.mxu0 0
        %2679 = vmatpush1.bf16.xpose.msra.mxu0 0
        %2680 = vmatprep.subr.bf16.mxu0 0
        %2681 = vmatpush1.bf16.xpose.msra.mxu0 0
        %2682 = vmatprep.mubr.bf16.mxu0 0
        %2683 = vmatmul.mubr.bf16.gmra.mrb[0].mxu0 %v2636
        %v2684 = vpop.f32.mrb[0].mxu0
        %v2685 = vadd.f32 0.0, %v2684
        %v2686 = vpop.f32.mrb[0].mxu0
        %v2687 = vpop.f32.mrb[0].mxu0
        %v2688 = vadd.f32 0.0, %v2687
        %v2689 = vpop.f32.mrb[0].mxu0
        %2690 = vdwg.mxu0
        %v2691 = vsel %vm2250, %v2685, -inf
        %2692 = vmax.xlane.f32.xlu0 %v2691
        %v2693 = vpop.xlane.xlu0 %2692
        %v2694 = vsel %vm2250, %v2688, -inf
        %2695 = vmax.xlane.f32.xlu0 %v2694
        %v2696 = vpop.xlane.xlu0 %2695
        %v2697 = vsub.f32 %v2685, %v2693
        %v2698 = vsub.f32 %v2688, %v2696
        %v2699 = vmul.f32 %v2697, 1.442695
        %v2700 = vpow.pop %v2699
        %v2701 = vmul.f32 %v2698, 1.442695
        %v2702 = vpow.pop %v2701
        %v2703 = vsel %vm2250, %v2700, 0.0
        %2704 = vadd.xlane.f32.xlu0 %v2703
        %v2705 = vpop.xlane.xlu0 %2704
        %v2706 = vsel %vm2250, %v2702, 0.0
        %2707 = vadd.xlane.f32.xlu0 %v2706
        %v2708 = vpop.xlane.xlu0 %2707
        %v2709 = vrcp.pop %v2705
        %v2710 = vrcp.pop %v2708
        %v2711 = vmul.f32 %v2700, %v2709
        %v2712 = vmul.f32 %v2702, %v2710
        %v2713 = vpack.c.bf16 %v2712, %v2711
        %2714 = vrot.lane.b32.xlu0 %v2182, 72
        %v2715 = vpop.permute.xlu0 %2714
        %2716 = vrot.lane.b32.xlu0 %v2183, 72
        %v2717 = vpop.permute.xlu0 %2716
        %2718 = vrot.lane.b32.xlu0 %v2184, 72
        %v2719 = vpop.permute.xlu0 %2718
        %2720 = vrot.lane.b32.xlu0 %v2185, 72
        %v2721 = vpop.permute.xlu0 %2720
        %v2727 = vsel %vm2250, %v2713, 0
        %2729 = vmatprep.subr.bf16.mxu0 0
        %2730 = vmatpush1.bf16.msra.mxu0 %v2715
        %2731 = vmatprep.subr.bf16.mxu0 0
        %2732 = vmatpush1.bf16.msra.mxu0 %v2717
        %2733 = vmatprep.subr.bf16.mxu0 0
        %2734 = vmatpush1.bf16.msra.mxu0 %v2719
        %2735 = vmatprep.subr.bf16.mxu0 0
        %2736 = vmatpush1.bf16.msra.mxu0 %v2721
        %2737 = vmatprep.subr.bf16.mxu0 0
        %2738 = vmatpush1.bf16.msra.mxu0 0
        %2739 = vmatprep.subr.bf16.mxu0 0
        %2740 = vmatpush1.bf16.msra.mxu0 0
        %2741 = vmatprep.subr.bf16.mxu0 0
        %2742 = vmatpush1.bf16.msra.mxu0 0
        %2743 = vmatprep.subr.bf16.mxu0 0
        %2744 = vmatpush1.bf16.msra.mxu0 0
        %2745 = vmatprep.subr.bf16.mxu0 0
        %2746 = vmatpush1.bf16.msra.mxu0 0
        %2747 = vmatprep.subr.bf16.mxu0 0
        %2748 = vmatpush1.bf16.msra.mxu0 0
        %2749 = vmatprep.subr.bf16.mxu0 0
        %2750 = vmatpush1.bf16.msra.mxu0 0
        %2751 = vmatprep.subr.bf16.mxu0 0
        %2752 = vmatpush1.bf16.msra.mxu0 0
        %2753 = vmatprep.subr.bf16.mxu0 0
        %2754 = vmatpush1.bf16.msra.mxu0 0
        %2755 = vmatprep.subr.bf16.mxu0 0
        %2756 = vmatpush1.bf16.msra.mxu0 0
        %2757 = vmatprep.subr.bf16.mxu0 0
        %2758 = vmatpush1.bf16.msra.mxu0 0
        %2759 = vmatprep.subr.bf16.mxu0 0
        %2760 = vmatpush1.bf16.msra.mxu0 0
        %2761 = vmatprep.mubr.bf16.mxu0 0
        %2762 = vmatmul.mubr.bf16.gmra.mrb[0].mxu0 %v2727
        %v2763 = vpop.f32.mrb[0].mxu0
        %v2764 = vadd.f32 0.0, %v2763
        %v2765 = vpop.f32.mrb[0].mxu0
        %v2766 = vpop.f32.mrb[0].mxu0
        %v2767 = vadd.f32 0.0, %v2766
        %v2768 = vpop.f32.mrb[0].mxu0
        %2769 = vdwg.mxu0
        %2772 = vrot.lane.b32.xlu0 %v2474, 8
        %v2773 = vpop.permute.xlu0 %2772
        %2774 = vrot.lane.b32.xlu0 %v2477, 8
        %v2775 = vpop.permute.xlu0 %2774
        %2780 = vrot.lane.b32.xlu0 %v2619, 16
        %v2781 = vpop.permute.xlu0 %2780
        %2782 = vrot.lane.b32.xlu0 %v2622, 16
        %v2783 = vpop.permute.xlu0 %2782
        %2788 = vrot.lane.b32.xlu0 %v2764, 24
        %v2789 = vpop.permute.xlu0 %2788
        %2790 = vrot.lane.b32.xlu0 %v2767, 24
        %v2791 = vpop.permute.xlu0 %2790
        %v2794 = vsel %vm1390, %v2328, %v2773
        %v2795 = vsel %vm1390, %v2331, %v2775
        %v2796 = vsel %vm1438, %v2794, %v2781
        %v2797 = vsel %vm1438, %v2795, %v2783
        %v2798 = vsel %vm1899, %v2796, %v2789
        %v2799 = vsel %vm1899, %v2797, %v2791
        %v2800 = vpack.c.bf16 %v2799, %v2798
        %v2802 = vlaneseq
        %v2803 = vshrl.u32 %v2802, 7
        %v2804 = vsub.s32 0, %v2803
        %v2805 = vrot.slane %v2190, %v2804
        %v2811 = vunpack.c.l.b16 %v2186
        %v2812 = vunpack.c.l.b16 %v2187
        %v2813 = vunpack.c.l.b16 %v2188
        %v2814 = vunpack.c.l.b16 %v2189
        %v2815 = vpack.c.b16 %v2812, %v2811
        %v2816 = vpack.c.b16 %v2814, %v2813
        %v2820 = vsel %vm1264, %v2800, 0
        %2822 = vmatprep.subr.bf16.mxu0 0
        %2823 = vmatpush1.bf16.msra.mxu0 %v2815
        %2824 = vmatprep.subr.bf16.mxu0 0
        %2825 = vmatpush1.bf16.msra.mxu0 %v2816
        %2826 = vmatprep.subr.bf16.mxu0 0
        %2827 = vmatpush1.bf16.msra.mxu0 0
        %2828 = vmatprep.subr.bf16.mxu0 0
        %2829 = vmatpush1.bf16.msra.mxu0 0
        %2830 = vmatprep.subr.bf16.mxu0 0
        %2831 = vmatpush1.bf16.msra.mxu0 0
        %2832 = vmatprep.subr.bf16.mxu0 0
        %2833 = vmatpush1.bf16.msra.mxu0 0
        %2834 = vmatprep.subr.bf16.mxu0 0
        %2835 = vmatpush1.bf16.msra.mxu0 0
        %2836 = vmatprep.subr.bf16.mxu0 0
        %2837 = vmatpush1.bf16.msra.mxu0 0
        %2838 = vmatprep.subr.bf16.mxu0 0
        %2839 = vmatpush1.bf16.msra.mxu0 0
        %2840 = vmatprep.subr.bf16.mxu0 0
        %2841 = vmatpush1.bf16.msra.mxu0 0
        %2842 = vmatprep.subr.bf16.mxu0 0
        %2843 = vmatpush1.bf16.msra.mxu0 0
        %2844 = vmatprep.subr.bf16.mxu0 0
        %2845 = vmatpush1.bf16.msra.mxu0 0
        %2846 = vmatprep.subr.bf16.mxu0 0
        %2847 = vmatpush1.bf16.msra.mxu0 0
        %2848 = vmatprep.subr.bf16.mxu0 0
        %2849 = vmatpush1.bf16.msra.mxu0 0
        %2850 = vmatprep.subr.bf16.mxu0 0
        %2851 = vmatpush1.bf16.msra.mxu0 0
        %2852 = vmatprep.subr.bf16.mxu0 0
        %2853 = vmatpush1.bf16.msra.mxu0 0
        %2854 = vmatprep.mubr.bf16.mxu0 0
        %2855 = vmatmul.mubr.bf16.gmra.mrb[0].mxu0 %v2820
        %v2856 = vpop.f32.mrb[0].mxu0
        %v2857 = vadd.f32 %v2805, %v2856
        %v2858 = vpop.f32.mrb[0].mxu0
        %v2859 = vpop.f32.mrb[0].mxu0
        %v2860 = vadd.f32 %v2805, %v2859
        %v2861 = vpop.f32.mrb[0].mxu0
        %2862 = vdwg.mxu0
        %v2863 = vadd.f32 %v2857, %v2010
        %v2864 = vadd.f32 %v2860, %v2011
        %v2865 = vld [vmem:[#allocation10] sm:$0x1]
        %v2866 = vld [vmem:[#allocation12] sm:$0x1]
        %v2867 = vsel %vm1264, %v2863, 0.0
        %2868 = vadd.xlane.f32.xlu0 %v2867
        %v2869 = vpop.xlane.xlu0 %2868
        %v2870 = vsel %vm1264, %v2864, 0.0
        %2871 = vadd.xlane.f32.xlu0 %v2870
        %v2872 = vpop.xlane.xlu0 %2871
        %v2873 = vmul.f32 %v2869, %v1975
        %v2874 = vmul.f32 %v2872, %v1975
        %v2875 = vsub.f32 %v2863, %v2873
        %v2876 = vsub.f32 %v2864, %v2874
        %v2877 = vmul.f32 %v2875, %v2875
        %v2878 = vmul.f32 %v2876, %v2876
        %v2879 = vsel %vm1264, %v2877, 0.0
        %2880 = vadd.xlane.f32.xlu0 %v2879
        %v2881 = vpop.xlane.xlu0 %2880
        %v2882 = vsel %vm1264, %v2878, 0.0
        %2883 = vadd.xlane.f32.xlu0 %v2882
        %v2884 = vpop.xlane.xlu0 %2883
        %v2885 = vmul.f32 %v2881, %v1975
        %v2886 = vmul.f32 %v2884, %v1975
        %v2887 = vadd.f32 %v2885, 1e-05
        %v2888 = vadd.f32 %v2886, 1e-05
        %v2889 = vrsqrt.pop %v2887
        %v2890 = vrsqrt.pop %v2888
        %v2891 = vmul.f32 %v2875, %v2889
        %v2892 = vmul.f32 %v2876, %v2890
        %v2894 = vlaneseq
        %v2895 = vshrl.u32 %v2894, 7
        %v2896 = vsub.s32 0, %v2895
        %v2897 = vrot.slane %v2865, %v2896
        %v2899 = vmul.f32 %v2891, %v2897
        %v2900 = vmul.f32 %v2892, %v2897
        %v2902 = vlaneseq
        %v2903 = vshrl.u32 %v2902, 7
        %v2904 = vsub.s32 0, %v2903
        %v2905 = vrot.slane %v2866, %v2904
        %v2907 = vadd.f32 %v2899, %v2905
        %v2908 = vadd.f32 %v2900, %v2905
        %v2909 = vld [vmem:[%s41] sm:$0xf]
        %v2910 = vld [vmem:[%s41 + $0x4] sm:$0xf]
        %v2911 = vld [vmem:[%s41 + $0x8] sm:$0xf]
        %v2912 = vld [vmem:[%s41 + $0xc] sm:$0xf]
        %v2913 = vld [vmem:[#allocation13] sm:$0x1]
        %v2914 = vpack.c.bf16 %v2908, %v2907
        %v2916 = vlaneseq
        %v2917 = vshrl.u32 %v2916, 7
        %v2918 = vsub.s32 0, %v2917
        %v2919 = vrot.slane %v2913, %v2918
        %v2925 = vunpack.c.l.b16 %v2909
        %v2926 = vunpack.c.l.b16 %v2910
        %v2927 = vunpack.c.l.b16 %v2911
        %v2928 = vunpack.c.l.b16 %v2912
        %v2929 = vpack.c.b16 %v2926, %v2925
        %v2930 = vpack.c.b16 %v2928, %v2927
        %v2934 = vsel %vm1264, %v2914, 0
        %2936 = vmatprep.subr.bf16.mxu0 0
        %2937 = vmatpush1.bf16.msra.mxu0 %v2929
        %2938 = vmatprep.subr.bf16.mxu0 0
        %2939 = vmatpush1.bf16.msra.mxu0 %v2930
        %2940 = vmatprep.subr.bf16.mxu0 0
        %2941 = vmatpush1.bf16.msra.mxu0 0
        %2942 = vmatprep.subr.bf16.mxu0 0
        %2943 = vmatpush1.bf16.msra.mxu0 0
        %2944 = vmatprep.subr.bf16.mxu0 0
        %2945 = vmatpush1.bf16.msra.mxu0 0
        %2946 = vmatprep.subr.bf16.mxu0 0
        %2947 = vmatpush1.bf16.msra.mxu0 0
        %2948 = vmatprep.subr.bf16.mxu0 0
        %2949 = vmatpush1.bf16.msra.mxu0 0
        %2950 = vmatprep.subr.bf16.mxu0 0
        %2951 = vmatpush1.bf16.msra.mxu0 0
        %2952 = vmatprep.subr.bf16.mxu0 0
        %2953 = vmatpush1.bf16.msra.mxu0 0
        %2954 = vmatprep.subr.bf16.mxu0 0
        %2955 = vmatpush1.bf16.msra.mxu0 0
        %2956 = vmatprep.subr.bf16.mxu0 0
        %2957 = vmatpush1.bf16.msra.mxu0 0
        %2958 = vmatprep.subr.bf16.mxu0 0
        %2959 = vmatpush1.bf16.msra.mxu0 0
        %2960 = vmatprep.subr.bf16.mxu0 0
        %2961 = vmatpush1.bf16.msra.mxu0 0
        %2962 = vmatprep.subr.bf16.mxu0 0
        %2963 = vmatpush1.bf16.msra.mxu0 0
        %2964 = vmatprep.subr.bf16.mxu0 0
        %2965 = vmatpush1.bf16.msra.mxu0 0
        %2966 = vmatprep.subr.bf16.mxu0 0
        %2967 = vmatpush1.bf16.msra.mxu0 0
        %2968 = vmatprep.mubr.bf16.mxu0 0
        %2969 = vmatmul.mubr.bf16.gmra.mrb[0].mxu0 %v2934
        %v2970 = vpop.f32.mrb[0].mxu0
        %v2971 = vadd.f32 %v2919, %v2970
        %v2972 = vpop.f32.mrb[0].mxu0
        %v2973 = vpop.f32.mrb[0].mxu0
        %v2974 = vadd.f32 %v2919, %v2973
        %v2975 = vpop.f32.mrb[0].mxu0
        %2976 = vdwg.mxu0
        %v2977 = vmax.f32 %v2971, 0.0
        %v2978 = vmax.f32 %v2974, 0.0
        %v2979 = vld [vmem:[%s45] sm:$0xf]
        %v2980 = vld [vmem:[%s45 + $0x4] sm:$0xf]
        %v2981 = vld [vmem:[%s45 + $0x8] sm:$0xf]
        %v2982 = vld [vmem:[%s45 + $0xc] sm:$0xf]
        %v2983 = vld [vmem:[%s45 + $0x10] sm:$0xf]
        %v2984 = vld [vmem:[%s45 + $0x14] sm:$0xf]
        %v2985 = vld [vmem:[%s45 + $0x18] sm:$0xf]
        %v2986 = vld [vmem:[%s45 + $0x1c] sm:$0xf]
        %v2987 = vld [vmem:[#allocation15] sm:$0x1]
        %v2988 = vpack.c.bf16 %v2978, %v2977
        %v2990 = vlaneseq
        %v2991 = vshrl.u32 %v2990, 7
        %v2992 = vsub.s32 0, %v2991
        %v2993 = vrot.slane %v2987, %v2992
        %v3003 = vunpack.c.l.b16 %v2979
        %v3004 = vunpack.c.l.b16 %v2980
        %v3005 = vunpack.c.l.b16 %v2981
        %v3006 = vunpack.c.l.b16 %v2982
        %v3007 = vunpack.c.l.b16 %v2983
        %v3008 = vunpack.c.l.b16 %v2984
        %v3009 = vunpack.c.l.b16 %v2985
        %v3010 = vunpack.c.l.b16 %v2986
        %v3011 = vpack.c.b16 %v3004, %v3003
        %v3012 = vpack.c.b16 %v3006, %v3005
        %v3013 = vpack.c.b16 %v3008, %v3007
        %v3014 = vpack.c.b16 %v3010, %v3009
        %v3020 = vsel %vm2250, %v2988, 0
        %3022 = vmatprep.subr.bf16.mxu0 0
        %3023 = vmatpush1.bf16.msra.mxu0 %v3011
        %3024 = vmatprep.subr.bf16.mxu0 0
        %3025 = vmatpush1.bf16.msra.mxu0 %v3012
        %3026 = vmatprep.subr.bf16.mxu0 0
        %3027 = vmatpush1.bf16.msra.mxu0 %v3013
        %3028 = vmatprep.subr.bf16.mxu0 0
        %3029 = vmatpush1.bf16.msra.mxu0 %v3014
        %3030 = vmatprep.subr.bf16.mxu0 0
        %3031 = vmatpush1.bf16.msra.mxu0 0
        %3032 = vmatprep.subr.bf16.mxu0 0
        %3033 = vmatpush1.bf16.msra.mxu0 0
        %3034 = vmatprep.subr.bf16.mxu0 0
        %3035 = vmatpush1.bf16.msra.mxu0 0
        %3036 = vmatprep.subr.bf16.mxu0 0
        %3037 = vmatpush1.bf16.msra.mxu0 0
        %3038 = vmatprep.subr.bf16.mxu0 0
        %3039 = vmatpush1.bf16.msra.mxu0 0
        %3040 = vmatprep.subr.bf16.mxu0 0
        %3041 = vmatpush1.bf16.msra.mxu0 0
        %3042 = vmatprep.subr.bf16.mxu0 0
        %3043 = vmatpush1.bf16.msra.mxu0 0
        %3044 = vmatprep.subr.bf16.mxu0 0
        %3045 = vmatpush1.bf16.msra.mxu0 0
        %3046 = vmatprep.subr.bf16.mxu0 0
        %3047 = vmatpush1.bf16.msra.mxu0 0
        %3048 = vmatprep.subr.bf16.mxu0 0
        %3049 = vmatpush1.bf16.msra.mxu0 0
        %3050 = vmatprep.subr.bf16.mxu0 0
        %3051 = vmatpush1.bf16.msra.mxu0 0
        %3052 = vmatprep.subr.bf16.mxu0 0
        %3053 = vmatpush1.bf16.msra.mxu0 0
        %3054 = vmatprep.mubr.bf16.mxu0 0
        %3055 = vmatmul.mubr.bf16.gmra.mrb[0].mxu0 %v3020
        %v3056 = vpop.f32.mrb[0].mxu0
        %v3057 = vadd.f32 %v2993, %v3056
        %v3058 = vpop.f32.mrb[0].mxu0
        %v3059 = vpop.f32.mrb[0].mxu0
        %v3060 = vadd.f32 %v2993, %v3059
        %v3061 = vpop.f32.mrb[0].mxu0
        %3062 = vdwg.mxu0
        %v3063 = vadd.f32 %v3057, %v2907
        %v3064 = vadd.f32 %v3060, %v2908
        %v3065 = vld [vmem:[#allocation16] sm:$0x1]
        %v3066 = vld [vmem:[#allocation18] sm:$0x1]
        %v3067 = vsel %vm1264, %v3063, 0.0
        %3068 = vadd.xlane.f32.xlu0 %v3067
        %v3069 = vpop.xlane.xlu0 %3068
        %v3070 = vsel %vm1264, %v3064, 0.0
        %3071 = vadd.xlane.f32.xlu0 %v3070
        %v3072 = vpop.xlane.xlu0 %3071
        %v3073 = vmul.f32 %v3069, %v1975
        %v3074 = vmul.f32 %v3072, %v1975
        %v3075 = vsub.f32 %v3063, %v3073
        %v3076 = vsub.f32 %v3064, %v3074
        %v3077 = vmul.f32 %v3075, %v3075
        %v3078 = vmul.f32 %v3076, %v3076
        %v3079 = vsel %vm1264, %v3077, 0.0
        %3080 = vadd.xlane.f32.xlu0 %v3079
        %v3081 = vpop.xlane.xlu0 %3080
        %v3082 = vsel %vm1264, %v3078, 0.0
        %3083 = vadd.xlane.f32.xlu0 %v3082
        %v3084 = vpop.xlane.xlu0 %3083
        %v3085 = vmul.f32 %v3081, %v1975
        %v3086 = vmul.f32 %v3084, %v1975
        %v3087 = vadd.f32 %v3085, 1e-05
        %v3088 = vadd.f32 %v3086, 1e-05
        %v3089 = vrsqrt.pop %v3087
        %v3090 = vrsqrt.pop %v3088
        %v3091 = vmul.f32 %v3075, %v3089
        %v3092 = vmul.f32 %v3076, %v3090
        %v3094 = vlaneseq
        %v3095 = vshrl.u32 %v3094, 7
        %v3096 = vsub.s32 0, %v3095
        %v3097 = vrot.slane %v3065, %v3096
        %v3099 = vmul.f32 %v3091, %v3097
        %v3100 = vmul.f32 %v3092, %v3097
        %v3102 = vlaneseq
        %v3103 = vshrl.u32 %v3102, 7
        %v3104 = vsub.s32 0, %v3103
        %v3105 = vrot.slane %v3066, %v3104
        %v3107 = vadd.f32 %v3099, %v3105
        %v3108 = vadd.f32 %v3100, %v3105
        %v3109 = vld [vmem:[%s53] sm:$0xf]
        %v3110 = vld [vmem:[%s53 + $0x4] sm:$0xf]
        %v3111 = vld [vmem:[%s53 + $0x8] sm:$0xf]
        %v3112 = vld [vmem:[%s53 + $0xc] sm:$0xf]
        %v3113 = vld [vmem:[#allocation19] sm:$0x1]
        %v3114 = vpack.c.bf16 %v3108, %v3107
        %v3116 = vlaneseq
        %v3117 = vshrl.u32 %v3116, 7
        %v3118 = vsub.s32 0, %v3117
        %v3119 = vrot.slane %v3113, %v3118
        %v3125 = vunpack.c.l.b16 %v3109
        %v3126 = vunpack.c.l.b16 %v3110
        %v3127 = vunpack.c.l.b16 %v3111
        %v3128 = vunpack.c.l.b16 %v3112
        %v3129 = vpack.c.b16 %v3126, %v3125
        %v3130 = vpack.c.b16 %v3128, %v3127
        %v3134 = vsel %vm1264, %v3114, 0
        %3136 = vmatprep.subr.bf16.mxu0 0
        %3137 = vmatpush1.bf16.msra.mxu0 %v3129
        %3138 = vmatprep.subr.bf16.mxu0 0
        %3139 = vmatpush1.bf16.msra.mxu0 %v3130
        %3140 = vmatprep.subr.bf16.mxu0 0
        %3141 = vmatpush1.bf16.msra.mxu0 0
        %3142 = vmatprep.subr.bf16.mxu0 0
        %3143 = vmatpush1.bf16.msra.mxu0 0
        %3144 = vmatprep.subr.bf16.mxu0 0
        %3145 = vmatpush1.bf16.msra.mxu0 0
        %3146 = vmatprep.subr.bf16.mxu0 0
        %3147 = vmatpush1.bf16.msra.mxu0 0
        %3148 = vmatprep.subr.bf16.mxu0 0
        %3149 = vmatpush1.bf16.msra.mxu0 0
        %3150 = vmatprep.subr.bf16.mxu0 0
        %3151 = vmatpush1.bf16.msra.mxu0 0
        %3152 = vmatprep.subr.bf16.mxu0 0
        %3153 = vmatpush1.bf16.msra.mxu0 0
        %3154 = vmatprep.subr.bf16.mxu0 0
        %3155 = vmatpush1.bf16.msra.mxu0 0
        %3156 = vmatprep.subr.bf16.mxu0 0
        %3157 = vmatpush1.bf16.msra.mxu0 0
        %3158 = vmatprep.subr.bf16.mxu0 0
        %3159 = vmatpush1.bf16.msra.mxu0 0
        %3160 = vmatprep.subr.bf16.mxu0 0
        %3161 = vmatpush1.bf16.msra.mxu0 0
        %3162 = vmatprep.subr.bf16.mxu0 0
        %3163 = vmatpush1.bf16.msra.mxu0 0
        %3164 = vmatprep.subr.bf16.mxu0 0
        %3165 = vmatpush1.bf16.msra.mxu0 0
        %3166 = vmatprep.subr.bf16.mxu0 0
        %3167 = vmatpush1.bf16.msra.mxu0 0
        %3168 = vmatprep.mubr.bf16.mxu0 0
        %3169 = vmatmul.mubr.bf16.gmra.mrb[0].mxu0 %v3134
        %v3170 = vpop.f32.mrb[0].mxu0
        %v3171 = vadd.f32 %v3119, %v3170
        %v3172 = vpop.f32.mrb[0].mxu0
        %v3173 = vpop.f32.mrb[0].mxu0
        %v3174 = vadd.f32 %v3119, %v3173
        %v3175 = vpop.f32.mrb[0].mxu0
        %3176 = vdwg.mxu0
        %v3177 = vmax.f32 %v3171, 0.0
        %v3178 = vmax.f32 %v3174, 0.0
        %v3179 = vld [vmem:[%s57] sm:$0xf]
        %v3180 = vld [vmem:[%s57 + $0x4] sm:$0xf]
        %v3181 = vld [vmem:[%s57 + $0x8] sm:$0xf]
        %v3182 = vld [vmem:[%s57 + $0xc] sm:$0xf]
        %v3183 = vld [vmem:[#allocation21] sm:$0x1]
        %v3184 = vpack.c.bf16 %v3178, %v3177
        %v3186 = vlaneseq
        %v3187 = vshrl.u32 %v3186, 7
        %v3188 = vsub.s32 0, %v3187
        %v3189 = vrot.slane %v3183, %v3188
        %v3195 = vunpack.c.l.b16 %v3179
        %v3196 = vunpack.c.l.b16 %v3180
        %v3197 = vunpack.c.l.b16 %v3181
        %v3198 = vunpack.c.l.b16 %v3182
        %v3199 = vpack.c.b16 %v3196, %v3195
        %v3200 = vpack.c.b16 %v3198, %v3197
        %v3204 = vsel %vm1264, %v3184, 0
        %3206 = vmatprep.subr.bf16.mxu0 0
        %3207 = vmatpush1.bf16.msra.mxu0 %v3199
        %3208 = vmatprep.subr.bf16.mxu0 0
        %3209 = vmatpush1.bf16.msra.mxu0 %v3200
        %3210 = vmatprep.subr.bf16.mxu0 0
        %3211 = vmatpush1.bf16.msra.mxu0 0
        %3212 = vmatprep.subr.bf16.mxu0 0
        %3213 = vmatpush1.bf16.msra.mxu0 0
        %3214 = vmatprep.subr.bf16.mxu0 0
        %3215 = vmatpush1.bf16.msra.mxu0 0
        %3216 = vmatprep.subr.bf16.mxu0 0
        %3217 = vmatpush1.bf16.msra.mxu0 0
        %3218 = vmatprep.subr.bf16.mxu0 0
        %3219 = vmatpush1.bf16.msra.mxu0 0
        %3220 = vmatprep.subr.bf16.mxu0 0
        %3221 = vmatpush1.bf16.msra.mxu0 0
        %3222 = vmatprep.subr.bf16.mxu0 0
        %3223 = vmatpush1.bf16.msra.mxu0 0
        %3224 = vmatprep.subr.bf16.mxu0 0
        %3225 = vmatpush1.bf16.msra.mxu0 0
        %3226 = vmatprep.subr.bf16.mxu0 0
        %3227 = vmatpush1.bf16.msra.mxu0 0
        %3228 = vmatprep.subr.bf16.mxu0 0
        %3229 = vmatpush1.bf16.msra.mxu0 0
        %3230 = vmatprep.subr.bf16.mxu0 0
        %3231 = vmatpush1.bf16.msra.mxu0 0
        %3232 = vmatprep.subr.bf16.mxu0 0
        %3233 = vmatpush1.bf16.msra.mxu0 0
        %3234 = vmatprep.subr.bf16.mxu0 0
        %3235 = vmatpush1.bf16.msra.mxu0 0
        %3236 = vmatprep.subr.bf16.mxu0 0
        %3237 = vmatpush1.bf16.msra.mxu0 0
        %3238 = vmatprep.mubr.bf16.mxu0 0
        %3239 = vmatmul.mubr.bf16.gmra.mrb[0].mxu0 %v3204
        %v3240 = vpop.f32.mrb[0].mxu0
        %v3241 = vadd.f32 %v3189, %v3240
        %v3242 = vpop.f32.mrb[0].mxu0
        %v3243 = vpop.f32.mrb[0].mxu0
        %v3244 = vadd.f32 %v3189, %v3243
        %v3245 = vpop.f32.mrb[0].mxu0
        %3246 = vdwg.mxu0
        %v3247 = vmax.f32 %v1224, 0.0
        %v3248 = vmax.f32 %v1225, 0.0
        %v3249 = vmin.f32 %v3247, 1.0
        %v3250 = vmin.f32 %v3248, 1.0
        %v3251 = vmax.f32 %v3249, 1e-05
        %v3252 = vmax.f32 %v3250, 1e-05
        %v3253 = vlog2.pop %v3251
        %v3254 = vmul.f32 %v3253, 0.6931472
        %v3255 = vlog2.pop %v3252
        %v3256 = vmul.f32 %v3255, 0.6931472
        %v3257 = vsub.f32 1.0, %v3249
        %v3258 = vsub.f32 1.0, %v3250
        %v3259 = vmax.f32 %v3257, 1e-05
        %v3260 = vmax.f32 %v3258, 1e-05
        %v3261 = vlog2.pop %v3259
        %v3262 = vmul.f32 %v3261, 0.6931472
        %v3263 = vlog2.pop %v3260
        %v3264 = vmul.f32 %v3263, 0.6931472
        %v3265 = vsub.f32 %v3254, %v3262
        %v3266 = vsub.f32 %v3256, %v3264
        %v3267 = vadd.f32 %v3241, %v3265
        %v3268 = vadd.f32 %v3244, %v3266
        %v3269 = vsub.f32 0.0, %v3267
        %v3270 = vsub.f32 0.0, %v3268
        %v3271 = vmul.f32 %v3269, 1.442695
        %v3272 = vpow.pop %v3271
        %v3273 = vmul.f32 %v3270, 1.442695
        %v3274 = vpow.pop %v3273
        %v3275 = vadd.f32 %v3272, 1.0
        %v3276 = vadd.f32 %v3274, 1.0
        %v3277 = vrcp.pop %v3275
        %v3278 = vmul.f32 1.0, %v3277
        %v3279 = vrcp.pop %v3276
        %v3280 = vmul.f32 1.0, %v3279
        %v3281 = vadd.f32 %v3107, %v1222
        %v3282 = vadd.f32 %v3108, %v1223
        %s3283 = scalar_lea.vmem %s9, 16
        %v3284 = vld [vmem:[%s3283] sm:$0xf]
        %v3285 = vld [vmem:[%s3283 + $0x4] sm:$0xf]
        %v3286 = vld [vmem:[%s3283 + $0x8] sm:$0xf]
        %v3287 = vld [vmem:[%s3283 + $0xc] sm:$0xf]
        %s3288 = scalar_lea.vmem %s11, 1
        %v3289 = vld [vmem:[%s3288] sm:$0x1]
        %v3290 = vpack.c.bf16 %v3282, %v3281
        %v3292 = vlaneseq
        %v3293 = vshrl.u32 %v3292, 7
        %v3294 = vsub.s32 0, %v3293
        %v3295 = vrot.slane %v3289, %v3294
        %v3301 = vunpack.c.l.b16 %v3284
        %v3302 = vunpack.c.l.b16 %v3285
        %v3303 = vunpack.c.l.b16 %v3286
        %v3304 = vunpack.c.l.b16 %v3287
        %v3305 = vpack.c.b16 %v3302, %v3301
        %v3306 = vpack.c.b16 %v3304, %v3303
        %v3310 = vsel %vm1264, %v3290, 0
        %3312 = vmatprep.subr.bf16.mxu0 0
        %3313 = vmatpush1.bf16.msra.mxu0 %v3305
        %3314 = vmatprep.subr.bf16.mxu0 0
        %3315 = vmatpush1.bf16.msra.mxu0 %v3306
        %3316 = vmatprep.subr.bf16.mxu0 0
        %3317 = vmatpush1.bf16.msra.mxu0 0
        %3318 = vmatprep.subr.bf16.mxu0 0
        %3319 = vmatpush1.bf16.msra.mxu0 0
        %3320 = vmatprep.subr.bf16.mxu0 0
        %3321 = vmatpush1.bf16.msra.mxu0 0
        %3322 = vmatprep.subr.bf16.mxu0 0
        %3323 = vmatpush1.bf16.msra.mxu0 0
        %3324 = vmatprep.subr.bf16.mxu0 0
        %3325 = vmatpush1.bf16.msra.mxu0 0
        %3326 = vmatprep.subr.bf16.mxu0 0
        %3327 = vmatpush1.bf16.msra.mxu0 0
        %3328 = vmatprep.subr.bf16.mxu0 0
        %3329 = vmatpush1.bf16.msra.mxu0 0
        %3330 = vmatprep.subr.bf16.mxu0 0
        %3331 = vmatpush1.bf16.msra.mxu0 0
        %3332 = vmatprep.subr.bf16.mxu0 0
        %3333 = vmatpush1.bf16.msra.mxu0 0
        %3334 = vmatprep.subr.bf16.mxu0 0
        %3335 = vmatpush1.bf16.msra.mxu0 0
        %3336 = vmatprep.subr.bf16.mxu0 0
        %3337 = vmatpush1.bf16.msra.mxu0 0
        %3338 = vmatprep.subr.bf16.mxu0 0
        %3339 = vmatpush1.bf16.msra.mxu0 0
        %3340 = vmatprep.subr.bf16.mxu0 0
        %3341 = vmatpush1.bf16.msra.mxu0 0
        %3342 = vmatprep.subr.bf16.mxu0 0
        %3343 = vmatpush1.bf16.msra.mxu0 0
        %3344 = vmatprep.mubr.bf16.mxu0 0
        %3345 = vmatmul.mubr.bf16.gmra.mrb[0].mxu0 %v3310
        %v3346 = vpop.f32.mrb[0].mxu0
        %v3347 = vadd.f32 %v3295, %v3346
        %v3348 = vpop.f32.mrb[0].mxu0
        %v3349 = vpop.f32.mrb[0].mxu0
        %v3350 = vadd.f32 %v3295, %v3349
        %v3351 = vpop.f32.mrb[0].mxu0
        %3352 = vdwg.mxu0
        %s3353 = scalar_lea.vmem %s13, 16
        %v3354 = vld [vmem:[%s3353] sm:$0xf]
        %v3355 = vld [vmem:[%s3353 + $0x4] sm:$0xf]
        %v3356 = vld [vmem:[%s3353 + $0x8] sm:$0xf]
        %v3357 = vld [vmem:[%s3353 + $0xc] sm:$0xf]
        %s3358 = scalar_lea.vmem %s15, 1
        %v3359 = vld [vmem:[%s3358] sm:$0x1]
        %v3361 = vlaneseq
        %v3362 = vshrl.u32 %v3361, 7
        %v3363 = vsub.s32 0, %v3362
        %v3364 = vrot.slane %v3359, %v3363
        %v3370 = vunpack.c.l.b16 %v3354
        %v3371 = vunpack.c.l.b16 %v3355
        %v3372 = vunpack.c.l.b16 %v3356
        %v3373 = vunpack.c.l.b16 %v3357
        %v3374 = vpack.c.b16 %v3371, %v3370
        %v3375 = vpack.c.b16 %v3373, %v3372
        %3378 = vmatprep.subr.bf16.mxu0 0
        %3379 = vmatpush1.bf16.msra.mxu0 %v3374
        %3380 = vmatprep.subr.bf16.mxu0 0
        %3381 = vmatpush1.bf16.msra.mxu0 %v3375
        %3382 = vmatprep.subr.bf16.mxu0 0
        %3383 = vmatpush1.bf16.msra.mxu0 0
        %3384 = vmatprep.subr.bf16.mxu0 0
        %3385 = vmatpush1.bf16.msra.mxu0 0
        %3386 = vmatprep.subr.bf16.mxu0 0
        %3387 = vmatpush1.bf16.msra.mxu0 0
        %3388 = vmatprep.subr.bf16.mxu0 0
        %3389 = vmatpush1.bf16.msra.mxu0 0
        %3390 = vmatprep.subr.bf16.mxu0 0
        %3391 = vmatpush1.bf16.msra.mxu0 0
        %3392 = vmatprep.subr.bf16.mxu0 0
        %3393 = vmatpush1.bf16.msra.mxu0 0
        %3394 = vmatprep.subr.bf16.mxu0 0
        %3395 = vmatpush1.bf16.msra.mxu0 0
        %3396 = vmatprep.subr.bf16.mxu0 0
        %3397 = vmatpush1.bf16.msra.mxu0 0
        %3398 = vmatprep.subr.bf16.mxu0 0
        %3399 = vmatpush1.bf16.msra.mxu0 0
        %3400 = vmatprep.subr.bf16.mxu0 0
        %3401 = vmatpush1.bf16.msra.mxu0 0
        %3402 = vmatprep.subr.bf16.mxu0 0
        %3403 = vmatpush1.bf16.msra.mxu0 0
        %3404 = vmatprep.subr.bf16.mxu0 0
        %3405 = vmatpush1.bf16.msra.mxu0 0
        %3406 = vmatprep.subr.bf16.mxu0 0
        %3407 = vmatpush1.bf16.msra.mxu0 0
        %3408 = vmatprep.subr.bf16.mxu0 0
        %3409 = vmatpush1.bf16.msra.mxu0 0
        %3410 = vmatprep.mubr.bf16.mxu0 0
        %3411 = vmatmul.mubr.bf16.gmra.mrb[0].mxu0 %v3134
        %v3412 = vpop.f32.mrb[0].mxu0
        %v3413 = vadd.f32 %v3364, %v3412
        %v3414 = vpop.f32.mrb[0].mxu0
        %v3415 = vpop.f32.mrb[0].mxu0
        %v3416 = vadd.f32 %v3364, %v3415
        %v3417 = vpop.f32.mrb[0].mxu0
        %3418 = vdwg.mxu0
        %v3419 = vpack.c.bf16 %v3350, %v3347
        %v3420 = vpack.c.bf16 %v3416, %v3413
        %s3421 = scalar_lea.vmem %s17, 16
        %v3422 = vld [vmem:[%s3421] sm:$0xf]
        %v3423 = vld [vmem:[%s3421 + $0x4] sm:$0xf]
        %v3424 = vld [vmem:[%s3421 + $0x8] sm:$0xf]
        %v3425 = vld [vmem:[%s3421 + $0xc] sm:$0xf]
        %s3426 = scalar_lea.vmem %s19, 1
        %v3427 = vld [vmem:[%s3426] sm:$0x1]
        %v3428 = vmul.f32 %v3347, 0.35355338
        %v3429 = vmul.f32 %v3350, 0.35355338
        %v3430 = vpack.c.bf16 %v3429, %v3428
        %3432 = vrot.lane.b32.xlu0 %v3419, 96
        %v3433 = vpop.permute.xlu0 %3432
        %v3435 = vsel %vm1390, %v3430, 0
        %v3438 = vsel %vm1390, %v3433, 0
        %3440 = vmatprep.subr.bf16.mxu0 0
        %3441 = vmatpush1.bf16.xpose.msra.mxu0 %v3438
        %3442 = vmatprep.subr.bf16.mxu0 0
        %3443 = vmatpush1.bf16.xpose.msra.mxu0 0
        %3444 = vmatprep.subr.bf16.mxu0 0
        %3445 = vmatpush1.bf16.xpose.msra.mxu0 0
        %3446 = vmatprep.subr.bf16.mxu0 0
        %3447 = vmatpush1.bf16.xpose.msra.mxu0 0
        %3448 = vmatprep.subr.bf16.mxu0 0
        %3449 = vmatpush1.bf16.xpose.msra.mxu0 0
        %3450 = vmatprep.subr.bf16.mxu0 0
        %3451 = vmatpush1.bf16.xpose.msra.mxu0 0
        %3452 = vmatprep.subr.bf16.mxu0 0
        %3453 = vmatpush1.bf16.xpose.msra.mxu0 0
        %3454 = vmatprep.subr.bf16.mxu0 0
        %3455 = vmatpush1.bf16.xpose.msra.mxu0 0
        %3456 = vmatprep.subr.bf16.mxu0 0
        %3457 = vmatpush1.bf16.xpose.msra.mxu0 0
        %3458 = vmatprep.subr.bf16.mxu0 0
        %3459 = vmatpush1.bf16.xpose.msra.mxu0 0
        %3460 = vmatprep.subr.bf16.mxu0 0
        %3461 = vmatpush1.bf16.xpose.msra.mxu0 0
        %3462 = vmatprep.subr.bf16.mxu0 0
        %3463 = vmatpush1.bf16.xpose.msra.mxu0 0
        %3464 = vmatprep.subr.bf16.mxu0 0
        %3465 = vmatpush1.bf16.xpose.msra.mxu0 0
        %3466 = vmatprep.subr.bf16.mxu0 0
        %3467 = vmatpush1.bf16.xpose.msra.mxu0 0
        %3468 = vmatprep.subr.bf16.mxu0 0
        %3469 = vmatpush1.bf16.xpose.msra.mxu0 0
        %3470 = vmatprep.subr.bf16.mxu0 0
        %3471 = vmatpush1.bf16.xpose.msra.mxu0 0
        %3472 = vmatprep.mubr.bf16.mxu0 0
        %3473 = vmatmul.mubr.bf16.gmra.mrb[0].mxu0 %v3435
        %v3474 = vpop.f32.mrb[0].mxu0
        %v3475 = vadd.f32 0.0, %v3474
        %v3476 = vpop.f32.mrb[0].mxu0
        %v3477 = vpop.f32.mrb[0].mxu0
        %v3478 = vadd.f32 0.0, %v3477
        %v3479 = vpop.f32.mrb[0].mxu0
        %3480 = vdwg.mxu0
        %v3481 = vsel %vm1438, %v3475, -inf
        %3482 = vmax.xlane.f32.xlu0 %v3481
        %v3483 = vpop.xlane.xlu0 %3482
        %v3484 = vsel %vm1438, %v3478, -inf
        %3485 = vmax.xlane.f32.xlu0 %v3484
        %v3486 = vpop.xlane.xlu0 %3485
        %v3487 = vsub.f32 %v3475, %v3483
        %v3488 = vsub.f32 %v3478, %v3486
        %v3489 = vmul.f32 %v3487, 1.442695
        %v3490 = vpow.pop %v3489
        %v3491 = vmul.f32 %v3488, 1.442695
        %v3492 = vpow.pop %v3491
        %v3493 = vsel %vm1438, %v3490, 0.0
        %3494 = vadd.xlane.f32.xlu0 %v3493
        %v3495 = vpop.xlane.xlu0 %3494
        %v3496 = vsel %vm1438, %v3492, 0.0
        %3497 = vadd.xlane.f32.xlu0 %v3496
        %v3498 = vpop.xlane.xlu0 %3497
        %v3499 = vrcp.pop %v3495
        %v3500 = vrcp.pop %v3498
        %v3501 = vmul.f32 %v3490, %v3499
        %v3502 = vmul.f32 %v3492, %v3500
        %v3503 = vpack.c.bf16 %v3502, %v3501
        %v3505 = vsel %vm1438, %v3503, 0
        %3507 = vmatprep.subr.bf16.mxu0 0
        %3508 = vmatpush1.bf16.msra.mxu0 %v3420
        %3509 = vmatprep.subr.bf16.mxu0 0
        %3510 = vmatpush1.bf16.msra.mxu0 0
        %3511 = vmatprep.subr.bf16.mxu0 0
        %3512 = vmatpush1.bf16.msra.mxu0 0
        %3513 = vmatprep.subr.bf16.mxu0 0
        %3514 = vmatpush1.bf16.msra.mxu0 0
        %3515 = vmatprep.subr.bf16.mxu0 0
        %3516 = vmatpush1.bf16.msra.mxu0 0
        %3517 = vmatprep.subr.bf16.mxu0 0
        %3518 = vmatpush1.bf16.msra.mxu0 0
        %3519 = vmatprep.subr.bf16.mxu0 0
        %3520 = vmatpush1.bf16.msra.mxu0 0
        %3521 = vmatprep.subr.bf16.mxu0 0
        %3522 = vmatpush1.bf16.msra.mxu0 0
        %3523 = vmatprep.subr.bf16.mxu0 0
        %3524 = vmatpush1.bf16.msra.mxu0 0
        %3525 = vmatprep.subr.bf16.mxu0 0
        %3526 = vmatpush1.bf16.msra.mxu0 0
        %3527 = vmatprep.subr.bf16.mxu0 0
        %3528 = vmatpush1.bf16.msra.mxu0 0
        %3529 = vmatprep.subr.bf16.mxu0 0
        %3530 = vmatpush1.bf16.msra.mxu0 0
        %3531 = vmatprep.subr.bf16.mxu0 0
        %3532 = vmatpush1.bf16.msra.mxu0 0
        %3533 = vmatprep.subr.bf16.mxu0 0
        %3534 = vmatpush1.bf16.msra.mxu0 0
        %3535 = vmatprep.subr.bf16.mxu0 0
        %3536 = vmatpush1.bf16.msra.mxu0 0
        %3537 = vmatprep.subr.bf16.mxu0 0
        %3538 = vmatpush1.bf16.msra.mxu0 0
        %3539 = vmatprep.mubr.bf16.mxu0 0
        %3540 = vmatmul.mubr.bf16.gmra.mrb[0].mxu0 %v3505
        %v3541 = vpop.f32.mrb[0].mxu0
        %v3542 = vadd.f32 0.0, %v3541
        %v3543 = vpop.f32.mrb[0].mxu0
        %v3544 = vpop.f32.mrb[0].mxu0
        %v3545 = vadd.f32 0.0, %v3544
        %v3546 = vpop.f32.mrb[0].mxu0
        %3547 = vdwg.mxu0
        %3549 = vrot.lane.b32.xlu0 %v3430, 120
        %v3550 = vpop.permute.xlu0 %3549
        %3551 = vrot.lane.b32.xlu0 %v3419, 88
        %v3552 = vpop.permute.xlu0 %3551
        %v3554 = vsel %vm1390, %v3550, 0
        %v3557 = vsel %vm1390, %v3552, 0
        %3559 = vmatprep.subr.bf16.mxu0 0
        %3560 = vmatpush1.bf16.xpose.msra.mxu0 %v3557
        %3561 = vmatprep.subr.bf16.mxu0 0
        %3562 = vmatpush1.bf16.xpose.msra.mxu0 0
        %3563 = vmatprep.subr.bf16.mxu0 0
        %3564 = vmatpush1.bf16.xpose.msra.mxu0 0
        %3565 = vmatprep.subr.bf16.mxu0 0
        %3566 = vmatpush1.bf16.xpose.msra.mxu0 0
        %3567 = vmatprep.subr.bf16.mxu0 0
        %3568 = vmatpush1.bf16.xpose.msra.mxu0 0
        %3569 = vmatprep.subr.bf16.mxu0 0
        %3570 = vmatpush1.bf16.xpose.msra.mxu0 0
        %3571 = vmatprep.subr.bf16.mxu0 0
        %3572 = vmatpush1.bf16.xpose.msra.mxu0 0
        %3573 = vmatprep.subr.bf16.mxu0 0
        %3574 = vmatpush1.bf16.xpose.msra.mxu0 0
        %3575 = vmatprep.subr.bf16.mxu0 0
        %3576 = vmatpush1.bf16.xpose.msra.mxu0 0
        %3577 = vmatprep.subr.bf16.mxu0 0
        %3578 = vmatpush1.bf16.xpose.msra.mxu0 0
        %3579 = vmatprep.subr.bf16.mxu0 0
        %3580 = vmatpush1.bf16.xpose.msra.mxu0 0
        %3581 = vmatprep.subr.bf16.mxu0 0
        %3582 = vmatpush1.bf16.xpose.msra.mxu0 0
        %3583 = vmatprep.subr.bf16.mxu0 0
        %3584 = vmatpush1.bf16.xpose.msra.mxu0 0
        %3585 = vmatprep.subr.bf16.mxu0 0
        %3586 = vmatpush1.bf16.xpose.msra.mxu0 0
        %3587 = vmatprep.subr.bf16.mxu0 0
        %3588 = vmatpush1.bf16.xpose.msra.mxu0 0
        %3589 = vmatprep.subr.bf16.mxu0 0
        %3590 = vmatpush1.bf16.xpose.msra.mxu0 0
        %3591 = vmatprep.mubr.bf16.mxu0 0
        %3592 = vmatmul.mubr.bf16.gmra.mrb[0].mxu0 %v3554
        %v3593 = vpop.f32.mrb[0].mxu0
        %v3594 = vadd.f32 0.0, %v3593
        %v3595 = vpop.f32.mrb[0].mxu0
        %v3596 = vpop.f32.mrb[0].mxu0
        %v3597 = vadd.f32 0.0, %v3596
        %v3598 = vpop.f32.mrb[0].mxu0
        %3599 = vdwg.mxu0
        %v3600 = vsel %vm1438, %v3594, -inf
        %3601 = vmax.xlane.f32.xlu0 %v3600
        %v3602 = vpop.xlane.xlu0 %3601
        %v3603 = vsel %vm1438, %v3597, -inf
        %3604 = vmax.xlane.f32.xlu0 %v3603
        %v3605 = vpop.xlane.xlu0 %3604
        %v3606 = vsub.f32 %v3594, %v3602
        %v3607 = vsub.f32 %v3597, %v3605
        %v3608 = vmul.f32 %v3606, 1.442695
        %v3609 = vpow.pop %v3608
        %v3610 = vmul.f32 %v3607, 1.442695
        %v3611 = vpow.pop %v3610
        %v3612 = vsel %vm1438, %v3609, 0.0
        %3613 = vadd.xlane.f32.xlu0 %v3612
        %v3614 = vpop.xlane.xlu0 %3613
        %v3615 = vsel %vm1438, %v3611, 0.0
        %3616 = vadd.xlane.f32.xlu0 %v3615
        %v3617 = vpop.xlane.xlu0 %3616
        %v3618 = vrcp.pop %v3614
        %v3619 = vrcp.pop %v3617
        %v3620 = vmul.f32 %v3609, %v3618
        %v3621 = vmul.f32 %v3611, %v3619
        %v3622 = vpack.c.bf16 %v3621, %v3620
        %3624 = vrot.lane.b32.xlu0 %v3420, 120
        %v3625 = vpop.permute.xlu0 %3624
        %v3628 = vsel %vm1438, %v3622, 0
        %3630 = vmatprep.subr.bf16.mxu0 0
        %3631 = vmatpush1.bf16.msra.mxu0 %v3625
        %3632 = vmatprep.subr.bf16.mxu0 0
        %3633 = vmatpush1.bf16.msra.mxu0 0
        %3634 = vmatprep.subr.bf16.mxu0 0
        %3635 = vmatpush1.bf16.msra.mxu0 0
        %3636 = vmatprep.subr.bf16.mxu0 0
        %3637 = vmatpush1.bf16.msra.mxu0 0
        %3638 = vmatprep.subr.bf16.mxu0 0
        %3639 = vmatpush1.bf16.msra.mxu0 0
        %3640 = vmatprep.subr.bf16.mxu0 0
        %3641 = vmatpush1.bf16.msra.mxu0 0
        %3642 = vmatprep.subr.bf16.mxu0 0
        %3643 = vmatpush1.bf16.msra.mxu0 0
        %3644 = vmatprep.subr.bf16.mxu0 0
        %3645 = vmatpush1.bf16.msra.mxu0 0
        %3646 = vmatprep.subr.bf16.mxu0 0
        %3647 = vmatpush1.bf16.msra.mxu0 0
        %3648 = vmatprep.subr.bf16.mxu0 0
        %3649 = vmatpush1.bf16.msra.mxu0 0
        %3650 = vmatprep.subr.bf16.mxu0 0
        %3651 = vmatpush1.bf16.msra.mxu0 0
        %3652 = vmatprep.subr.bf16.mxu0 0
        %3653 = vmatpush1.bf16.msra.mxu0 0
        %3654 = vmatprep.subr.bf16.mxu0 0
        %3655 = vmatpush1.bf16.msra.mxu0 0
        %3656 = vmatprep.subr.bf16.mxu0 0
        %3657 = vmatpush1.bf16.msra.mxu0 0
        %3658 = vmatprep.subr.bf16.mxu0 0
        %3659 = vmatpush1.bf16.msra.mxu0 0
        %3660 = vmatprep.subr.bf16.mxu0 0
        %3661 = vmatpush1.bf16.msra.mxu0 0
        %3662 = vmatprep.mubr.bf16.mxu0 0
        %3663 = vmatmul.mubr.bf16.gmra.mrb[0].mxu0 %v3628
        %v3664 = vpop.f32.mrb[0].mxu0
        %v3665 = vadd.f32 0.0, %v3664
        %v3666 = vpop.f32.mrb[0].mxu0
        %v3667 = vpop.f32.mrb[0].mxu0
        %v3668 = vadd.f32 0.0, %v3667
        %v3669 = vpop.f32.mrb[0].mxu0
        %3670 = vdwg.mxu0
        %3671 = vrot.lane.b32.xlu0 %v3430, 112
        %v3672 = vpop.permute.xlu0 %3671
        %3673 = vrot.lane.b32.xlu0 %v3419, 80
        %v3674 = vpop.permute.xlu0 %3673
        %v3676 = vsel %vm1390, %v3672, 0
        %v3679 = vsel %vm1390, %v3674, 0
        %3681 = vmatprep.subr.bf16.mxu0 0
        %3682 = vmatpush1.bf16.xpose.msra.mxu0 %v3679
        %3683 = vmatprep.subr.bf16.mxu0 0
        %3684 = vmatpush1.bf16.xpose.msra.mxu0 0
        %3685 = vmatprep.subr.bf16.mxu0 0
        %3686 = vmatpush1.bf16.xpose.msra.mxu0 0
        %3687 = vmatprep.subr.bf16.mxu0 0
        %3688 = vmatpush1.bf16.xpose.msra.mxu0 0
        %3689 = vmatprep.subr.bf16.mxu0 0
        %3690 = vmatpush1.bf16.xpose.msra.mxu0 0
        %3691 = vmatprep.subr.bf16.mxu0 0
        %3692 = vmatpush1.bf16.xpose.msra.mxu0 0
        %3693 = vmatprep.subr.bf16.mxu0 0
        %3694 = vmatpush1.bf16.xpose.msra.mxu0 0
        %3695 = vmatprep.subr.bf16.mxu0 0
        %3696 = vmatpush1.bf16.xpose.msra.mxu0 0
        %3697 = vmatprep.subr.bf16.mxu0 0
        %3698 = vmatpush1.bf16.xpose.msra.mxu0 0
        %3699 = vmatprep.subr.bf16.mxu0 0
        %3700 = vmatpush1.bf16.xpose.msra.mxu0 0
        %3701 = vmatprep.subr.bf16.mxu0 0
        %3702 = vmatpush1.bf16.xpose.msra.mxu0 0
        %3703 = vmatprep.subr.bf16.mxu0 0
        %3704 = vmatpush1.bf16.xpose.msra.mxu0 0
        %3705 = vmatprep.subr.bf16.mxu0 0
        %3706 = vmatpush1.bf16.xpose.msra.mxu0 0
        %3707 = vmatprep.subr.bf16.mxu0 0
        %3708 = vmatpush1.bf16.xpose.msra.mxu0 0
        %3709 = vmatprep.subr.bf16.mxu0 0
        %3710 = vmatpush1.bf16.xpose.msra.mxu0 0
        %3711 = vmatprep.subr.bf16.mxu0 0
        %3712 = vmatpush1.bf16.xpose.msra.mxu0 0
        %3713 = vmatprep.mubr.bf16.mxu0 0
        %3714 = vmatmul.mubr.bf16.gmra.mrb[0].mxu0 %v3676
        %v3715 = vpop.f32.mrb[0].mxu0
        %v3716 = vadd.f32 0.0, %v3715
        %v3717 = vpop.f32.mrb[0].mxu0
        %v3718 = vpop.f32.mrb[0].mxu0
        %v3719 = vadd.f32 0.0, %v3718
        %v3720 = vpop.f32.mrb[0].mxu0
        %3721 = vdwg.mxu0
        %v3722 = vsel %vm1438, %v3716, -inf
        %3723 = vmax.xlane.f32.xlu0 %v3722
        %v3724 = vpop.xlane.xlu0 %3723
        %v3725 = vsel %vm1438, %v3719, -inf
        %3726 = vmax.xlane.f32.xlu0 %v3725
        %v3727 = vpop.xlane.xlu0 %3726
        %v3728 = vsub.f32 %v3716, %v3724
        %v3729 = vsub.f32 %v3719, %v3727
        %v3730 = vmul.f32 %v3728, 1.442695
        %v3731 = vpow.pop %v3730
        %v3732 = vmul.f32 %v3729, 1.442695
        %v3733 = vpow.pop %v3732
        %v3734 = vsel %vm1438, %v3731, 0.0
        %3735 = vadd.xlane.f32.xlu0 %v3734
        %v3736 = vpop.xlane.xlu0 %3735
        %v3737 = vsel %vm1438, %v3733, 0.0
        %3738 = vadd.xlane.f32.xlu0 %v3737
        %v3739 = vpop.xlane.xlu0 %3738
        %v3740 = vrcp.pop %v3736
        %v3741 = vrcp.pop %v3739
        %v3742 = vmul.f32 %v3731, %v3740
        %v3743 = vmul.f32 %v3733, %v3741
        %v3744 = vpack.c.bf16 %v3743, %v3742
        %3745 = vrot.lane.b32.xlu0 %v3420, 112
        %v3746 = vpop.permute.xlu0 %3745
        %v3749 = vsel %vm1438, %v3744, 0
        %3751 = vmatprep.subr.bf16.mxu0 0
        %3752 = vmatpush1.bf16.msra.mxu0 %v3746
        %3753 = vmatprep.subr.bf16.mxu0 0
        %3754 = vmatpush1.bf16.msra.mxu0 0
        %3755 = vmatprep.subr.bf16.mxu0 0
        %3756 = vmatpush1.bf16.msra.mxu0 0
        %3757 = vmatprep.subr.bf16.mxu0 0
        %3758 = vmatpush1.bf16.msra.mxu0 0
        %3759 = vmatprep.subr.bf16.mxu0 0
        %3760 = vmatpush1.bf16.msra.mxu0 0
        %3761 = vmatprep.subr.bf16.mxu0 0
        %3762 = vmatpush1.bf16.msra.mxu0 0
        %3763 = vmatprep.subr.bf16.mxu0 0
        %3764 = vmatpush1.bf16.msra.mxu0 0
        %3765 = vmatprep.subr.bf16.mxu0 0
        %3766 = vmatpush1.bf16.msra.mxu0 0
        %3767 = vmatprep.subr.bf16.mxu0 0
        %3768 = vmatpush1.bf16.msra.mxu0 0
        %3769 = vmatprep.subr.bf16.mxu0 0
        %3770 = vmatpush1.bf16.msra.mxu0 0
        %3771 = vmatprep.subr.bf16.mxu0 0
        %3772 = vmatpush1.bf16.msra.mxu0 0
        %3773 = vmatprep.subr.bf16.mxu0 0
        %3774 = vmatpush1.bf16.msra.mxu0 0
        %3775 = vmatprep.subr.bf16.mxu0 0
        %3776 = vmatpush1.bf16.msra.mxu0 0
        %3777 = vmatprep.subr.bf16.mxu0 0
        %3778 = vmatpush1.bf16.msra.mxu0 0
        %3779 = vmatprep.subr.bf16.mxu0 0
        %3780 = vmatpush1.bf16.msra.mxu0 0
        %3781 = vmatprep.subr.bf16.mxu0 0
        %3782 = vmatpush1.bf16.msra.mxu0 0
        %3783 = vmatprep.mubr.bf16.mxu0 0
        %3784 = vmatmul.mubr.bf16.gmra.mrb[0].mxu0 %v3749
        %v3785 = vpop.f32.mrb[0].mxu0
        %v3786 = vadd.f32 0.0, %v3785
        %v3787 = vpop.f32.mrb[0].mxu0
        %v3788 = vpop.f32.mrb[0].mxu0
        %v3789 = vadd.f32 0.0, %v3788
        %v3790 = vpop.f32.mrb[0].mxu0
        %3791 = vdwg.mxu0
        %3792 = vrot.lane.b32.xlu0 %v3430, 104
        %v3793 = vpop.permute.xlu0 %3792
        %3794 = vrot.lane.b32.xlu0 %v3419, 72
        %v3795 = vpop.permute.xlu0 %3794
        %v3797 = vsel %vm1390, %v3793, 0
        %v3800 = vsel %vm1390, %v3795, 0
        %3802 = vmatprep.subr.bf16.mxu0 0
        %3803 = vmatpush1.bf16.xpose.msra.mxu0 %v3800
        %3804 = vmatprep.subr.bf16.mxu0 0
        %3805 = vmatpush1.bf16.xpose.msra.mxu0 0
        %3806 = vmatprep.subr.bf16.mxu0 0
        %3807 = vmatpush1.bf16.xpose.msra.mxu0 0
        %3808 = vmatprep.subr.bf16.mxu0 0
        %3809 = vmatpush1.bf16.xpose.msra.mxu0 0
        %3810 = vmatprep.subr.bf16.mxu0 0
        %3811 = vmatpush1.bf16.xpose.msra.mxu0 0
        %3812 = vmatprep.subr.bf16.mxu0 0
        %3813 = vmatpush1.bf16.xpose.msra.mxu0 0
        %3814 = vmatprep.subr.bf16.mxu0 0
        %3815 = vmatpush1.bf16.xpose.msra.mxu0 0
        %3816 = vmatprep.subr.bf16.mxu0 0
        %3817 = vmatpush1.bf16.xpose.msra.mxu0 0
        %3818 = vmatprep.subr.bf16.mxu0 0
        %3819 = vmatpush1.bf16.xpose.msra.mxu0 0
        %3820 = vmatprep.subr.bf16.mxu0 0
        %3821 = vmatpush1.bf16.xpose.msra.mxu0 0
        %3822 = vmatprep.subr.bf16.mxu0 0
        %3823 = vmatpush1.bf16.xpose.msra.mxu0 0
        %3824 = vmatprep.subr.bf16.mxu0 0
        %3825 = vmatpush1.bf16.xpose.msra.mxu0 0
        %3826 = vmatprep.subr.bf16.mxu0 0
        %3827 = vmatpush1.bf16.xpose.msra.mxu0 0
        %3828 = vmatprep.subr.bf16.mxu0 0
        %3829 = vmatpush1.bf16.xpose.msra.mxu0 0
        %3830 = vmatprep.subr.bf16.mxu0 0
        %3831 = vmatpush1.bf16.xpose.msra.mxu0 0
        %3832 = vmatprep.subr.bf16.mxu0 0
        %3833 = vmatpush1.bf16.xpose.msra.mxu0 0
        %3834 = vmatprep.mubr.bf16.mxu0 0
        %3835 = vmatmul.mubr.bf16.gmra.mrb[0].mxu0 %v3797
        %v3836 = vpop.f32.mrb[0].mxu0
        %v3837 = vadd.f32 0.0, %v3836
        %v3838 = vpop.f32.mrb[0].mxu0
        %v3839 = vpop.f32.mrb[0].mxu0
        %v3840 = vadd.f32 0.0, %v3839
        %v3841 = vpop.f32.mrb[0].mxu0
        %3842 = vdwg.mxu0
        %v3843 = vsel %vm1438, %v3837, -inf
        %3844 = vmax.xlane.f32.xlu0 %v3843
        %v3845 = vpop.xlane.xlu0 %3844
        %v3846 = vsel %vm1438, %v3840, -inf
        %3847 = vmax.xlane.f32.xlu0 %v3846
        %v3848 = vpop.xlane.xlu0 %3847
        %v3849 = vsub.f32 %v3837, %v3845
        %v3850 = vsub.f32 %v3840, %v3848
        %v3851 = vmul.f32 %v3849, 1.442695
        %v3852 = vpow.pop %v3851
        %v3853 = vmul.f32 %v3850, 1.442695
        %v3854 = vpow.pop %v3853
        %v3855 = vsel %vm1438, %v3852, 0.0
        %3856 = vadd.xlane.f32.xlu0 %v3855
        %v3857 = vpop.xlane.xlu0 %3856
        %v3858 = vsel %vm1438, %v3854, 0.0
        %3859 = vadd.xlane.f32.xlu0 %v3858
        %v3860 = vpop.xlane.xlu0 %3859
        %v3861 = vrcp.pop %v3857
        %v3862 = vrcp.pop %v3860
        %v3863 = vmul.f32 %v3852, %v3861
        %v3864 = vmul.f32 %v3854, %v3862
        %v3865 = vpack.c.bf16 %v3864, %v3863
        %3866 = vrot.lane.b32.xlu0 %v3420, 104
        %v3867 = vpop.permute.xlu0 %3866
        %v3870 = vsel %vm1438, %v3865, 0
        %3872 = vmatprep.subr.bf16.mxu0 0
        %3873 = vmatpush1.bf16.msra.mxu0 %v3867
        %3874 = vmatprep.subr.bf16.mxu0 0
        %3875 = vmatpush1.bf16.msra.mxu0 0
        %3876 = vmatprep.subr.bf16.mxu0 0
        %3877 = vmatpush1.bf16.msra.mxu0 0
        %3878 = vmatprep.subr.bf16.mxu0 0
        %3879 = vmatpush1.bf16.msra.mxu0 0
        %3880 = vmatprep.subr.bf16.mxu0 0
        %3881 = vmatpush1.bf16.msra.mxu0 0
        %3882 = vmatprep.subr.bf16.mxu0 0
        %3883 = vmatpush1.bf16.msra.mxu0 0
        %3884 = vmatprep.subr.bf16.mxu0 0
        %3885 = vmatpush1.bf16.msra.mxu0 0
        %3886 = vmatprep.subr.bf16.mxu0 0
        %3887 = vmatpush1.bf16.msra.mxu0 0
        %3888 = vmatprep.subr.bf16.mxu0 0
        %3889 = vmatpush1.bf16.msra.mxu0 0
        %3890 = vmatprep.subr.bf16.mxu0 0
        %3891 = vmatpush1.bf16.msra.mxu0 0
        %3892 = vmatprep.subr.bf16.mxu0 0
        %3893 = vmatpush1.bf16.msra.mxu0 0
        %3894 = vmatprep.subr.bf16.mxu0 0
        %3895 = vmatpush1.bf16.msra.mxu0 0
        %3896 = vmatprep.subr.bf16.mxu0 0
        %3897 = vmatpush1.bf16.msra.mxu0 0
        %3898 = vmatprep.subr.bf16.mxu0 0
        %3899 = vmatpush1.bf16.msra.mxu0 0
        %3900 = vmatprep.subr.bf16.mxu0 0
        %3901 = vmatpush1.bf16.msra.mxu0 0
        %3902 = vmatprep.subr.bf16.mxu0 0
        %3903 = vmatpush1.bf16.msra.mxu0 0
        %3904 = vmatprep.mubr.bf16.mxu0 0
        %3905 = vmatmul.mubr.bf16.gmra.mrb[0].mxu0 %v3870
        %v3906 = vpop.f32.mrb[0].mxu0
        %v3907 = vadd.f32 0.0, %v3906
        %v3908 = vpop.f32.mrb[0].mxu0
        %v3909 = vpop.f32.mrb[0].mxu0
        %v3910 = vadd.f32 0.0, %v3909
        %v3911 = vpop.f32.mrb[0].mxu0
        %3912 = vdwg.mxu0
        %3915 = vrot.lane.b32.xlu0 %v3665, 8
        %v3916 = vpop.permute.xlu0 %3915
        %3917 = vrot.lane.b32.xlu0 %v3668, 8
        %v3918 = vpop.permute.xlu0 %3917
        %3923 = vrot.lane.b32.xlu0 %v3786, 16
        %v3924 = vpop.permute.xlu0 %3923
        %3925 = vrot.lane.b32.xlu0 %v3789, 16
        %v3926 = vpop.permute.xlu0 %3925
        %3931 = vrot.lane.b32.xlu0 %v3907, 24
        %v3932 = vpop.permute.xlu0 %3931
        %3933 = vrot.lane.b32.xlu0 %v3910, 24
        %v3934 = vpop.permute.xlu0 %3933
        %v3937 = vsel %vm1390, %v3542, %v3916
        %v3938 = vsel %vm1390, %v3545, %v3918
        %v3939 = vsel %vm1438, %v3937, %v3924
        %v3940 = vsel %vm1438, %v3938, %v3926
        %v3941 = vsel %vm1899, %v3939, %v3932
        %v3942 = vsel %vm1899, %v3940, %v3934
        %v3943 = vpack.c.bf16 %v3942, %v3941
        %v3945 = vlaneseq
        %v3946 = vshrl.u32 %v3945, 7
        %v3947 = vsub.s32 0, %v3946
        %v3948 = vrot.slane %v3427, %v3947
        %v3954 = vunpack.c.l.b16 %v3422
        %v3955 = vunpack.c.l.b16 %v3423
        %v3956 = vunpack.c.l.b16 %v3424
        %v3957 = vunpack.c.l.b16 %v3425
        %v3958 = vpack.c.b16 %v3955, %v3954
        %v3959 = vpack.c.b16 %v3957, %v3956
        %v3963 = vsel %vm1264, %v3943, 0
        %3965 = vmatprep.subr.bf16.mxu0 0
        %3966 = vmatpush1.bf16.msra.mxu0 %v3958
        %3967 = vmatprep.subr.bf16.mxu0 0
        %3968 = vmatpush1.bf16.msra.mxu0 %v3959
        %3969 = vmatprep.subr.bf16.mxu0 0
        %3970 = vmatpush1.bf16.msra.mxu0 0
        %3971 = vmatprep.subr.bf16.mxu0 0
        %3972 = vmatpush1.bf16.msra.mxu0 0
        %3973 = vmatprep.subr.bf16.mxu0 0
        %3974 = vmatpush1.bf16.msra.mxu0 0
        %3975 = vmatprep.subr.bf16.mxu0 0
        %3976 = vmatpush1.bf16.msra.mxu0 0
        %3977 = vmatprep.subr.bf16.mxu0 0
        %3978 = vmatpush1.bf16.msra.mxu0 0
        %3979 = vmatprep.subr.bf16.mxu0 0
        %3980 = vmatpush1.bf16.msra.mxu0 0
        %3981 = vmatprep.subr.bf16.mxu0 0
        %3982 = vmatpush1.bf16.msra.mxu0 0
        %3983 = vmatprep.subr.bf16.mxu0 0
        %3984 = vmatpush1.bf16.msra.mxu0 0
        %3985 = vmatprep.subr.bf16.mxu0 0
        %3986 = vmatpush1.bf16.msra.mxu0 0
        %3987 = vmatprep.subr.bf16.mxu0 0
        %3988 = vmatpush1.bf16.msra.mxu0 0
        %3989 = vmatprep.subr.bf16.mxu0 0
        %3990 = vmatpush1.bf16.msra.mxu0 0
        %3991 = vmatprep.subr.bf16.mxu0 0
        %3992 = vmatpush1.bf16.msra.mxu0 0
        %3993 = vmatprep.subr.bf16.mxu0 0
        %3994 = vmatpush1.bf16.msra.mxu0 0
        %3995 = vmatprep.subr.bf16.mxu0 0
        %3996 = vmatpush1.bf16.msra.mxu0 0
        %3997 = vmatprep.mubr.bf16.mxu0 0
        %3998 = vmatmul.mubr.bf16.gmra.mrb[0].mxu0 %v3963
        %v3999 = vpop.f32.mrb[0].mxu0
        %v4000 = vadd.f32 %v3948, %v3999
        %v4001 = vpop.f32.mrb[0].mxu0
        %v4002 = vpop.f32.mrb[0].mxu0
        %v4003 = vadd.f32 %v3948, %v4002
        %v4004 = vpop.f32.mrb[0].mxu0
        %4005 = vdwg.mxu0
        %v4006 = vadd.f32 %v4000, %v3107
        %v4007 = vadd.f32 %v4003, %v3108
        %s4008 = scalar_lea.vmem [#allocation2], 1
        %v4009 = vld [vmem:[%s4008] sm:$0x1]
        %s4010 = scalar_lea.vmem [#allocation4], 1
        %v4011 = vld [vmem:[%s4010] sm:$0x1]
        %v4012 = vsel %vm1264, %v4006, 0.0
        %4013 = vadd.xlane.f32.xlu0 %v4012
        %v4014 = vpop.xlane.xlu0 %4013
        %v4015 = vsel %vm1264, %v4007, 0.0
        %4016 = vadd.xlane.f32.xlu0 %v4015
        %v4017 = vpop.xlane.xlu0 %4016
        %v4018 = vmul.f32 %v4014, %v1975
        %v4019 = vmul.f32 %v4017, %v1975
        %v4020 = vsub.f32 %v4006, %v4018
        %v4021 = vsub.f32 %v4007, %v4019
        %v4022 = vmul.f32 %v4020, %v4020
        %v4023 = vmul.f32 %v4021, %v4021
        %v4024 = vsel %vm1264, %v4022, 0.0
        %4025 = vadd.xlane.f32.xlu0 %v4024
        %v4026 = vpop.xlane.xlu0 %4025
        %v4027 = vsel %vm1264, %v4023, 0.0
        %4028 = vadd.xlane.f32.xlu0 %v4027
        %v4029 = vpop.xlane.xlu0 %4028
        %v4030 = vmul.f32 %v4026, %v1975
        %v4031 = vmul.f32 %v4029, %v1975
        %v4032 = vadd.f32 %v4030, 1e-05
        %v4033 = vadd.f32 %v4031, 1e-05
        %v4034 = vrsqrt.pop %v4032
        %v4035 = vrsqrt.pop %v4033
        %v4036 = vmul.f32 %v4020, %v4034
        %v4037 = vmul.f32 %v4021, %v4035
        %v4039 = vlaneseq
        %v4040 = vshrl.u32 %v4039, 7
        %v4041 = vsub.s32 0, %v4040
        %v4042 = vrot.slane %v4009, %v4041
        %v4044 = vmul.f32 %v4036, %v4042
        %v4045 = vmul.f32 %v4037, %v4042
        %v4047 = vlaneseq
        %v4048 = vshrl.u32 %v4047, 7
        %v4049 = vsub.s32 0, %v4048
        %v4050 = vrot.slane %v4011, %v4049
        %v4052 = vadd.f32 %v4044, %v4050
        %v4053 = vadd.f32 %v4045, %v4050
        %v4054 = vadd.f32 %v4052, %v1222
        %v4055 = vadd.f32 %v4053, %v1223
        %s4056 = scalar_lea.vmem %s25, 16
        %v4057 = vld [vmem:[%s4056] sm:$0xf]
        %v4058 = vld [vmem:[%s4056 + $0x4] sm:$0xf]
        %v4059 = vld [vmem:[%s4056 + $0x8] sm:$0xf]
        %v4060 = vld [vmem:[%s4056 + $0xc] sm:$0xf]
        %s4061 = scalar_lea.vmem [#allocation6], 1
        %v4062 = vld [vmem:[%s4061] sm:$0x1]
        %v4063 = vpack.c.bf16 %v4055, %v4054
        %v4065 = vlaneseq
        %v4066 = vshrl.u32 %v4065, 7
        %v4067 = vsub.s32 0, %v4066
        %v4068 = vrot.slane %v4062, %v4067
        %v4074 = vunpack.c.l.b16 %v4057
        %v4075 = vunpack.c.l.b16 %v4058
        %v4076 = vunpack.c.l.b16 %v4059
        %v4077 = vunpack.c.l.b16 %v4060
        %v4078 = vpack.c.b16 %v4075, %v4074
        %v4079 = vpack.c.b16 %v4077, %v4076
        %v4083 = vsel %vm1264, %v4063, 0
        %4085 = vmatprep.subr.bf16.mxu0 0
        %4086 = vmatpush1.bf16.msra.mxu0 %v4078
        %4087 = vmatprep.subr.bf16.mxu0 0
        %4088 = vmatpush1.bf16.msra.mxu0 %v4079
        %4089 = vmatprep.subr.bf16.mxu0 0
        %4090 = vmatpush1.bf16.msra.mxu0 0
        %4091 = vmatprep.subr.bf16.mxu0 0
        %4092 = vmatpush1.bf16.msra.mxu0 0
        %4093 = vmatprep.subr.bf16.mxu0 0
        %4094 = vmatpush1.bf16.msra.mxu0 0
        %4095 = vmatprep.subr.bf16.mxu0 0
        %4096 = vmatpush1.bf16.msra.mxu0 0
        %4097 = vmatprep.subr.bf16.mxu0 0
        %4098 = vmatpush1.bf16.msra.mxu0 0
        %4099 = vmatprep.subr.bf16.mxu0 0
        %4100 = vmatpush1.bf16.msra.mxu0 0
        %4101 = vmatprep.subr.bf16.mxu0 0
        %4102 = vmatpush1.bf16.msra.mxu0 0
        %4103 = vmatprep.subr.bf16.mxu0 0
        %4104 = vmatpush1.bf16.msra.mxu0 0
        %4105 = vmatprep.subr.bf16.mxu0 0
        %4106 = vmatpush1.bf16.msra.mxu0 0
        %4107 = vmatprep.subr.bf16.mxu0 0
        %4108 = vmatpush1.bf16.msra.mxu0 0
        %4109 = vmatprep.subr.bf16.mxu0 0
        %4110 = vmatpush1.bf16.msra.mxu0 0
        %4111 = vmatprep.subr.bf16.mxu0 0
        %4112 = vmatpush1.bf16.msra.mxu0 0
        %4113 = vmatprep.subr.bf16.mxu0 0
        %4114 = vmatpush1.bf16.msra.mxu0 0
        %4115 = vmatprep.subr.bf16.mxu0 0
        %4116 = vmatpush1.bf16.msra.mxu0 0
        %4117 = vmatprep.mubr.bf16.mxu0 0
        %4118 = vmatmul.mubr.bf16.gmra.mrb[0].mxu0 %v4083
        %v4119 = vpop.f32.mrb[0].mxu0
        %v4120 = vadd.f32 %v4068, %v4119
        %v4121 = vpop.f32.mrb[0].mxu0
        %v4122 = vpop.f32.mrb[0].mxu0
        %v4123 = vadd.f32 %v4068, %v4122
        %v4124 = vpop.f32.mrb[0].mxu0
        %4125 = vdwg.mxu0
        %s4126 = scalar_lea.vmem %s29, 16
        %v4127 = vld [vmem:[%s4126] sm:$0xf]
        %v4128 = vld [vmem:[%s4126 + $0x4] sm:$0xf]
        %v4129 = vld [vmem:[%s4126 + $0x8] sm:$0xf]
        %v4130 = vld [vmem:[%s4126 + $0xc] sm:$0xf]
        %s4131 = scalar_lea.vmem [#allocation7], 1
        %v4132 = vld [vmem:[%s4131] sm:$0x1]
        %v4134 = vlaneseq
        %v4135 = vshrl.u32 %v4134, 7
        %v4136 = vsub.s32 0, %v4135
        %v4137 = vrot.slane %v4132, %v4136
        %v4143 = vunpack.c.l.b16 %v4127
        %v4144 = vunpack.c.l.b16 %v4128
        %v4145 = vunpack.c.l.b16 %v4129
        %v4146 = vunpack.c.l.b16 %v4130
        %v4147 = vpack.c.b16 %v4144, %v4143
        %v4148 = vpack.c.b16 %v4146, %v4145
        %4151 = vmatprep.subr.bf16.mxu0 0
        %4152 = vmatpush1.bf16.msra.mxu0 %v4147
        %4153 = vmatprep.subr.bf16.mxu0 0
        %4154 = vmatpush1.bf16.msra.mxu0 %v4148
        %4155 = vmatprep.subr.bf16.mxu0 0
        %4156 = vmatpush1.bf16.msra.mxu0 0
        %4157 = vmatprep.subr.bf16.mxu0 0
        %4158 = vmatpush1.bf16.msra.mxu0 0
        %4159 = vmatprep.subr.bf16.mxu0 0
        %4160 = vmatpush1.bf16.msra.mxu0 0
        %4161 = vmatprep.subr.bf16.mxu0 0
        %4162 = vmatpush1.bf16.msra.mxu0 0
        %4163 = vmatprep.subr.bf16.mxu0 0
        %4164 = vmatpush1.bf16.msra.mxu0 0
        %4165 = vmatprep.subr.bf16.mxu0 0
        %4166 = vmatpush1.bf16.msra.mxu0 0
        %4167 = vmatprep.subr.bf16.mxu0 0
        %4168 = vmatpush1.bf16.msra.mxu0 0
        %4169 = vmatprep.subr.bf16.mxu0 0
        %4170 = vmatpush1.bf16.msra.mxu0 0
        %4171 = vmatprep.subr.bf16.mxu0 0
        %4172 = vmatpush1.bf16.msra.mxu0 0
        %4173 = vmatprep.subr.bf16.mxu0 0
        %4174 = vmatpush1.bf16.msra.mxu0 0
        %4175 = vmatprep.subr.bf16.mxu0 0
        %4176 = vmatpush1.bf16.msra.mxu0 0
        %4177 = vmatprep.subr.bf16.mxu0 0
        %4178 = vmatpush1.bf16.msra.mxu0 0
        %4179 = vmatprep.subr.bf16.mxu0 0
        %4180 = vmatpush1.bf16.msra.mxu0 0
        %4181 = vmatprep.subr.bf16.mxu0 0
        %4182 = vmatpush1.bf16.msra.mxu0 0
        %4183 = vmatprep.mubr.bf16.mxu0 0
        %4184 = vmatmul.mubr.bf16.gmra.mrb[0].mxu0 %v2106
        %v4185 = vpop.f32.mrb[0].mxu0
        %v4186 = vadd.f32 %v4137, %v4185
        %v4187 = vpop.f32.mrb[0].mxu0
        %v4188 = vpop.f32.mrb[0].mxu0
        %v4189 = vadd.f32 %v4137, %v4188
        %v4190 = vpop.f32.mrb[0].mxu0
        %4191 = vmatprep.mubr.bf16.mxu0 0
        %4192 = vmatmul.mubr.bf16.gmra.mrb[0].mxu0 %v2109
        %v4193 = vpop.f32.mrb[0].mxu0
        %v4194 = vadd.f32 %v4137, %v4193
        %v4195 = vpop.f32.mrb[0].mxu0
        %v4196 = vpop.f32.mrb[0].mxu0
        %v4197 = vadd.f32 %v4137, %v4196
        %v4198 = vpop.f32.mrb[0].mxu0
        %4199 = vmatprep.mubr.bf16.mxu0 0
        %4200 = vmatmul.mubr.bf16.gmra.mrb[0].mxu0 %v2112
        %v4201 = vpop.f32.mrb[0].mxu0
        %v4202 = vadd.f32 %v4137, %v4201
        %v4203 = vpop.f32.mrb[0].mxu0
        %v4204 = vpop.f32.mrb[0].mxu0
        %v4205 = vadd.f32 %v4137, %v4204
        %v4206 = vpop.f32.mrb[0].mxu0
        %4207 = vmatprep.mubr.bf16.mxu0 0
        %4208 = vmatmul.mubr.bf16.gmra.mrb[0].mxu0 %v2115
        %v4209 = vpop.f32.mrb[0].mxu0
        %v4210 = vadd.f32 %v4137, %v4209
        %v4211 = vpop.f32.mrb[0].mxu0
        %v4212 = vpop.f32.mrb[0].mxu0
        %v4213 = vadd.f32 %v4137, %v4212
        %v4214 = vpop.f32.mrb[0].mxu0
        %4215 = vdwg.mxu0
        %v4216 = vpack.c.bf16 %v4189, %v4186
        %v4217 = vpack.c.bf16 %v4197, %v4194
        %v4218 = vpack.c.bf16 %v4205, %v4202
        %v4219 = vpack.c.bf16 %v4213, %v4210
        %s4220 = scalar_lea.vmem %s33, 16
        %v4221 = vld [vmem:[%s4220] sm:$0xf]
        %v4222 = vld [vmem:[%s4220 + $0x4] sm:$0xf]
        %v4223 = vld [vmem:[%s4220 + $0x8] sm:$0xf]
        %v4224 = vld [vmem:[%s4220 + $0xc] sm:$0xf]
        %s4225 = scalar_lea.vmem [#allocation9], 1
        %v4226 = vld [vmem:[%s4225] sm:$0x1]
        %v4227 = vmul.f32 %v4120, 0.35355338
        %v4228 = vmul.f32 %v4123, 0.35355338
        %v4229 = vpack.c.bf16 %v4228, %v4227
        %v4231 = vsel %vm1390, %v4229, 0
        %v4234 = vsel %vm1390, %v4216, 0
        %v4237 = vsel %vm1390, %v4217, 0
        %v4240 = vsel %vm1390, %v4218, 0
        %v4243 = vsel %vm1390, %v4219, 0
        %4245 = vmatprep.subr.bf16.mxu0 0
        %4246 = vmatpush1.bf16.xpose.msra.mxu0 %v4234
        %4247 = vmatprep.subr.bf16.mxu0 0
        %4248 = vmatpush1.bf16.xpose.msra.mxu0 %v4237
        %4249 = vmatprep.subr.bf16.mxu0 0
        %4250 = vmatpush1.bf16.xpose.msra.mxu0 %v4240
        %4251 = vmatprep.subr.bf16.mxu0 0
        %4252 = vmatpush1.bf16.xpose.msra.mxu0 %v4243
        %4253 = vmatprep.subr.bf16.mxu0 0
        %4254 = vmatpush1.bf16.xpose.msra.mxu0 0
        %4255 = vmatprep.subr.bf16.mxu0 0
        %4256 = vmatpush1.bf16.xpose.msra.mxu0 0
        %4257 = vmatprep.subr.bf16.mxu0 0
        %4258 = vmatpush1.bf16.xpose.msra.mxu0 0
        %4259 = vmatprep.subr.bf16.mxu0 0
        %4260 = vmatpush1.bf16.xpose.msra.mxu0 0
        %4261 = vmatprep.subr.bf16.mxu0 0
        %4262 = vmatpush1.bf16.xpose.msra.mxu0 0
        %4263 = vmatprep.subr.bf16.mxu0 0
        %4264 = vmatpush1.bf16.xpose.msra.mxu0 0
        %4265 = vmatprep.subr.bf16.mxu0 0
        %4266 = vmatpush1.bf16.xpose.msra.mxu0 0
        %4267 = vmatprep.subr.bf16.mxu0 0
        %4268 = vmatpush1.bf16.xpose.msra.mxu0 0
        %4269 = vmatprep.subr.bf16.mxu0 0
        %4270 = vmatpush1.bf16.xpose.msra.mxu0 0
        %4271 = vmatprep.subr.bf16.mxu0 0
        %4272 = vmatpush1.bf16.xpose.msra.mxu0 0
        %4273 = vmatprep.subr.bf16.mxu0 0
        %4274 = vmatpush1.bf16.xpose.msra.mxu0 0
        %4275 = vmatprep.subr.bf16.mxu0 0
        %4276 = vmatpush1.bf16.xpose.msra.mxu0 0
        %4277 = vmatprep.mubr.bf16.mxu0 0
        %4278 = vmatmul.mubr.bf16.gmra.mrb[0].mxu0 %v4231
        %v4279 = vpop.f32.mrb[0].mxu0
        %v4280 = vadd.f32 0.0, %v4279
        %v4281 = vpop.f32.mrb[0].mxu0
        %v4282 = vpop.f32.mrb[0].mxu0
        %v4283 = vadd.f32 0.0, %v4282
        %v4284 = vpop.f32.mrb[0].mxu0
        %4285 = vdwg.mxu0
        %v4286 = vsel %vm2250, %v4280, -inf
        %4287 = vmax.xlane.f32.xlu0 %v4286
        %v4288 = vpop.xlane.xlu0 %4287
        %v4289 = vsel %vm2250, %v4283, -inf
        %4290 = vmax.xlane.f32.xlu0 %v4289
        %v4291 = vpop.xlane.xlu0 %4290
        %v4292 = vsub.f32 %v4280, %v4288
        %v4293 = vsub.f32 %v4283, %v4291
        %v4294 = vmul.f32 %v4292, 1.442695
        %v4295 = vpow.pop %v4294
        %v4296 = vmul.f32 %v4293, 1.442695
        %v4297 = vpow.pop %v4296
        %v4298 = vsel %vm2250, %v4295, 0.0
        %4299 = vadd.xlane.f32.xlu0 %v4298
        %v4300 = vpop.xlane.xlu0 %4299
        %v4301 = vsel %vm2250, %v4297, 0.0
        %4302 = vadd.xlane.f32.xlu0 %v4301
        %v4303 = vpop.xlane.xlu0 %4302
        %v4304 = vrcp.pop %v4300
        %v4305 = vrcp.pop %v4303
        %v4306 = vmul.f32 %v4295, %v4304
        %v4307 = vmul.f32 %v4297, %v4305
        %v4308 = vpack.c.bf16 %v4307, %v4306
        %4313 = vrot.lane.b32.xlu0 %v4216, 96
        %v4314 = vpop.permute.xlu0 %4313
        %4315 = vrot.lane.b32.xlu0 %v4217, 96
        %v4316 = vpop.permute.xlu0 %4315
        %4317 = vrot.lane.b32.xlu0 %v4218, 96
        %v4318 = vpop.permute.xlu0 %4317
        %4319 = vrot.lane.b32.xlu0 %v4219, 96
        %v4320 = vpop.permute.xlu0 %4319
        %v4326 = vsel %vm2250, %v4308, 0
        %4328 = vmatprep.subr.bf16.mxu0 0
        %4329 = vmatpush1.bf16.msra.mxu0 %v4314
        %4330 = vmatprep.subr.bf16.mxu0 0
        %4331 = vmatpush1.bf16.msra.mxu0 %v4316
        %4332 = vmatprep.subr.bf16.mxu0 0
        %4333 = vmatpush1.bf16.msra.mxu0 %v4318
        %4334 = vmatprep.subr.bf16.mxu0 0
        %4335 = vmatpush1.bf16.msra.mxu0 %v4320
        %4336 = vmatprep.subr.bf16.mxu0 0
        %4337 = vmatpush1.bf16.msra.mxu0 0
        %4338 = vmatprep.subr.bf16.mxu0 0
        %4339 = vmatpush1.bf16.msra.mxu0 0
        %4340 = vmatprep.subr.bf16.mxu0 0
        %4341 = vmatpush1.bf16.msra.mxu0 0
        %4342 = vmatprep.subr.bf16.mxu0 0
        %4343 = vmatpush1.bf16.msra.mxu0 0
        %4344 = vmatprep.subr.bf16.mxu0 0
        %4345 = vmatpush1.bf16.msra.mxu0 0
        %4346 = vmatprep.subr.bf16.mxu0 0
        %4347 = vmatpush1.bf16.msra.mxu0 0
        %4348 = vmatprep.subr.bf16.mxu0 0
        %4349 = vmatpush1.bf16.msra.mxu0 0
        %4350 = vmatprep.subr.bf16.mxu0 0
        %4351 = vmatpush1.bf16.msra.mxu0 0
        %4352 = vmatprep.subr.bf16.mxu0 0
        %4353 = vmatpush1.bf16.msra.mxu0 0
        %4354 = vmatprep.subr.bf16.mxu0 0
        %4355 = vmatpush1.bf16.msra.mxu0 0
        %4356 = vmatprep.subr.bf16.mxu0 0
        %4357 = vmatpush1.bf16.msra.mxu0 0
        %4358 = vmatprep.subr.bf16.mxu0 0
        %4359 = vmatpush1.bf16.msra.mxu0 0
        %4360 = vmatprep.mubr.bf16.mxu0 0
        %4361 = vmatmul.mubr.bf16.gmra.mrb[0].mxu0 %v4326
        %v4362 = vpop.f32.mrb[0].mxu0
        %v4363 = vadd.f32 0.0, %v4362
        %v4364 = vpop.f32.mrb[0].mxu0
        %v4365 = vpop.f32.mrb[0].mxu0
        %v4366 = vadd.f32 0.0, %v4365
        %v4367 = vpop.f32.mrb[0].mxu0
        %4368 = vdwg.mxu0
        %4370 = vrot.lane.b32.xlu0 %v4229, 120
        %v4371 = vpop.permute.xlu0 %4370
        %4372 = vrot.lane.b32.xlu0 %v4216, 120
        %v4373 = vpop.permute.xlu0 %4372
        %4374 = vrot.lane.b32.xlu0 %v4217, 120
        %v4375 = vpop.permute.xlu0 %4374
        %4376 = vrot.lane.b32.xlu0 %v4218, 120
        %v4377 = vpop.permute.xlu0 %4376
        %4378 = vrot.lane.b32.xlu0 %v4219, 120
        %v4379 = vpop.permute.xlu0 %4378
        %v4381 = vsel %vm1390, %v4371, 0
        %v4384 = vsel %vm1390, %v4373, 0
        %v4387 = vsel %vm1390, %v4375, 0
        %v4390 = vsel %vm1390, %v4377, 0
        %v4393 = vsel %vm1390, %v4379, 0
        %4395 = vmatprep.subr.bf16.mxu0 0
        %4396 = vmatpush1.bf16.xpose.msra.mxu0 %v4384
        %4397 = vmatprep.subr.bf16.mxu0 0
        %4398 = vmatpush1.bf16.xpose.msra.mxu0 %v4387
        %4399 = vmatprep.subr.bf16.mxu0 0
        %4400 = vmatpush1.bf16.xpose.msra.mxu0 %v4390
        %4401 = vmatprep.subr.bf16.mxu0 0
        %4402 = vmatpush1.bf16.xpose.msra.mxu0 %v4393
        %4403 = vmatprep.subr.bf16.mxu0 0
        %4404 = vmatpush1.bf16.xpose.msra.mxu0 0
        %4405 = vmatprep.subr.bf16.mxu0 0
        %4406 = vmatpush1.bf16.xpose.msra.mxu0 0
        %4407 = vmatprep.subr.bf16.mxu0 0
        %4408 = vmatpush1.bf16.xpose.msra.mxu0 0
        %4409 = vmatprep.subr.bf16.mxu0 0
        %4410 = vmatpush1.bf16.xpose.msra.mxu0 0
        %4411 = vmatprep.subr.bf16.mxu0 0
        %4412 = vmatpush1.bf16.xpose.msra.mxu0 0
        %4413 = vmatprep.subr.bf16.mxu0 0
        %4414 = vmatpush1.bf16.xpose.msra.mxu0 0
        %4415 = vmatprep.subr.bf16.mxu0 0
        %4416 = vmatpush1.bf16.xpose.msra.mxu0 0
        %4417 = vmatprep.subr.bf16.mxu0 0
        %4418 = vmatpush1.bf16.xpose.msra.mxu0 0
        %4419 = vmatprep.subr.bf16.mxu0 0
        %4420 = vmatpush1.bf16.xpose.msra.mxu0 0
        %4421 = vmatprep.subr.bf16.mxu0 0
        %4422 = vmatpush1.bf16.xpose.msra.mxu0 0
        %4423 = vmatprep.subr.bf16.mxu0 0
        %4424 = vmatpush1.bf16.xpose.msra.mxu0 0
        %4425 = vmatprep.subr.bf16.mxu0 0
        %4426 = vmatpush1.bf16.xpose.msra.mxu0 0
        %4427 = vmatprep.mubr.bf16.mxu0 0
        %4428 = vmatmul.mubr.bf16.gmra.mrb[0].mxu0 %v4381
        %v4429 = vpop.f32.mrb[0].mxu0
        %v4430 = vadd.f32 0.0, %v4429
        %v4431 = vpop.f32.mrb[0].mxu0
        %v4432 = vpop.f32.mrb[0].mxu0
        %v4433 = vadd.f32 0.0, %v4432
        %v4434 = vpop.f32.mrb[0].mxu0
        %4435 = vdwg.mxu0
        %v4436 = vsel %vm2250, %v4430, -inf
        %4437 = vmax.xlane.f32.xlu0 %v4436
        %v4438 = vpop.xlane.xlu0 %4437
        %v4439 = vsel %vm2250, %v4433, -inf
        %4440 = vmax.xlane.f32.xlu0 %v4439
        %v4441 = vpop.xlane.xlu0 %4440
        %v4442 = vsub.f32 %v4430, %v4438
        %v4443 = vsub.f32 %v4433, %v4441
        %v4444 = vmul.f32 %v4442, 1.442695
        %v4445 = vpow.pop %v4444
        %v4446 = vmul.f32 %v4443, 1.442695
        %v4447 = vpow.pop %v4446
        %v4448 = vsel %vm2250, %v4445, 0.0
        %4449 = vadd.xlane.f32.xlu0 %v4448
        %v4450 = vpop.xlane.xlu0 %4449
        %v4451 = vsel %vm2250, %v4447, 0.0
        %4452 = vadd.xlane.f32.xlu0 %v4451
        %v4453 = vpop.xlane.xlu0 %4452
        %v4454 = vrcp.pop %v4450
        %v4455 = vrcp.pop %v4453
        %v4456 = vmul.f32 %v4445, %v4454
        %v4457 = vmul.f32 %v4447, %v4455
        %v4458 = vpack.c.bf16 %v4457, %v4456
        %4459 = vrot.lane.b32.xlu0 %v4216, 88
        %v4460 = vpop.permute.xlu0 %4459
        %4461 = vrot.lane.b32.xlu0 %v4217, 88
        %v4462 = vpop.permute.xlu0 %4461
        %4463 = vrot.lane.b32.xlu0 %v4218, 88
        %v4464 = vpop.permute.xlu0 %4463
        %4465 = vrot.lane.b32.xlu0 %v4219, 88
        %v4466 = vpop.permute.xlu0 %4465
        %v4472 = vsel %vm2250, %v4458, 0
        %4474 = vmatprep.subr.bf16.mxu0 0
        %4475 = vmatpush1.bf16.msra.mxu0 %v4460
        %4476 = vmatprep.subr.bf16.mxu0 0
        %4477 = vmatpush1.bf16.msra.mxu0 %v4462
        %4478 = vmatprep.subr.bf16.mxu0 0
        %4479 = vmatpush1.bf16.msra.mxu0 %v4464
        %4480 = vmatprep.subr.bf16.mxu0 0
        %4481 = vmatpush1.bf16.msra.mxu0 %v4466
        %4482 = vmatprep.subr.bf16.mxu0 0
        %4483 = vmatpush1.bf16.msra.mxu0 0
        %4484 = vmatprep.subr.bf16.mxu0 0
        %4485 = vmatpush1.bf16.msra.mxu0 0
        %4486 = vmatprep.subr.bf16.mxu0 0
        %4487 = vmatpush1.bf16.msra.mxu0 0
        %4488 = vmatprep.subr.bf16.mxu0 0
        %4489 = vmatpush1.bf16.msra.mxu0 0
        %4490 = vmatprep.subr.bf16.mxu0 0
        %4491 = vmatpush1.bf16.msra.mxu0 0
        %4492 = vmatprep.subr.bf16.mxu0 0
        %4493 = vmatpush1.bf16.msra.mxu0 0
        %4494 = vmatprep.subr.bf16.mxu0 0
        %4495 = vmatpush1.bf16.msra.mxu0 0
        %4496 = vmatprep.subr.bf16.mxu0 0
        %4497 = vmatpush1.bf16.msra.mxu0 0
        %4498 = vmatprep.subr.bf16.mxu0 0
        %4499 = vmatpush1.bf16.msra.mxu0 0
        %4500 = vmatprep.subr.bf16.mxu0 0
        %4501 = vmatpush1.bf16.msra.mxu0 0
        %4502 = vmatprep.subr.bf16.mxu0 0
        %4503 = vmatpush1.bf16.msra.mxu0 0
        %4504 = vmatprep.subr.bf16.mxu0 0
        %4505 = vmatpush1.bf16.msra.mxu0 0
        %4506 = vmatprep.mubr.bf16.mxu0 0
        %4507 = vmatmul.mubr.bf16.gmra.mrb[0].mxu0 %v4472
        %v4508 = vpop.f32.mrb[0].mxu0
        %v4509 = vadd.f32 0.0, %v4508
        %v4510 = vpop.f32.mrb[0].mxu0
        %v4511 = vpop.f32.mrb[0].mxu0
        %v4512 = vadd.f32 0.0, %v4511
        %v4513 = vpop.f32.mrb[0].mxu0
        %4514 = vdwg.mxu0
        %4515 = vrot.lane.b32.xlu0 %v4229, 112
        %v4516 = vpop.permute.xlu0 %4515
        %4517 = vrot.lane.b32.xlu0 %v4216, 112
        %v4518 = vpop.permute.xlu0 %4517
        %4519 = vrot.lane.b32.xlu0 %v4217, 112
        %v4520 = vpop.permute.xlu0 %4519
        %4521 = vrot.lane.b32.xlu0 %v4218, 112
        %v4522 = vpop.permute.xlu0 %4521
        %4523 = vrot.lane.b32.xlu0 %v4219, 112
        %v4524 = vpop.permute.xlu0 %4523
        %v4526 = vsel %vm1390, %v4516, 0
        %v4529 = vsel %vm1390, %v4518, 0
        %v4532 = vsel %vm1390, %v4520, 0
        %v4535 = vsel %vm1390, %v4522, 0
        %v4538 = vsel %vm1390, %v4524, 0
        %4540 = vmatprep.subr.bf16.mxu0 0
        %4541 = vmatpush1.bf16.xpose.msra.mxu0 %v4529
        %4542 = vmatprep.subr.bf16.mxu0 0
        %4543 = vmatpush1.bf16.xpose.msra.mxu0 %v4532
        %4544 = vmatprep.subr.bf16.mxu0 0
        %4545 = vmatpush1.bf16.xpose.msra.mxu0 %v4535
        %4546 = vmatprep.subr.bf16.mxu0 0
        %4547 = vmatpush1.bf16.xpose.msra.mxu0 %v4538
        %4548 = vmatprep.subr.bf16.mxu0 0
        %4549 = vmatpush1.bf16.xpose.msra.mxu0 0
        %4550 = vmatprep.subr.bf16.mxu0 0
        %4551 = vmatpush1.bf16.xpose.msra.mxu0 0
        %4552 = vmatprep.subr.bf16.mxu0 0
        %4553 = vmatpush1.bf16.xpose.msra.mxu0 0
        %4554 = vmatprep.subr.bf16.mxu0 0
        %4555 = vmatpush1.bf16.xpose.msra.mxu0 0
        %4556 = vmatprep.subr.bf16.mxu0 0
        %4557 = vmatpush1.bf16.xpose.msra.mxu0 0
        %4558 = vmatprep.subr.bf16.mxu0 0
        %4559 = vmatpush1.bf16.xpose.msra.mxu0 0
        %4560 = vmatprep.subr.bf16.mxu0 0
        %4561 = vmatpush1.bf16.xpose.msra.mxu0 0
        %4562 = vmatprep.subr.bf16.mxu0 0
        %4563 = vmatpush1.bf16.xpose.msra.mxu0 0
        %4564 = vmatprep.subr.bf16.mxu0 0
        %4565 = vmatpush1.bf16.xpose.msra.mxu0 0
        %4566 = vmatprep.subr.bf16.mxu0 0
        %4567 = vmatpush1.bf16.xpose.msra.mxu0 0
        %4568 = vmatprep.subr.bf16.mxu0 0
        %4569 = vmatpush1.bf16.xpose.msra.mxu0 0
        %4570 = vmatprep.subr.bf16.mxu0 0
        %4571 = vmatpush1.bf16.xpose.msra.mxu0 0
        %4572 = vmatprep.mubr.bf16.mxu0 0
        %4573 = vmatmul.mubr.bf16.gmra.mrb[0].mxu0 %v4526
        %v4574 = vpop.f32.mrb[0].mxu0
        %v4575 = vadd.f32 0.0, %v4574
        %v4576 = vpop.f32.mrb[0].mxu0
        %v4577 = vpop.f32.mrb[0].mxu0
        %v4578 = vadd.f32 0.0, %v4577
        %v4579 = vpop.f32.mrb[0].mxu0
        %4580 = vdwg.mxu0
        %v4581 = vsel %vm2250, %v4575, -inf
        %4582 = vmax.xlane.f32.xlu0 %v4581
        %v4583 = vpop.xlane.xlu0 %4582
        %v4584 = vsel %vm2250, %v4578, -inf
        %4585 = vmax.xlane.f32.xlu0 %v4584
        %v4586 = vpop.xlane.xlu0 %4585
        %v4587 = vsub.f32 %v4575, %v4583
        %v4588 = vsub.f32 %v4578, %v4586
        %v4589 = vmul.f32 %v4587, 1.442695
        %v4590 = vpow.pop %v4589
        %v4591 = vmul.f32 %v4588, 1.442695
        %v4592 = vpow.pop %v4591
        %v4593 = vsel %vm2250, %v4590, 0.0
        %4594 = vadd.xlane.f32.xlu0 %v4593
        %v4595 = vpop.xlane.xlu0 %4594
        %v4596 = vsel %vm2250, %v4592, 0.0
        %4597 = vadd.xlane.f32.xlu0 %v4596
        %v4598 = vpop.xlane.xlu0 %4597
        %v4599 = vrcp.pop %v4595
        %v4600 = vrcp.pop %v4598
        %v4601 = vmul.f32 %v4590, %v4599
        %v4602 = vmul.f32 %v4592, %v4600
        %v4603 = vpack.c.bf16 %v4602, %v4601
        %4604 = vrot.lane.b32.xlu0 %v4216, 80
        %v4605 = vpop.permute.xlu0 %4604
        %4606 = vrot.lane.b32.xlu0 %v4217, 80
        %v4607 = vpop.permute.xlu0 %4606
        %4608 = vrot.lane.b32.xlu0 %v4218, 80
        %v4609 = vpop.permute.xlu0 %4608
        %4610 = vrot.lane.b32.xlu0 %v4219, 80
        %v4611 = vpop.permute.xlu0 %4610
        %v4617 = vsel %vm2250, %v4603, 0
        %4619 = vmatprep.subr.bf16.mxu0 0
        %4620 = vmatpush1.bf16.msra.mxu0 %v4605
        %4621 = vmatprep.subr.bf16.mxu0 0
        %4622 = vmatpush1.bf16.msra.mxu0 %v4607
        %4623 = vmatprep.subr.bf16.mxu0 0
        %4624 = vmatpush1.bf16.msra.mxu0 %v4609
        %4625 = vmatprep.subr.bf16.mxu0 0
        %4626 = vmatpush1.bf16.msra.mxu0 %v4611
        %4627 = vmatprep.subr.bf16.mxu0 0
        %4628 = vmatpush1.bf16.msra.mxu0 0
        %4629 = vmatprep.subr.bf16.mxu0 0
        %4630 = vmatpush1.bf16.msra.mxu0 0
        %4631 = vmatprep.subr.bf16.mxu0 0
        %4632 = vmatpush1.bf16.msra.mxu0 0
        %4633 = vmatprep.subr.bf16.mxu0 0
        %4634 = vmatpush1.bf16.msra.mxu0 0
        %4635 = vmatprep.subr.bf16.mxu0 0
        %4636 = vmatpush1.bf16.msra.mxu0 0
        %4637 = vmatprep.subr.bf16.mxu0 0
        %4638 = vmatpush1.bf16.msra.mxu0 0
        %4639 = vmatprep.subr.bf16.mxu0 0
        %4640 = vmatpush1.bf16.msra.mxu0 0
        %4641 = vmatprep.subr.bf16.mxu0 0
        %4642 = vmatpush1.bf16.msra.mxu0 0
        %4643 = vmatprep.subr.bf16.mxu0 0
        %4644 = vmatpush1.bf16.msra.mxu0 0
        %4645 = vmatprep.subr.bf16.mxu0 0
        %4646 = vmatpush1.bf16.msra.mxu0 0
        %4647 = vmatprep.subr.bf16.mxu0 0
        %4648 = vmatpush1.bf16.msra.mxu0 0
        %4649 = vmatprep.subr.bf16.mxu0 0
        %4650 = vmatpush1.bf16.msra.mxu0 0
        %4651 = vmatprep.mubr.bf16.mxu0 0
        %4652 = vmatmul.mubr.bf16.gmra.mrb[0].mxu0 %v4617
        %v4653 = vpop.f32.mrb[0].mxu0
        %v4654 = vadd.f32 0.0, %v4653
        %v4655 = vpop.f32.mrb[0].mxu0
        %v4656 = vpop.f32.mrb[0].mxu0
        %v4657 = vadd.f32 0.0, %v4656
        %v4658 = vpop.f32.mrb[0].mxu0
        %4659 = vdwg.mxu0
        %4660 = vrot.lane.b32.xlu0 %v4229, 104
        %v4661 = vpop.permute.xlu0 %4660
        %4662 = vrot.lane.b32.xlu0 %v4216, 104
        %v4663 = vpop.permute.xlu0 %4662
        %4664 = vrot.lane.b32.xlu0 %v4217, 104
        %v4665 = vpop.permute.xlu0 %4664
        %4666 = vrot.lane.b32.xlu0 %v4218, 104
        %v4667 = vpop.permute.xlu0 %4666
        %4668 = vrot.lane.b32.xlu0 %v4219, 104
        %v4669 = vpop.permute.xlu0 %4668
        %v4671 = vsel %vm1390, %v4661, 0
        %v4674 = vsel %vm1390, %v4663, 0
        %v4677 = vsel %vm1390, %v4665, 0
        %v4680 = vsel %vm1390, %v4667, 0
        %v4683 = vsel %vm1390, %v4669, 0
        %4685 = vmatprep.subr.bf16.mxu0 0
        %4686 = vmatpush1.bf16.xpose.msra.mxu0 %v4674
        %4687 = vmatprep.subr.bf16.mxu0 0
        %4688 = vmatpush1.bf16.xpose.msra.mxu0 %v4677
        %4689 = vmatprep.subr.bf16.mxu0 0
        %4690 = vmatpush1.bf16.xpose.msra.mxu0 %v4680
        %4691 = vmatprep.subr.bf16.mxu0 0
        %4692 = vmatpush1.bf16.xpose.msra.mxu0 %v4683
        %4693 = vmatprep.subr.bf16.mxu0 0
        %4694 = vmatpush1.bf16.xpose.msra.mxu0 0
        %4695 = vmatprep.subr.bf16.mxu0 0
        %4696 = vmatpush1.bf16.xpose.msra.mxu0 0
        %4697 = vmatprep.subr.bf16.mxu0 0
        %4698 = vmatpush1.bf16.xpose.msra.mxu0 0
        %4699 = vmatprep.subr.bf16.mxu0 0
        %4700 = vmatpush1.bf16.xpose.msra.mxu0 0
        %4701 = vmatprep.subr.bf16.mxu0 0
        %4702 = vmatpush1.bf16.xpose.msra.mxu0 0
        %4703 = vmatprep.subr.bf16.mxu0 0
        %4704 = vmatpush1.bf16.xpose.msra.mxu0 0
        %4705 = vmatprep.subr.bf16.mxu0 0
        %4706 = vmatpush1.bf16.xpose.msra.mxu0 0
        %4707 = vmatprep.subr.bf16.mxu0 0
        %4708 = vmatpush1.bf16.xpose.msra.mxu0 0
        %4709 = vmatprep.subr.bf16.mxu0 0
        %4710 = vmatpush1.bf16.xpose.msra.mxu0 0
        %4711 = vmatprep.subr.bf16.mxu0 0
        %4712 = vmatpush1.bf16.xpose.msra.mxu0 0
        %4713 = vmatprep.subr.bf16.mxu0 0
        %4714 = vmatpush1.bf16.xpose.msra.mxu0 0
        %4715 = vmatprep.subr.bf16.mxu0 0
        %4716 = vmatpush1.bf16.xpose.msra.mxu0 0
        %4717 = vmatprep.mubr.bf16.mxu0 0
        %4718 = vmatmul.mubr.bf16.gmra.mrb[0].mxu0 %v4671
        %v4719 = vpop.f32.mrb[0].mxu0
        %v4720 = vadd.f32 0.0, %v4719
        %v4721 = vpop.f32.mrb[0].mxu0
        %v4722 = vpop.f32.mrb[0].mxu0
        %v4723 = vadd.f32 0.0, %v4722
        %v4724 = vpop.f32.mrb[0].mxu0
        %4725 = vdwg.mxu0
        %v4726 = vsel %vm2250, %v4720, -inf
        %4727 = vmax.xlane.f32.xlu0 %v4726
        %v4728 = vpop.xlane.xlu0 %4727
        %v4729 = vsel %vm2250, %v4723, -inf
        %4730 = vmax.xlane.f32.xlu0 %v4729
        %v4731 = vpop.xlane.xlu0 %4730
        %v4732 = vsub.f32 %v4720, %v4728
        %v4733 = vsub.f32 %v4723, %v4731
        %v4734 = vmul.f32 %v4732, 1.442695
        %v4735 = vpow.pop %v4734
        %v4736 = vmul.f32 %v4733, 1.442695
        %v4737 = vpow.pop %v4736
        %v4738 = vsel %vm2250, %v4735, 0.0
        %4739 = vadd.xlane.f32.xlu0 %v4738
        %v4740 = vpop.xlane.xlu0 %4739
        %v4741 = vsel %vm2250, %v4737, 0.0
        %4742 = vadd.xlane.f32.xlu0 %v4741
        %v4743 = vpop.xlane.xlu0 %4742
        %v4744 = vrcp.pop %v4740
        %v4745 = vrcp.pop %v4743
        %v4746 = vmul.f32 %v4735, %v4744
        %v4747 = vmul.f32 %v4737, %v4745
        %v4748 = vpack.c.bf16 %v4747, %v4746
        %4749 = vrot.lane.b32.xlu0 %v4216, 72
        %v4750 = vpop.permute.xlu0 %4749
        %4751 = vrot.lane.b32.xlu0 %v4217, 72
        %v4752 = vpop.permute.xlu0 %4751
        %4753 = vrot.lane.b32.xlu0 %v4218, 72
        %v4754 = vpop.permute.xlu0 %4753
        %4755 = vrot.lane.b32.xlu0 %v4219, 72
        %v4756 = vpop.permute.xlu0 %4755
        %v4762 = vsel %vm2250, %v4748, 0
        %4764 = vmatprep.subr.bf16.mxu0 0
        %4765 = vmatpush1.bf16.msra.mxu0 %v4750
        %4766 = vmatprep.subr.bf16.mxu0 0
        %4767 = vmatpush1.bf16.msra.mxu0 %v4752
        %4768 = vmatprep.subr.bf16.mxu0 0
        %4769 = vmatpush1.bf16.msra.mxu0 %v4754
        %4770 = vmatprep.subr.bf16.mxu0 0
        %4771 = vmatpush1.bf16.msra.mxu0 %v4756
        %4772 = vmatprep.subr.bf16.mxu0 0
        %4773 = vmatpush1.bf16.msra.mxu0 0
        %4774 = vmatprep.subr.bf16.mxu0 0
        %4775 = vmatpush1.bf16.msra.mxu0 0
        %4776 = vmatprep.subr.bf16.mxu0 0
        %4777 = vmatpush1.bf16.msra.mxu0 0
        %4778 = vmatprep.subr.bf16.mxu0 0
        %4779 = vmatpush1.bf16.msra.mxu0 0
        %4780 = vmatprep.subr.bf16.mxu0 0
        %4781 = vmatpush1.bf16.msra.mxu0 0
        %4782 = vmatprep.subr.bf16.mxu0 0
        %4783 = vmatpush1.bf16.msra.mxu0 0
        %4784 = vmatprep.subr.bf16.mxu0 0
        %4785 = vmatpush1.bf16.msra.mxu0 0
        %4786 = vmatprep.subr.bf16.mxu0 0
        %4787 = vmatpush1.bf16.msra.mxu0 0
        %4788 = vmatprep.subr.bf16.mxu0 0
        %4789 = vmatpush1.bf16.msra.mxu0 0
        %4790 = vmatprep.subr.bf16.mxu0 0
        %4791 = vmatpush1.bf16.msra.mxu0 0
        %4792 = vmatprep.subr.bf16.mxu0 0
        %4793 = vmatpush1.bf16.msra.mxu0 0
        %4794 = vmatprep.subr.bf16.mxu0 0
        %4795 = vmatpush1.bf16.msra.mxu0 0
        %4796 = vmatprep.mubr.bf16.mxu0 0
        %4797 = vmatmul.mubr.bf16.gmra.mrb[0].mxu0 %v4762
        %v4798 = vpop.f32.mrb[0].mxu0
        %v4799 = vadd.f32 0.0, %v4798
        %v4800 = vpop.f32.mrb[0].mxu0
        %v4801 = vpop.f32.mrb[0].mxu0
        %v4802 = vadd.f32 0.0, %v4801
        %v4803 = vpop.f32.mrb[0].mxu0
        %4804 = vdwg.mxu0
        %4807 = vrot.lane.b32.xlu0 %v4509, 8
        %v4808 = vpop.permute.xlu0 %4807
        %4809 = vrot.lane.b32.xlu0 %v4512, 8
        %v4810 = vpop.permute.xlu0 %4809
        %4815 = vrot.lane.b32.xlu0 %v4654, 16
        %v4816 = vpop.permute.xlu0 %4815
        %4817 = vrot.lane.b32.xlu0 %v4657, 16
        %v4818 = vpop.permute.xlu0 %4817
        %4823 = vrot.lane.b32.xlu0 %v4799, 24
        %v4824 = vpop.permute.xlu0 %4823
        %4825 = vrot.lane.b32.xlu0 %v4802, 24
        %v4826 = vpop.permute.xlu0 %4825
        %v4829 = vsel %vm1390, %v4363, %v4808
        %v4830 = vsel %vm1390, %v4366, %v4810
        %v4831 = vsel %vm1438, %v4829, %v4816
        %v4832 = vsel %vm1438, %v4830, %v4818
        %v4833 = vsel %vm1899, %v4831, %v4824
        %v4834 = vsel %vm1899, %v4832, %v4826
        %v4835 = vpack.c.bf16 %v4834, %v4833
        %v4837 = vlaneseq
        %v4838 = vshrl.u32 %v4837, 7
        %v4839 = vsub.s32 0, %v4838
        %v4840 = vrot.slane %v4226, %v4839
        %v4846 = vunpack.c.l.b16 %v4221
        %v4847 = vunpack.c.l.b16 %v4222
        %v4848 = vunpack.c.l.b16 %v4223
        %v4849 = vunpack.c.l.b16 %v4224
        %v4850 = vpack.c.b16 %v4847, %v4846
        %v4851 = vpack.c.b16 %v4849, %v4848
        %v4855 = vsel %vm1264, %v4835, 0
        %4857 = vmatprep.subr.bf16.mxu0 0
        %4858 = vmatpush1.bf16.msra.mxu0 %v4850
        %4859 = vmatprep.subr.bf16.mxu0 0
        %4860 = vmatpush1.bf16.msra.mxu0 %v4851
        %4861 = vmatprep.subr.bf16.mxu0 0
        %4862 = vmatpush1.bf16.msra.mxu0 0
        %4863 = vmatprep.subr.bf16.mxu0 0
        %4864 = vmatpush1.bf16.msra.mxu0 0
        %4865 = vmatprep.subr.bf16.mxu0 0
        %4866 = vmatpush1.bf16.msra.mxu0 0
        %4867 = vmatprep.subr.bf16.mxu0 0
        %4868 = vmatpush1.bf16.msra.mxu0 0
        %4869 = vmatprep.subr.bf16.mxu0 0
        %4870 = vmatpush1.bf16.msra.mxu0 0
        %4871 = vmatprep.subr.bf16.mxu0 0
        %4872 = vmatpush1.bf16.msra.mxu0 0
        %4873 = vmatprep.subr.bf16.mxu0 0
        %4874 = vmatpush1.bf16.msra.mxu0 0
        %4875 = vmatprep.subr.bf16.mxu0 0
        %4876 = vmatpush1.bf16.msra.mxu0 0
        %4877 = vmatprep.subr.bf16.mxu0 0
        %4878 = vmatpush1.bf16.msra.mxu0 0
        %4879 = vmatprep.subr.bf16.mxu0 0
        %4880 = vmatpush1.bf16.msra.mxu0 0
        %4881 = vmatprep.subr.bf16.mxu0 0
        %4882 = vmatpush1.bf16.msra.mxu0 0
        %4883 = vmatprep.subr.bf16.mxu0 0
        %4884 = vmatpush1.bf16.msra.mxu0 0
        %4885 = vmatprep.subr.bf16.mxu0 0
        %4886 = vmatpush1.bf16.msra.mxu0 0
        %4887 = vmatprep.subr.bf16.mxu0 0
        %4888 = vmatpush1.bf16.msra.mxu0 0
        %4889 = vmatprep.mubr.bf16.mxu0 0
        %4890 = vmatmul.mubr.bf16.gmra.mrb[0].mxu0 %v4855
        %v4891 = vpop.f32.mrb[0].mxu0
        %v4892 = vadd.f32 %v4840, %v4891
        %v4893 = vpop.f32.mrb[0].mxu0
        %v4894 = vpop.f32.mrb[0].mxu0
        %v4895 = vadd.f32 %v4840, %v4894
        %v4896 = vpop.f32.mrb[0].mxu0
        %4897 = vdwg.mxu0
        %v4898 = vadd.f32 %v4892, %v4052
        %v4899 = vadd.f32 %v4895, %v4053
        %s4900 = scalar_lea.vmem [#allocation10], 1
        %v4901 = vld [vmem:[%s4900] sm:$0x1]
        %s4902 = scalar_lea.vmem [#allocation12], 1
        %v4903 = vld [vmem:[%s4902] sm:$0x1]
        %v4904 = vsel %vm1264, %v4898, 0.0
        %4905 = vadd.xlane.f32.xlu0 %v4904
        %v4906 = vpop.xlane.xlu0 %4905
        %v4907 = vsel %vm1264, %v4899, 0.0
        %4908 = vadd.xlane.f32.xlu0 %v4907
        %v4909 = vpop.xlane.xlu0 %4908
        %v4910 = vmul.f32 %v4906, %v1975
        %v4911 = vmul.f32 %v4909, %v1975
        %v4912 = vsub.f32 %v4898, %v4910
        %v4913 = vsub.f32 %v4899, %v4911
        %v4914 = vmul.f32 %v4912, %v4912
        %v4915 = vmul.f32 %v4913, %v4913
        %v4916 = vsel %vm1264, %v4914, 0.0
        %4917 = vadd.xlane.f32.xlu0 %v4916
        %v4918 = vpop.xlane.xlu0 %4917
        %v4919 = vsel %vm1264, %v4915, 0.0
        %4920 = vadd.xlane.f32.xlu0 %v4919
        %v4921 = vpop.xlane.xlu0 %4920
        %v4922 = vmul.f32 %v4918, %v1975
        %v4923 = vmul.f32 %v4921, %v1975
        %v4924 = vadd.f32 %v4922, 1e-05
        %v4925 = vadd.f32 %v4923, 1e-05
        %v4926 = vrsqrt.pop %v4924
        %v4927 = vrsqrt.pop %v4925
        %v4928 = vmul.f32 %v4912, %v4926
        %v4929 = vmul.f32 %v4913, %v4927
        %v4931 = vlaneseq
        %v4932 = vshrl.u32 %v4931, 7
        %v4933 = vsub.s32 0, %v4932
        %v4934 = vrot.slane %v4901, %v4933
        %v4936 = vmul.f32 %v4928, %v4934
        %v4937 = vmul.f32 %v4929, %v4934
        %v4939 = vlaneseq
        %v4940 = vshrl.u32 %v4939, 7
        %v4941 = vsub.s32 0, %v4940
        %v4942 = vrot.slane %v4903, %v4941
        %v4944 = vadd.f32 %v4936, %v4942
        %v4945 = vadd.f32 %v4937, %v4942
        %s4946 = scalar_lea.vmem %s41, 16
        %v4947 = vld [vmem:[%s4946] sm:$0xf]
        %v4948 = vld [vmem:[%s4946 + $0x4] sm:$0xf]
        %v4949 = vld [vmem:[%s4946 + $0x8] sm:$0xf]
        %v4950 = vld [vmem:[%s4946 + $0xc] sm:$0xf]
        %s4951 = scalar_lea.vmem [#allocation13], 1
        %v4952 = vld [vmem:[%s4951] sm:$0x1]
        %v4953 = vpack.c.bf16 %v4945, %v4944
        %v4955 = vlaneseq
        %v4956 = vshrl.u32 %v4955, 7
        %v4957 = vsub.s32 0, %v4956
        %v4958 = vrot.slane %v4952, %v4957
        %v4964 = vunpack.c.l.b16 %v4947
        %v4965 = vunpack.c.l.b16 %v4948
        %v4966 = vunpack.c.l.b16 %v4949
        %v4967 = vunpack.c.l.b16 %v4950
        %v4968 = vpack.c.b16 %v4965, %v4964
        %v4969 = vpack.c.b16 %v4967, %v4966
        %v4973 = vsel %vm1264, %v4953, 0
        %4975 = vmatprep.subr.bf16.mxu0 0
        %4976 = vmatpush1.bf16.msra.mxu0 %v4968
        %4977 = vmatprep.subr.bf16.mxu0 0
        %4978 = vmatpush1.bf16.msra.mxu0 %v4969
        %4979 = vmatprep.subr.bf16.mxu0 0
        %4980 = vmatpush1.bf16.msra.mxu0 0
        %4981 = vmatprep.subr.bf16.mxu0 0
        %4982 = vmatpush1.bf16.msra.mxu0 0
        %4983 = vmatprep.subr.bf16.mxu0 0
        %4984 = vmatpush1.bf16.msra.mxu0 0
        %4985 = vmatprep.subr.bf16.mxu0 0
        %4986 = vmatpush1.bf16.msra.mxu0 0
        %4987 = vmatprep.subr.bf16.mxu0 0
        %4988 = vmatpush1.bf16.msra.mxu0 0
        %4989 = vmatprep.subr.bf16.mxu0 0
        %4990 = vmatpush1.bf16.msra.mxu0 0
        %4991 = vmatprep.subr.bf16.mxu0 0
        %4992 = vmatpush1.bf16.msra.mxu0 0
        %4993 = vmatprep.subr.bf16.mxu0 0
        %4994 = vmatpush1.bf16.msra.mxu0 0
        %4995 = vmatprep.subr.bf16.mxu0 0
        %4996 = vmatpush1.bf16.msra.mxu0 0
        %4997 = vmatprep.subr.bf16.mxu0 0
        %4998 = vmatpush1.bf16.msra.mxu0 0
        %4999 = vmatprep.subr.bf16.mxu0 0
        %5000 = vmatpush1.bf16.msra.mxu0 0
        %5001 = vmatprep.subr.bf16.mxu0 0
        %5002 = vmatpush1.bf16.msra.mxu0 0
        %5003 = vmatprep.subr.bf16.mxu0 0
        %5004 = vmatpush1.bf16.msra.mxu0 0
        %5005 = vmatprep.subr.bf16.mxu0 0
        %5006 = vmatpush1.bf16.msra.mxu0 0
        %5007 = vmatprep.mubr.bf16.mxu0 0
        %5008 = vmatmul.mubr.bf16.gmra.mrb[0].mxu0 %v4973
        %v5009 = vpop.f32.mrb[0].mxu0
        %v5010 = vadd.f32 %v4958, %v5009
        %v5011 = vpop.f32.mrb[0].mxu0
        %v5012 = vpop.f32.mrb[0].mxu0
        %v5013 = vadd.f32 %v4958, %v5012
        %v5014 = vpop.f32.mrb[0].mxu0
        %5015 = vdwg.mxu0
        %v5016 = vmax.f32 %v5010, 0.0
        %v5017 = vmax.f32 %v5013, 0.0
        %s5018 = scalar_lea.vmem %s45, 32
        %v5019 = vld [vmem:[%s5018] sm:$0xf]
        %v5020 = vld [vmem:[%s5018 + $0x4] sm:$0xf]
        %v5021 = vld [vmem:[%s5018 + $0x8] sm:$0xf]
        %v5022 = vld [vmem:[%s5018 + $0xc] sm:$0xf]
        %v5023 = vld [vmem:[%s5018 + $0x10] sm:$0xf]
        %v5024 = vld [vmem:[%s5018 + $0x14] sm:$0xf]
        %v5025 = vld [vmem:[%s5018 + $0x18] sm:$0xf]
        %v5026 = vld [vmem:[%s5018 + $0x1c] sm:$0xf]
        %s5027 = scalar_lea.vmem [#allocation15], 1
        %v5028 = vld [vmem:[%s5027] sm:$0x1]
        %v5029 = vpack.c.bf16 %v5017, %v5016
        %v5031 = vlaneseq
        %v5032 = vshrl.u32 %v5031, 7
        %v5033 = vsub.s32 0, %v5032
        %v5034 = vrot.slane %v5028, %v5033
        %v5044 = vunpack.c.l.b16 %v5019
        %v5045 = vunpack.c.l.b16 %v5020
        %v5046 = vunpack.c.l.b16 %v5021
        %v5047 = vunpack.c.l.b16 %v5022
        %v5048 = vunpack.c.l.b16 %v5023
        %v5049 = vunpack.c.l.b16 %v5024
        %v5050 = vunpack.c.l.b16 %v5025
        %v5051 = vunpack.c.l.b16 %v5026
        %v5052 = vpack.c.b16 %v5045, %v5044
        %v5053 = vpack.c.b16 %v5047, %v5046
        %v5054 = vpack.c.b16 %v5049, %v5048
        %v5055 = vpack.c.b16 %v5051, %v5050
        %v5061 = vsel %vm2250, %v5029, 0
        %5063 = vmatprep.subr.bf16.mxu0 0
        %5064 = vmatpush1.bf16.msra.mxu0 %v5052
        %5065 = vmatprep.subr.bf16.mxu0 0
        %5066 = vmatpush1.bf16.msra.mxu0 %v5053
        %5067 = vmatprep.subr.bf16.mxu0 0
        %5068 = vmatpush1.bf16.msra.mxu0 %v5054
        %5069 = vmatprep.subr.bf16.mxu0 0
        %5070 = vmatpush1.bf16.msra.mxu0 %v5055
        %5071 = vmatprep.subr.bf16.mxu0 0
        %5072 = vmatpush1.bf16.msra.mxu0 0
        %5073 = vmatprep.subr.bf16.mxu0 0
        %5074 = vmatpush1.bf16.msra.mxu0 0
        %5075 = vmatprep.subr.bf16.mxu0 0
        %5076 = vmatpush1.bf16.msra.mxu0 0
        %5077 = vmatprep.subr.bf16.mxu0 0
        %5078 = vmatpush1.bf16.msra.mxu0 0
        %5079 = vmatprep.subr.bf16.mxu0 0
        %5080 = vmatpush1.bf16.msra.mxu0 0
        %5081 = vmatprep.subr.bf16.mxu0 0
        %5082 = vmatpush1.bf16.msra.mxu0 0
        %5083 = vmatprep.subr.bf16.mxu0 0
        %5084 = vmatpush1.bf16.msra.mxu0 0
        %5085 = vmatprep.subr.bf16.mxu0 0
        %5086 = vmatpush1.bf16.msra.mxu0 0
        %5087 = vmatprep.subr.bf16.mxu0 0
        %5088 = vmatpush1.bf16.msra.mxu0 0
        %5089 = vmatprep.subr.bf16.mxu0 0
        %5090 = vmatpush1.bf16.msra.mxu0 0
        %5091 = vmatprep.subr.bf16.mxu0 0
        %5092 = vmatpush1.bf16.msra.mxu0 0
        %5093 = vmatprep.subr.bf16.mxu0 0
        %5094 = vmatpush1.bf16.msra.mxu0 0
        %5095 = vmatprep.mubr.bf16.mxu0 0
        %5096 = vmatmul.mubr.bf16.gmra.mrb[0].mxu0 %v5061
        %v5097 = vpop.f32.mrb[0].mxu0
        %v5098 = vadd.f32 %v5034, %v5097
        %v5099 = vpop.f32.mrb[0].mxu0
        %v5100 = vpop.f32.mrb[0].mxu0
        %v5101 = vadd.f32 %v5034, %v5100
        %v5102 = vpop.f32.mrb[0].mxu0
        %5103 = vdwg.mxu0
        %v5104 = vadd.f32 %v5098, %v4944
        %v5105 = vadd.f32 %v5101, %v4945
        %s5106 = scalar_lea.vmem [#allocation16], 1
        %v5107 = vld [vmem:[%s5106] sm:$0x1]
        %s5108 = scalar_lea.vmem [#allocation18], 1
        %v5109 = vld [vmem:[%s5108] sm:$0x1]
        %v5110 = vsel %vm1264, %v5104, 0.0
        %5111 = vadd.xlane.f32.xlu0 %v5110
        %v5112 = vpop.xlane.xlu0 %5111
        %v5113 = vsel %vm1264, %v5105, 0.0
        %5114 = vadd.xlane.f32.xlu0 %v5113
        %v5115 = vpop.xlane.xlu0 %5114
        %v5116 = vmul.f32 %v5112, %v1975
        %v5117 = vmul.f32 %v5115, %v1975
        %v5118 = vsub.f32 %v5104, %v5116
        %v5119 = vsub.f32 %v5105, %v5117
        %v5120 = vmul.f32 %v5118, %v5118
        %v5121 = vmul.f32 %v5119, %v5119
        %v5122 = vsel %vm1264, %v5120, 0.0
        %5123 = vadd.xlane.f32.xlu0 %v5122
        %v5124 = vpop.xlane.xlu0 %5123
        %v5125 = vsel %vm1264, %v5121, 0.0
        %5126 = vadd.xlane.f32.xlu0 %v5125
        %v5127 = vpop.xlane.xlu0 %5126
        %v5128 = vmul.f32 %v5124, %v1975
        %v5129 = vmul.f32 %v5127, %v1975
        %v5130 = vadd.f32 %v5128, 1e-05
        %v5131 = vadd.f32 %v5129, 1e-05
        %v5132 = vrsqrt.pop %v5130
        %v5133 = vrsqrt.pop %v5131
        %v5134 = vmul.f32 %v5118, %v5132
        %v5135 = vmul.f32 %v5119, %v5133
        %v5137 = vlaneseq
        %v5138 = vshrl.u32 %v5137, 7
        %v5139 = vsub.s32 0, %v5138
        %v5140 = vrot.slane %v5107, %v5139
        %v5142 = vmul.f32 %v5134, %v5140
        %v5143 = vmul.f32 %v5135, %v5140
        %v5145 = vlaneseq
        %v5146 = vshrl.u32 %v5145, 7
        %v5147 = vsub.s32 0, %v5146
        %v5148 = vrot.slane %v5109, %v5147
        %v5150 = vadd.f32 %v5142, %v5148
        %v5151 = vadd.f32 %v5143, %v5148
        %s5152 = scalar_lea.vmem %s53, 16
        %v5153 = vld [vmem:[%s5152] sm:$0xf]
        %v5154 = vld [vmem:[%s5152 + $0x4] sm:$0xf]
        %v5155 = vld [vmem:[%s5152 + $0x8] sm:$0xf]
        %v5156 = vld [vmem:[%s5152 + $0xc] sm:$0xf]
        %s5157 = scalar_lea.vmem [#allocation19], 1
        %v5158 = vld [vmem:[%s5157] sm:$0x1]
        %v5159 = vpack.c.bf16 %v5151, %v5150
        %v5161 = vlaneseq
        %v5162 = vshrl.u32 %v5161, 7
        %v5163 = vsub.s32 0, %v5162
        %v5164 = vrot.slane %v5158, %v5163
        %v5170 = vunpack.c.l.b16 %v5153
        %v5171 = vunpack.c.l.b16 %v5154
        %v5172 = vunpack.c.l.b16 %v5155
        %v5173 = vunpack.c.l.b16 %v5156
        %v5174 = vpack.c.b16 %v5171, %v5170
        %v5175 = vpack.c.b16 %v5173, %v5172
        %v5179 = vsel %vm1264, %v5159, 0
        %5181 = vmatprep.subr.bf16.mxu0 0
        %5182 = vmatpush1.bf16.msra.mxu0 %v5174
        %5183 = vmatprep.subr.bf16.mxu0 0
        %5184 = vmatpush1.bf16.msra.mxu0 %v5175
        %5185 = vmatprep.subr.bf16.mxu0 0
        %5186 = vmatpush1.bf16.msra.mxu0 0
        %5187 = vmatprep.subr.bf16.mxu0 0
        %5188 = vmatpush1.bf16.msra.mxu0 0
        %5189 = vmatprep.subr.bf16.mxu0 0
        %5190 = vmatpush1.bf16.msra.mxu0 0
        %5191 = vmatprep.subr.bf16.mxu0 0
        %5192 = vmatpush1.bf16.msra.mxu0 0
        %5193 = vmatprep.subr.bf16.mxu0 0
        %5194 = vmatpush1.bf16.msra.mxu0 0
        %5195 = vmatprep.subr.bf16.mxu0 0
        %5196 = vmatpush1.bf16.msra.mxu0 0
        %5197 = vmatprep.subr.bf16.mxu0 0
        %5198 = vmatpush1.bf16.msra.mxu0 0
        %5199 = vmatprep.subr.bf16.mxu0 0
        %5200 = vmatpush1.bf16.msra.mxu0 0
        %5201 = vmatprep.subr.bf16.mxu0 0
        %5202 = vmatpush1.bf16.msra.mxu0 0
        %5203 = vmatprep.subr.bf16.mxu0 0
        %5204 = vmatpush1.bf16.msra.mxu0 0
        %5205 = vmatprep.subr.bf16.mxu0 0
        %5206 = vmatpush1.bf16.msra.mxu0 0
        %5207 = vmatprep.subr.bf16.mxu0 0
        %5208 = vmatpush1.bf16.msra.mxu0 0
        %5209 = vmatprep.subr.bf16.mxu0 0
        %5210 = vmatpush1.bf16.msra.mxu0 0
        %5211 = vmatprep.subr.bf16.mxu0 0
        %5212 = vmatpush1.bf16.msra.mxu0 0
        %5213 = vmatprep.mubr.bf16.mxu0 0
        %5214 = vmatmul.mubr.bf16.gmra.mrb[0].mxu0 %v5179
        %v5215 = vpop.f32.mrb[0].mxu0
        %v5216 = vadd.f32 %v5164, %v5215
        %v5217 = vpop.f32.mrb[0].mxu0
        %v5218 = vpop.f32.mrb[0].mxu0
        %v5219 = vadd.f32 %v5164, %v5218
        %v5220 = vpop.f32.mrb[0].mxu0
        %5221 = vdwg.mxu0
        %v5222 = vmax.f32 %v5216, 0.0
        %v5223 = vmax.f32 %v5219, 0.0
        %s5224 = scalar_lea.vmem %s57, 16
        %v5225 = vld [vmem:[%s5224] sm:$0xf]
        %v5226 = vld [vmem:[%s5224 + $0x4] sm:$0xf]
        %v5227 = vld [vmem:[%s5224 + $0x8] sm:$0xf]
        %v5228 = vld [vmem:[%s5224 + $0xc] sm:$0xf]
        %s5229 = scalar_lea.vmem [#allocation21], 1
        %v5230 = vld [vmem:[%s5229] sm:$0x1]
        %v5231 = vpack.c.bf16 %v5223, %v5222
        %v5233 = vlaneseq
        %v5234 = vshrl.u32 %v5233, 7
        %v5235 = vsub.s32 0, %v5234
        %v5236 = vrot.slane %v5230, %v5235
        %v5242 = vunpack.c.l.b16 %v5225
        %v5243 = vunpack.c.l.b16 %v5226
        %v5244 = vunpack.c.l.b16 %v5227
        %v5245 = vunpack.c.l.b16 %v5228
        %v5246 = vpack.c.b16 %v5243, %v5242
        %v5247 = vpack.c.b16 %v5245, %v5244
        %v5251 = vsel %vm1264, %v5231, 0
        %5253 = vmatprep.subr.bf16.mxu0 0
        %5254 = vmatpush1.bf16.msra.mxu0 %v5246
        %5255 = vmatprep.subr.bf16.mxu0 0
        %5256 = vmatpush1.bf16.msra.mxu0 %v5247
        %5257 = vmatprep.subr.bf16.mxu0 0
        %5258 = vmatpush1.bf16.msra.mxu0 0
        %5259 = vmatprep.subr.bf16.mxu0 0
        %5260 = vmatpush1.bf16.msra.mxu0 0
        %5261 = vmatprep.subr.bf16.mxu0 0
        %5262 = vmatpush1.bf16.msra.mxu0 0
        %5263 = vmatprep.subr.bf16.mxu0 0
        %5264 = vmatpush1.bf16.msra.mxu0 0
        %5265 = vmatprep.subr.bf16.mxu0 0
        %5266 = vmatpush1.bf16.msra.mxu0 0
        %5267 = vmatprep.subr.bf16.mxu0 0
        %5268 = vmatpush1.bf16.msra.mxu0 0
        %5269 = vmatprep.subr.bf16.mxu0 0
        %5270 = vmatpush1.bf16.msra.mxu0 0
        %5271 = vmatprep.subr.bf16.mxu0 0
        %5272 = vmatpush1.bf16.msra.mxu0 0
        %5273 = vmatprep.subr.bf16.mxu0 0
        %5274 = vmatpush1.bf16.msra.mxu0 0
        %5275 = vmatprep.subr.bf16.mxu0 0
        %5276 = vmatpush1.bf16.msra.mxu0 0
        %5277 = vmatprep.subr.bf16.mxu0 0
        %5278 = vmatpush1.bf16.msra.mxu0 0
        %5279 = vmatprep.subr.bf16.mxu0 0
        %5280 = vmatpush1.bf16.msra.mxu0 0
        %5281 = vmatprep.subr.bf16.mxu0 0
        %5282 = vmatpush1.bf16.msra.mxu0 0
        %5283 = vmatprep.subr.bf16.mxu0 0
        %5284 = vmatpush1.bf16.msra.mxu0 0
        %5285 = vmatprep.mubr.bf16.mxu0 0
        %5286 = vmatmul.mubr.bf16.gmra.mrb[0].mxu0 %v5251
        %v5287 = vpop.f32.mrb[0].mxu0
        %v5288 = vadd.f32 %v5236, %v5287
        %v5289 = vpop.f32.mrb[0].mxu0
        %v5290 = vpop.f32.mrb[0].mxu0
        %v5291 = vadd.f32 %v5236, %v5290
        %v5292 = vpop.f32.mrb[0].mxu0
        %5293 = vdwg.mxu0
        %v5294 = vmax.f32 %v3278, 0.0
        %v5295 = vmax.f32 %v3280, 0.0
        %v5296 = vmin.f32 %v5294, 1.0
        %v5297 = vmin.f32 %v5295, 1.0
        %v5298 = vmax.f32 %v5296, 1e-05
        %v5299 = vmax.f32 %v5297, 1e-05
        %v5300 = vlog2.pop %v5298
        %v5301 = vmul.f32 %v5300, 0.6931472
        %v5302 = vlog2.pop %v5299
        %v5303 = vmul.f32 %v5302, 0.6931472
        %v5304 = vsub.f32 1.0, %v5296
        %v5305 = vsub.f32 1.0, %v5297
        %v5306 = vmax.f32 %v5304, 1e-05
        %v5307 = vmax.f32 %v5305, 1e-05
        %v5308 = vlog2.pop %v5306
        %v5309 = vmul.f32 %v5308, 0.6931472
        %v5310 = vlog2.pop %v5307
        %v5311 = vmul.f32 %v5310, 0.6931472
        %v5312 = vsub.f32 %v5301, %v5309
        %v5313 = vsub.f32 %v5303, %v5311
        %v5314 = vadd.f32 %v5288, %v5312
        %v5315 = vadd.f32 %v5291, %v5313
        %v5316 = vsub.f32 0.0, %v5314
        %v5317 = vsub.f32 0.0, %v5315
        %v5318 = vmul.f32 %v5316, 1.442695
        %v5319 = vpow.pop %v5318
        %v5320 = vmul.f32 %v5317, 1.442695
        %v5321 = vpow.pop %v5320
        %v5322 = vadd.f32 %v5319, 1.0
        %v5323 = vadd.f32 %v5321, 1.0
        %v5324 = vrcp.pop %v5322
        %v5325 = vmul.f32 1.0, %v5324
        %v5326 = vrcp.pop %v5323
        %v5327 = vmul.f32 1.0, %v5326
        %v5329 = vrot.slane %v5150, 4
        %5330 = vrot.lane.b32.xlu0 %v5329, 32
        %v5331 = vpop.permute.xlu0 %5330
        %5334 = vrot.lane.b32.xlu0 %v5151, 64
        %v5335 = vpop.permute.xlu0 %5334
        %v5337 = vrot.slane %v5151, 4
        %5338 = vrot.lane.b32.xlu0 %v5337, 96
        %v5339 = vpop.permute.xlu0 %5338
        %v5341 = vsel %vm1264, %v5150, %v5331
        %v5342 = vsel %vm2250, %v5341, %v5335
        %vm5343 = vcmask 785408
        %v5344 = vsel %vm5343, %v5342, %v5339
        %5345 = vst [vmem:[%s1213] sm:$0xf] %v5344
        %vm5346 = vcmask 23552
        %5347 = vst.msk [vmem:[%s1218] sm:$0xff] %vm5346, %v5325
        %5348 = vst.msk [vmem:[%s1218 + $0x8] sm:$0xff] %vm5346, %v5327
        %p5349 = scmp.lt.s32.totalorder %s82, 1
        %s5350 = scalar_select %p5349, %s82, 1
        %s5351 = smul.addr %s5350, 4
        %s5352 = scalar_lea.vmem %s61, %s5351
        %p5353 = scmp.lt.s32.totalorder %s82, 1
        %s5354 = scalar_select %p5353, %s82, 1
        %s5355 = smul.addr %s5354, 2
        %s5356 = smul.addr %s5355, 8
        %s5357 = scalar_lea.vmem %s63, %s5356
        // Predicated region
        $region193: #{_mvp_decoder_forward.1} parent=139 // pred_check
          %p5358 = pneg %p750
        $region194: #{_mvp_decoder_forward.1} parent=139 // pred_check_branch
          %5360 = sbr.rel (%p5358) target = $region196
        $region195: #{_mvp_decoder_forward.1} parent=139 // pred_region
          _
        $region196: #{_mvp_decoder_forward.1} parent=139 // pred_fallthru
          _
        // Predicated region
        $region197: #{_mvp_decoder_forward.1} parent=139 // pred_check
          %p5361 = pneg %p776
        $region198: #{_mvp_decoder_forward.1} parent=139 // pred_check_branch
          %5363 = sbr.rel (%p5361) target = $region200
        $region199: #{_mvp_decoder_forward.1} parent=139 // pred_region
          _
        $region200: #{_mvp_decoder_forward.1} parent=139 // pred_fallthru
          _
      $region140: #{_mvp_decoder_forward.1} parent=5 // pred_fallthru
        _
      %p5364 = scmp.le.s32.totalorder 2, %s77
      // Predicated region
      $region201: #{_mvp_decoder_forward.1} parent=5 // pred_check
        %p5365 = pneg %p5364
      $region202: #{_mvp_decoder_forward.1} parent=5 // pred_check_branch
        %5367 = sbr.rel (%p5365) target = $region204
      $region203: #{_mvp_decoder_forward.1} parent=5 // pred_region
        %s5368 = ssub.s32 %s77, 2
        // Predicated region
        $region205: #{_mvp_decoder_forward.1} parent=203 // pred_check
          %p5369 = pneg %p756
        $region206: #{_mvp_decoder_forward.1} parent=203 // pred_check_branch
          %5371 = sbr.rel (%p5369) target = $region208
        $region207: #{_mvp_decoder_forward.1} parent=203 // pred_region
          %p5372 = scmp.lt.s32.totalorder %s83, 1
          %s5373 = scalar_select %p5372, %s83, 1
          %s5374 = smul.addr %s5373, 4
          %s5375 = scalar_lea.vmem %s61, %s5374
        $region208: #{_mvp_decoder_forward.1} parent=203 // pred_fallthru
          _
        // Predicated region
        $region209: #{_mvp_decoder_forward.1} parent=203 // pred_check
          %p5376 = pneg %p782
        $region210: #{_mvp_decoder_forward.1} parent=203 // pred_check_branch
          %5378 = sbr.rel (%p5376) target = $region212
        $region211: #{_mvp_decoder_forward.1} parent=203 // pred_region
          %p5379 = scmp.lt.s32.totalorder %s83, 1
          %s5380 = scalar_select %p5379, %s83, 1
          %s5381 = smul.addr %s5380, 2
          %s5382 = smul.addr %s5381, 8
          %s5383 = scalar_lea.vmem %s63, %s5382
        $region212: #{_mvp_decoder_forward.1} parent=203 // pred_fallthru
          _
      $region204: #{_mvp_decoder_forward.1} parent=5 // pred_fallthru
        _
    $region6: #{_mvp_decoder_forward.1} parent=1 // loop_footer
      %s81 = sadd.s32 1, %s77
    $region7: #{_mvp_decoder_forward.1} parent=1 // loop_footer_branch
      %76 = sbr.rel target = $region3
    $region8: #{_mvp_decoder_forward.1} parent=1 // loop_exit
      _
    %5384 = vsyncpa [#allocation3], 1
    %s5385 = scalar_lea.sflag [#allocation3], 1
    %5386 = vsyncpa %s5385, 1
    %5387 = vsyncpa [#allocation5], 1
    %5388 = vsyncpa [#allocation8], 1
    %5389 = vsyncpa [#allocation11], 1
    %5390 = vsyncpa [#allocation14], 1
    %5391 = vsyncpa [#allocation17], 1
    %5392 = vsyncpa [#allocation20], 1

</llo_original>
